<compile_context>
chip_gen: v7x
topology: tpu7x:2x2x1
jax: 0.10.0
libtpu: 0.0.40
codegen_flags: <defaults>
</compile_context>

<pallas_src>
import functools
import math

import jax
import jax.numpy as jnp
import numpy as np
from jax.experimental import pallas as pl
from jax.experimental.pallas import tpu as pltpu

_PREC = jax.lax.Precision.HIGHEST   # fp32 MXU contraction (kernel + reference)


# -----------------------------------------------------------------------------
# helpers (plain JAX glue)
# -----------------------------------------------------------------------------
def get_padding_size(oi, s, k, d):
    return math.ceil(0.5 * ((oi - 1) * s - oi + k + (k - 1) * (d - 1)))


def swish(x):
    return x * jax.nn.sigmoid(x)


def xavier_uniform(key, shape, fan_in, fan_out):
    bound = math.sqrt(6.0 / (fan_in + fan_out))
    return jax.random.uniform(key, shape, jnp.float32, -bound, bound)


def init_conv(key, cout, cin_per_group, k):
    kw, kb = jax.random.split(key)
    w = xavier_uniform(kw, (cout, cin_per_group, k), cin_per_group * k, cout * k)
    b = jax.random.uniform(kb, (cout,), jnp.float32, -0.1, 0.1)
    return w, b


def default_bn(c):
    # gamma, beta, running_mean, running_var (PyTorch eval-mode defaults)
    return jnp.ones((c,)), jnp.zeros((c,)), jnp.zeros((c,)), jnp.ones((c,))


def fold_bn(bias, gamma, beta, mean, var, eps=1e-5):
    """Fold conv bias + eval-mode BatchNorm into per-channel scale/shift."""
    scale = gamma / jnp.sqrt(var + eps)
    shift = beta + (bias - mean) * scale
    return scale[:, None].astype(jnp.float32), shift[:, None].astype(jnp.float32)


def expand_grouped(w, groups):
    """Expand a grouped conv weight (Cout, Cin//g, K) into dense (Cout, Cin, K).

    Only used for the groups < exp_ch case; the depthwise (groups == exp_ch)
    path uses a diagonal VPU MAC instead.
    TODO(synk): for bf16/fp8 weights prefer per-group block matmuls so the zero
    blocks never enter the MXU accumulate.
    """
    oc, icg, k = w.shape
    ic = icg * groups
    ocg = oc // groups
    wd = jnp.zeros((oc, ic, k), w.dtype)
    for g in range(groups):
        wd = wd.at[g * ocg:(g + 1) * ocg, g * icg:(g + 1) * icg, :].set(
            w[g * ocg:(g + 1) * ocg])
    return wd


# -----------------------------------------------------------------------------
# fused Pallas kernel (all layers, one grid step per batch chunk)
# -----------------------------------------------------------------------------
def make_fused_tcn_kernel(meta, bc):
    """meta: static per-layer geometry; bc: batch elements per grid step."""
    m0 = meta[0]
    k0, d0 = m0["k"], m0["d"]
    Le, Lo, Lh = m0["Le"], m0["Lo"], m0["Lh"]
    n_t = len(meta) - 1                      # number of temporal blocks
    n_in = 5 + 9 * n_t

    def kernel(*refs):
        in_refs = refs[:n_in]
        out_ref = refs[n_in]
        scratch = refs[n_in + 1:]            # [pad_t, acc_t] per temporal block

        # ------------------- layer 0: CNNMax -------------------
        xe_ref, xo_ref, w0_ref, sc0_ref, sh0_ref = in_refs[:5]
        xe = xe_ref[0].astype(jnp.float32)   # (1, bc*Le)  even input positions
        xo = xo_ref[0].astype(jnp.float32)   # (1, bc*Lo)  odd input positions
        w0 = w0_ref[...].astype(jnp.float32) # (C1, k0)
        sc0 = sc0_ref[...]
        sh0 = sh0_ref[...]
        C1 = w0.shape[0]

        if n_t > 0:
            m1 = meta[1]
            dst0 = scratch[0]                            # (C1, bc*Lp1)
            dst0[...] = jnp.zeros_like(dst0)             # zero pad columns
            dst_pad, dst_Lp = m1["pad"], m1["Lp"]

        for b in range(bc):
            acc_e = jnp.zeros((C1, Lh), jnp.float32)
            acc_o = jnp.zeros((C1, Lh), jnp.float32)
            for j in range(k0):                          # conv taps on the VPU
                q = j * d0
                if q % 2 == 0:
                    se = xe[:, b * Le + q // 2: b * Le + q // 2 + Lh]
                    so = xo[:, b * Lo + q // 2: b * Lo + q // 2 + Lh]
                else:
                    se = xo[:, b * Lo + (q - 1) // 2: b * Lo + (q - 1) // 2 + Lh]
                    so = xe[:, b * Le + (q + 1) // 2: b * Le + (q + 1) // 2 + Lh]
                wj = w0[:, j:j + 1]                      # (C1, 1)
                acc_e = acc_e + wj * se
                acc_o = acc_o + wj * so
            z_e = acc_e * sc0 + sh0
            z_o = acc_o * sc0 + sh0
            # MaxPool(2,2) after Swish == max of even/odd-position activations.
            pooled = jnp.maximum(z_e * jax.nn.sigmoid(z_e),
                                 z_o * jax.nn.sigmoid(z_o))        # (C1, Lh)
            if n_t > 0:
                dst0[:, b * dst_Lp + dst_pad: b * dst_Lp + dst_pad + Lh] = pooled
            else:
                out_ref[0, :, b * Lh: (b + 1) * Lh] = pooled.astype(out_ref.dtype)

        # ------------------- temporal blocks -------------------
        ri = 5
        for t, m in enumerate(meta[1:]):
            (w1_ref, s1_ref, b1_ref, w2_ref, s2_ref, b2_ref,
             w3_ref, s3_ref, b3_ref) = in_refs[ri:ri + 9]
            ri += 9
            pad_ref = scratch[2 * t]                     # (Cin, bc*Lp) padded input
            acc_ref = scratch[2 * t + 1]                 # (exp, bc*Lout)
            k, d, pad = m["k"], m["d"], m["pad"]
            L, Lp, Lout = m["Lin"], m["Lp"], m["Lout"]

            hp = pad_ref[...]                            # (Cin, bc*Lp)

            # 1x1 expansion conv + BN + Swish  (wide, batch-packed MXU matmul)
            z1 = jnp.dot(w1_ref[...], hp,
                         preferred_element_type=jnp.float32, precision=_PREC)
            z1 = z1 * s1_ref[...] + b1_ref[...]
            h1 = z1 * jax.nn.sigmoid(z1)                 # (exp, bc*Lp)
            exp_ch = h1.shape[0]

            # dilated grouped conv
            for b in range(bc):
                if m["depthwise"]:
                    a = jnp.zeros((exp_ch, Lout), jnp.float32)
                    for j in range(k):                   # per-channel VPU MAC
                        a = a + w2_ref[:, j:j + 1] * \
                            h1[:, b * Lp + j * d: b * Lp + j * d + Lout]
                else:
                    a = jnp.zeros((w2_ref.shape[1], Lout), jnp.float32)
                    for j in range(k):                   # block-diag dense matmul
                        a = a + jnp.dot(
                            w2_ref[j],
                            h1[:, b * Lp + j * d: b * Lp + j * d + Lout],
                            preferred_element_type=jnp.float32, precision=_PREC)
                acc_ref[:, b * Lout: (b + 1) * Lout] = a
            z2 = acc_ref[...] * s2_ref[...] + b2_ref[...]
            h2 = z2 * jax.nn.sigmoid(z2)                 # (exp, bc*Lout)

            # 1x1 projection conv + BN + Swish (wide matmul)
            z3 = jnp.dot(w3_ref[...], h2,
                         preferred_element_type=jnp.float32, precision=_PREC)
            z3 = z3 * s3_ref[...] + b3_ref[...]
            h3 = z3 * jax.nn.sigmoid(z3)                 # (Cout, bc*Lout)

            is_last = (t == n_t - 1)
            if is_last and not m["do_res"]:
                out_ref[0] = h3.astype(out_ref.dtype)
            else:
                if not is_last:
                    nm = meta[t + 2]
                    ndst = scratch[2 * (t + 1)]
                    ndst[...] = jnp.zeros_like(ndst)     # zero next pad columns
                    npad, nLp = nm["pad"], nm["Lp"]
                for b in range(bc):
                    seg = h3[:, b * Lout: (b + 1) * Lout]
                    if m["do_res"]:
                        res = hp[:, b * Lp + pad: b * Lp + pad + L]
                        rr = seg + res
                        seg = rr * jax.nn.sigmoid(rr)
                    if is_last:
                        out_ref[0, :, b * Lout: (b + 1) * Lout] = \
                            seg.astype(out_ref.dtype)
                    else:
                        ndst[:, b * nLp + npad: b * nLp + npad + Lout] = seg

    return kernel


# -----------------------------------------------------------------------------
# wrapper: layout plumbing + one pallas_call for the whole network
# -----------------------------------------------------------------------------
def tcn_forward(x, layers, num_chunks=1):
    B, cin0, L0 = x.shape
    assert cin0 == 1, "CNNMax layer expects a single input channel"
    assert B % num_chunks == 0
    nc = num_chunks
    bc = B // nc                                   # batch elements per grid step

    # ---- layer-0 host-side prep: pad + parity split + batch->lane packing ----
    ly0 = layers[0]
    k0, d0, pad0 = ly0["k"], ly0["d"], ly0["pad"]
    Lp0 = L0 + 2 * pad0
    Lconv = Lp0 - d0 * (k0 - 1)
    assert Lconv >= 2
    Lh = Lconv // 2                                # MaxPool(2,2) floors odd lengths
    C1 = ly0["w0"].shape[0]

    xp = jnp.pad(x, ((0, 0), (0, 0), (pad0, pad0)))
    xe = xp[:, :, 0::2]                            # (B, 1, Le)
    xo = xp[:, :, 1::2]                            # (B, 1, Lo)
    Le, Lo = xe.shape[-1], xo.shape[-1]

    def pack(a):                                   # (B, C, Lx) -> (nc, C, bc*Lx)
        _, C, Lx = a.shape
        return a.reshape(nc, bc, C, Lx).transpose(0, 2, 1, 3).reshape(nc, C, bc * Lx)

    xe_p, xo_p = pack(xe), pack(xo)

    # ---- static per-layer geometry + rough cost model ----
    meta = [dict(kind="cnnmax", k=k0, d=d0, Le=Le, Lo=Lo, Lh=Lh)]
    scratch_shapes = []
    L, C = Lh, C1
    flops = 2 * B * C1 * k0 * Lconv
    trans = B * C1 * Lconv
    for ly in layers[1:]:
        k, d, pad = ly["k"], ly["d"], ly["pad"]
        exp_ch = ly["w1"].shape[0]
        cout = ly["w3"].shape[0]
        assert ly["w1"].shape[1] == C
        Lp = L + 2 * pad
        Lout = Lp - d * (k - 1)
        assert Lout >= 1
        if ly["do_res"]:
            assert Lout == L and cout == C, "residual branch needs matching shapes"
        meta.append(dict(kind="temporal", k=k, d=d, pad=pad, Lin=L, Lp=Lp, Lout=Lout,
                         do_res=ly["do_res"], depthwise=ly["depthwise"]))
        scratch_shapes += [pltpu.VMEM((C, bc * Lp), jnp.float32),
                           pltpu.VMEM((exp_ch, bc * Lout), jnp.float32)]
        flops += B * (2 * exp_ch * C * Lp
                      + 2 * exp_ch * (1 if ly["depthwise"] else exp_ch) * k * Lout
                      + 2 * cout * exp_ch * Lout)
        trans += B * (exp_ch * Lp + exp_ch * Lout
                      + cout * Lout * (2 if ly["do_res"] else 1))
        L, C = Lout, cout

    # ---- assemble inputs / specs ----
    inputs = [xe_p, xo_p, ly0["w0"], ly0["scale"], ly0["shift"]]
    for ly in layers[1:]:
        inputs += [ly["w1"], ly["s1"], ly["b1"], ly["w2"], ly["s2"], ly["b2"],
                   ly["w3"], ly["s3"], ly["b3"]]

    def const_spec(arr):
        nd = arr.ndim
        return pl.BlockSpec(arr.shape, lambda c, _nd=nd: (0,) * _nd)

    in_specs = [pl.BlockSpec((1, 1, bc * Le), lambda c: (c, 0, 0)),
                pl.BlockSpec((1, 1, bc * Lo), lambda c: (c, 0, 0))]
    in_specs += [const_spec(a) for a in inputs[2:]]

    out_shape = jax.ShapeDtypeStruct((nc, C, bc * L), x.dtype)
    out_spec = pl.BlockSpec((1, C, bc * L), lambda c: (c, 0, 0))

    bytes_accessed = sum(int(np.prod(a.shape)) * a.dtype.itemsize for a in inputs)
    bytes_accessed += int(np.prod(out_shape.shape)) * x.dtype.itemsize
    cost = pl.CostEstimate(flops=int(flops), transcendentals=int(trans),
                           bytes_accessed=int(bytes_accessed))

    kernel = make_fused_tcn_kernel(meta, bc)

    out = pl.pallas_call(
        kernel,
        out_shape=out_shape,
        grid=(nc,),
        in_specs=in_specs,
        out_specs=out_spec,
        scratch_shapes=scratch_shapes,
        compiler_params=pltpu.CompilerParams(dimension_semantics=("parallel",)),
        cost_estimate=cost,
    )(*inputs)

    # (nc, C, bc*L) -> (B, C, L)
    return out.reshape(nc, C, bc, L).transpose(0, 2, 1, 3).reshape(B, C, L)


# -----------------------------------------------------------------------------
# parameter construction mirroring TemporalConvNet.__init__
# -----------------------------------------------------------------------------
def build_tcn(key, num_inputs, kernel_sizes, dilation_sizes, input_scalings,
              num_channels):
    layers = []
    input_size = num_inputs
    keys = jax.random.split(key, len(num_channels))
    for i, (k, d, scl) in enumerate(zip(kernel_sizes, dilation_sizes, input_scalings)):
        in_ch = 1 if i == 0 else num_channels[i - 1]
        out_ch = num_channels[i]
        pad = get_padding_size(input_size, 1, k, d)
        if i == 0:
            w, b = init_conv(keys[i], out_ch, in_ch, k)             # (oc, 1, k)
            scale, shift = fold_bn(b, *default_bn(out_ch))
            layers.append(dict(kind="cnnmax", k=k, d=d, pad=pad,
                               w0=w[:, 0, :], scale=scale, shift=shift))
        else:
            exp = 2 * in_ch
            do_res = (in_ch == out_ch)
            groups = exp if do_res else in_ch                       # as in module
            depthwise = (groups == exp)
            k1, k2, k3 = jax.random.split(keys[i], 3)
            w1, b1 = init_conv(k1, exp, in_ch, 1)
            w2, b2 = init_conv(k2, exp, exp // groups, k)
            w3, b3 = init_conv(k3, out_ch, exp, 1)
            s1, sh1 = fold_bn(b1, *default_bn(exp))
            s2, sh2 = fold_bn(b2, *default_bn(exp))
            s3, sh3 = fold_bn(b3, *default_bn(out_ch))
            if depthwise:
                w2k = w2[:, 0, :]                                   # (exp, k) diag
            else:
                w2k = jnp.transpose(expand_grouped(w2, groups), (2, 0, 1))
            layers.append(dict(kind="temporal", k=k, d=d, pad=pad, do_res=do_res,
                               depthwise=depthwise, groups=groups,
                               w1=w1[:, :, 0], s1=s1, b1=sh1,
                               w2=w2k, w2_raw=w2, s2=s2, b2=sh2,
                               w3=w3[:, :, 0], s3=s3, b3=sh3))
        input_size = int(input_size * scl)
    return layers


# -----------------------------------------------------------------------------
# pure-JAX reference (lax conv) for correctness check
# -----------------------------------------------------------------------------
def ref_forward(x, layers):
    h = x
    for ly in layers:
        k, d, pad = ly["k"], ly["d"], ly["pad"]
        if ly["kind"] == "cnnmax":
            hp = jnp.pad(h, ((0, 0), (0, 0), (pad, pad)))
            w = ly["w0"][:, None, :]
            z = jax.lax.conv_general_dilated(
                hp, w, (1,), "VALID", rhs_dilation=(d,),
                dimension_numbers=("NCH", "OIH", "NCH"), precision=_PREC)
            z = z * ly["scale"][None] + ly["shift"][None]
            a = swish(z)
            B, C, Lc = a.shape
            a = a[..., :2 * (Lc // 2)]                    # MaxPool floors odd length
            h = jnp.max(a.reshape(B, C, Lc // 2, 2), axis=-1)
        else:
            hp = jnp.pad(h, ((0, 0), (0, 0), (pad, pad)))
            z1 = jnp.einsum("oc,bcl->bol", ly["w1"], hp, precision=_PREC)
            h1 = swish(z1 * ly["s1"][None] + ly["b1"][None])
            z2 = jax.lax.conv_general_dilated(
                h1, ly["w2_raw"], (1,), "VALID", rhs_dilation=(d,),
                dimension_numbers=("NCH", "OIH", "NCH"),
                feature_group_count=ly["groups"], precision=_PREC)
            h2 = swish(z2 * ly["s2"][None] + ly["b2"][None])
            z3 = jnp.einsum("oc,bcl->bol", ly["w3"], h2, precision=_PREC)
            h3 = swish(z3 * ly["s3"][None] + ly["b3"][None])
            if ly["do_res"]:
                h3 = swish(h3 + h)
            h = h3
    return h


# -----------------------------------------------------------------------------
if __name__ == "__main__":
    key = jax.random.PRNGKey(0)
    kp, kx = jax.random.split(key)

    # TemporalConvNet(num_inputs=32, kernel_sizes=[3,3,3], dilation_sizes=[1,2,4],
    #                 input_scaling=[0.5,1,1], num_channels=[8,8,16], conv2d=False)
    num_inputs = 32
    kernel_sizes = [3, 3, 3]
    dilation_sizes = [1, 2, 4]
    input_scalings = [0.5, 1, 1]
    num_channels = [8, 8, 16]
    batch = 2

    layers = build_tcn(kp, num_inputs, kernel_sizes, dilation_sizes,
                       input_scalings, num_channels)
    x = jax.random.normal(kx, (batch, 1, num_inputs), jnp.float32)

    ref = jax.block_until_ready(ref_forward(x, layers))

    # fully fused, batch packed into the lane axis (single grid step)
    fwd = jax.jit(functools.partial(tcn_forward, layers=layers, num_chunks=1))
    out = jax.block_until_ready(fwd(x))
    assert out.shape == (batch, num_channels[-1], num_inputs // 2), out.shape
    np.testing.assert_allclose(np.asarray(out), np.asarray(ref),
                               rtol=1e-4, atol=1e-5)

    # v7x: a parallel chunk axis lets the two TensorCores each take a batch chunk
    out2 = jax.block_until_ready(tcn_forward(x, layers, num_chunks=2))
    np.testing.assert_allclose(np.asarray(out2), np.asarray(ref),
                               rtol=1e-4, atol=1e-5)

    print("KERNEL_OK")
</pallas_src>

<mosaic_0001>
module attributes {stable_mosaic.version = 11 : i64} {
  func.func @kernel(%arg0: i32, %arg1: memref<1x1x34xf32, #tpu.memory_space<vmem>>, %arg2: memref<1x1x34xf32, #tpu.memory_space<vmem>>, %arg3: memref<8x3xf32, #tpu.memory_space<vmem>>, %arg4: memref<8x1xf32, #tpu.memory_space<vmem>>, %arg5: memref<8x1xf32, #tpu.memory_space<vmem>>, %arg6: memref<16x8xf32, #tpu.memory_space<vmem>>, %arg7: memref<16x1xf32, #tpu.memory_space<vmem>>, %arg8: memref<16x1xf32, #tpu.memory_space<vmem>>, %arg9: memref<16x3xf32, #tpu.memory_space<vmem>>, %arg10: memref<16x1xf32, #tpu.memory_space<vmem>>, %arg11: memref<16x1xf32, #tpu.memory_space<vmem>>, %arg12: memref<8x16xf32, #tpu.memory_space<vmem>>, %arg13: memref<8x1xf32, #tpu.memory_space<vmem>>, %arg14: memref<8x1xf32, #tpu.memory_space<vmem>>, %arg15: memref<16x8xf32, #tpu.memory_space<vmem>>, %arg16: memref<16x1xf32, #tpu.memory_space<vmem>>, %arg17: memref<16x1xf32, #tpu.memory_space<vmem>>, %arg18: memref<3x16x16xf32, #tpu.memory_space<vmem>>, %arg19: memref<16x1xf32, #tpu.memory_space<vmem>>, %arg20: memref<16x1xf32, #tpu.memory_space<vmem>>, %arg21: memref<16x16xf32, #tpu.memory_space<vmem>>, %arg22: memref<16x1xf32, #tpu.memory_space<vmem>>, %arg23: memref<16x1xf32, #tpu.memory_space<vmem>>, %arg24: memref<1x16x32xf32, #tpu.memory_space<vmem>>, %arg25: memref<8x40xf32, #tpu.memory_space<vmem>>, %arg26: memref<16x32xf32, #tpu.memory_space<vmem>>, %arg27: memref<8x48xf32, #tpu.memory_space<vmem>>, %arg28: memref<16x32xf32, #tpu.memory_space<vmem>>) attributes {dimension_semantics = [#tpu.dimension_semantics<parallel>], iteration_bounds = array<i64: 1>, scalar_prefetch = 0 : i64, scratch_operands = 4 : i64, tpu.core_type = #tpu.core_type<tc>, window_params = [{transform_indices = @transform_0, window_bounds = array<i64: 1, 1, 34>}, {transform_indices = @transform_1, window_bounds = array<i64: 1, 1, 34>}, {pipeline_mode = #tpu.pipeline_mode<synchronous>, transform_indices = @transform_2, window_bounds = array<i64: 8, 3>}, {pipeline_mode = #tpu.pipeline_mode<synchronous>, transform_indices = @transform_3, window_bounds = array<i64: 8, 1>}, {pipeline_mode = #tpu.pipeline_mode<synchronous>, transform_indices = @transform_4, window_bounds = array<i64: 8, 1>}, {pipeline_mode = #tpu.pipeline_mode<synchronous>, transform_indices = @transform_5, window_bounds = array<i64: 16, 8>}, {pipeline_mode = #tpu.pipeline_mode<synchronous>, transform_indices = @transform_6, window_bounds = array<i64: 16, 1>}, {pipeline_mode = #tpu.pipeline_mode<synchronous>, transform_indices = @transform_7, window_bounds = array<i64: 16, 1>}, {pipeline_mode = #tpu.pipeline_mode<synchronous>, transform_indices = @transform_8, window_bounds = array<i64: 16, 3>}, {pipeline_mode = #tpu.pipeline_mode<synchronous>, transform_indices = @transform_9, window_bounds = array<i64: 16, 1>}, {pipeline_mode = #tpu.pipeline_mode<synchronous>, transform_indices = @transform_10, window_bounds = array<i64: 16, 1>}, {pipeline_mode = #tpu.pipeline_mode<synchronous>, transform_indices = @transform_11, window_bounds = array<i64: 8, 16>}, {pipeline_mode = #tpu.pipeline_mode<synchronous>, transform_indices = @transform_12, window_bounds = array<i64: 8, 1>}, {pipeline_mode = #tpu.pipeline_mode<synchronous>, transform_indices = @transform_13, window_bounds = array<i64: 8, 1>}, {pipeline_mode = #tpu.pipeline_mode<synchronous>, transform_indices = @transform_14, window_bounds = array<i64: 16, 8>}, {pipeline_mode = #tpu.pipeline_mode<synchronous>, transform_indices = @transform_15, window_bounds = array<i64: 16, 1>}, {pipeline_mode = #tpu.pipeline_mode<synchronous>, transform_indices = @transform_16, window_bounds = array<i64: 16, 1>}, {pipeline_mode = #tpu.pipeline_mode<synchronous>, transform_indices = @transform_17, window_bounds = array<i64: 3, 16, 16>}, {pipeline_mode = #tpu.pipeline_mode<synchronous>, transform_indices = @transform_18, window_bounds = array<i64: 16, 1>}, {pipeline_mode = #tpu.pipeline_mode<synchronous>, transform_indices = @transform_19, window_bounds = array<i64: 16, 1>}, {pipeline_mode = #tpu.pipeline_mode<synchronous>, transform_indices = @transform_20, window_bounds = array<i64: 16, 16>}, {pipeline_mode = #tpu.pipeline_mode<synchronous>, transform_indices = @transform_21, window_bounds = array<i64: 16, 1>}, {pipeline_mode = #tpu.pipeline_mode<synchronous>, transform_indices = @transform_22, window_bounds = array<i64: 16, 1>}, {transform_indices = @transform_23, window_bounds = array<i64: 1, 16, 32>}]} {
    %c0 = arith.constant 0 : index
    %c0_0 = arith.constant 0 : index
    %c0_1 = arith.constant 0 : index
    %0 = vector.load %arg1[%c0, %c0_0, %c0_1] : memref<1x1x34xf32, #tpu.memory_space<vmem>>, vector<1x1x34xf32>
    %1 = vector.shape_cast %0 : vector<1x1x34xf32> to vector<1x34xf32>
    %c0_2 = arith.constant 0 : index
    %c0_3 = arith.constant 0 : index
    %c0_4 = arith.constant 0 : index
    %2 = vector.load %arg2[%c0_2, %c0_3, %c0_4] : memref<1x1x34xf32, #tpu.memory_space<vmem>>, vector<1x1x34xf32>
    %3 = vector.shape_cast %2 : vector<1x1x34xf32> to vector<1x34xf32>
    %c0_5 = arith.constant 0 : index
    %c0_6 = arith.constant 0 : index
    %4 = vector.load %arg3[%c0_5, %c0_6] : memref<8x3xf32, #tpu.memory_space<vmem>>, vector<8x3xf32>
    %c0_7 = arith.constant 0 : index
    %c0_8 = arith.constant 0 : index
    %5 = vector.load %arg4[%c0_7, %c0_8] : memref<8x1xf32, #tpu.memory_space<vmem>>, vector<8x1xf32>
    %c0_9 = arith.constant 0 : index
    %c0_10 = arith.constant 0 : index
    %6 = vector.load %arg5[%c0_9, %c0_10] : memref<8x1xf32, #tpu.memory_space<vmem>>, vector<8x1xf32>
    %cst = arith.constant 0.000000e+00 : f32
    %7 = vector.broadcast %cst : f32 to vector<8x40xf32>
    %c0_11 = arith.constant 0 : index
    %c0_12 = arith.constant 0 : index
    %8 = vector.load %arg25[%c0_11, %c0_12] : memref<8x40xf32, #tpu.memory_space<vmem>>, vector<8x40xf32>
    tpu.vector_store %arg25[%c0_11, %c0_12], %7 {strides = array<i32>} : memref<8x40xf32, #tpu.memory_space<vmem>>, vector<8x40xf32>,
    %cst_13 = arith.constant 0.000000e+00 : f32
    %9 = vector.broadcast %cst_13 : f32 to vector<8x16xf32>
    %cst_14 = arith.constant 0.000000e+00 : f32
    %10 = vector.broadcast %cst_14 : f32 to vector<8x16xf32>
    %11 = vector.extract_strided_slice %1 {offsets = [0, 0], sizes = [1, 16], strides = [1, 1]} : vector<1x34xf32> to vector<1x16xf32>
    %12 = vector.extract_strided_slice %3 {offsets = [0, 0], sizes = [1, 16], strides = [1, 1]} : vector<1x34xf32> to vector<1x16xf32>
    %13 = vector.extract_strided_slice %4 {offsets = [0, 0], sizes = [8, 1], strides = [1, 1]} : vector<8x3xf32> to vector<8x1xf32>
    %14 = vector.broadcast %13 : vector<8x1xf32> to vector<8x16xf32>
    %15 = vector.broadcast %11 : vector<1x16xf32> to vector<8x16xf32>
    %16 = arith.mulf %14, %15 : vector<8x16xf32>
    %17 = arith.addf %9, %16 : vector<8x16xf32>
    %18 = vector.broadcast %13 : vector<8x1xf32> to vector<8x16xf32>
    %19 = vector.broadcast %12 : vector<1x16xf32> to vector<8x16xf32>
    %20 = arith.mulf %18, %19 : vector<8x16xf32>
    %21 = arith.addf %10, %20 : vector<8x16xf32>
    %22 = vector.extract_strided_slice %3 {offsets = [0, 0], sizes = [1, 16], strides = [1, 1]} : vector<1x34xf32> to vector<1x16xf32>
    %23 = vector.extract_strided_slice %1 {offsets = [0, 1], sizes = [1, 16], strides = [1, 1]} : vector<1x34xf32> to vector<1x16xf32>
    %24 = vector.extract_strided_slice %4 {offsets = [0, 1], sizes = [8, 1], strides = [1, 1]} : vector<8x3xf32> to vector<8x1xf32>
    %25 = vector.broadcast %24 : vector<8x1xf32> to vector<8x16xf32>
    %26 = vector.broadcast %22 : vector<1x16xf32> to vector<8x16xf32>
    %27 = arith.mulf %25, %26 : vector<8x16xf32>
    %28 = arith.addf %17, %27 : vector<8x16xf32>
    %29 = vector.broadcast %24 : vector<8x1xf32> to vector<8x16xf32>
    %30 = vector.broadcast %23 : vector<1x16xf32> to vector<8x16xf32>
    %31 = arith.mulf %29, %30 : vector<8x16xf32>
    %32 = arith.addf %21, %31 : vector<8x16xf32>
    %33 = vector.extract_strided_slice %1 {offsets = [0, 1], sizes = [1, 16], strides = [1, 1]} : vector<1x34xf32> to vector<1x16xf32>
    %34 = vector.extract_strided_slice %3 {offsets = [0, 1], sizes = [1, 16], strides = [1, 1]} : vector<1x34xf32> to vector<1x16xf32>
    %35 = vector.extract_strided_slice %4 {offsets = [0, 2], sizes = [8, 1], strides = [1, 1]} : vector<8x3xf32> to vector<8x1xf32>
    %36 = vector.broadcast %35 : vector<8x1xf32> to vector<8x16xf32>
    %37 = vector.broadcast %33 : vector<1x16xf32> to vector<8x16xf32>
    %38 = arith.mulf %36, %37 : vector<8x16xf32>
    %39 = arith.addf %28, %38 : vector<8x16xf32>
    %40 = vector.broadcast %35 : vector<8x1xf32> to vector<8x16xf32>
    %41 = vector.broadcast %34 : vector<1x16xf32> to vector<8x16xf32>
    %42 = arith.mulf %40, %41 : vector<8x16xf32>
    %43 = arith.addf %32, %42 : vector<8x16xf32>
    %44 = vector.broadcast %5 : vector<8x1xf32> to vector<8x16xf32>
    %45 = arith.mulf %39, %44 : vector<8x16xf32>
    %46 = vector.broadcast %6 : vector<8x1xf32> to vector<8x16xf32>
    %47 = arith.addf %45, %46 : vector<8x16xf32>
    %48 = vector.broadcast %5 : vector<8x1xf32> to vector<8x16xf32>
    %49 = arith.mulf %43, %48 : vector<8x16xf32>
    %50 = vector.broadcast %6 : vector<8x1xf32> to vector<8x16xf32>
    %51 = arith.addf %49, %50 : vector<8x16xf32>
    %52 = arith.negf %47 : vector<8x16xf32>
    %53 = math.exp %52 : vector<8x16xf32>
    %cst_15 = arith.constant 1.000000e+00 : f32
    %54 = vector.broadcast %cst_15 : f32 to vector<8x16xf32>
    %55 = arith.addf %54, %53 : vector<8x16xf32>
    %56 = arith.divf %54, %55 : vector<8x16xf32>
    %57 = arith.mulf %47, %56 : vector<8x16xf32>
    %58 = arith.negf %51 : vector<8x16xf32>
    %59 = math.exp %58 : vector<8x16xf32>
    %cst_16 = arith.constant 1.000000e+00 : f32
    %60 = vector.broadcast %cst_16 : f32 to vector<8x16xf32>
    %61 = arith.addf %60, %59 : vector<8x16xf32>
    %62 = arith.divf %60, %61 : vector<8x16xf32>
    %63 = arith.mulf %51, %62 : vector<8x16xf32>
    %64 = arith.maximumf %57, %63 : vector<8x16xf32>
    %c0_17 = arith.constant 0 : index
    %c2 = arith.constant 2 : index
    %65 = vector.load %arg25[%c0_17, %c2] : memref<8x40xf32, #tpu.memory_space<vmem>>, vector<8x16xf32>
    tpu.vector_store %arg25[%c0_17, %c2], %64 {strides = array<i32>} : memref<8x40xf32, #tpu.memory_space<vmem>>, vector<8x16xf32>,
    %cst_18 = arith.constant 0.000000e+00 : f32
    %66 = vector.broadcast %cst_18 : f32 to vector<8x16xf32>
    %cst_19 = arith.constant 0.000000e+00 : f32
    %67 = vector.broadcast %cst_19 : f32 to vector<8x16xf32>
    %68 = vector.extract_strided_slice %1 {offsets = [0, 17], sizes = [1, 16], strides = [1, 1]} : vector<1x34xf32> to vector<1x16xf32>
    %69 = vector.extract_strided_slice %3 {offsets = [0, 17], sizes = [1, 16], strides = [1, 1]} : vector<1x34xf32> to vector<1x16xf32>
    %70 = vector.extract_strided_slice %4 {offsets = [0, 0], sizes = [8, 1], strides = [1, 1]} : vector<8x3xf32> to vector<8x1xf32>
    %71 = vector.broadcast %70 : vector<8x1xf32> to vector<8x16xf32>
    %72 = vector.broadcast %68 : vector<1x16xf32> to vector<8x16xf32>
    %73 = arith.mulf %71, %72 : vector<8x16xf32>
    %74 = arith.addf %66, %73 : vector<8x16xf32>
    %75 = vector.broadcast %70 : vector<8x1xf32> to vector<8x16xf32>
    %76 = vector.broadcast %69 : vector<1x16xf32> to vector<8x16xf32>
    %77 = arith.mulf %75, %76 : vector<8x16xf32>
    %78 = arith.addf %67, %77 : vector<8x16xf32>
    %79 = vector.extract_strided_slice %3 {offsets = [0, 17], sizes = [1, 16], strides = [1, 1]} : vector<1x34xf32> to vector<1x16xf32>
    %80 = vector.extract_strided_slice %1 {offsets = [0, 18], sizes = [1, 16], strides = [1, 1]} : vector<1x34xf32> to vector<1x16xf32>
    %81 = vector.extract_strided_slice %4 {offsets = [0, 1], sizes = [8, 1], strides = [1, 1]} : vector<8x3xf32> to vector<8x1xf32>
    %82 = vector.broadcast %81 : vector<8x1xf32> to vector<8x16xf32>
    %83 = vector.broadcast %79 : vector<1x16xf32> to vector<8x16xf32>
    %84 = arith.mulf %82, %83 : vector<8x16xf32>
    %85 = arith.addf %74, %84 : vector<8x16xf32>
    %86 = vector.broadcast %81 : vector<8x1xf32> to vector<8x16xf32>
    %87 = vector.broadcast %80 : vector<1x16xf32> to vector<8x16xf32>
    %88 = arith.mulf %86, %87 : vector<8x16xf32>
    %89 = arith.addf %78, %88 : vector<8x16xf32>
    %90 = vector.extract_strided_slice %1 {offsets = [0, 18], sizes = [1, 16], strides = [1, 1]} : vector<1x34xf32> to vector<1x16xf32>
    %91 = vector.extract_strided_slice %3 {offsets = [0, 18], sizes = [1, 16], strides = [1, 1]} : vector<1x34xf32> to vector<1x16xf32>
    %92 = vector.extract_strided_slice %4 {offsets = [0, 2], sizes = [8, 1], strides = [1, 1]} : vector<8x3xf32> to vector<8x1xf32>
    %93 = vector.broadcast %92 : vector<8x1xf32> to vector<8x16xf32>
    %94 = vector.broadcast %90 : vector<1x16xf32> to vector<8x16xf32>
    %95 = arith.mulf %93, %94 : vector<8x16xf32>
    %96 = arith.addf %85, %95 : vector<8x16xf32>
    %97 = vector.broadcast %92 : vector<8x1xf32> to vector<8x16xf32>
    %98 = vector.broadcast %91 : vector<1x16xf32> to vector<8x16xf32>
    %99 = arith.mulf %97, %98 : vector<8x16xf32>
    %100 = arith.addf %89, %99 : vector<8x16xf32>
    %101 = vector.broadcast %5 : vector<8x1xf32> to vector<8x16xf32>
    %102 = arith.mulf %96, %101 : vector<8x16xf32>
    %103 = vector.broadcast %6 : vector<8x1xf32> to vector<8x16xf32>
    %104 = arith.addf %102, %103 : vector<8x16xf32>
    %105 = vector.broadcast %5 : vector<8x1xf32> to vector<8x16xf32>
    %106 = arith.mulf %100, %105 : vector<8x16xf32>
    %107 = vector.broadcast %6 : vector<8x1xf32> to vector<8x16xf32>
    %108 = arith.addf %106, %107 : vector<8x16xf32>
    %109 = arith.negf %104 : vector<8x16xf32>
    %110 = math.exp %109 : vector<8x16xf32>
    %cst_20 = arith.constant 1.000000e+00 : f32
    %111 = vector.broadcast %cst_20 : f32 to vector<8x16xf32>
    %112 = arith.addf %111, %110 : vector<8x16xf32>
    %113 = arith.divf %111, %112 : vector<8x16xf32>
    %114 = arith.mulf %104, %113 : vector<8x16xf32>
    %115 = arith.negf %108 : vector<8x16xf32>
    %116 = math.exp %115 : vector<8x16xf32>
    %cst_21 = arith.constant 1.000000e+00 : f32
    %117 = vector.broadcast %cst_21 : f32 to vector<8x16xf32>
    %118 = arith.addf %117, %116 : vector<8x16xf32>
    %119 = arith.divf %117, %118 : vector<8x16xf32>
    %120 = arith.mulf %108, %119 : vector<8x16xf32>
    %121 = arith.maximumf %114, %120 : vector<8x16xf32>
    %c0_22 = arith.constant 0 : index
    %c22 = arith.constant 22 : index
    %122 = vector.load %arg25[%c0_22, %c22] : memref<8x40xf32, #tpu.memory_space<vmem>>, vector<8x16xf32>
    tpu.vector_store %arg25[%c0_22, %c22], %121 {strides = array<i32>} : memref<8x40xf32, #tpu.memory_space<vmem>>, vector<8x16xf32>,
    %c0_23 = arith.constant 0 : index
    %c0_24 = arith.constant 0 : index
    %123 = vector.load %arg25[%c0_23, %c0_24] : memref<8x40xf32, #tpu.memory_space<vmem>>, vector<8x40xf32>
    %c0_25 = arith.constant 0 : index
    %c0_26 = arith.constant 0 : index
    %124 = vector.load %arg6[%c0_25, %c0_26] : memref<16x8xf32, #tpu.memory_space<vmem>>, vector<16x8xf32>
    %cst_27 = arith.constant dense<0.000000e+00> : vector<16x40xf32>
    %125 = tpu.matmul %124, %123, %cst_27 {dimension_numbers = #tpu.dot_dimension_numbers<[1], [0], [0], [1], [0, 0, 1, 1], [], []>, precision = #tpu.contract_precision<fp32>} : vector<16x8xf32>, vector<8x40xf32>, vector<16x40xf32> -> vector<16x40xf32>
    %c0_28 = arith.constant 0 : index
    %c0_29 = arith.constant 0 : index
    %126 = vector.load %arg7[%c0_28, %c0_29] : memref<16x1xf32, #tpu.memory_space<vmem>>, vector<16x1xf32>
    %127 = vector.broadcast %126 : vector<16x1xf32> to vector<16x40xf32>
    %128 = arith.mulf %125, %127 : vector<16x40xf32>
    %c0_30 = arith.constant 0 : index
    %c0_31 = arith.constant 0 : index
    %129 = vector.load %arg8[%c0_30, %c0_31] : memref<16x1xf32, #tpu.memory_space<vmem>>, vector<16x1xf32>
    %130 = vector.broadcast %129 : vector<16x1xf32> to vector<16x40xf32>
    %131 = arith.addf %128, %130 : vector<16x40xf32>
    %132 = arith.negf %131 : vector<16x40xf32>
    %133 = math.exp %132 : vector<16x40xf32>
    %cst_32 = arith.constant 1.000000e+00 : f32
    %134 = vector.broadcast %cst_32 : f32 to vector<16x40xf32>
    %135 = arith.addf %134, %133 : vector<16x40xf32>
    %136 = arith.divf %134, %135 : vector<16x40xf32>
    %137 = arith.mulf %131, %136 : vector<16x40xf32>
    %cst_33 = arith.constant 0.000000e+00 : f32
    %138 = vector.broadcast %cst_33 : f32 to vector<16x16xf32>
    %c0_34 = arith.constant 0 : index
    %c0_35 = arith.constant 0 : index
    %139 = vector.load %arg9[%c0_34, %c0_35] : memref<16x3xf32, #tpu.memory_space<vmem>>, vector<16x1xf32>
    %140 = vector.extract_strided_slice %137 {offsets = [0, 0], sizes = [16, 16], strides = [1, 1]} : vector<16x40xf32> to vector<16x16xf32>
    %141 = vector.broadcast %139 : vector<16x1xf32> to vector<16x16xf32>
    %142 = arith.mulf %141, %140 : vector<16x16xf32>
    %143 = arith.addf %138, %142 : vector<16x16xf32>
    %c0_36 = arith.constant 0 : index
    %c1 = arith.constant 1 : index
    %144 = vector.load %arg9[%c0_36, %c1] : memref<16x3xf32, #tpu.memory_space<vmem>>, vector<16x1xf32>
    %145 = vector.extract_strided_slice %137 {offsets = [0, 2], sizes = [16, 16], strides = [1, 1]} : vector<16x40xf32> to vector<16x16xf32>
    %146 = vector.broadcast %144 : vector<16x1xf32> to vector<16x16xf32>
    %147 = arith.mulf %146, %145 : vector<16x16xf32>
    %148 = arith.addf %143, %147 : vector<16x16xf32>
    %c0_37 = arith.constant 0 : index
    %c2_38 = arith.constant 2 : index
    %149 = vector.load %arg9[%c0_37, %c2_38] : memref<16x3xf32, #tpu.memory_space<vmem>>, vector<16x1xf32>
    %150 = vector.extract_strided_slice %137 {offsets = [0, 4], sizes = [16, 16], strides = [1, 1]} : vector<16x40xf32> to vector<16x16xf32>
    %151 = vector.broadcast %149 : vector<16x1xf32> to vector<16x16xf32>
    %152 = arith.mulf %151, %150 : vector<16x16xf32>
    %153 = arith.addf %148, %152 : vector<16x16xf32>
    %c0_39 = arith.constant 0 : index
    %c0_40 = arith.constant 0 : index
    %154 = vector.load %arg26[%c0_39, %c0_40] : memref<16x32xf32, #tpu.memory_space<vmem>>, vector<16x16xf32>
    tpu.vector_store %arg26[%c0_39, %c0_40], %153 {strides = array<i32>} : memref<16x32xf32, #tpu.memory_space<vmem>>, vector<16x16xf32>,
    %cst_41 = arith.constant 0.000000e+00 : f32
    %155 = vector.broadcast %cst_41 : f32 to vector<16x16xf32>
    %c0_42 = arith.constant 0 : index
    %c0_43 = arith.constant 0 : index
    %156 = vector.load %arg9[%c0_42, %c0_43] : memref<16x3xf32, #tpu.memory_space<vmem>>, vector<16x1xf32>
    %157 = vector.extract_strided_slice %137 {offsets = [0, 20], sizes = [16, 16], strides = [1, 1]} : vector<16x40xf32> to vector<16x16xf32>
    %158 = vector.broadcast %156 : vector<16x1xf32> to vector<16x16xf32>
    %159 = arith.mulf %158, %157 : vector<16x16xf32>
    %160 = arith.addf %155, %159 : vector<16x16xf32>
    %c0_44 = arith.constant 0 : index
    %c1_45 = arith.constant 1 : index
    %161 = vector.load %arg9[%c0_44, %c1_45] : memref<16x3xf32, #tpu.memory_space<vmem>>, vector<16x1xf32>
    %162 = vector.extract_strided_slice %137 {offsets = [0, 22], sizes = [16, 16], strides = [1, 1]} : vector<16x40xf32> to vector<16x16xf32>
    %163 = vector.broadcast %161 : vector<16x1xf32> to vector<16x16xf32>
    %164 = arith.mulf %163, %162 : vector<16x16xf32>
    %165 = arith.addf %160, %164 : vector<16x16xf32>
    %c0_46 = arith.constant 0 : index
    %c2_47 = arith.constant 2 : index
    %166 = vector.load %arg9[%c0_46, %c2_47] : memref<16x3xf32, #tpu.memory_space<vmem>>, vector<16x1xf32>
    %167 = vector.extract_strided_slice %137 {offsets = [0, 24], sizes = [16, 16], strides = [1, 1]} : vector<16x40xf32> to vector<16x16xf32>
    %168 = vector.broadcast %166 : vector<16x1xf32> to vector<16x16xf32>
    %169 = arith.mulf %168, %167 : vector<16x16xf32>
    %170 = arith.addf %165, %169 : vector<16x16xf32>
    %c0_48 = arith.constant 0 : index
    %c16 = arith.constant 16 : index
    %171 = vector.load %arg26[%c0_48, %c16] : memref<16x32xf32, #tpu.memory_space<vmem>>, vector<16x16xf32>
    tpu.vector_store %arg26[%c0_48, %c16], %170 {strides = array<i32>} : memref<16x32xf32, #tpu.memory_space<vmem>>, vector<16x16xf32>,
    %c0_49 = arith.constant 0 : index
    %c0_50 = arith.constant 0 : index
    %172 = vector.load %arg26[%c0_49, %c0_50] : memref<16x32xf32, #tpu.memory_space<vmem>>, vector<16x32xf32>
    %c0_51 = arith.constant 0 : index
    %c0_52 = arith.constant 0 : index
    %173 = vector.load %arg10[%c0_51, %c0_52] : memref<16x1xf32, #tpu.memory_space<vmem>>, vector<16x1xf32>
    %174 = vector.broadcast %173 : vector<16x1xf32> to vector<16x32xf32>
    %175 = arith.mulf %172, %174 : vector<16x32xf32>
    %c0_53 = arith.constant 0 : index
    %c0_54 = arith.constant 0 : index
    %176 = vector.load %arg11[%c0_53, %c0_54] : memref<16x1xf32, #tpu.memory_space<vmem>>, vector<16x1xf32>
    %177 = vector.broadcast %176 : vector<16x1xf32> to vector<16x32xf32>
    %178 = arith.addf %175, %177 : vector<16x32xf32>
    %179 = arith.negf %178 : vector<16x32xf32>
    %180 = math.exp %179 : vector<16x32xf32>
    %cst_55 = arith.constant 1.000000e+00 : f32
    %181 = vector.broadcast %cst_55 : f32 to vector<16x32xf32>
    %182 = arith.addf %181, %180 : vector<16x32xf32>
    %183 = arith.divf %181, %182 : vector<16x32xf32>
    %184 = arith.mulf %178, %183 : vector<16x32xf32>
    %c0_56 = arith.constant 0 : index
    %c0_57 = arith.constant 0 : index
    %185 = vector.load %arg12[%c0_56, %c0_57] : memref<8x16xf32, #tpu.memory_space<vmem>>, vector<8x16xf32>
    %cst_58 = arith.constant dense<0.000000e+00> : vector<8x32xf32>
    %186 = tpu.matmul %185, %184, %cst_58 {dimension_numbers = #tpu.dot_dimension_numbers<[1], [0], [0], [1], [0, 0, 1, 1], [], []>, precision = #tpu.contract_precision<fp32>} : vector<8x16xf32>, vector<16x32xf32>, vector<8x32xf32> -> vector<8x32xf32>
    %c0_59 = arith.constant 0 : index
    %c0_60 = arith.constant 0 : index
    %187 = vector.load %arg13[%c0_59, %c0_60] : memref<8x1xf32, #tpu.memory_space<vmem>>, vector<8x1xf32>
    %188 = vector.broadcast %187 : vector<8x1xf32> to vector<8x32xf32>
    %189 = arith.mulf %186, %188 : vector<8x32xf32>
    %c0_61 = arith.constant 0 : index
    %c0_62 = arith.constant 0 : index
    %190 = vector.load %arg14[%c0_61, %c0_62] : memref<8x1xf32, #tpu.memory_space<vmem>>, vector<8x1xf32>
    %191 = vector.broadcast %190 : vector<8x1xf32> to vector<8x32xf32>
    %192 = arith.addf %189, %191 : vector<8x32xf32>
    %193 = arith.negf %192 : vector<8x32xf32>
    %194 = math.exp %193 : vector<8x32xf32>
    %cst_63 = arith.constant 1.000000e+00 : f32
    %195 = vector.broadcast %cst_63 : f32 to vector<8x32xf32>
    %196 = arith.addf %195, %194 : vector<8x32xf32>
    %197 = arith.divf %195, %196 : vector<8x32xf32>
    %198 = arith.mulf %192, %197 : vector<8x32xf32>
    %cst_64 = arith.constant 0.000000e+00 : f32
    %199 = vector.broadcast %cst_64 : f32 to vector<8x48xf32>
    %c0_65 = arith.constant 0 : index
    %c0_66 = arith.constant 0 : index
    %200 = vector.load %arg27[%c0_65, %c0_66] : memref<8x48xf32, #tpu.memory_space<vmem>>, vector<8x48xf32>
    tpu.vector_store %arg27[%c0_65, %c0_66], %199 {strides = array<i32>} : memref<8x48xf32, #tpu.memory_space<vmem>>, vector<8x48xf32>,
    %201 = vector.extract_strided_slice %198 {offsets = [0, 0], sizes = [8, 16], strides = [1, 1]} : vector<8x32xf32> to vector<8x16xf32>
    %202 = vector.extract_strided_slice %123 {offsets = [0, 2], sizes = [8, 16], strides = [1, 1]} : vector<8x40xf32> to vector<8x16xf32>
    %203 = arith.addf %201, %202 : vector<8x16xf32>
    %204 = arith.negf %203 : vector<8x16xf32>
    %205 = math.exp %204 : vector<8x16xf32>
    %cst_67 = arith.constant 1.000000e+00 : f32
    %206 = vector.broadcast %cst_67 : f32 to vector<8x16xf32>
    %207 = arith.addf %206, %205 : vector<8x16xf32>
    %208 = arith.divf %206, %207 : vector<8x16xf32>
    %209 = arith.mulf %203, %208 : vector<8x16xf32>
    %c0_68 = arith.constant 0 : index
    %c4 = arith.constant 4 : index
    %210 = vector.load %arg27[%c0_68, %c4] : memref<8x48xf32, #tpu.memory_space<vmem>>, vector<8x16xf32>
    tpu.vector_store %arg27[%c0_68, %c4], %209 {strides = array<i32>} : memref<8x48xf32, #tpu.memory_space<vmem>>, vector<8x16xf32>,
    %211 = vector.extract_strided_slice %198 {offsets = [0, 16], sizes = [8, 16], strides = [1, 1]} : vector<8x32xf32> to vector<8x16xf32>
    %212 = vector.extract_strided_slice %123 {offsets = [0, 22], sizes = [8, 16], strides = [1, 1]} : vector<8x40xf32> to vector<8x16xf32>
    %213 = arith.addf %211, %212 : vector<8x16xf32>
    %214 = arith.negf %213 : vector<8x16xf32>
    %215 = math.exp %214 : vector<8x16xf32>
    %cst_69 = arith.constant 1.000000e+00 : f32
    %216 = vector.broadcast %cst_69 : f32 to vector<8x16xf32>
    %217 = arith.addf %216, %215 : vector<8x16xf32>
    %218 = arith.divf %216, %217 : vector<8x16xf32>
    %219 = arith.mulf %213, %218 : vector<8x16xf32>
    %c0_70 = arith.constant 0 : index
    %c28 = arith.constant 28 : index
    %220 = vector.load %arg27[%c0_70, %c28] : memref<8x48xf32, #tpu.memory_space<vmem>>, vector<8x16xf32>
    tpu.vector_store %arg27[%c0_70, %c28], %219 {strides = array<i32>} : memref<8x48xf32, #tpu.memory_space<vmem>>, vector<8x16xf32>,
    %c0_71 = arith.constant 0 : index
    %c0_72 = arith.constant 0 : index
    %221 = vector.load %arg27[%c0_71, %c0_72] : memref<8x48xf32, #tpu.memory_space<vmem>>, vector<8x48xf32>
    %c0_73 = arith.constant 0 : index
    %c0_74 = arith.constant 0 : index
    %222 = vector.load %arg15[%c0_73, %c0_74] : memref<16x8xf32, #tpu.memory_space<vmem>>, vector<16x8xf32>
    %cst_75 = arith.constant dense<0.000000e+00> : vector<16x48xf32>
    %223 = tpu.matmul %222, %221, %cst_75 {dimension_numbers = #tpu.dot_dimension_numbers<[1], [0], [0], [1], [0, 0, 1, 1], [], []>, precision = #tpu.contract_precision<fp32>} : vector<16x8xf32>, vector<8x48xf32>, vector<16x48xf32> -> vector<16x48xf32>
    %c0_76 = arith.constant 0 : index
    %c0_77 = arith.constant 0 : index
    %224 = vector.load %arg16[%c0_76, %c0_77] : memref<16x1xf32, #tpu.memory_space<vmem>>, vector<16x1xf32>
    %225 = vector.broadcast %224 : vector<16x1xf32> to vector<16x48xf32>
    %226 = arith.mulf %223, %225 : vector<16x48xf32>
    %c0_78 = arith.constant 0 : index
    %c0_79 = arith.constant 0 : index
    %227 = vector.load %arg17[%c0_78, %c0_79] : memref<16x1xf32, #tpu.memory_space<vmem>>, vector<16x1xf32>
    %228 = vector.broadcast %227 : vector<16x1xf32> to vector<16x48xf32>
    %229 = arith.addf %226, %228 : vector<16x48xf32>
    %230 = arith.negf %229 : vector<16x48xf32>
    %231 = math.exp %230 : vector<16x48xf32>
    %cst_80 = arith.constant 1.000000e+00 : f32
    %232 = vector.broadcast %cst_80 : f32 to vector<16x48xf32>
    %233 = arith.addf %232, %231 : vector<16x48xf32>
    %234 = arith.divf %232, %233 : vector<16x48xf32>
    %235 = arith.mulf %229, %234 : vector<16x48xf32>
    %cst_81 = arith.constant 0.000000e+00 : f32
    %236 = vector.broadcast %cst_81 : f32 to vector<16x16xf32>
    %c0_82 = arith.constant 0 : index
    %c0_83 = arith.constant 0 : index
    %c0_84 = arith.constant 0 : index
    %237 = vector.load %arg18[%c0_82, %c0_83, %c0_84] : memref<3x16x16xf32, #tpu.memory_space<vmem>>, vector<1x16x16xf32>
    %238 = vector.shape_cast %237 : vector<1x16x16xf32> to vector<16x16xf32>
    %239 = vector.extract_strided_slice %235 {offsets = [0, 0], sizes = [16, 16], strides = [1, 1]} : vector<16x48xf32> to vector<16x16xf32>
    %cst_85 = arith.constant dense<0.000000e+00> : vector<16x16xf32>
    %240 = tpu.matmul %238, %239, %cst_85 {dimension_numbers = #tpu.dot_dimension_numbers<[1], [0], [0], [1], [0, 0, 1, 1], [], []>, precision = #tpu.contract_precision<fp32>} : vector<16x16xf32>, vector<16x16xf32>, vector<16x16xf32> -> vector<16x16xf32>
    %241 = arith.addf %236, %240 : vector<16x16xf32>
    %c1_86 = arith.constant 1 : index
    %c0_87 = arith.constant 0 : index
    %c0_88 = arith.constant 0 : index
    %242 = vector.load %arg18[%c1_86, %c0_87, %c0_88] : memref<3x16x16xf32, #tpu.memory_space<vmem>>, vector<1x16x16xf32>
    %243 = vector.shape_cast %242 : vector<1x16x16xf32> to vector<16x16xf32>
    %244 = vector.extract_strided_slice %235 {offsets = [0, 4], sizes = [16, 16], strides = [1, 1]} : vector<16x48xf32> to vector<16x16xf32>
    %cst_89 = arith.constant dense<0.000000e+00> : vector<16x16xf32>
    %245 = tpu.matmul %243, %244, %cst_89 {dimension_numbers = #tpu.dot_dimension_numbers<[1], [0], [0], [1], [0, 0, 1, 1], [], []>, precision = #tpu.contract_precision<fp32>} : vector<16x16xf32>, vector<16x16xf32>, vector<16x16xf32> -> vector<16x16xf32>
    %246 = arith.addf %241, %245 : vector<16x16xf32>
    %c2_90 = arith.constant 2 : index
    %c0_91 = arith.constant 0 : index
    %c0_92 = arith.constant 0 : index
    %247 = vector.load %arg18[%c2_90, %c0_91, %c0_92] : memref<3x16x16xf32, #tpu.memory_space<vmem>>, vector<1x16x16xf32>
    %248 = vector.shape_cast %247 : vector<1x16x16xf32> to vector<16x16xf32>
    %249 = vector.extract_strided_slice %235 {offsets = [0, 8], sizes = [16, 16], strides = [1, 1]} : vector<16x48xf32> to vector<16x16xf32>
    %cst_93 = arith.constant dense<0.000000e+00> : vector<16x16xf32>
    %250 = tpu.matmul %248, %249, %cst_93 {dimension_numbers = #tpu.dot_dimension_numbers<[1], [0], [0], [1], [0, 0, 1, 1], [], []>, precision = #tpu.contract_precision<fp32>} : vector<16x16xf32>, vector<16x16xf32>, vector<16x16xf32> -> vector<16x16xf32>
    %251 = arith.addf %246, %250 : vector<16x16xf32>
    %c0_94 = arith.constant 0 : index
    %c0_95 = arith.constant 0 : index
    %252 = vector.load %arg28[%c0_94, %c0_95] : memref<16x32xf32, #tpu.memory_space<vmem>>, vector<16x16xf32>
    tpu.vector_store %arg28[%c0_94, %c0_95], %251 {strides = array<i32>} : memref<16x32xf32, #tpu.memory_space<vmem>>, vector<16x16xf32>,
    %cst_96 = arith.constant 0.000000e+00 : f32
    %253 = vector.broadcast %cst_96 : f32 to vector<16x16xf32>
    %c0_97 = arith.constant 0 : index
    %c0_98 = arith.constant 0 : index
    %c0_99 = arith.constant 0 : index
    %254 = vector.load %arg18[%c0_97, %c0_98, %c0_99] : memref<3x16x16xf32, #tpu.memory_space<vmem>>, vector<1x16x16xf32>
    %255 = vector.shape_cast %254 : vector<1x16x16xf32> to vector<16x16xf32>
    %256 = vector.extract_strided_slice %235 {offsets = [0, 24], sizes = [16, 16], strides = [1, 1]} : vector<16x48xf32> to vector<16x16xf32>
    %cst_100 = arith.constant dense<0.000000e+00> : vector<16x16xf32>
    %257 = tpu.matmul %255, %256, %cst_100 {dimension_numbers = #tpu.dot_dimension_numbers<[1], [0], [0], [1], [0, 0, 1, 1], [], []>, precision = #tpu.contract_precision<fp32>} : vector<16x16xf32>, vector<16x16xf32>, vector<16x16xf32> -> vector<16x16xf32>
    %258 = arith.addf %253, %257 : vector<16x16xf32>
    %c1_101 = arith.constant 1 : index
    %c0_102 = arith.constant 0 : index
    %c0_103 = arith.constant 0 : index
    %259 = vector.load %arg18[%c1_101, %c0_102, %c0_103] : memref<3x16x16xf32, #tpu.memory_space<vmem>>, vector<1x16x16xf32>
    %260 = vector.shape_cast %259 : vector<1x16x16xf32> to vector<16x16xf32>
    %261 = vector.extract_strided_slice %235 {offsets = [0, 28], sizes = [16, 16], strides = [1, 1]} : vector<16x48xf32> to vector<16x16xf32>
    %cst_104 = arith.constant dense<0.000000e+00> : vector<16x16xf32>
    %262 = tpu.matmul %260, %261, %cst_104 {dimension_numbers = #tpu.dot_dimension_numbers<[1], [0], [0], [1], [0, 0, 1, 1], [], []>, precision = #tpu.contract_precision<fp32>} : vector<16x16xf32>, vector<16x16xf32>, vector<16x16xf32> -> vector<16x16xf32>
    %263 = arith.addf %258, %262 : vector<16x16xf32>
    %c2_105 = arith.constant 2 : index
    %c0_106 = arith.constant 0 : index
    %c0_107 = arith.constant 0 : index
    %264 = vector.load %arg18[%c2_105, %c0_106, %c0_107] : memref<3x16x16xf32, #tpu.memory_space<vmem>>, vector<1x16x16xf32>
    %265 = vector.shape_cast %264 : vector<1x16x16xf32> to vector<16x16xf32>
    %266 = vector.extract_strided_slice %235 {offsets = [0, 32], sizes = [16, 16], strides = [1, 1]} : vector<16x48xf32> to vector<16x16xf32>
    %cst_108 = arith.constant dense<0.000000e+00> : vector<16x16xf32>
    %267 = tpu.matmul %265, %266, %cst_108 {dimension_numbers = #tpu.dot_dimension_numbers<[1], [0], [0], [1], [0, 0, 1, 1], [], []>, precision = #tpu.contract_precision<fp32>} : vector<16x16xf32>, vector<16x16xf32>, vector<16x16xf32> -> vector<16x16xf32>
    %268 = arith.addf %263, %267 : vector<16x16xf32>
    %c0_109 = arith.constant 0 : index
    %c16_110 = arith.constant 16 : index
    %269 = vector.load %arg28[%c0_109, %c16_110] : memref<16x32xf32, #tpu.memory_space<vmem>>, vector<16x16xf32>
    tpu.vector_store %arg28[%c0_109, %c16_110], %268 {strides = array<i32>} : memref<16x32xf32, #tpu.memory_space<vmem>>, vector<16x16xf32>,
    %c0_111 = arith.constant 0 : index
    %c0_112 = arith.constant 0 : index
    %270 = vector.load %arg28[%c0_111, %c0_112] : memref<16x32xf32, #tpu.memory_space<vmem>>, vector<16x32xf32>
    %c0_113 = arith.constant 0 : index
    %c0_114 = arith.constant 0 : index
    %271 = vector.load %arg19[%c0_113, %c0_114] : memref<16x1xf32, #tpu.memory_space<vmem>>, vector<16x1xf32>
    %272 = vector.broadcast %271 : vector<16x1xf32> to vector<16x32xf32>
    %273 = arith.mulf %270, %272 : vector<16x32xf32>
    %c0_115 = arith.constant 0 : index
    %c0_116 = arith.constant 0 : index
    %274 = vector.load %arg20[%c0_115, %c0_116] : memref<16x1xf32, #tpu.memory_space<vmem>>, vector<16x1xf32>
    %275 = vector.broadcast %274 : vector<16x1xf32> to vector<16x32xf32>
    %276 = arith.addf %273, %275 : vector<16x32xf32>
    %277 = arith.negf %276 : vector<16x32xf32>
    %278 = math.exp %277 : vector<16x32xf32>
    %cst_117 = arith.constant 1.000000e+00 : f32
    %279 = vector.broadcast %cst_117 : f32 to vector<16x32xf32>
    %280 = arith.addf %279, %278 : vector<16x32xf32>
    %281 = arith.divf %279, %280 : vector<16x32xf32>
    %282 = arith.mulf %276, %281 : vector<16x32xf32>
    %c0_118 = arith.constant 0 : index
    %c0_119 = arith.constant 0 : index
    %283 = vector.load %arg21[%c0_118, %c0_119] : memref<16x16xf32, #tpu.memory_space<vmem>>, vector<16x16xf32>
    %cst_120 = arith.constant dense<0.000000e+00> : vector<16x32xf32>
    %284 = tpu.matmul %283, %282, %cst_120 {dimension_numbers = #tpu.dot_dimension_numbers<[1], [0], [0], [1], [0, 0, 1, 1], [], []>, precision = #tpu.contract_precision<fp32>} : vector<16x16xf32>, vector<16x32xf32>, vector<16x32xf32> -> vector<16x32xf32>
    %c0_121 = arith.constant 0 : index
    %c0_122 = arith.constant 0 : index
    %285 = vector.load %arg22[%c0_121, %c0_122] : memref<16x1xf32, #tpu.memory_space<vmem>>, vector<16x1xf32>
    %286 = vector.broadcast %285 : vector<16x1xf32> to vector<16x32xf32>
    %287 = arith.mulf %284, %286 : vector<16x32xf32>
    %c0_123 = arith.constant 0 : index
    %c0_124 = arith.constant 0 : index
    %288 = vector.load %arg23[%c0_123, %c0_124] : memref<16x1xf32, #tpu.memory_space<vmem>>, vector<16x1xf32>
    %289 = vector.broadcast %288 : vector<16x1xf32> to vector<16x32xf32>
    %290 = arith.addf %287, %289 : vector<16x32xf32>
    %291 = arith.negf %290 : vector<16x32xf32>
    %292 = math.exp %291 : vector<16x32xf32>
    %cst_125 = arith.constant 1.000000e+00 : f32
    %293 = vector.broadcast %cst_125 : f32 to vector<16x32xf32>
    %294 = arith.addf %293, %292 : vector<16x32xf32>
    %295 = arith.divf %293, %294 : vector<16x32xf32>
    %296 = arith.mulf %290, %295 : vector<16x32xf32>
    %c0_126 = arith.constant 0 : index
    %c0_127 = arith.constant 0 : index
    %c0_128 = arith.constant 0 : index
    %297 = vector.load %arg24[%c0_126, %c0_127, %c0_128] : memref<1x16x32xf32, #tpu.memory_space<vmem>>, vector<1x16x32xf32>
    %298 = vector.shape_cast %297 : vector<1x16x32xf32> to vector<16x32xf32>
    %299 = vector.shape_cast %296 : vector<16x32xf32> to vector<1x16x32xf32>
    tpu.vector_store %arg24[%c0_126, %c0_127, %c0_128], %299 {strides = array<i32>} : memref<1x16x32xf32, #tpu.memory_space<vmem>>, vector<1x16x32xf32>,
    return
  }
  func.func @transform_0(%arg0: i32) -> (i32, i32, i32) {
    %c0_i32 = arith.constant 0 : i32
    %c0_i32_0 = arith.constant 0 : i32
    %c0_i32_1 = arith.constant 0 : i32
    return %arg0, %c0_i32, %c0_i32_0 : i32, i32, i32
  }
  func.func @transform_1(%arg0: i32) -> (i32, i32, i32) {
    %c0_i32 = arith.constant 0 : i32
    %c0_i32_0 = arith.constant 0 : i32
    %c0_i32_1 = arith.constant 0 : i32
    return %arg0, %c0_i32, %c0_i32_0 : i32, i32, i32
  }
  func.func @transform_2(%arg0: i32) -> (i32, i32) {
    %c0_i32 = arith.constant 0 : i32
    %c0_i32_0 = arith.constant 0 : i32
    %c0_i32_1 = arith.constant 0 : i32
    return %c0_i32, %c0_i32_0 : i32, i32
  }
  func.func @transform_3(%arg0: i32) -> (i32, i32) {
    %c0_i32 = arith.constant 0 : i32
    %c0_i32_0 = arith.constant 0 : i32
    %c0_i32_1 = arith.constant 0 : i32
    return %c0_i32, %c0_i32_0 : i32, i32
  }
  func.func @transform_4(%arg0: i32) -> (i32, i32) {
    %c0_i32 = arith.constant 0 : i32
    %c0_i32_0 = arith.constant 0 : i32
    %c0_i32_1 = arith.constant 0 : i32
    return %c0_i32, %c0_i32_0 : i32, i32
  }
  func.func @transform_5(%arg0: i32) -> (i32, i32) {
    %c0_i32 = arith.constant 0 : i32
    %c0_i32_0 = arith.constant 0 : i32
    %c0_i32_1 = arith.constant 0 : i32
    return %c0_i32, %c0_i32_0 : i32, i32
  }
  func.func @transform_6(%arg0: i32) -> (i32, i32) {
    %c0_i32 = arith.constant 0 : i32
    %c0_i32_0 = arith.constant 0 : i32
    %c0_i32_1 = arith.constant 0 : i32
    return %c0_i32, %c0_i32_0 : i32, i32
  }
  func.func @transform_7(%arg0: i32) -> (i32, i32) {
    %c0_i32 = arith.constant 0 : i32
    %c0_i32_0 = arith.constant 0 : i32
    %c0_i32_1 = arith.constant 0 : i32
    return %c0_i32, %c0_i32_0 : i32, i32
  }
  func.func @transform_8(%arg0: i32) -> (i32, i32) {
    %c0_i32 = arith.constant 0 : i32
    %c0_i32_0 = arith.constant 0 : i32
    %c0_i32_1 = arith.constant 0 : i32
    return %c0_i32, %c0_i32_0 : i32, i32
  }
  func.func @transform_9(%arg0: i32) -> (i32, i32) {
    %c0_i32 = arith.constant 0 : i32
    %c0_i32_0 = arith.constant 0 : i32
    %c0_i32_1 = arith.constant 0 : i32
    return %c0_i32, %c0_i32_0 : i32, i32
  }
  func.func @transform_10(%arg0: i32) -> (i32, i32) {
    %c0_i32 = arith.constant 0 : i32
    %c0_i32_0 = arith.constant 0 : i32
    %c0_i32_1 = arith.constant 0 : i32
    return %c0_i32, %c0_i32_0 : i32, i32
  }
  func.func @transform_11(%arg0: i32) -> (i32, i32) {
    %c0_i32 = arith.constant 0 : i32
    %c0_i32_0 = arith.constant 0 : i32
    %c0_i32_1 = arith.constant 0 : i32
    return %c0_i32, %c0_i32_0 : i32, i32
  }
  func.func @transform_12(%arg0: i32) -> (i32, i32) {
    %c0_i32 = arith.constant 0 : i32
    %c0_i32_0 = arith.constant 0 : i32
    %c0_i32_1 = arith.constant 0 : i32
    return %c0_i32, %c0_i32_0 : i32, i32
  }
  func.func @transform_13(%arg0: i32) -> (i32, i32) {
    %c0_i32 = arith.constant 0 : i32
    %c0_i32_0 = arith.constant 0 : i32
    %c0_i32_1 = arith.constant 0 : i32
    return %c0_i32, %c0_i32_0 : i32, i32
  }
  func.func @transform_14(%arg0: i32) -> (i32, i32) {
    %c0_i32 = arith.constant 0 : i32
    %c0_i32_0 = arith.constant 0 : i32
    %c0_i32_1 = arith.constant 0 : i32
    return %c0_i32, %c0_i32_0 : i32, i32
  }
  func.func @transform_15(%arg0: i32) -> (i32, i32) {
    %c0_i32 = arith.constant 0 : i32
    %c0_i32_0 = arith.constant 0 : i32
    %c0_i32_1 = arith.constant 0 : i32
    return %c0_i32, %c0_i32_0 : i32, i32
  }
  func.func @transform_16(%arg0: i32) -> (i32, i32) {
    %c0_i32 = arith.constant 0 : i32
    %c0_i32_0 = arith.constant 0 : i32
    %c0_i32_1 = arith.constant 0 : i32
    return %c0_i32, %c0_i32_0 : i32, i32
  }
  func.func @transform_17(%arg0: i32) -> (i32, i32, i32) {
    %c0_i32 = arith.constant 0 : i32
    %c0_i32_0 = arith.constant 0 : i32
    %c0_i32_1 = arith.constant 0 : i32
    %c0_i32_2 = arith.constant 0 : i32
    return %c0_i32, %c0_i32_0, %c0_i32_1 : i32, i32, i32
  }
  func.func @transform_18(%arg0: i32) -> (i32, i32) {
    %c0_i32 = arith.constant 0 : i32
    %c0_i32_0 = arith.constant 0 : i32
    %c0_i32_1 = arith.constant 0 : i32
    return %c0_i32, %c0_i32_0 : i32, i32
  }
  func.func @transform_19(%arg0: i32) -> (i32, i32) {
    %c0_i32 = arith.constant 0 : i32
    %c0_i32_0 = arith.constant 0 : i32
    %c0_i32_1 = arith.constant 0 : i32
    return %c0_i32, %c0_i32_0 : i32, i32
  }
  func.func @transform_20(%arg0: i32) -> (i32, i32) {
    %c0_i32 = arith.constant 0 : i32
    %c0_i32_0 = arith.constant 0 : i32
    %c0_i32_1 = arith.constant 0 : i32
    return %c0_i32, %c0_i32_0 : i32, i32
  }
  func.func @transform_21(%arg0: i32) -> (i32, i32) {
    %c0_i32 = arith.constant 0 : i32
    %c0_i32_0 = arith.constant 0 : i32
    %c0_i32_1 = arith.constant 0 : i32
    return %c0_i32, %c0_i32_0 : i32, i32
  }
  func.func @transform_22(%arg0: i32) -> (i32, i32) {
    %c0_i32 = arith.constant 0 : i32
    %c0_i32_0 = arith.constant 0 : i32
    %c0_i32_1 = arith.constant 0 : i32
    return %c0_i32, %c0_i32_0 : i32, i32
  }
  func.func @transform_23(%arg0: i32) -> (i32, i32, i32) {
    %c0_i32 = arith.constant 0 : i32
    %c0_i32_0 = arith.constant 0 : i32
    %c0_i32_1 = arith.constant 0 : i32
    return %arg0, %c0_i32, %c0_i32_0 : i32, i32, i32
  }
}

</mosaic_0001>

<llo_original>
// kernel: tcn_forward.1
$region0: #{tcn_forward.1}
  #allocation0 [shape = 'u32[]', space=smem, size = 0x4, offset = 0x4, fixed_abs, tag = 'smem constant byte address 0x4 - core index']
  #allocation1 [shape = 'u32[144,128]{1,0:T(1,128)}', space=vmem, size = 0x12000, scoped, tag = 'internal scratch']
  #allocation2 [shape = 'f32[8,40]{1,0:T(8,128)}', space=vmem, size = 0x1000, scoped, tag = 'scratch operand']
  #allocation3 [shape = 'f32[16,32]{1,0:T(8,128)}', space=vmem, size = 0x2000, scoped, tag = 'scratch operand']
  #allocation4 [shape = 'f32[8,48]{1,0:T(8,128)}', space=vmem, size = 0x1000, scoped, tag = 'scratch operand']
  #allocation5 [shape = 'f32[16,32]{1,0:T(8,128)}', space=vmem, size = 0x2000, scoped, tag = 'scratch operand']
  %s0 = inlined_call_operand.vmem [shape: f32[1,1,34], index: 0, kind: input, shape index: {}]
  %s1 = inlined_call_operand.vmem [shape: f32[1,1,34], index: 1, kind: input, shape index: {}]
  %s2 = inlined_call_operand.hbm [shape: f32[8,3], index: 2, kind: input, shape index: {}]
  %s3 = inlined_call_operand.vmem [shape: f32[8,1], index: 3, kind: input, shape index: {}, may-alias: {3,12}]
  %s4 = inlined_call_operand.hbm [shape: f32[8,1], index: 4, kind: input, shape index: {}]
  %s5 = inlined_call_operand.hbm [shape: f32[16,8], index: 5, kind: input, shape index: {}]
  %s6 = inlined_call_operand.vmem [shape: f32[16,1], index: 6, kind: input, shape index: {}, may-alias: {6,9,15,18,21}]
  %s7 = inlined_call_operand.hbm [shape: f32[16,1], index: 7, kind: input, shape index: {}]
  %s8 = inlined_call_operand.hbm [shape: f32[16,3], index: 8, kind: input, shape index: {}]
  %s9 = inlined_call_operand.vmem [shape: f32[16,1], index: 9, kind: input, shape index: {}, may-alias: {6,9,15,18,21}]
  %s10 = inlined_call_operand.hbm [shape: f32[16,1], index: 10, kind: input, shape index: {}]
  %s11 = inlined_call_operand.hbm [shape: f32[8,16], index: 11, kind: input, shape index: {}]
  %s12 = inlined_call_operand.vmem [shape: f32[8,1], index: 12, kind: input, shape index: {}, may-alias: {3,12}]
  %s13 = inlined_call_operand.hbm [shape: f32[8,1], index: 13, kind: input, shape index: {}]
  %s14 = inlined_call_operand.hbm [shape: f32[16,8], index: 14, kind: input, shape index: {}]
  %s15 = inlined_call_operand.vmem [shape: f32[16,1], index: 15, kind: input, shape index: {}, may-alias: {6,9,15,18,21}]
  %s16 = inlined_call_operand.hbm [shape: f32[16,1], index: 16, kind: input, shape index: {}]
  %s17 = inlined_call_operand.vmem [shape: f32[3,16,16], index: 17, kind: input, shape index: {}]
  %s18 = inlined_call_operand.vmem [shape: f32[16,1], index: 18, kind: input, shape index: {}, may-alias: {6,9,15,18,21}]
  %s19 = inlined_call_operand.vmem [shape: f32[16,1], index: 19, kind: input, shape index: {}]
  %s20 = inlined_call_operand.vmem [shape: f32[16,16], index: 20, kind: input, shape index: {}]
  %s21 = inlined_call_operand.vmem [shape: f32[16,1], index: 21, kind: input, shape index: {}, may-alias: {6,9,15,18,21}]
  %s22 = inlined_call_operand.vmem [shape: f32[16,1], index: 22, kind: input, shape index: {}]
  %s23 = inlined_call_operand.vmem [shape: f32[1,16,32], index: 23, kind: output, shape index: {}]
  %s24 = sld [smem:[#allocation0]]
  $region142: #{tcn_forward.1} parent=0
    _
  %s26 = ssub.s32 1, %s24
  %s27 = scalar_select 0, %s26, %s24
  $region1: #{tcn_forward.1} parent=0
    #allocation6 [shape = 'u8[4096]{0}', space=vmem, size = 0x1000, scoped, tag = 'input window, operand 2, single buffered']
    #allocation7 [shape = 's32[1]{0}', space=sflag, size = 0x4, scoped, tag = 'scoped memory for tcn_forward.1']
    #allocation8 [shape = 'u8[4096]{0}', space=vmem, size = 0x1000, scoped, tag = 'input window, operand 4, single buffered']
    #allocation9 [shape = 's32[1]{0}', space=sflag, size = 0x4, scoped, tag = 'scoped memory for tcn_forward.1']
    #allocation10 [shape = 'u8[8192]{0}', space=vmem, size = 0x2000, scoped, tag = 'input window, operand 5, single buffered']
    #allocation11 [shape = 'u8[8192]{0}', space=vmem, size = 0x2000, scoped, tag = 'input window, operand 7, single buffered']
    #allocation12 [shape = 's32[1]{0}', space=sflag, size = 0x4, scoped, tag = 'scoped memory for tcn_forward.1']
    #allocation13 [shape = 'u8[8192]{0}', space=vmem, size = 0x2000, scoped, tag = 'input window, operand 8, single buffered']
    #allocation14 [shape = 'u8[8192]{0}', space=vmem, size = 0x2000, scoped, tag = 'input window, operand 10, single buffered']
    #allocation15 [shape = 's32[1]{0}', space=sflag, size = 0x4, scoped, tag = 'scoped memory for tcn_forward.1']
    #allocation16 [shape = 'u8[4096]{0}', space=vmem, size = 0x1000, scoped, tag = 'input window, operand 11, single buffered']
    #allocation17 [shape = 'u8[4096]{0}', space=vmem, size = 0x1000, scoped, tag = 'input window, operand 13, single buffered']
    #allocation18 [shape = 's32[1]{0}', space=sflag, size = 0x4, scoped, tag = 'scoped memory for tcn_forward.1']
    #allocation19 [shape = 'u8[8192]{0}', space=vmem, size = 0x2000, scoped, tag = 'input window, operand 14, single buffered']
    #allocation20 [shape = 'u8[8192]{0}', space=vmem, size = 0x2000, scoped, tag = 'input window, operand 16, single buffered']
    #allocation21 [shape = 's32[1]{0}', space=sflag, size = 0x4, scoped, tag = 'scoped memory for tcn_forward.1']
    %28 = vsyncpa [#allocation7], 0
    %29 = vsyncpa [#allocation9], 0
    %30 = vsyncpa [#allocation12], 0
    %31 = vsyncpa [#allocation15], 0
    %32 = vsyncpa [#allocation18], 0
    %33 = vsyncpa [#allocation21], 0
    // Predicated region
    $region2: #{tcn_forward.1} parent=1 // pred_check
      _
    $region3: #{tcn_forward.1} parent=1 // pred_check_branch
      %35 = sbr.rel (0) target = $region5
    $region4: #{tcn_forward.1} parent=1 // pred_region
      _
    $region5: #{tcn_forward.1} parent=1 // pred_fallthru
      _
    // Predicated region
    $region6: #{tcn_forward.1} parent=1 // pred_check
      _
    $region7: #{tcn_forward.1} parent=1 // pred_check_branch
      %37 = sbr.rel (0) target = $region9
    $region8: #{tcn_forward.1} parent=1 // pred_region
      _
    $region9: #{tcn_forward.1} parent=1 // pred_fallthru
      _
    // Predicated region
    $region10: #{tcn_forward.1} parent=1 // pred_check
      _
    $region11: #{tcn_forward.1} parent=1 // pred_check_branch
      %39 = sbr.rel (0) target = $region13
    $region12: #{tcn_forward.1} parent=1 // pred_region
      %s41 = ssub.s32 128, 128
      %42 = vsyncadd [#allocation7], %s41
      %s44 = sshll.u32 [#allocation6], 4
      %s45 = int_to_ptr.vmem [resolvable:$true] %s44
      %47 = dma.hbm_to_vmem [thread:$0]  %s2, 128, %s45, [#allocation7]
    $region13: #{tcn_forward.1} parent=1 // pred_fallthru
      _
    // Predicated region
    $region14: #{tcn_forward.1} parent=1 // pred_check
      _
    $region15: #{tcn_forward.1} parent=1 // pred_check_branch
      %49 = sbr.rel (0) target = $region17
    $region16: #{tcn_forward.1} parent=1 // pred_region
      _
    $region17: #{tcn_forward.1} parent=1 // pred_fallthru
      _
    // Predicated region
    $region18: #{tcn_forward.1} parent=1 // pred_check
      _
    $region19: #{tcn_forward.1} parent=1 // pred_check_branch
      %51 = sbr.rel (0) target = $region21
    $region20: #{tcn_forward.1} parent=1 // pred_region
      %s53 = ssub.s32 128, 128
      %54 = vsyncadd [#allocation9], %s53
      %s56 = sshll.u32 [#allocation8], 4
      %s57 = int_to_ptr.vmem [resolvable:$true] %s56
      %59 = dma.hbm_to_vmem [thread:$0]  %s4, 128, %s57, [#allocation9]
    $region21: #{tcn_forward.1} parent=1 // pred_fallthru
      _
    // Predicated region
    $region22: #{tcn_forward.1} parent=1 // pred_check
      _
    $region23: #{tcn_forward.1} parent=1 // pred_check_branch
      %61 = sbr.rel (0) target = $region25
    $region24: #{tcn_forward.1} parent=1 // pred_region
      %s63 = ssub.s32 256, 256
      %64 = vsyncadd [#allocation9], %s63
      %s65 = sshll.u32 [#allocation10], 4
      %s66 = int_to_ptr.vmem [resolvable:$true] %s65
      %71 = dma.hbm_to_vmem [thread:$0]  %s5, 256, %s66, [#allocation9], 128, 128, 8
    $region25: #{tcn_forward.1} parent=1 // pred_fallthru
      _
    // Predicated region
    $region26: #{tcn_forward.1} parent=1 // pred_check
      _
    $region27: #{tcn_forward.1} parent=1 // pred_check_branch
      %73 = sbr.rel (0) target = $region29
    $region28: #{tcn_forward.1} parent=1 // pred_region
      _
    $region29: #{tcn_forward.1} parent=1 // pred_fallthru
      _
    // Predicated region
    $region30: #{tcn_forward.1} parent=1 // pred_check
      _
    $region31: #{tcn_forward.1} parent=1 // pred_check_branch
      %75 = sbr.rel (0) target = $region33
    $region32: #{tcn_forward.1} parent=1 // pred_region
      %s77 = ssub.s32 256, 256
      %78 = vsyncadd [#allocation12], %s77
      %s79 = sshll.u32 [#allocation11], 4
      %s80 = int_to_ptr.vmem [resolvable:$true] %s79
      %85 = dma.hbm_to_vmem [thread:$0]  %s7, 256, %s80, [#allocation12], 128, 128, 8
    $region33: #{tcn_forward.1} parent=1 // pred_fallthru
      _
    // Predicated region
    $region34: #{tcn_forward.1} parent=1 // pred_check
      _
    $region35: #{tcn_forward.1} parent=1 // pred_check_branch
      %87 = sbr.rel (0) target = $region37
    $region36: #{tcn_forward.1} parent=1 // pred_region
      %s89 = ssub.s32 256, 256
      %90 = vsyncadd [#allocation12], %s89
      %s91 = sshll.u32 [#allocation13], 4
      %s92 = int_to_ptr.vmem [resolvable:$true] %s91
      %97 = dma.hbm_to_vmem [thread:$0]  %s8, 256, %s92, [#allocation12], 128, 128, 8
    $region37: #{tcn_forward.1} parent=1 // pred_fallthru
      _
    // Predicated region
    $region38: #{tcn_forward.1} parent=1 // pred_check
      _
    $region39: #{tcn_forward.1} parent=1 // pred_check_branch
      %99 = sbr.rel (0) target = $region41
    $region40: #{tcn_forward.1} parent=1 // pred_region
      _
    $region41: #{tcn_forward.1} parent=1 // pred_fallthru
      _
    // Predicated region
    $region42: #{tcn_forward.1} parent=1 // pred_check
      _
    $region43: #{tcn_forward.1} parent=1 // pred_check_branch
      %101 = sbr.rel (0) target = $region45
    $region44: #{tcn_forward.1} parent=1 // pred_region
      %s103 = ssub.s32 256, 256
      %104 = vsyncadd [#allocation15], %s103
      %s105 = sshll.u32 [#allocation14], 4
      %s106 = int_to_ptr.vmem [resolvable:$true] %s105
      %111 = dma.hbm_to_vmem [thread:$0]  %s10, 256, %s106, [#allocation15], 128, 128, 8
    $region45: #{tcn_forward.1} parent=1 // pred_fallthru
      _
    // Predicated region
    $region46: #{tcn_forward.1} parent=1 // pred_check
      _
    $region47: #{tcn_forward.1} parent=1 // pred_check_branch
      %113 = sbr.rel (0) target = $region49
    $region48: #{tcn_forward.1} parent=1 // pred_region
      %s115 = ssub.s32 128, 128
      %116 = vsyncadd [#allocation15], %s115
      %s118 = sshll.u32 [#allocation16], 4
      %s119 = int_to_ptr.vmem [resolvable:$true] %s118
      %121 = dma.hbm_to_vmem [thread:$0]  %s11, 128, %s119, [#allocation15]
    $region49: #{tcn_forward.1} parent=1 // pred_fallthru
      _
    // Predicated region
    $region50: #{tcn_forward.1} parent=1 // pred_check
      _
    $region51: #{tcn_forward.1} parent=1 // pred_check_branch
      %123 = sbr.rel (0) target = $region53
    $region52: #{tcn_forward.1} parent=1 // pred_region
      _
    $region53: #{tcn_forward.1} parent=1 // pred_fallthru
      _
    // Predicated region
    $region54: #{tcn_forward.1} parent=1 // pred_check
      _
    $region55: #{tcn_forward.1} parent=1 // pred_check_branch
      %125 = sbr.rel (0) target = $region57
    $region56: #{tcn_forward.1} parent=1 // pred_region
      %s127 = ssub.s32 128, 128
      %128 = vsyncadd [#allocation18], %s127
      %s130 = sshll.u32 [#allocation17], 4
      %s131 = int_to_ptr.vmem [resolvable:$true] %s130
      %133 = dma.hbm_to_vmem [thread:$0]  %s13, 128, %s131, [#allocation18]
    $region57: #{tcn_forward.1} parent=1 // pred_fallthru
      _
    // Predicated region
    $region58: #{tcn_forward.1} parent=1 // pred_check
      _
    $region59: #{tcn_forward.1} parent=1 // pred_check_branch
      %135 = sbr.rel (0) target = $region61
    $region60: #{tcn_forward.1} parent=1 // pred_region
      %s137 = ssub.s32 256, 256
      %138 = vsyncadd [#allocation18], %s137
      %s139 = sshll.u32 [#allocation19], 4
      %s140 = int_to_ptr.vmem [resolvable:$true] %s139
      %145 = dma.hbm_to_vmem [thread:$0]  %s14, 256, %s140, [#allocation18], 128, 128, 8
    $region61: #{tcn_forward.1} parent=1 // pred_fallthru
      _
    // Predicated region
    $region62: #{tcn_forward.1} parent=1 // pred_check
      _
    $region63: #{tcn_forward.1} parent=1 // pred_check_branch
      %147 = sbr.rel (0) target = $region65
    $region64: #{tcn_forward.1} parent=1 // pred_region
      _
    $region65: #{tcn_forward.1} parent=1 // pred_fallthru
      _
    // Predicated region
    $region66: #{tcn_forward.1} parent=1 // pred_check
      _
    $region67: #{tcn_forward.1} parent=1 // pred_check_branch
      %149 = sbr.rel (0) target = $region69
    $region68: #{tcn_forward.1} parent=1 // pred_region
      %s151 = ssub.s32 256, 256
      %152 = vsyncadd [#allocation21], %s151
      %s153 = sshll.u32 [#allocation20], 4
      %s154 = int_to_ptr.vmem [resolvable:$true] %s153
      %159 = dma.hbm_to_vmem [thread:$0]  %s16, 256, %s154, [#allocation21], 128, 128, 8
    $region69: #{tcn_forward.1} parent=1 // pred_fallthru
      _
    // Predicated region
    $region70: #{tcn_forward.1} parent=1 // pred_check
      _
    $region71: #{tcn_forward.1} parent=1 // pred_check_branch
      %161 = sbr.rel (0) target = $region73
    $region72: #{tcn_forward.1} parent=1 // pred_region
      _
    $region73: #{tcn_forward.1} parent=1 // pred_fallthru
      _
    // Predicated region
    $region74: #{tcn_forward.1} parent=1 // pred_check
      _
    $region75: #{tcn_forward.1} parent=1 // pred_check_branch
      %163 = sbr.rel (0) target = $region77
    $region76: #{tcn_forward.1} parent=1 // pred_region
      _
    $region77: #{tcn_forward.1} parent=1 // pred_fallthru
      _
    // Predicated region
    $region78: #{tcn_forward.1} parent=1 // pred_check
      _
    $region79: #{tcn_forward.1} parent=1 // pred_check_branch
      %165 = sbr.rel (0) target = $region81
    $region80: #{tcn_forward.1} parent=1 // pred_region
      _
    $region81: #{tcn_forward.1} parent=1 // pred_fallthru
      _
    // Predicated region
    $region82: #{tcn_forward.1} parent=1 // pred_check
      _
    $region83: #{tcn_forward.1} parent=1 // pred_check_branch
      %167 = sbr.rel (0) target = $region85
    $region84: #{tcn_forward.1} parent=1 // pred_region
      _
    $region85: #{tcn_forward.1} parent=1 // pred_fallthru
      _
    // Predicated region
    $region86: #{tcn_forward.1} parent=1 // pred_check
      _
    $region87: #{tcn_forward.1} parent=1 // pred_check_branch
      %169 = sbr.rel (0) target = $region89
    $region88: #{tcn_forward.1} parent=1 // pred_region
      _
    $region89: #{tcn_forward.1} parent=1 // pred_fallthru
      _
    // Predicated region
    $region90: #{tcn_forward.1} parent=1 // pred_check
      _
    $region91: #{tcn_forward.1} parent=1 // pred_check_branch
      %171 = sbr.rel (0) target = $region93
    $region92: #{tcn_forward.1} parent=1 // pred_region
      _
    $region93: #{tcn_forward.1} parent=1 // pred_fallthru
      _
    // Predicated region
    $region94: #{tcn_forward.1} parent=1 // pred_check
      _
    $region95: #{tcn_forward.1} parent=1 // pred_check_branch
      %173 = sbr.rel (0) target = $region97
    $region96: #{tcn_forward.1} parent=1 // pred_region
      %174 = dma.done [#allocation7], 128
    $region97: #{tcn_forward.1} parent=1 // pred_fallthru
      _
    // Predicated region
    $region98: #{tcn_forward.1} parent=1 // pred_check
      _
    $region99: #{tcn_forward.1} parent=1 // pred_check_branch
      %176 = sbr.rel (0) target = $region101
    $region100: #{tcn_forward.1} parent=1 // pred_region
      %177 = dma.done [#allocation9], 128
    $region101: #{tcn_forward.1} parent=1 // pred_fallthru
      _
    // Predicated region
    $region102: #{tcn_forward.1} parent=1 // pred_check
      _
    $region103: #{tcn_forward.1} parent=1 // pred_check_branch
      %179 = sbr.rel (0) target = $region105
    $region104: #{tcn_forward.1} parent=1 // pred_region
      %180 = dma.done [#allocation9], 256
    $region105: #{tcn_forward.1} parent=1 // pred_fallthru
      _
    // Predicated region
    $region106: #{tcn_forward.1} parent=1 // pred_check
      _
    $region107: #{tcn_forward.1} parent=1 // pred_check_branch
      %182 = sbr.rel (0) target = $region109
    $region108: #{tcn_forward.1} parent=1 // pred_region
      %183 = dma.done [#allocation12], 256
    $region109: #{tcn_forward.1} parent=1 // pred_fallthru
      _
    // Predicated region
    $region110: #{tcn_forward.1} parent=1 // pred_check
      _
    $region111: #{tcn_forward.1} parent=1 // pred_check_branch
      %185 = sbr.rel (0) target = $region113
    $region112: #{tcn_forward.1} parent=1 // pred_region
      %186 = dma.done [#allocation12], 256
    $region113: #{tcn_forward.1} parent=1 // pred_fallthru
      _
    // Predicated region
    $region114: #{tcn_forward.1} parent=1 // pred_check
      _
    $region115: #{tcn_forward.1} parent=1 // pred_check_branch
      %188 = sbr.rel (0) target = $region117
    $region116: #{tcn_forward.1} parent=1 // pred_region
      %189 = dma.done [#allocation15], 256
    $region117: #{tcn_forward.1} parent=1 // pred_fallthru
      _
    // Predicated region
    $region118: #{tcn_forward.1} parent=1 // pred_check
      _
    $region119: #{tcn_forward.1} parent=1 // pred_check_branch
      %191 = sbr.rel (0) target = $region121
    $region120: #{tcn_forward.1} parent=1 // pred_region
      %192 = dma.done [#allocation15], 128
    $region121: #{tcn_forward.1} parent=1 // pred_fallthru
      _
    // Predicated region
    $region122: #{tcn_forward.1} parent=1 // pred_check
      _
    $region123: #{tcn_forward.1} parent=1 // pred_check_branch
      %194 = sbr.rel (0) target = $region125
    $region124: #{tcn_forward.1} parent=1 // pred_region
      %195 = dma.done [#allocation18], 128
    $region125: #{tcn_forward.1} parent=1 // pred_fallthru
      _
    // Predicated region
    $region126: #{tcn_forward.1} parent=1 // pred_check
      _
    $region127: #{tcn_forward.1} parent=1 // pred_check_branch
      %197 = sbr.rel (0) target = $region129
    $region128: #{tcn_forward.1} parent=1 // pred_region
      %198 = dma.done [#allocation18], 256
    $region129: #{tcn_forward.1} parent=1 // pred_fallthru
      _
    // Predicated region
    $region130: #{tcn_forward.1} parent=1 // pred_check
      _
    $region131: #{tcn_forward.1} parent=1 // pred_check_branch
      %200 = sbr.rel (0) target = $region133
    $region132: #{tcn_forward.1} parent=1 // pred_region
      %201 = dma.done [#allocation21], 256
    $region133: #{tcn_forward.1} parent=1 // pred_fallthru
      _
    %v202 = vld [vmem:[%s0] sm:$0x1]
    %v203 = vld [vmem:[%s1] sm:$0x1]
    %v204 = vld [vmem:[#allocation6] sm:$0xff]
    %v205 = vld [vmem:[%s3] sm:$0xff]
    %v206 = vld [vmem:[#allocation8] sm:$0xff]
    %vm207 = vcmask 326656
    %208 = vst.msk [vmem:[#allocation2] sm:$0xff] %vm207, 0.0
    %210 = vset.pattern.permute.xlu0 0
    %211 = vperm.xlu0 %210, %v204
    %v212 = vpop.permute.xlu0 %211
    %v215 = vlaneseq
    %v216 = vshrl.u32 %v215, 7
    %v217 = vsub.s32 0, %v216
    %v218 = vrot.slane %v202, %v217
    %v220 = vmul.f32 %v212, %v218
    %v221 = vadd.f32 %v220, 0.0
    %v223 = vlaneseq
    %v224 = vshrl.u32 %v223, 7
    %v225 = vsub.s32 0, %v224
    %v226 = vrot.slane %v203, %v225
    %v228 = vmul.f32 %v212, %v226
    %v229 = vadd.f32 %v228, 0.0
    %230 = vset.pattern.permute.xlu0 1
    %231 = vperm.xlu0 %230, %v204
    %v232 = vpop.permute.xlu0 %231
    %v234 = vmul.f32 %v232, %v226
    %v235 = vadd.f32 %v221, %v234
    %v236 = vmul.f32 %v232, %v218
    %238 = vrot.lane.b32.xlu0 %v236, 127
    %v239 = vpop.permute.xlu0 %238
    %v241 = vadd.f32 %v229, %v239
    %242 = vset.pattern.permute.xlu0 2
    %243 = vperm.xlu0 %242, %v204
    %v244 = vpop.permute.xlu0 %243
    %v246 = vmul.f32 %v244, %v218
    %248 = vrot.lane.b32.xlu0 %v246, 127
    %v249 = vpop.permute.xlu0 %248
    %v251 = vadd.f32 %v235, %v249
    %v252 = vmul.f32 %v244, %v226
    %254 = vrot.lane.b32.xlu0 %v252, 127
    %v255 = vpop.permute.xlu0 %254
    %v257 = vadd.f32 %v241, %v255
    %259 = vset.pattern.permute.xlu0 0
    %260 = vperm.xlu0 %259, %v205
    %v261 = vpop.permute.xlu0 %260
    %v263 = vmul.f32 %v251, %v261
    %265 = vset.pattern.permute.xlu0 0
    %266 = vperm.xlu0 %265, %v206
    %v267 = vpop.permute.xlu0 %266
    %v269 = vadd.f32 %v263, %v267
    %v270 = vmul.f32 %v257, %v261
    %v271 = vadd.f32 %v270, %v267
    %v272 = vxor.u32 %v269, 2147483648
    %v273 = vmul.f32 %v272, 1.442695
    %v274 = vpow.pop %v273
    %v275 = vadd.f32 %v274, 1.0
    %v276 = vrcp.pop %v275
    %v277 = vmul.f32 1.0, %v276
    %v278 = vmul.f32 %v269, %v277
    %v279 = vxor.u32 %v271, 2147483648
    %v280 = vmul.f32 %v279, 1.442695
    %v281 = vpow.pop %v280
    %v282 = vadd.f32 %v281, 1.0
    %v283 = vrcp.pop %v282
    %v284 = vmul.f32 1.0, %v283
    %v285 = vmul.f32 %v271, %v284
    %v286 = vmax.f32 %v278, %v285
    %288 = vrot.lane.b32.xlu0 %v286, 2
    %v289 = vpop.permute.xlu0 %288
    %vm291 = vcmask 146448
    %292 = vst.msk [vmem:[#allocation2] sm:$0xff] %vm291, %v289
    %293 = vrot.lane.b32.xlu0 %v286, 5
    %v294 = vpop.permute.xlu0 %293
    %vm296 = vcmask 310448
    %297 = vst.msk [vmem:[#allocation2] sm:$0xff] %vm296, %v294
    %v298 = vld [vmem:[#allocation2] sm:$0xff]
    %v299 = vld [vmem:[#allocation10] sm:$0xff]
    %v300 = vld [vmem:[#allocation10 + $0x8] sm:$0xff]
    %vm301 = vcmask 64512
    %v303 = vsel %vm301, %v299, 0
    %v306 = vsel %vm301, %v300, 0
    %308 = vmatprep.subr.mxu0 0.0
    %v309 = vand.u32 %v298, 4294901760
    %310 = vmatpush1.msra.mxu0 %v309
    %311 = vmatprep.subr.mxu0 0.0
    %312 = vmatpush1.msra.mxu0 0.0
    %313 = vmatprep.subr.mxu0 0.0
    %314 = vmatpush1.msra.mxu0 0.0
    %315 = vmatprep.subr.mxu0 0.0
    %316 = vmatpush1.msra.mxu0 0.0
    %317 = vmatprep.subr.mxu0 0.0
    %318 = vmatpush1.msra.mxu0 0.0
    %319 = vmatprep.subr.mxu0 0.0
    %320 = vmatpush1.msra.mxu0 0.0
    %321 = vmatprep.subr.mxu0 0.0
    %322 = vmatpush1.msra.mxu0 0.0
    %323 = vmatprep.subr.mxu0 0.0
    %324 = vmatpush1.msra.mxu0 0.0
    %325 = vmatprep.subr.mxu0 0.0
    %326 = vmatpush1.msra.mxu0 0.0
    %327 = vmatprep.subr.mxu0 0.0
    %328 = vmatpush1.msra.mxu0 0.0
    %329 = vmatprep.subr.mxu0 0.0
    %330 = vmatpush1.msra.mxu0 0.0
    %331 = vmatprep.subr.mxu0 0.0
    %332 = vmatpush1.msra.mxu0 0.0
    %333 = vmatprep.subr.mxu0 0.0
    %334 = vmatpush1.msra.mxu0 0.0
    %335 = vmatprep.subr.mxu0 0.0
    %336 = vmatpush1.msra.mxu0 0.0
    %337 = vmatprep.subr.mxu0 0.0
    %338 = vmatpush1.msra.mxu0 0.0
    %339 = vmatprep.subr.mxu0 0.0
    %340 = vmatpush1.msra.mxu0 0.0
    %341 = vmatprep.subr.mxu0 0.0
    %342 = vmatpush1.msra.mxu0 0.0
    %343 = vmatprep.subr.mxu0 0.0
    %344 = vmatpush1.msra.mxu0 0.0
    %345 = vmatprep.subr.mxu0 0.0
    %346 = vmatpush1.msra.mxu0 0.0
    %347 = vmatprep.subr.mxu0 0.0
    %348 = vmatpush1.msra.mxu0 0.0
    %349 = vmatprep.subr.mxu0 0.0
    %350 = vmatpush1.msra.mxu0 0.0
    %351 = vmatprep.subr.mxu0 0.0
    %352 = vmatpush1.msra.mxu0 0.0
    %353 = vmatprep.subr.mxu0 0.0
    %354 = vmatpush1.msra.mxu0 0.0
    %355 = vmatprep.subr.mxu0 0.0
    %356 = vmatpush1.msra.mxu0 0.0
    %357 = vmatprep.subr.mxu0 0.0
    %358 = vmatpush1.msra.mxu0 0.0
    %359 = vmatprep.subr.mxu0 0.0
    %360 = vmatpush1.msra.mxu0 0.0
    %361 = vmatprep.subr.mxu0 0.0
    %362 = vmatpush1.msra.mxu0 0.0
    %363 = vmatprep.subr.mxu0 0.0
    %364 = vmatpush1.msra.mxu0 0.0
    %365 = vmatprep.subr.mxu0 0.0
    %366 = vmatpush1.msra.mxu0 0.0
    %367 = vmatprep.subr.mxu0 0.0
    %368 = vmatpush1.msra.mxu0 0.0
    %369 = vmatprep.subr.mxu0 0.0
    %370 = vmatpush1.msra.mxu0 0.0
    %371 = vmatprep.subr.mxu0 0.0
    %372 = vmatpush1.msra.mxu0 0.0
    %373 = vmatprep.mubr.f32.mxu0 0.0
    %v374 = vand.u32 %v303, 4294901760
    %v375 = vsub.f32 %v303, %v374
    %v376 = vand.u32 %v375, 4294901760
    %v377 = vsub.f32 %v375, %v376
    %v378 = vand.u32 %v377, 4294901760
    %379 = vmatmul.mubr.f32.gmra.mrb[0].mxu0 %v378
    %v380 = vpop.f32.mrb[0].mxu0
    %v381 = vadd.f32 0.0, %v380
    %v382 = vpop.f32.mrb[0].mxu0
    %383 = vmatprep.mubr.f32.mxu0 0.0
    %v384 = vand.u32 %v306, 4294901760
    %v385 = vsub.f32 %v306, %v384
    %v386 = vand.u32 %v385, 4294901760
    %v387 = vsub.f32 %v385, %v386
    %v388 = vand.u32 %v387, 4294901760
    %389 = vmatmul.mubr.f32.gmra.mrb[0].mxu0 %v388
    %v390 = vpop.f32.mrb[0].mxu0
    %v391 = vadd.f32 0.0, %v390
    %v392 = vpop.f32.mrb[0].mxu0
    %393 = vdwg.mxu0
    %394 = vmatprep.subr.mxu0 0.0
    %v395 = vand.u32 %v298, 4294901760
    %v396 = vsub.f32 %v298, %v395
    %v397 = vand.u32 %v396, 4294901760
    %v398 = vsub.f32 %v396, %v397
    %v399 = vand.u32 %v398, 4294901760
    %400 = vmatpush1.msra.mxu0 %v399
    %401 = vmatprep.subr.mxu0 0.0
    %402 = vmatpush1.msra.mxu0 0.0
    %403 = vmatprep.subr.mxu0 0.0
    %404 = vmatpush1.msra.mxu0 0.0
    %405 = vmatprep.subr.mxu0 0.0
    %406 = vmatpush1.msra.mxu0 0.0
    %407 = vmatprep.subr.mxu0 0.0
    %408 = vmatpush1.msra.mxu0 0.0
    %409 = vmatprep.subr.mxu0 0.0
    %410 = vmatpush1.msra.mxu0 0.0
    %411 = vmatprep.subr.mxu0 0.0
    %412 = vmatpush1.msra.mxu0 0.0
    %413 = vmatprep.subr.mxu0 0.0
    %414 = vmatpush1.msra.mxu0 0.0
    %415 = vmatprep.subr.mxu0 0.0
    %416 = vmatpush1.msra.mxu0 0.0
    %417 = vmatprep.subr.mxu0 0.0
    %418 = vmatpush1.msra.mxu0 0.0
    %419 = vmatprep.subr.mxu0 0.0
    %420 = vmatpush1.msra.mxu0 0.0
    %421 = vmatprep.subr.mxu0 0.0
    %422 = vmatpush1.msra.mxu0 0.0
    %423 = vmatprep.subr.mxu0 0.0
    %424 = vmatpush1.msra.mxu0 0.0
    %425 = vmatprep.subr.mxu0 0.0
    %426 = vmatpush1.msra.mxu0 0.0
    %427 = vmatprep.subr.mxu0 0.0
    %428 = vmatpush1.msra.mxu0 0.0
    %429 = vmatprep.subr.mxu0 0.0
    %430 = vmatpush1.msra.mxu0 0.0
    %431 = vmatprep.subr.mxu0 0.0
    %432 = vmatpush1.msra.mxu0 0.0
    %433 = vmatprep.subr.mxu0 0.0
    %434 = vmatpush1.msra.mxu0 0.0
    %435 = vmatprep.subr.mxu0 0.0
    %436 = vmatpush1.msra.mxu0 0.0
    %437 = vmatprep.subr.mxu0 0.0
    %438 = vmatpush1.msra.mxu0 0.0
    %439 = vmatprep.subr.mxu0 0.0
    %440 = vmatpush1.msra.mxu0 0.0
    %441 = vmatprep.subr.mxu0 0.0
    %442 = vmatpush1.msra.mxu0 0.0
    %443 = vmatprep.subr.mxu0 0.0
    %444 = vmatpush1.msra.mxu0 0.0
    %445 = vmatprep.subr.mxu0 0.0
    %446 = vmatpush1.msra.mxu0 0.0
    %447 = vmatprep.subr.mxu0 0.0
    %448 = vmatpush1.msra.mxu0 0.0
    %449 = vmatprep.subr.mxu0 0.0
    %450 = vmatpush1.msra.mxu0 0.0
    %451 = vmatprep.subr.mxu0 0.0
    %452 = vmatpush1.msra.mxu0 0.0
    %453 = vmatprep.subr.mxu0 0.0
    %454 = vmatpush1.msra.mxu0 0.0
    %455 = vmatprep.subr.mxu0 0.0
    %456 = vmatpush1.msra.mxu0 0.0
    %457 = vmatprep.subr.mxu0 0.0
    %458 = vmatpush1.msra.mxu0 0.0
    %459 = vmatprep.subr.mxu0 0.0
    %460 = vmatpush1.msra.mxu0 0.0
    %461 = vmatprep.subr.mxu0 0.0
    %462 = vmatpush1.msra.mxu0 0.0
    %463 = vmatprep.mubr.f32.mxu0 0.0
    %v464 = vand.u32 %v303, 4294901760
    %465 = vmatmul.mubr.f32.gmra.mrb[0].mxu0 %v464
    %v466 = vpop.f32.mrb[0].mxu0
    %v467 = vadd.f32 %v381, %v466
    %v468 = vpop.f32.mrb[0].mxu0
    %469 = vmatprep.mubr.f32.mxu0 0.0
    %v470 = vand.u32 %v306, 4294901760
    %471 = vmatmul.mubr.f32.gmra.mrb[0].mxu0 %v470
    %v472 = vpop.f32.mrb[0].mxu0
    %v473 = vadd.f32 %v391, %v472
    %v474 = vpop.f32.mrb[0].mxu0
    %475 = vdwg.mxu0
    %476 = vmatprep.subr.mxu0 0.0
    %v477 = vand.u32 %v298, 4294901760
    %v478 = vsub.f32 %v298, %v477
    %479 = vmatpush1.msra.mxu0 %v478
    %480 = vmatprep.subr.mxu0 0.0
    %481 = vmatpush1.msra.mxu0 0.0
    %482 = vmatprep.subr.mxu0 0.0
    %483 = vmatpush1.msra.mxu0 0.0
    %484 = vmatprep.subr.mxu0 0.0
    %485 = vmatpush1.msra.mxu0 0.0
    %486 = vmatprep.subr.mxu0 0.0
    %487 = vmatpush1.msra.mxu0 0.0
    %488 = vmatprep.subr.mxu0 0.0
    %489 = vmatpush1.msra.mxu0 0.0
    %490 = vmatprep.subr.mxu0 0.0
    %491 = vmatpush1.msra.mxu0 0.0
    %492 = vmatprep.subr.mxu0 0.0
    %493 = vmatpush1.msra.mxu0 0.0
    %494 = vmatprep.subr.mxu0 0.0
    %495 = vmatpush1.msra.mxu0 0.0
    %496 = vmatprep.subr.mxu0 0.0
    %497 = vmatpush1.msra.mxu0 0.0
    %498 = vmatprep.subr.mxu0 0.0
    %499 = vmatpush1.msra.mxu0 0.0
    %500 = vmatprep.subr.mxu0 0.0
    %501 = vmatpush1.msra.mxu0 0.0
    %502 = vmatprep.subr.mxu0 0.0
    %503 = vmatpush1.msra.mxu0 0.0
    %504 = vmatprep.subr.mxu0 0.0
    %505 = vmatpush1.msra.mxu0 0.0
    %506 = vmatprep.subr.mxu0 0.0
    %507 = vmatpush1.msra.mxu0 0.0
    %508 = vmatprep.subr.mxu0 0.0
    %509 = vmatpush1.msra.mxu0 0.0
    %510 = vmatprep.subr.mxu0 0.0
    %511 = vmatpush1.msra.mxu0 0.0
    %512 = vmatprep.subr.mxu0 0.0
    %513 = vmatpush1.msra.mxu0 0.0
    %514 = vmatprep.subr.mxu0 0.0
    %515 = vmatpush1.msra.mxu0 0.0
    %516 = vmatprep.subr.mxu0 0.0
    %517 = vmatpush1.msra.mxu0 0.0
    %518 = vmatprep.subr.mxu0 0.0
    %519 = vmatpush1.msra.mxu0 0.0
    %520 = vmatprep.subr.mxu0 0.0
    %521 = vmatpush1.msra.mxu0 0.0
    %522 = vmatprep.subr.mxu0 0.0
    %523 = vmatpush1.msra.mxu0 0.0
    %524 = vmatprep.subr.mxu0 0.0
    %525 = vmatpush1.msra.mxu0 0.0
    %526 = vmatprep.subr.mxu0 0.0
    %527 = vmatpush1.msra.mxu0 0.0
    %528 = vmatprep.subr.mxu0 0.0
    %529 = vmatpush1.msra.mxu0 0.0
    %530 = vmatprep.subr.mxu0 0.0
    %531 = vmatpush1.msra.mxu0 0.0
    %532 = vmatprep.subr.mxu0 0.0
    %533 = vmatpush1.msra.mxu0 0.0
    %534 = vmatprep.subr.mxu0 0.0
    %535 = vmatpush1.msra.mxu0 0.0
    %536 = vmatprep.subr.mxu0 0.0
    %537 = vmatpush1.msra.mxu0 0.0
    %538 = vmatprep.subr.mxu0 0.0
    %539 = vmatpush1.msra.mxu0 0.0
    %540 = vmatprep.subr.mxu0 0.0
    %541 = vmatpush1.msra.mxu0 0.0
    %542 = vmatprep.mubr.f32.mxu0 0.0
    %v543 = vand.u32 %v303, 4294901760
    %v544 = vsub.f32 %v303, %v543
    %545 = vmatmul.mubr.f32.gmra.mrb[0].mxu0 %v544
    %v546 = vpop.f32.mrb[0].mxu0
    %v547 = vadd.f32 %v467, %v546
    %v548 = vpop.f32.mrb[0].mxu0
    %549 = vmatprep.mubr.f32.mxu0 0.0
    %v550 = vand.u32 %v306, 4294901760
    %v551 = vsub.f32 %v306, %v550
    %552 = vmatmul.mubr.f32.gmra.mrb[0].mxu0 %v551
    %v553 = vpop.f32.mrb[0].mxu0
    %v554 = vadd.f32 %v473, %v553
    %v555 = vpop.f32.mrb[0].mxu0
    %556 = vdwg.mxu0
    %557 = vmatprep.subr.mxu0 0.0
    %v558 = vand.u32 %v298, 4294901760
    %559 = vmatpush1.msra.mxu0 %v558
    %560 = vmatprep.subr.mxu0 0.0
    %561 = vmatpush1.msra.mxu0 0.0
    %562 = vmatprep.subr.mxu0 0.0
    %563 = vmatpush1.msra.mxu0 0.0
    %564 = vmatprep.subr.mxu0 0.0
    %565 = vmatpush1.msra.mxu0 0.0
    %566 = vmatprep.subr.mxu0 0.0
    %567 = vmatpush1.msra.mxu0 0.0
    %568 = vmatprep.subr.mxu0 0.0
    %569 = vmatpush1.msra.mxu0 0.0
    %570 = vmatprep.subr.mxu0 0.0
    %571 = vmatpush1.msra.mxu0 0.0
    %572 = vmatprep.subr.mxu0 0.0
    %573 = vmatpush1.msra.mxu0 0.0
    %574 = vmatprep.subr.mxu0 0.0
    %575 = vmatpush1.msra.mxu0 0.0
    %576 = vmatprep.subr.mxu0 0.0
    %577 = vmatpush1.msra.mxu0 0.0
    %578 = vmatprep.subr.mxu0 0.0
    %579 = vmatpush1.msra.mxu0 0.0
    %580 = vmatprep.subr.mxu0 0.0
    %581 = vmatpush1.msra.mxu0 0.0
    %582 = vmatprep.subr.mxu0 0.0
    %583 = vmatpush1.msra.mxu0 0.0
    %584 = vmatprep.subr.mxu0 0.0
    %585 = vmatpush1.msra.mxu0 0.0
    %586 = vmatprep.subr.mxu0 0.0
    %587 = vmatpush1.msra.mxu0 0.0
    %588 = vmatprep.subr.mxu0 0.0
    %589 = vmatpush1.msra.mxu0 0.0
    %590 = vmatprep.subr.mxu0 0.0
    %591 = vmatpush1.msra.mxu0 0.0
    %592 = vmatprep.subr.mxu0 0.0
    %593 = vmatpush1.msra.mxu0 0.0
    %594 = vmatprep.subr.mxu0 0.0
    %595 = vmatpush1.msra.mxu0 0.0
    %596 = vmatprep.subr.mxu0 0.0
    %597 = vmatpush1.msra.mxu0 0.0
    %598 = vmatprep.subr.mxu0 0.0
    %599 = vmatpush1.msra.mxu0 0.0
    %600 = vmatprep.subr.mxu0 0.0
    %601 = vmatpush1.msra.mxu0 0.0
    %602 = vmatprep.subr.mxu0 0.0
    %603 = vmatpush1.msra.mxu0 0.0
    %604 = vmatprep.subr.mxu0 0.0
    %605 = vmatpush1.msra.mxu0 0.0
    %606 = vmatprep.subr.mxu0 0.0
    %607 = vmatpush1.msra.mxu0 0.0
    %608 = vmatprep.subr.mxu0 0.0
    %609 = vmatpush1.msra.mxu0 0.0
    %610 = vmatprep.subr.mxu0 0.0
    %611 = vmatpush1.msra.mxu0 0.0
    %612 = vmatprep.subr.mxu0 0.0
    %613 = vmatpush1.msra.mxu0 0.0
    %614 = vmatprep.subr.mxu0 0.0
    %615 = vmatpush1.msra.mxu0 0.0
    %616 = vmatprep.subr.mxu0 0.0
    %617 = vmatpush1.msra.mxu0 0.0
    %618 = vmatprep.subr.mxu0 0.0
    %619 = vmatpush1.msra.mxu0 0.0
    %620 = vmatprep.subr.mxu0 0.0
    %621 = vmatpush1.msra.mxu0 0.0
    %622 = vmatprep.mubr.f32.mxu0 0.0
    %v623 = vand.u32 %v303, 4294901760
    %v624 = vsub.f32 %v303, %v623
    %v625 = vand.u32 %v624, 4294901760
    %626 = vmatmul.mubr.f32.gmra.mrb[0].mxu0 %v625
    %v627 = vpop.f32.mrb[0].mxu0
    %v628 = vadd.f32 %v547, %v627
    %v629 = vpop.f32.mrb[0].mxu0
    %630 = vmatprep.mubr.f32.mxu0 0.0
    %v631 = vand.u32 %v306, 4294901760
    %v632 = vsub.f32 %v306, %v631
    %v633 = vand.u32 %v632, 4294901760
    %634 = vmatmul.mubr.f32.gmra.mrb[0].mxu0 %v633
    %v635 = vpop.f32.mrb[0].mxu0
    %v636 = vadd.f32 %v554, %v635
    %v637 = vpop.f32.mrb[0].mxu0
    %638 = vdwg.mxu0
    %639 = vmatprep.subr.mxu0 0.0
    %v640 = vand.u32 %v298, 4294901760
    %v641 = vsub.f32 %v298, %v640
    %v642 = vand.u32 %v641, 4294901760
    %643 = vmatpush1.msra.mxu0 %v642
    %644 = vmatprep.subr.mxu0 0.0
    %645 = vmatpush1.msra.mxu0 0.0
    %646 = vmatprep.subr.mxu0 0.0
    %647 = vmatpush1.msra.mxu0 0.0
    %648 = vmatprep.subr.mxu0 0.0
    %649 = vmatpush1.msra.mxu0 0.0
    %650 = vmatprep.subr.mxu0 0.0
    %651 = vmatpush1.msra.mxu0 0.0
    %652 = vmatprep.subr.mxu0 0.0
    %653 = vmatpush1.msra.mxu0 0.0
    %654 = vmatprep.subr.mxu0 0.0
    %655 = vmatpush1.msra.mxu0 0.0
    %656 = vmatprep.subr.mxu0 0.0
    %657 = vmatpush1.msra.mxu0 0.0
    %658 = vmatprep.subr.mxu0 0.0
    %659 = vmatpush1.msra.mxu0 0.0
    %660 = vmatprep.subr.mxu0 0.0
    %661 = vmatpush1.msra.mxu0 0.0
    %662 = vmatprep.subr.mxu0 0.0
    %663 = vmatpush1.msra.mxu0 0.0
    %664 = vmatprep.subr.mxu0 0.0
    %665 = vmatpush1.msra.mxu0 0.0
    %666 = vmatprep.subr.mxu0 0.0
    %667 = vmatpush1.msra.mxu0 0.0
    %668 = vmatprep.subr.mxu0 0.0
    %669 = vmatpush1.msra.mxu0 0.0
    %670 = vmatprep.subr.mxu0 0.0
    %671 = vmatpush1.msra.mxu0 0.0
    %672 = vmatprep.subr.mxu0 0.0
    %673 = vmatpush1.msra.mxu0 0.0
    %674 = vmatprep.subr.mxu0 0.0
    %675 = vmatpush1.msra.mxu0 0.0
    %676 = vmatprep.subr.mxu0 0.0
    %677 = vmatpush1.msra.mxu0 0.0
    %678 = vmatprep.subr.mxu0 0.0
    %679 = vmatpush1.msra.mxu0 0.0
    %680 = vmatprep.subr.mxu0 0.0
    %681 = vmatpush1.msra.mxu0 0.0
    %682 = vmatprep.subr.mxu0 0.0
    %683 = vmatpush1.msra.mxu0 0.0
    %684 = vmatprep.subr.mxu0 0.0
    %685 = vmatpush1.msra.mxu0 0.0
    %686 = vmatprep.subr.mxu0 0.0
    %687 = vmatpush1.msra.mxu0 0.0
    %688 = vmatprep.subr.mxu0 0.0
    %689 = vmatpush1.msra.mxu0 0.0
    %690 = vmatprep.subr.mxu0 0.0
    %691 = vmatpush1.msra.mxu0 0.0
    %692 = vmatprep.subr.mxu0 0.0
    %693 = vmatpush1.msra.mxu0 0.0
    %694 = vmatprep.subr.mxu0 0.0
    %695 = vmatpush1.msra.mxu0 0.0
    %696 = vmatprep.subr.mxu0 0.0
    %697 = vmatpush1.msra.mxu0 0.0
    %698 = vmatprep.subr.mxu0 0.0
    %699 = vmatpush1.msra.mxu0 0.0
    %700 = vmatprep.subr.mxu0 0.0
    %701 = vmatpush1.msra.mxu0 0.0
    %702 = vmatprep.subr.mxu0 0.0
    %703 = vmatpush1.msra.mxu0 0.0
    %704 = vmatprep.subr.mxu0 0.0
    %705 = vmatpush1.msra.mxu0 0.0
    %706 = vmatprep.mubr.f32.mxu0 0.0
    %v707 = vand.u32 %v303, 4294901760
    %708 = vmatmul.mubr.f32.gmra.mrb[0].mxu0 %v707
    %v709 = vpop.f32.mrb[0].mxu0
    %v710 = vadd.f32 %v628, %v709
    %v711 = vpop.f32.mrb[0].mxu0
    %712 = vmatprep.mubr.f32.mxu0 0.0
    %v713 = vand.u32 %v306, 4294901760
    %714 = vmatmul.mubr.f32.gmra.mrb[0].mxu0 %v713
    %v715 = vpop.f32.mrb[0].mxu0
    %v716 = vadd.f32 %v636, %v715
    %v717 = vpop.f32.mrb[0].mxu0
    %718 = vdwg.mxu0
    %719 = vmatprep.subr.mxu0 0.0
    %v720 = vand.u32 %v298, 4294901760
    %721 = vmatpush1.msra.mxu0 %v720
    %722 = vmatprep.subr.mxu0 0.0
    %723 = vmatpush1.msra.mxu0 0.0
    %724 = vmatprep.subr.mxu0 0.0
    %725 = vmatpush1.msra.mxu0 0.0
    %726 = vmatprep.subr.mxu0 0.0
    %727 = vmatpush1.msra.mxu0 0.0
    %728 = vmatprep.subr.mxu0 0.0
    %729 = vmatpush1.msra.mxu0 0.0
    %730 = vmatprep.subr.mxu0 0.0
    %731 = vmatpush1.msra.mxu0 0.0
    %732 = vmatprep.subr.mxu0 0.0
    %733 = vmatpush1.msra.mxu0 0.0
    %734 = vmatprep.subr.mxu0 0.0
    %735 = vmatpush1.msra.mxu0 0.0
    %736 = vmatprep.subr.mxu0 0.0
    %737 = vmatpush1.msra.mxu0 0.0
    %738 = vmatprep.subr.mxu0 0.0
    %739 = vmatpush1.msra.mxu0 0.0
    %740 = vmatprep.subr.mxu0 0.0
    %741 = vmatpush1.msra.mxu0 0.0
    %742 = vmatprep.subr.mxu0 0.0
    %743 = vmatpush1.msra.mxu0 0.0
    %744 = vmatprep.subr.mxu0 0.0
    %745 = vmatpush1.msra.mxu0 0.0
    %746 = vmatprep.subr.mxu0 0.0
    %747 = vmatpush1.msra.mxu0 0.0
    %748 = vmatprep.subr.mxu0 0.0
    %749 = vmatpush1.msra.mxu0 0.0
    %750 = vmatprep.subr.mxu0 0.0
    %751 = vmatpush1.msra.mxu0 0.0
    %752 = vmatprep.subr.mxu0 0.0
    %753 = vmatpush1.msra.mxu0 0.0
    %754 = vmatprep.subr.mxu0 0.0
    %755 = vmatpush1.msra.mxu0 0.0
    %756 = vmatprep.subr.mxu0 0.0
    %757 = vmatpush1.msra.mxu0 0.0
    %758 = vmatprep.subr.mxu0 0.0
    %759 = vmatpush1.msra.mxu0 0.0
    %760 = vmatprep.subr.mxu0 0.0
    %761 = vmatpush1.msra.mxu0 0.0
    %762 = vmatprep.subr.mxu0 0.0
    %763 = vmatpush1.msra.mxu0 0.0
    %764 = vmatprep.subr.mxu0 0.0
    %765 = vmatpush1.msra.mxu0 0.0
    %766 = vmatprep.subr.mxu0 0.0
    %767 = vmatpush1.msra.mxu0 0.0
    %768 = vmatprep.subr.mxu0 0.0
    %769 = vmatpush1.msra.mxu0 0.0
    %770 = vmatprep.subr.mxu0 0.0
    %771 = vmatpush1.msra.mxu0 0.0
    %772 = vmatprep.subr.mxu0 0.0
    %773 = vmatpush1.msra.mxu0 0.0
    %774 = vmatprep.subr.mxu0 0.0
    %775 = vmatpush1.msra.mxu0 0.0
    %776 = vmatprep.subr.mxu0 0.0
    %777 = vmatpush1.msra.mxu0 0.0
    %778 = vmatprep.subr.mxu0 0.0
    %779 = vmatpush1.msra.mxu0 0.0
    %780 = vmatprep.subr.mxu0 0.0
    %781 = vmatpush1.msra.mxu0 0.0
    %782 = vmatprep.subr.mxu0 0.0
    %783 = vmatpush1.msra.mxu0 0.0
    %784 = vmatprep.mubr.f32.mxu0 0.0
    %v785 = vand.u32 %v303, 4294901760
    %786 = vmatmul.mubr.f32.gmra.mrb[0].mxu0 %v785
    %v787 = vpop.f32.mrb[0].mxu0
    %v788 = vadd.f32 %v710, %v787
    %v789 = vpop.f32.mrb[0].mxu0
    %790 = vmatprep.mubr.f32.mxu0 0.0
    %v791 = vand.u32 %v306, 4294901760
    %792 = vmatmul.mubr.f32.gmra.mrb[0].mxu0 %v791
    %v793 = vpop.f32.mrb[0].mxu0
    %v794 = vadd.f32 %v716, %v793
    %v795 = vpop.f32.mrb[0].mxu0
    %796 = vdwg.mxu0
    %v797 = vld [vmem:[%s6] sm:$0xff]
    %v798 = vld [vmem:[%s6 + $0x8] sm:$0xff]
    %800 = vset.pattern.permute.xlu0 0
    %801 = vperm.xlu0 %800, %v797
    %v802 = vpop.permute.xlu0 %801
    %805 = vset.pattern.permute.xlu0 0
    %806 = vperm.xlu0 %805, %v798
    %v807 = vpop.permute.xlu0 %806
    %v809 = vmul.f32 %v788, %v802
    %v810 = vmul.f32 %v794, %v807
    %v811 = vld [vmem:[#allocation11] sm:$0xff]
    %v812 = vld [vmem:[#allocation11 + $0x8] sm:$0xff]
    %814 = vset.pattern.permute.xlu0 0
    %815 = vperm.xlu0 %814, %v811
    %v816 = vpop.permute.xlu0 %815
    %819 = vset.pattern.permute.xlu0 0
    %820 = vperm.xlu0 %819, %v812
    %v821 = vpop.permute.xlu0 %820
    %v823 = vadd.f32 %v809, %v816
    %v824 = vadd.f32 %v810, %v821
    %v825 = vxor.u32 %v823, 2147483648
    %v826 = vxor.u32 %v824, 2147483648
    %v827 = vmul.f32 %v825, 1.442695
    %v828 = vpow.pop %v827
    %v829 = vmul.f32 %v826, 1.442695
    %v830 = vpow.pop %v829
    %v831 = vadd.f32 %v828, 1.0
    %v832 = vadd.f32 %v830, 1.0
    %v833 = vrcp.pop %v831
    %v834 = vmul.f32 1.0, %v833
    %v835 = vrcp.pop %v832
    %v836 = vmul.f32 1.0, %v835
    %v837 = vmul.f32 %v823, %v834
    %v838 = vmul.f32 %v824, %v836
    %v839 = vld [vmem:[#allocation13] sm:$0xff]
    %v840 = vld [vmem:[#allocation13 + $0x8] sm:$0xff]
    %842 = vset.pattern.permute.xlu0 0
    %843 = vperm.xlu0 %842, %v839
    %v844 = vpop.permute.xlu0 %843
    %847 = vset.pattern.permute.xlu0 0
    %848 = vperm.xlu0 %847, %v840
    %v849 = vpop.permute.xlu0 %848
    %v851 = vmul.f32 %v844, %v837
    %v852 = vmul.f32 %v849, %v838
    %v853 = vadd.f32 %v851, 0.0
    %v854 = vadd.f32 %v852, 0.0
    %855 = vset.pattern.permute.xlu0 1
    %856 = vperm.xlu0 %855, %v839
    %v857 = vpop.permute.xlu0 %856
    %859 = vset.pattern.permute.xlu0 1
    %860 = vperm.xlu0 %859, %v840
    %v861 = vpop.permute.xlu0 %860
    %v863 = vmul.f32 %v857, %v837
    %v864 = vmul.f32 %v861, %v838
    %867 = vrot.lane.b32.xlu0 %v863, 126
    %v868 = vpop.permute.xlu0 %867
    %869 = vrot.lane.b32.xlu0 %v864, 126
    %v870 = vpop.permute.xlu0 %869
    %v873 = vadd.f32 %v853, %v868
    %v874 = vadd.f32 %v854, %v870
    %875 = vset.pattern.permute.xlu0 2
    %876 = vperm.xlu0 %875, %v839
    %v877 = vpop.permute.xlu0 %876
    %879 = vset.pattern.permute.xlu0 2
    %880 = vperm.xlu0 %879, %v840
    %v881 = vpop.permute.xlu0 %880
    %v883 = vmul.f32 %v877, %v837
    %v884 = vmul.f32 %v881, %v838
    %887 = vrot.lane.b32.xlu0 %v883, 124
    %v888 = vpop.permute.xlu0 %887
    %889 = vrot.lane.b32.xlu0 %v884, 124
    %v890 = vpop.permute.xlu0 %889
    %v893 = vadd.f32 %v873, %v888
    %v894 = vadd.f32 %v874, %v890
    %vm895 = vcmask 130048
    %896 = vst.msk [vmem:[#allocation3] sm:$0xff] %vm895, %v893
    %897 = vst.msk [vmem:[#allocation3 + $0x8] sm:$0xff] %vm895, %v894
    %v898 = vld [vmem:[#allocation13] sm:$0xff]
    %v899 = vld [vmem:[#allocation13 + $0x8] sm:$0xff]
    %901 = vset.pattern.permute.xlu0 0
    %902 = vperm.xlu0 %901, %v898
    %v903 = vpop.permute.xlu0 %902
    %906 = vset.pattern.permute.xlu0 0
    %907 = vperm.xlu0 %906, %v899
    %v908 = vpop.permute.xlu0 %907
    %v910 = vmul.f32 %v903, %v837
    %v911 = vmul.f32 %v908, %v838
    %v912 = vadd.f32 %v910, 0.0
    %v913 = vadd.f32 %v911, 0.0
    %914 = vset.pattern.permute.xlu0 1
    %915 = vperm.xlu0 %914, %v898
    %v916 = vpop.permute.xlu0 %915
    %918 = vset.pattern.permute.xlu0 1
    %919 = vperm.xlu0 %918, %v899
    %v920 = vpop.permute.xlu0 %919
    %v922 = vmul.f32 %v916, %v837
    %v923 = vmul.f32 %v920, %v838
    %926 = vrot.lane.b32.xlu0 %v922, 126
    %v927 = vpop.permute.xlu0 %926
    %928 = vrot.lane.b32.xlu0 %v923, 126
    %v929 = vpop.permute.xlu0 %928
    %v932 = vadd.f32 %v912, %v927
    %v933 = vadd.f32 %v913, %v929
    %934 = vset.pattern.permute.xlu0 2
    %935 = vperm.xlu0 %934, %v898
    %v936 = vpop.permute.xlu0 %935
    %938 = vset.pattern.permute.xlu0 2
    %939 = vperm.xlu0 %938, %v899
    %v940 = vpop.permute.xlu0 %939
    %v942 = vmul.f32 %v936, %v837
    %v943 = vmul.f32 %v940, %v838
    %946 = vrot.lane.b32.xlu0 %v942, 124
    %v947 = vpop.permute.xlu0 %946
    %948 = vrot.lane.b32.xlu0 %v943, 124
    %v949 = vpop.permute.xlu0 %948
    %v952 = vadd.f32 %v932, %v947
    %v953 = vadd.f32 %v933, %v949
    %956 = vrot.lane.b32.xlu0 %v952, 124
    %v957 = vpop.permute.xlu0 %956
    %958 = vrot.lane.b32.xlu0 %v953, 124
    %v959 = vpop.permute.xlu0 %958
    %vm962 = vcmask 261248
    %963 = vst.msk [vmem:[#allocation3] sm:$0xff] %vm962, %v957
    %964 = vst.msk [vmem:[#allocation3 + $0x8] sm:$0xff] %vm962, %v959
    %v965 = vld [vmem:[#allocation3] sm:$0xff]
    %v966 = vld [vmem:[#allocation3 + $0x8] sm:$0xff]
    %v967 = vld [vmem:[%s9] sm:$0xff]
    %v968 = vld [vmem:[%s9 + $0x8] sm:$0xff]
    %970 = vset.pattern.permute.xlu0 0
    %971 = vperm.xlu0 %970, %v967
    %v972 = vpop.permute.xlu0 %971
    %975 = vset.pattern.permute.xlu0 0
    %976 = vperm.xlu0 %975, %v968
    %v977 = vpop.permute.xlu0 %976
    %v979 = vmul.f32 %v965, %v972
    %v980 = vmul.f32 %v966, %v977
    %v981 = vld [vmem:[#allocation14] sm:$0xff]
    %v982 = vld [vmem:[#allocation14 + $0x8] sm:$0xff]
    %984 = vset.pattern.permute.xlu0 0
    %985 = vperm.xlu0 %984, %v981
    %v986 = vpop.permute.xlu0 %985
    %989 = vset.pattern.permute.xlu0 0
    %990 = vperm.xlu0 %989, %v982
    %v991 = vpop.permute.xlu0 %990
    %v993 = vadd.f32 %v979, %v986
    %v994 = vadd.f32 %v980, %v991
    %v995 = vxor.u32 %v993, 2147483648
    %v996 = vxor.u32 %v994, 2147483648
    %v997 = vmul.f32 %v995, 1.442695
    %v998 = vpow.pop %v997
    %v999 = vmul.f32 %v996, 1.442695
    %v1000 = vpow.pop %v999
    %v1001 = vadd.f32 %v998, 1.0
    %v1002 = vadd.f32 %v1000, 1.0
    %v1003 = vrcp.pop %v1001
    %v1004 = vmul.f32 1.0, %v1003
    %v1005 = vrcp.pop %v1002
    %v1006 = vmul.f32 1.0, %v1005
    %v1007 = vmul.f32 %v993, %v1004
    %v1008 = vmul.f32 %v994, %v1006
    %v1009 = vld [vmem:[#allocation16] sm:$0xff]
    %v1011 = vsel %vm895, %v1009, 0
    %1013 = vmatprep.subr.mxu0 0.0
    %v1014 = vand.u32 %v1007, 4294901760
    %1015 = vmatpush1.msra.mxu0 %v1014
    %1016 = vmatprep.subr.mxu0 0.0
    %v1017 = vand.u32 %v1008, 4294901760
    %1018 = vmatpush1.msra.mxu0 %v1017
    %1019 = vmatprep.subr.mxu0 0.0
    %1020 = vmatpush1.msra.mxu0 0.0
    %1021 = vmatprep.subr.mxu0 0.0
    %1022 = vmatpush1.msra.mxu0 0.0
    %1023 = vmatprep.subr.mxu0 0.0
    %1024 = vmatpush1.msra.mxu0 0.0
    %1025 = vmatprep.subr.mxu0 0.0
    %1026 = vmatpush1.msra.mxu0 0.0
    %1027 = vmatprep.subr.mxu0 0.0
    %1028 = vmatpush1.msra.mxu0 0.0
    %1029 = vmatprep.subr.mxu0 0.0
    %1030 = vmatpush1.msra.mxu0 0.0
    %1031 = vmatprep.subr.mxu0 0.0
    %1032 = vmatpush1.msra.mxu0 0.0
    %1033 = vmatprep.subr.mxu0 0.0
    %1034 = vmatpush1.msra.mxu0 0.0
    %1035 = vmatprep.subr.mxu0 0.0
    %1036 = vmatpush1.msra.mxu0 0.0
    %1037 = vmatprep.subr.mxu0 0.0
    %1038 = vmatpush1.msra.mxu0 0.0
    %1039 = vmatprep.subr.mxu0 0.0
    %1040 = vmatpush1.msra.mxu0 0.0
    %1041 = vmatprep.subr.mxu0 0.0
    %1042 = vmatpush1.msra.mxu0 0.0
    %1043 = vmatprep.subr.mxu0 0.0
    %1044 = vmatpush1.msra.mxu0 0.0
    %1045 = vmatprep.subr.mxu0 0.0
    %1046 = vmatpush1.msra.mxu0 0.0
    %1047 = vmatprep.subr.mxu0 0.0
    %1048 = vmatpush1.msra.mxu0 0.0
    %1049 = vmatprep.subr.mxu0 0.0
    %1050 = vmatpush1.msra.mxu0 0.0
    %1051 = vmatprep.subr.mxu0 0.0
    %1052 = vmatpush1.msra.mxu0 0.0
    %1053 = vmatprep.subr.mxu0 0.0
    %1054 = vmatpush1.msra.mxu0 0.0
    %1055 = vmatprep.subr.mxu0 0.0
    %1056 = vmatpush1.msra.mxu0 0.0
    %1057 = vmatprep.subr.mxu0 0.0
    %1058 = vmatpush1.msra.mxu0 0.0
    %1059 = vmatprep.subr.mxu0 0.0
    %1060 = vmatpush1.msra.mxu0 0.0
    %1061 = vmatprep.subr.mxu0 0.0
    %1062 = vmatpush1.msra.mxu0 0.0
    %1063 = vmatprep.subr.mxu0 0.0
    %1064 = vmatpush1.msra.mxu0 0.0
    %1065 = vmatprep.subr.mxu0 0.0
    %1066 = vmatpush1.msra.mxu0 0.0
    %1067 = vmatprep.subr.mxu0 0.0
    %1068 = vmatpush1.msra.mxu0 0.0
    %1069 = vmatprep.subr.mxu0 0.0
    %1070 = vmatpush1.msra.mxu0 0.0
    %1071 = vmatprep.subr.mxu0 0.0
    %1072 = vmatpush1.msra.mxu0 0.0
    %1073 = vmatprep.subr.mxu0 0.0
    %1074 = vmatpush1.msra.mxu0 0.0
    %1075 = vmatprep.subr.mxu0 0.0
    %1076 = vmatpush1.msra.mxu0 0.0
    %1077 = vmatprep.subr.mxu0 0.0
    %1078 = vmatpush1.msra.mxu0 0.0
    %1079 = vmatprep.mubr.f32.mxu0 0.0
    %v1080 = vand.u32 %v1011, 4294901760
    %v1081 = vsub.f32 %v1011, %v1080
    %v1082 = vand.u32 %v1081, 4294901760
    %v1083 = vsub.f32 %v1081, %v1082
    %v1084 = vand.u32 %v1083, 4294901760
    %1085 = vmatmul.mubr.f32.gmra.mrb[0].mxu0 %v1084
    %v1086 = vpop.f32.mrb[0].mxu0
    %v1087 = vadd.f32 0.0, %v1086
    %v1088 = vpop.f32.mrb[0].mxu0
    %1089 = vdwg.mxu0
    %1090 = vmatprep.subr.mxu0 0.0
    %v1091 = vand.u32 %v1007, 4294901760
    %v1092 = vsub.f32 %v1007, %v1091
    %v1093 = vand.u32 %v1092, 4294901760
    %v1094 = vsub.f32 %v1092, %v1093
    %v1095 = vand.u32 %v1094, 4294901760
    %1096 = vmatpush1.msra.mxu0 %v1095
    %1097 = vmatprep.subr.mxu0 0.0
    %v1098 = vand.u32 %v1008, 4294901760
    %v1099 = vsub.f32 %v1008, %v1098
    %v1100 = vand.u32 %v1099, 4294901760
    %v1101 = vsub.f32 %v1099, %v1100
    %v1102 = vand.u32 %v1101, 4294901760
    %1103 = vmatpush1.msra.mxu0 %v1102
    %1104 = vmatprep.subr.mxu0 0.0
    %1105 = vmatpush1.msra.mxu0 0.0
    %1106 = vmatprep.subr.mxu0 0.0
    %1107 = vmatpush1.msra.mxu0 0.0
    %1108 = vmatprep.subr.mxu0 0.0
    %1109 = vmatpush1.msra.mxu0 0.0
    %1110 = vmatprep.subr.mxu0 0.0
    %1111 = vmatpush1.msra.mxu0 0.0
    %1112 = vmatprep.subr.mxu0 0.0
    %1113 = vmatpush1.msra.mxu0 0.0
    %1114 = vmatprep.subr.mxu0 0.0
    %1115 = vmatpush1.msra.mxu0 0.0
    %1116 = vmatprep.subr.mxu0 0.0
    %1117 = vmatpush1.msra.mxu0 0.0
    %1118 = vmatprep.subr.mxu0 0.0
    %1119 = vmatpush1.msra.mxu0 0.0
    %1120 = vmatprep.subr.mxu0 0.0
    %1121 = vmatpush1.msra.mxu0 0.0
    %1122 = vmatprep.subr.mxu0 0.0
    %1123 = vmatpush1.msra.mxu0 0.0
    %1124 = vmatprep.subr.mxu0 0.0
    %1125 = vmatpush1.msra.mxu0 0.0
    %1126 = vmatprep.subr.mxu0 0.0
    %1127 = vmatpush1.msra.mxu0 0.0
    %1128 = vmatprep.subr.mxu0 0.0
    %1129 = vmatpush1.msra.mxu0 0.0
    %1130 = vmatprep.subr.mxu0 0.0
    %1131 = vmatpush1.msra.mxu0 0.0
    %1132 = vmatprep.subr.mxu0 0.0
    %1133 = vmatpush1.msra.mxu0 0.0
    %1134 = vmatprep.subr.mxu0 0.0
    %1135 = vmatpush1.msra.mxu0 0.0
    %1136 = vmatprep.subr.mxu0 0.0
    %1137 = vmatpush1.msra.mxu0 0.0
    %1138 = vmatprep.subr.mxu0 0.0
    %1139 = vmatpush1.msra.mxu0 0.0
    %1140 = vmatprep.subr.mxu0 0.0
    %1141 = vmatpush1.msra.mxu0 0.0
    %1142 = vmatprep.subr.mxu0 0.0
    %1143 = vmatpush1.msra.mxu0 0.0
    %1144 = vmatprep.subr.mxu0 0.0
    %1145 = vmatpush1.msra.mxu0 0.0
    %1146 = vmatprep.subr.mxu0 0.0
    %1147 = vmatpush1.msra.mxu0 0.0
    %1148 = vmatprep.subr.mxu0 0.0
    %1149 = vmatpush1.msra.mxu0 0.0
    %1150 = vmatprep.subr.mxu0 0.0
    %1151 = vmatpush1.msra.mxu0 0.0
    %1152 = vmatprep.subr.mxu0 0.0
    %1153 = vmatpush1.msra.mxu0 0.0
    %1154 = vmatprep.subr.mxu0 0.0
    %1155 = vmatpush1.msra.mxu0 0.0
    %1156 = vmatprep.subr.mxu0 0.0
    %1157 = vmatpush1.msra.mxu0 0.0
    %1158 = vmatprep.subr.mxu0 0.0
    %1159 = vmatpush1.msra.mxu0 0.0
    %1160 = vmatprep.subr.mxu0 0.0
    %1161 = vmatpush1.msra.mxu0 0.0
    %1162 = vmatprep.subr.mxu0 0.0
    %1163 = vmatpush1.msra.mxu0 0.0
    %1164 = vmatprep.mubr.f32.mxu0 0.0
    %v1165 = vand.u32 %v1011, 4294901760
    %1166 = vmatmul.mubr.f32.gmra.mrb[0].mxu0 %v1165
    %v1167 = vpop.f32.mrb[0].mxu0
    %v1168 = vadd.f32 %v1087, %v1167
    %v1169 = vpop.f32.mrb[0].mxu0
    %1170 = vdwg.mxu0
    %1171 = vmatprep.subr.mxu0 0.0
    %v1172 = vand.u32 %v1007, 4294901760
    %v1173 = vsub.f32 %v1007, %v1172
    %1174 = vmatpush1.msra.mxu0 %v1173
    %1175 = vmatprep.subr.mxu0 0.0
    %v1176 = vand.u32 %v1008, 4294901760
    %v1177 = vsub.f32 %v1008, %v1176
    %1178 = vmatpush1.msra.mxu0 %v1177
    %1179 = vmatprep.subr.mxu0 0.0
    %1180 = vmatpush1.msra.mxu0 0.0
    %1181 = vmatprep.subr.mxu0 0.0
    %1182 = vmatpush1.msra.mxu0 0.0
    %1183 = vmatprep.subr.mxu0 0.0
    %1184 = vmatpush1.msra.mxu0 0.0
    %1185 = vmatprep.subr.mxu0 0.0
    %1186 = vmatpush1.msra.mxu0 0.0
    %1187 = vmatprep.subr.mxu0 0.0
    %1188 = vmatpush1.msra.mxu0 0.0
    %1189 = vmatprep.subr.mxu0 0.0
    %1190 = vmatpush1.msra.mxu0 0.0
    %1191 = vmatprep.subr.mxu0 0.0
    %1192 = vmatpush1.msra.mxu0 0.0
    %1193 = vmatprep.subr.mxu0 0.0
    %1194 = vmatpush1.msra.mxu0 0.0
    %1195 = vmatprep.subr.mxu0 0.0
    %1196 = vmatpush1.msra.mxu0 0.0
    %1197 = vmatprep.subr.mxu0 0.0
    %1198 = vmatpush1.msra.mxu0 0.0
    %1199 = vmatprep.subr.mxu0 0.0
    %1200 = vmatpush1.msra.mxu0 0.0
    %1201 = vmatprep.subr.mxu0 0.0
    %1202 = vmatpush1.msra.mxu0 0.0
    %1203 = vmatprep.subr.mxu0 0.0
    %1204 = vmatpush1.msra.mxu0 0.0
    %1205 = vmatprep.subr.mxu0 0.0
    %1206 = vmatpush1.msra.mxu0 0.0
    %1207 = vmatprep.subr.mxu0 0.0
    %1208 = vmatpush1.msra.mxu0 0.0
    %1209 = vmatprep.subr.mxu0 0.0
    %1210 = vmatpush1.msra.mxu0 0.0
    %1211 = vmatprep.subr.mxu0 0.0
    %1212 = vmatpush1.msra.mxu0 0.0
    %1213 = vmatprep.subr.mxu0 0.0
    %1214 = vmatpush1.msra.mxu0 0.0
    %1215 = vmatprep.subr.mxu0 0.0
    %1216 = vmatpush1.msra.mxu0 0.0
    %1217 = vmatprep.subr.mxu0 0.0
    %1218 = vmatpush1.msra.mxu0 0.0
    %1219 = vmatprep.subr.mxu0 0.0
    %1220 = vmatpush1.msra.mxu0 0.0
    %1221 = vmatprep.subr.mxu0 0.0
    %1222 = vmatpush1.msra.mxu0 0.0
    %1223 = vmatprep.subr.mxu0 0.0
    %1224 = vmatpush1.msra.mxu0 0.0
    %1225 = vmatprep.subr.mxu0 0.0
    %1226 = vmatpush1.msra.mxu0 0.0
    %1227 = vmatprep.subr.mxu0 0.0
    %1228 = vmatpush1.msra.mxu0 0.0
    %1229 = vmatprep.subr.mxu0 0.0
    %1230 = vmatpush1.msra.mxu0 0.0
    %1231 = vmatprep.subr.mxu0 0.0
    %1232 = vmatpush1.msra.mxu0 0.0
    %1233 = vmatprep.subr.mxu0 0.0
    %1234 = vmatpush1.msra.mxu0 0.0
    %1235 = vmatprep.subr.mxu0 0.0
    %1236 = vmatpush1.msra.mxu0 0.0
    %1237 = vmatprep.subr.mxu0 0.0
    %1238 = vmatpush1.msra.mxu0 0.0
    %1239 = vmatprep.mubr.f32.mxu0 0.0
    %v1240 = vand.u32 %v1011, 4294901760
    %v1241 = vsub.f32 %v1011, %v1240
    %1242 = vmatmul.mubr.f32.gmra.mrb[0].mxu0 %v1241
    %v1243 = vpop.f32.mrb[0].mxu0
    %v1244 = vadd.f32 %v1168, %v1243
    %v1245 = vpop.f32.mrb[0].mxu0
    %1246 = vdwg.mxu0
    %1247 = vmatprep.subr.mxu0 0.0
    %v1248 = vand.u32 %v1007, 4294901760
    %1249 = vmatpush1.msra.mxu0 %v1248
    %1250 = vmatprep.subr.mxu0 0.0
    %v1251 = vand.u32 %v1008, 4294901760
    %1252 = vmatpush1.msra.mxu0 %v1251
    %1253 = vmatprep.subr.mxu0 0.0
    %1254 = vmatpush1.msra.mxu0 0.0
    %1255 = vmatprep.subr.mxu0 0.0
    %1256 = vmatpush1.msra.mxu0 0.0
    %1257 = vmatprep.subr.mxu0 0.0
    %1258 = vmatpush1.msra.mxu0 0.0
    %1259 = vmatprep.subr.mxu0 0.0
    %1260 = vmatpush1.msra.mxu0 0.0
    %1261 = vmatprep.subr.mxu0 0.0
    %1262 = vmatpush1.msra.mxu0 0.0
    %1263 = vmatprep.subr.mxu0 0.0
    %1264 = vmatpush1.msra.mxu0 0.0
    %1265 = vmatprep.subr.mxu0 0.0
    %1266 = vmatpush1.msra.mxu0 0.0
    %1267 = vmatprep.subr.mxu0 0.0
    %1268 = vmatpush1.msra.mxu0 0.0
    %1269 = vmatprep.subr.mxu0 0.0
    %1270 = vmatpush1.msra.mxu0 0.0
    %1271 = vmatprep.subr.mxu0 0.0
    %1272 = vmatpush1.msra.mxu0 0.0
    %1273 = vmatprep.subr.mxu0 0.0
    %1274 = vmatpush1.msra.mxu0 0.0
    %1275 = vmatprep.subr.mxu0 0.0
    %1276 = vmatpush1.msra.mxu0 0.0
    %1277 = vmatprep.subr.mxu0 0.0
    %1278 = vmatpush1.msra.mxu0 0.0
    %1279 = vmatprep.subr.mxu0 0.0
    %1280 = vmatpush1.msra.mxu0 0.0
    %1281 = vmatprep.subr.mxu0 0.0
    %1282 = vmatpush1.msra.mxu0 0.0
    %1283 = vmatprep.subr.mxu0 0.0
    %1284 = vmatpush1.msra.mxu0 0.0
    %1285 = vmatprep.subr.mxu0 0.0
    %1286 = vmatpush1.msra.mxu0 0.0
    %1287 = vmatprep.subr.mxu0 0.0
    %1288 = vmatpush1.msra.mxu0 0.0
    %1289 = vmatprep.subr.mxu0 0.0
    %1290 = vmatpush1.msra.mxu0 0.0
    %1291 = vmatprep.subr.mxu0 0.0
    %1292 = vmatpush1.msra.mxu0 0.0
    %1293 = vmatprep.subr.mxu0 0.0
    %1294 = vmatpush1.msra.mxu0 0.0
    %1295 = vmatprep.subr.mxu0 0.0
    %1296 = vmatpush1.msra.mxu0 0.0
    %1297 = vmatprep.subr.mxu0 0.0
    %1298 = vmatpush1.msra.mxu0 0.0
    %1299 = vmatprep.subr.mxu0 0.0
    %1300 = vmatpush1.msra.mxu0 0.0
    %1301 = vmatprep.subr.mxu0 0.0
    %1302 = vmatpush1.msra.mxu0 0.0
    %1303 = vmatprep.subr.mxu0 0.0
    %1304 = vmatpush1.msra.mxu0 0.0
    %1305 = vmatprep.subr.mxu0 0.0
    %1306 = vmatpush1.msra.mxu0 0.0
    %1307 = vmatprep.subr.mxu0 0.0
    %1308 = vmatpush1.msra.mxu0 0.0
    %1309 = vmatprep.subr.mxu0 0.0
    %1310 = vmatpush1.msra.mxu0 0.0
    %1311 = vmatprep.subr.mxu0 0.0
    %1312 = vmatpush1.msra.mxu0 0.0
    %1313 = vmatprep.mubr.f32.mxu0 0.0
    %v1314 = vand.u32 %v1011, 4294901760
    %v1315 = vsub.f32 %v1011, %v1314
    %v1316 = vand.u32 %v1315, 4294901760
    %1317 = vmatmul.mubr.f32.gmra.mrb[0].mxu0 %v1316
    %v1318 = vpop.f32.mrb[0].mxu0
    %v1319 = vadd.f32 %v1244, %v1318
    %v1320 = vpop.f32.mrb[0].mxu0
    %1321 = vdwg.mxu0
    %1322 = vmatprep.subr.mxu0 0.0
    %v1323 = vand.u32 %v1007, 4294901760
    %v1324 = vsub.f32 %v1007, %v1323
    %v1325 = vand.u32 %v1324, 4294901760
    %1326 = vmatpush1.msra.mxu0 %v1325
    %1327 = vmatprep.subr.mxu0 0.0
    %v1328 = vand.u32 %v1008, 4294901760
    %v1329 = vsub.f32 %v1008, %v1328
    %v1330 = vand.u32 %v1329, 4294901760
    %1331 = vmatpush1.msra.mxu0 %v1330
    %1332 = vmatprep.subr.mxu0 0.0
    %1333 = vmatpush1.msra.mxu0 0.0
    %1334 = vmatprep.subr.mxu0 0.0
    %1335 = vmatpush1.msra.mxu0 0.0
    %1336 = vmatprep.subr.mxu0 0.0
    %1337 = vmatpush1.msra.mxu0 0.0
    %1338 = vmatprep.subr.mxu0 0.0
    %1339 = vmatpush1.msra.mxu0 0.0
    %1340 = vmatprep.subr.mxu0 0.0
    %1341 = vmatpush1.msra.mxu0 0.0
    %1342 = vmatprep.subr.mxu0 0.0
    %1343 = vmatpush1.msra.mxu0 0.0
    %1344 = vmatprep.subr.mxu0 0.0
    %1345 = vmatpush1.msra.mxu0 0.0
    %1346 = vmatprep.subr.mxu0 0.0
    %1347 = vmatpush1.msra.mxu0 0.0
    %1348 = vmatprep.subr.mxu0 0.0
    %1349 = vmatpush1.msra.mxu0 0.0
    %1350 = vmatprep.subr.mxu0 0.0
    %1351 = vmatpush1.msra.mxu0 0.0
    %1352 = vmatprep.subr.mxu0 0.0
    %1353 = vmatpush1.msra.mxu0 0.0
    %1354 = vmatprep.subr.mxu0 0.0
    %1355 = vmatpush1.msra.mxu0 0.0
    %1356 = vmatprep.subr.mxu0 0.0
    %1357 = vmatpush1.msra.mxu0 0.0
    %1358 = vmatprep.subr.mxu0 0.0
    %1359 = vmatpush1.msra.mxu0 0.0
    %1360 = vmatprep.subr.mxu0 0.0
    %1361 = vmatpush1.msra.mxu0 0.0
    %1362 = vmatprep.subr.mxu0 0.0
    %1363 = vmatpush1.msra.mxu0 0.0
    %1364 = vmatprep.subr.mxu0 0.0
    %1365 = vmatpush1.msra.mxu0 0.0
    %1366 = vmatprep.subr.mxu0 0.0
    %1367 = vmatpush1.msra.mxu0 0.0
    %1368 = vmatprep.subr.mxu0 0.0
    %1369 = vmatpush1.msra.mxu0 0.0
    %1370 = vmatprep.subr.mxu0 0.0
    %1371 = vmatpush1.msra.mxu0 0.0
    %1372 = vmatprep.subr.mxu0 0.0
    %1373 = vmatpush1.msra.mxu0 0.0
    %1374 = vmatprep.subr.mxu0 0.0
    %1375 = vmatpush1.msra.mxu0 0.0
    %1376 = vmatprep.subr.mxu0 0.0
    %1377 = vmatpush1.msra.mxu0 0.0
    %1378 = vmatprep.subr.mxu0 0.0
    %1379 = vmatpush1.msra.mxu0 0.0
    %1380 = vmatprep.subr.mxu0 0.0
    %1381 = vmatpush1.msra.mxu0 0.0
    %1382 = vmatprep.subr.mxu0 0.0
    %1383 = vmatpush1.msra.mxu0 0.0
    %1384 = vmatprep.subr.mxu0 0.0
    %1385 = vmatpush1.msra.mxu0 0.0
    %1386 = vmatprep.subr.mxu0 0.0
    %1387 = vmatpush1.msra.mxu0 0.0
    %1388 = vmatprep.subr.mxu0 0.0
    %1389 = vmatpush1.msra.mxu0 0.0
    %1390 = vmatprep.subr.mxu0 0.0
    %1391 = vmatpush1.msra.mxu0 0.0
    %1392 = vmatprep.mubr.f32.mxu0 0.0
    %v1393 = vand.u32 %v1011, 4294901760
    %1394 = vmatmul.mubr.f32.gmra.mrb[0].mxu0 %v1393
    %v1395 = vpop.f32.mrb[0].mxu0
    %v1396 = vadd.f32 %v1319, %v1395
    %v1397 = vpop.f32.mrb[0].mxu0
    %1398 = vdwg.mxu0
    %1399 = vmatprep.subr.mxu0 0.0
    %v1400 = vand.u32 %v1007, 4294901760
    %1401 = vmatpush1.msra.mxu0 %v1400
    %1402 = vmatprep.subr.mxu0 0.0
    %v1403 = vand.u32 %v1008, 4294901760
    %1404 = vmatpush1.msra.mxu0 %v1403
    %1405 = vmatprep.subr.mxu0 0.0
    %1406 = vmatpush1.msra.mxu0 0.0
    %1407 = vmatprep.subr.mxu0 0.0
    %1408 = vmatpush1.msra.mxu0 0.0
    %1409 = vmatprep.subr.mxu0 0.0
    %1410 = vmatpush1.msra.mxu0 0.0
    %1411 = vmatprep.subr.mxu0 0.0
    %1412 = vmatpush1.msra.mxu0 0.0
    %1413 = vmatprep.subr.mxu0 0.0
    %1414 = vmatpush1.msra.mxu0 0.0
    %1415 = vmatprep.subr.mxu0 0.0
    %1416 = vmatpush1.msra.mxu0 0.0
    %1417 = vmatprep.subr.mxu0 0.0
    %1418 = vmatpush1.msra.mxu0 0.0
    %1419 = vmatprep.subr.mxu0 0.0
    %1420 = vmatpush1.msra.mxu0 0.0
    %1421 = vmatprep.subr.mxu0 0.0
    %1422 = vmatpush1.msra.mxu0 0.0
    %1423 = vmatprep.subr.mxu0 0.0
    %1424 = vmatpush1.msra.mxu0 0.0
    %1425 = vmatprep.subr.mxu0 0.0
    %1426 = vmatpush1.msra.mxu0 0.0
    %1427 = vmatprep.subr.mxu0 0.0
    %1428 = vmatpush1.msra.mxu0 0.0
    %1429 = vmatprep.subr.mxu0 0.0
    %1430 = vmatpush1.msra.mxu0 0.0
    %1431 = vmatprep.subr.mxu0 0.0
    %1432 = vmatpush1.msra.mxu0 0.0
    %1433 = vmatprep.subr.mxu0 0.0
    %1434 = vmatpush1.msra.mxu0 0.0
    %1435 = vmatprep.subr.mxu0 0.0
    %1436 = vmatpush1.msra.mxu0 0.0
    %1437 = vmatprep.subr.mxu0 0.0
    %1438 = vmatpush1.msra.mxu0 0.0
    %1439 = vmatprep.subr.mxu0 0.0
    %1440 = vmatpush1.msra.mxu0 0.0
    %1441 = vmatprep.subr.mxu0 0.0
    %1442 = vmatpush1.msra.mxu0 0.0
    %1443 = vmatprep.subr.mxu0 0.0
    %1444 = vmatpush1.msra.mxu0 0.0
    %1445 = vmatprep.subr.mxu0 0.0
    %1446 = vmatpush1.msra.mxu0 0.0
    %1447 = vmatprep.subr.mxu0 0.0
    %1448 = vmatpush1.msra.mxu0 0.0
    %1449 = vmatprep.subr.mxu0 0.0
    %1450 = vmatpush1.msra.mxu0 0.0
    %1451 = vmatprep.subr.mxu0 0.0
    %1452 = vmatpush1.msra.mxu0 0.0
    %1453 = vmatprep.subr.mxu0 0.0
    %1454 = vmatpush1.msra.mxu0 0.0
    %1455 = vmatprep.subr.mxu0 0.0
    %1456 = vmatpush1.msra.mxu0 0.0
    %1457 = vmatprep.subr.mxu0 0.0
    %1458 = vmatpush1.msra.mxu0 0.0
    %1459 = vmatprep.subr.mxu0 0.0
    %1460 = vmatpush1.msra.mxu0 0.0
    %1461 = vmatprep.subr.mxu0 0.0
    %1462 = vmatpush1.msra.mxu0 0.0
    %1463 = vmatprep.subr.mxu0 0.0
    %1464 = vmatpush1.msra.mxu0 0.0
    %1465 = vmatprep.mubr.f32.mxu0 0.0
    %v1466 = vand.u32 %v1011, 4294901760
    %1467 = vmatmul.mubr.f32.gmra.mrb[0].mxu0 %v1466
    %v1468 = vpop.f32.mrb[0].mxu0
    %v1469 = vadd.f32 %v1396, %v1468
    %v1470 = vpop.f32.mrb[0].mxu0
    %1471 = vdwg.mxu0
    %v1472 = vld [vmem:[%s12] sm:$0xff]
    %1474 = vset.pattern.permute.xlu0 0
    %1475 = vperm.xlu0 %1474, %v1472
    %v1476 = vpop.permute.xlu0 %1475
    %v1478 = vmul.f32 %v1469, %v1476
    %v1479 = vld [vmem:[#allocation17] sm:$0xff]
    %1481 = vset.pattern.permute.xlu0 0
    %1482 = vperm.xlu0 %1481, %v1479
    %v1483 = vpop.permute.xlu0 %1482
    %v1485 = vadd.f32 %v1478, %v1483
    %v1486 = vxor.u32 %v1485, 2147483648
    %v1487 = vmul.f32 %v1486, 1.442695
    %v1488 = vpow.pop %v1487
    %v1489 = vadd.f32 %v1488, 1.0
    %v1490 = vrcp.pop %v1489
    %v1491 = vmul.f32 1.0, %v1490
    %v1492 = vmul.f32 %v1485, %v1491
    %vm1493 = vcmask 392192
    %1494 = vst.msk [vmem:[#allocation4] sm:$0xff] %vm1493, 0.0
    %1496 = vrot.lane.b32.xlu0 %v298, 126
    %v1497 = vpop.permute.xlu0 %1496
    %v1499 = vadd.f32 %v1492, %v1497
    %v1500 = vxor.u32 %v1499, 2147483648
    %v1501 = vmul.f32 %v1500, 1.442695
    %v1502 = vpow.pop %v1501
    %v1503 = vadd.f32 %v1502, 1.0
    %v1504 = vrcp.pop %v1503
    %v1505 = vmul.f32 1.0, %v1504
    %v1506 = vmul.f32 %v1499, %v1505
    %1508 = vrot.lane.b32.xlu0 %v1506, 4
    %v1509 = vpop.permute.xlu0 %1508
    %vm1511 = vcmask 162848
    %1512 = vst.msk [vmem:[#allocation4] sm:$0xff] %vm1511, %v1509
    %1513 = vrot.lane.b32.xlu0 %v298, 122
    %v1514 = vpop.permute.xlu0 %1513
    %v1516 = vadd.f32 %v1492, %v1514
    %v1517 = vxor.u32 %v1516, 2147483648
    %v1518 = vmul.f32 %v1517, 1.442695
    %v1519 = vpow.pop %v1518
    %v1520 = vadd.f32 %v1519, 1.0
    %v1521 = vrcp.pop %v1520
    %v1522 = vmul.f32 1.0, %v1521
    %v1523 = vmul.f32 %v1516, %v1522
    %1525 = vrot.lane.b32.xlu0 %v1523, 12
    %v1526 = vpop.permute.xlu0 %1525
    %vm1528 = vcmask 359648
    %1529 = vst.msk [vmem:[#allocation4] sm:$0xff] %vm1528, %v1526
    %v1530 = vld [vmem:[#allocation4] sm:$0xff]
    %v1531 = vld [vmem:[#allocation19] sm:$0xff]
    %v1532 = vld [vmem:[#allocation19 + $0x8] sm:$0xff]
    %v1534 = vsel %vm301, %v1531, 0
    %v1537 = vsel %vm301, %v1532, 0
    %1539 = vmatprep.subr.mxu0 0.0
    %v1540 = vand.u32 %v1530, 4294901760
    %1541 = vmatpush1.msra.mxu0 %v1540
    %1542 = vmatprep.subr.mxu0 0.0
    %1543 = vmatpush1.msra.mxu0 0.0
    %1544 = vmatprep.subr.mxu0 0.0
    %1545 = vmatpush1.msra.mxu0 0.0
    %1546 = vmatprep.subr.mxu0 0.0
    %1547 = vmatpush1.msra.mxu0 0.0
    %1548 = vmatprep.subr.mxu0 0.0
    %1549 = vmatpush1.msra.mxu0 0.0
    %1550 = vmatprep.subr.mxu0 0.0
    %1551 = vmatpush1.msra.mxu0 0.0
    %1552 = vmatprep.subr.mxu0 0.0
    %1553 = vmatpush1.msra.mxu0 0.0
    %1554 = vmatprep.subr.mxu0 0.0
    %1555 = vmatpush1.msra.mxu0 0.0
    %1556 = vmatprep.subr.mxu0 0.0
    %1557 = vmatpush1.msra.mxu0 0.0
    %1558 = vmatprep.subr.mxu0 0.0
    %1559 = vmatpush1.msra.mxu0 0.0
    %1560 = vmatprep.subr.mxu0 0.0
    %1561 = vmatpush1.msra.mxu0 0.0
    %1562 = vmatprep.subr.mxu0 0.0
    %1563 = vmatpush1.msra.mxu0 0.0
    %1564 = vmatprep.subr.mxu0 0.0
    %1565 = vmatpush1.msra.mxu0 0.0
    %1566 = vmatprep.subr.mxu0 0.0
    %1567 = vmatpush1.msra.mxu0 0.0
    %1568 = vmatprep.subr.mxu0 0.0
    %1569 = vmatpush1.msra.mxu0 0.0
    %1570 = vmatprep.subr.mxu0 0.0
    %1571 = vmatpush1.msra.mxu0 0.0
    %1572 = vmatprep.subr.mxu0 0.0
    %1573 = vmatpush1.msra.mxu0 0.0
    %1574 = vmatprep.subr.mxu0 0.0
    %1575 = vmatpush1.msra.mxu0 0.0
    %1576 = vmatprep.subr.mxu0 0.0
    %1577 = vmatpush1.msra.mxu0 0.0
    %1578 = vmatprep.subr.mxu0 0.0
    %1579 = vmatpush1.msra.mxu0 0.0
    %1580 = vmatprep.subr.mxu0 0.0
    %1581 = vmatpush1.msra.mxu0 0.0
    %1582 = vmatprep.subr.mxu0 0.0
    %1583 = vmatpush1.msra.mxu0 0.0
    %1584 = vmatprep.subr.mxu0 0.0
    %1585 = vmatpush1.msra.mxu0 0.0
    %1586 = vmatprep.subr.mxu0 0.0
    %1587 = vmatpush1.msra.mxu0 0.0
    %1588 = vmatprep.subr.mxu0 0.0
    %1589 = vmatpush1.msra.mxu0 0.0
    %1590 = vmatprep.subr.mxu0 0.0
    %1591 = vmatpush1.msra.mxu0 0.0
    %1592 = vmatprep.subr.mxu0 0.0
    %1593 = vmatpush1.msra.mxu0 0.0
    %1594 = vmatprep.subr.mxu0 0.0
    %1595 = vmatpush1.msra.mxu0 0.0
    %1596 = vmatprep.subr.mxu0 0.0
    %1597 = vmatpush1.msra.mxu0 0.0
    %1598 = vmatprep.subr.mxu0 0.0
    %1599 = vmatpush1.msra.mxu0 0.0
    %1600 = vmatprep.subr.mxu0 0.0
    %1601 = vmatpush1.msra.mxu0 0.0
    %1602 = vmatprep.subr.mxu0 0.0
    %1603 = vmatpush1.msra.mxu0 0.0
    %1604 = vmatprep.mubr.f32.mxu0 0.0
    %v1605 = vand.u32 %v1534, 4294901760
    %v1606 = vsub.f32 %v1534, %v1605
    %v1607 = vand.u32 %v1606, 4294901760
    %v1608 = vsub.f32 %v1606, %v1607
    %v1609 = vand.u32 %v1608, 4294901760
    %1610 = vmatmul.mubr.f32.gmra.mrb[0].mxu0 %v1609
    %v1611 = vpop.f32.mrb[0].mxu0
    %v1612 = vadd.f32 0.0, %v1611
    %v1613 = vpop.f32.mrb[0].mxu0
    %1614 = vmatprep.mubr.f32.mxu0 0.0
    %v1615 = vand.u32 %v1537, 4294901760
    %v1616 = vsub.f32 %v1537, %v1615
    %v1617 = vand.u32 %v1616, 4294901760
    %v1618 = vsub.f32 %v1616, %v1617
    %v1619 = vand.u32 %v1618, 4294901760
    %1620 = vmatmul.mubr.f32.gmra.mrb[0].mxu0 %v1619
    %v1621 = vpop.f32.mrb[0].mxu0
    %v1622 = vadd.f32 0.0, %v1621
    %v1623 = vpop.f32.mrb[0].mxu0
    %1624 = vdwg.mxu0
    %1625 = vmatprep.subr.mxu0 0.0
    %v1626 = vand.u32 %v1530, 4294901760
    %v1627 = vsub.f32 %v1530, %v1626
    %v1628 = vand.u32 %v1627, 4294901760
    %v1629 = vsub.f32 %v1627, %v1628
    %v1630 = vand.u32 %v1629, 4294901760
    %1631 = vmatpush1.msra.mxu0 %v1630
    %1632 = vmatprep.subr.mxu0 0.0
    %1633 = vmatpush1.msra.mxu0 0.0
    %1634 = vmatprep.subr.mxu0 0.0
    %1635 = vmatpush1.msra.mxu0 0.0
    %1636 = vmatprep.subr.mxu0 0.0
    %1637 = vmatpush1.msra.mxu0 0.0
    %1638 = vmatprep.subr.mxu0 0.0
    %1639 = vmatpush1.msra.mxu0 0.0
    %1640 = vmatprep.subr.mxu0 0.0
    %1641 = vmatpush1.msra.mxu0 0.0
    %1642 = vmatprep.subr.mxu0 0.0
    %1643 = vmatpush1.msra.mxu0 0.0
    %1644 = vmatprep.subr.mxu0 0.0
    %1645 = vmatpush1.msra.mxu0 0.0
    %1646 = vmatprep.subr.mxu0 0.0
    %1647 = vmatpush1.msra.mxu0 0.0
    %1648 = vmatprep.subr.mxu0 0.0
    %1649 = vmatpush1.msra.mxu0 0.0
    %1650 = vmatprep.subr.mxu0 0.0
    %1651 = vmatpush1.msra.mxu0 0.0
    %1652 = vmatprep.subr.mxu0 0.0
    %1653 = vmatpush1.msra.mxu0 0.0
    %1654 = vmatprep.subr.mxu0 0.0
    %1655 = vmatpush1.msra.mxu0 0.0
    %1656 = vmatprep.subr.mxu0 0.0
    %1657 = vmatpush1.msra.mxu0 0.0
    %1658 = vmatprep.subr.mxu0 0.0
    %1659 = vmatpush1.msra.mxu0 0.0
    %1660 = vmatprep.subr.mxu0 0.0
    %1661 = vmatpush1.msra.mxu0 0.0
    %1662 = vmatprep.subr.mxu0 0.0
    %1663 = vmatpush1.msra.mxu0 0.0
    %1664 = vmatprep.subr.mxu0 0.0
    %1665 = vmatpush1.msra.mxu0 0.0
    %1666 = vmatprep.subr.mxu0 0.0
    %1667 = vmatpush1.msra.mxu0 0.0
    %1668 = vmatprep.subr.mxu0 0.0
    %1669 = vmatpush1.msra.mxu0 0.0
    %1670 = vmatprep.subr.mxu0 0.0
    %1671 = vmatpush1.msra.mxu0 0.0
    %1672 = vmatprep.subr.mxu0 0.0
    %1673 = vmatpush1.msra.mxu0 0.0
    %1674 = vmatprep.subr.mxu0 0.0
    %1675 = vmatpush1.msra.mxu0 0.0
    %1676 = vmatprep.subr.mxu0 0.0
    %1677 = vmatpush1.msra.mxu0 0.0
    %1678 = vmatprep.subr.mxu0 0.0
    %1679 = vmatpush1.msra.mxu0 0.0
    %1680 = vmatprep.subr.mxu0 0.0
    %1681 = vmatpush1.msra.mxu0 0.0
    %1682 = vmatprep.subr.mxu0 0.0
    %1683 = vmatpush1.msra.mxu0 0.0
    %1684 = vmatprep.subr.mxu0 0.0
    %1685 = vmatpush1.msra.mxu0 0.0
    %1686 = vmatprep.subr.mxu0 0.0
    %1687 = vmatpush1.msra.mxu0 0.0
    %1688 = vmatprep.subr.mxu0 0.0
    %1689 = vmatpush1.msra.mxu0 0.0
    %1690 = vmatprep.subr.mxu0 0.0
    %1691 = vmatpush1.msra.mxu0 0.0
    %1692 = vmatprep.subr.mxu0 0.0
    %1693 = vmatpush1.msra.mxu0 0.0
    %1694 = vmatprep.mubr.f32.mxu0 0.0
    %v1695 = vand.u32 %v1534, 4294901760
    %1696 = vmatmul.mubr.f32.gmra.mrb[0].mxu0 %v1695
    %v1697 = vpop.f32.mrb[0].mxu0
    %v1698 = vadd.f32 %v1612, %v1697
    %v1699 = vpop.f32.mrb[0].mxu0
    %1700 = vmatprep.mubr.f32.mxu0 0.0
    %v1701 = vand.u32 %v1537, 4294901760
    %1702 = vmatmul.mubr.f32.gmra.mrb[0].mxu0 %v1701
    %v1703 = vpop.f32.mrb[0].mxu0
    %v1704 = vadd.f32 %v1622, %v1703
    %v1705 = vpop.f32.mrb[0].mxu0
    %1706 = vdwg.mxu0
    %1707 = vmatprep.subr.mxu0 0.0
    %v1708 = vand.u32 %v1530, 4294901760
    %v1709 = vsub.f32 %v1530, %v1708
    %1710 = vmatpush1.msra.mxu0 %v1709
    %1711 = vmatprep.subr.mxu0 0.0
    %1712 = vmatpush1.msra.mxu0 0.0
    %1713 = vmatprep.subr.mxu0 0.0
    %1714 = vmatpush1.msra.mxu0 0.0
    %1715 = vmatprep.subr.mxu0 0.0
    %1716 = vmatpush1.msra.mxu0 0.0
    %1717 = vmatprep.subr.mxu0 0.0
    %1718 = vmatpush1.msra.mxu0 0.0
    %1719 = vmatprep.subr.mxu0 0.0
    %1720 = vmatpush1.msra.mxu0 0.0
    %1721 = vmatprep.subr.mxu0 0.0
    %1722 = vmatpush1.msra.mxu0 0.0
    %1723 = vmatprep.subr.mxu0 0.0
    %1724 = vmatpush1.msra.mxu0 0.0
    %1725 = vmatprep.subr.mxu0 0.0
    %1726 = vmatpush1.msra.mxu0 0.0
    %1727 = vmatprep.subr.mxu0 0.0
    %1728 = vmatpush1.msra.mxu0 0.0
    %1729 = vmatprep.subr.mxu0 0.0
    %1730 = vmatpush1.msra.mxu0 0.0
    %1731 = vmatprep.subr.mxu0 0.0
    %1732 = vmatpush1.msra.mxu0 0.0
    %1733 = vmatprep.subr.mxu0 0.0
    %1734 = vmatpush1.msra.mxu0 0.0
    %1735 = vmatprep.subr.mxu0 0.0
    %1736 = vmatpush1.msra.mxu0 0.0
    %1737 = vmatprep.subr.mxu0 0.0
    %1738 = vmatpush1.msra.mxu0 0.0
    %1739 = vmatprep.subr.mxu0 0.0
    %1740 = vmatpush1.msra.mxu0 0.0
    %1741 = vmatprep.subr.mxu0 0.0
    %1742 = vmatpush1.msra.mxu0 0.0
    %1743 = vmatprep.subr.mxu0 0.0
    %1744 = vmatpush1.msra.mxu0 0.0
    %1745 = vmatprep.subr.mxu0 0.0
    %1746 = vmatpush1.msra.mxu0 0.0
    %1747 = vmatprep.subr.mxu0 0.0
    %1748 = vmatpush1.msra.mxu0 0.0
    %1749 = vmatprep.subr.mxu0 0.0
    %1750 = vmatpush1.msra.mxu0 0.0
    %1751 = vmatprep.subr.mxu0 0.0
    %1752 = vmatpush1.msra.mxu0 0.0
    %1753 = vmatprep.subr.mxu0 0.0
    %1754 = vmatpush1.msra.mxu0 0.0
    %1755 = vmatprep.subr.mxu0 0.0
    %1756 = vmatpush1.msra.mxu0 0.0
    %1757 = vmatprep.subr.mxu0 0.0
    %1758 = vmatpush1.msra.mxu0 0.0
    %1759 = vmatprep.subr.mxu0 0.0
    %1760 = vmatpush1.msra.mxu0 0.0
    %1761 = vmatprep.subr.mxu0 0.0
    %1762 = vmatpush1.msra.mxu0 0.0
    %1763 = vmatprep.subr.mxu0 0.0
    %1764 = vmatpush1.msra.mxu0 0.0
    %1765 = vmatprep.subr.mxu0 0.0
    %1766 = vmatpush1.msra.mxu0 0.0
    %1767 = vmatprep.subr.mxu0 0.0
    %1768 = vmatpush1.msra.mxu0 0.0
    %1769 = vmatprep.subr.mxu0 0.0
    %1770 = vmatpush1.msra.mxu0 0.0
    %1771 = vmatprep.subr.mxu0 0.0
    %1772 = vmatpush1.msra.mxu0 0.0
    %1773 = vmatprep.mubr.f32.mxu0 0.0
    %v1774 = vand.u32 %v1534, 4294901760
    %v1775 = vsub.f32 %v1534, %v1774
    %1776 = vmatmul.mubr.f32.gmra.mrb[0].mxu0 %v1775
    %v1777 = vpop.f32.mrb[0].mxu0
    %v1778 = vadd.f32 %v1698, %v1777
    %v1779 = vpop.f32.mrb[0].mxu0
    %1780 = vmatprep.mubr.f32.mxu0 0.0
    %v1781 = vand.u32 %v1537, 4294901760
    %v1782 = vsub.f32 %v1537, %v1781
    %1783 = vmatmul.mubr.f32.gmra.mrb[0].mxu0 %v1782
    %v1784 = vpop.f32.mrb[0].mxu0
    %v1785 = vadd.f32 %v1704, %v1784
    %v1786 = vpop.f32.mrb[0].mxu0
    %1787 = vdwg.mxu0
    %1788 = vmatprep.subr.mxu0 0.0
    %v1789 = vand.u32 %v1530, 4294901760
    %1790 = vmatpush1.msra.mxu0 %v1789
    %1791 = vmatprep.subr.mxu0 0.0
    %1792 = vmatpush1.msra.mxu0 0.0
    %1793 = vmatprep.subr.mxu0 0.0
    %1794 = vmatpush1.msra.mxu0 0.0
    %1795 = vmatprep.subr.mxu0 0.0
    %1796 = vmatpush1.msra.mxu0 0.0
    %1797 = vmatprep.subr.mxu0 0.0
    %1798 = vmatpush1.msra.mxu0 0.0
    %1799 = vmatprep.subr.mxu0 0.0
    %1800 = vmatpush1.msra.mxu0 0.0
    %1801 = vmatprep.subr.mxu0 0.0
    %1802 = vmatpush1.msra.mxu0 0.0
    %1803 = vmatprep.subr.mxu0 0.0
    %1804 = vmatpush1.msra.mxu0 0.0
    %1805 = vmatprep.subr.mxu0 0.0
    %1806 = vmatpush1.msra.mxu0 0.0
    %1807 = vmatprep.subr.mxu0 0.0
    %1808 = vmatpush1.msra.mxu0 0.0
    %1809 = vmatprep.subr.mxu0 0.0
    %1810 = vmatpush1.msra.mxu0 0.0
    %1811 = vmatprep.subr.mxu0 0.0
    %1812 = vmatpush1.msra.mxu0 0.0
    %1813 = vmatprep.subr.mxu0 0.0
    %1814 = vmatpush1.msra.mxu0 0.0
    %1815 = vmatprep.subr.mxu0 0.0
    %1816 = vmatpush1.msra.mxu0 0.0
    %1817 = vmatprep.subr.mxu0 0.0
    %1818 = vmatpush1.msra.mxu0 0.0
    %1819 = vmatprep.subr.mxu0 0.0
    %1820 = vmatpush1.msra.mxu0 0.0
    %1821 = vmatprep.subr.mxu0 0.0
    %1822 = vmatpush1.msra.mxu0 0.0
    %1823 = vmatprep.subr.mxu0 0.0
    %1824 = vmatpush1.msra.mxu0 0.0
    %1825 = vmatprep.subr.mxu0 0.0
    %1826 = vmatpush1.msra.mxu0 0.0
    %1827 = vmatprep.subr.mxu0 0.0
    %1828 = vmatpush1.msra.mxu0 0.0
    %1829 = vmatprep.subr.mxu0 0.0
    %1830 = vmatpush1.msra.mxu0 0.0
    %1831 = vmatprep.subr.mxu0 0.0
    %1832 = vmatpush1.msra.mxu0 0.0
    %1833 = vmatprep.subr.mxu0 0.0
    %1834 = vmatpush1.msra.mxu0 0.0
    %1835 = vmatprep.subr.mxu0 0.0
    %1836 = vmatpush1.msra.mxu0 0.0
    %1837 = vmatprep.subr.mxu0 0.0
    %1838 = vmatpush1.msra.mxu0 0.0
    %1839 = vmatprep.subr.mxu0 0.0
    %1840 = vmatpush1.msra.mxu0 0.0
    %1841 = vmatprep.subr.mxu0 0.0
    %1842 = vmatpush1.msra.mxu0 0.0
    %1843 = vmatprep.subr.mxu0 0.0
    %1844 = vmatpush1.msra.mxu0 0.0
    %1845 = vmatprep.subr.mxu0 0.0
    %1846 = vmatpush1.msra.mxu0 0.0
    %1847 = vmatprep.subr.mxu0 0.0
    %1848 = vmatpush1.msra.mxu0 0.0
    %1849 = vmatprep.subr.mxu0 0.0
    %1850 = vmatpush1.msra.mxu0 0.0
    %1851 = vmatprep.subr.mxu0 0.0
    %1852 = vmatpush1.msra.mxu0 0.0
    %1853 = vmatprep.mubr.f32.mxu0 0.0
    %v1854 = vand.u32 %v1534, 4294901760
    %v1855 = vsub.f32 %v1534, %v1854
    %v1856 = vand.u32 %v1855, 4294901760
    %1857 = vmatmul.mubr.f32.gmra.mrb[0].mxu0 %v1856
    %v1858 = vpop.f32.mrb[0].mxu0
    %v1859 = vadd.f32 %v1778, %v1858
    %v1860 = vpop.f32.mrb[0].mxu0
    %1861 = vmatprep.mubr.f32.mxu0 0.0
    %v1862 = vand.u32 %v1537, 4294901760
    %v1863 = vsub.f32 %v1537, %v1862
    %v1864 = vand.u32 %v1863, 4294901760
    %1865 = vmatmul.mubr.f32.gmra.mrb[0].mxu0 %v1864
    %v1866 = vpop.f32.mrb[0].mxu0
    %v1867 = vadd.f32 %v1785, %v1866
    %v1868 = vpop.f32.mrb[0].mxu0
    %1869 = vdwg.mxu0
    %1870 = vmatprep.subr.mxu0 0.0
    %v1871 = vand.u32 %v1530, 4294901760
    %v1872 = vsub.f32 %v1530, %v1871
    %v1873 = vand.u32 %v1872, 4294901760
    %1874 = vmatpush1.msra.mxu0 %v1873
    %1875 = vmatprep.subr.mxu0 0.0
    %1876 = vmatpush1.msra.mxu0 0.0
    %1877 = vmatprep.subr.mxu0 0.0
    %1878 = vmatpush1.msra.mxu0 0.0
    %1879 = vmatprep.subr.mxu0 0.0
    %1880 = vmatpush1.msra.mxu0 0.0
    %1881 = vmatprep.subr.mxu0 0.0
    %1882 = vmatpush1.msra.mxu0 0.0
    %1883 = vmatprep.subr.mxu0 0.0
    %1884 = vmatpush1.msra.mxu0 0.0
    %1885 = vmatprep.subr.mxu0 0.0
    %1886 = vmatpush1.msra.mxu0 0.0
    %1887 = vmatprep.subr.mxu0 0.0
    %1888 = vmatpush1.msra.mxu0 0.0
    %1889 = vmatprep.subr.mxu0 0.0
    %1890 = vmatpush1.msra.mxu0 0.0
    %1891 = vmatprep.subr.mxu0 0.0
    %1892 = vmatpush1.msra.mxu0 0.0
    %1893 = vmatprep.subr.mxu0 0.0
    %1894 = vmatpush1.msra.mxu0 0.0
    %1895 = vmatprep.subr.mxu0 0.0
    %1896 = vmatpush1.msra.mxu0 0.0
    %1897 = vmatprep.subr.mxu0 0.0
    %1898 = vmatpush1.msra.mxu0 0.0
    %1899 = vmatprep.subr.mxu0 0.0
    %1900 = vmatpush1.msra.mxu0 0.0
    %1901 = vmatprep.subr.mxu0 0.0
    %1902 = vmatpush1.msra.mxu0 0.0
    %1903 = vmatprep.subr.mxu0 0.0
    %1904 = vmatpush1.msra.mxu0 0.0
    %1905 = vmatprep.subr.mxu0 0.0
    %1906 = vmatpush1.msra.mxu0 0.0
    %1907 = vmatprep.subr.mxu0 0.0
    %1908 = vmatpush1.msra.mxu0 0.0
    %1909 = vmatprep.subr.mxu0 0.0
    %1910 = vmatpush1.msra.mxu0 0.0
    %1911 = vmatprep.subr.mxu0 0.0
    %1912 = vmatpush1.msra.mxu0 0.0
    %1913 = vmatprep.subr.mxu0 0.0
    %1914 = vmatpush1.msra.mxu0 0.0
    %1915 = vmatprep.subr.mxu0 0.0
    %1916 = vmatpush1.msra.mxu0 0.0
    %1917 = vmatprep.subr.mxu0 0.0
    %1918 = vmatpush1.msra.mxu0 0.0
    %1919 = vmatprep.subr.mxu0 0.0
    %1920 = vmatpush1.msra.mxu0 0.0
    %1921 = vmatprep.subr.mxu0 0.0
    %1922 = vmatpush1.msra.mxu0 0.0
    %1923 = vmatprep.subr.mxu0 0.0
    %1924 = vmatpush1.msra.mxu0 0.0
    %1925 = vmatprep.subr.mxu0 0.0
    %1926 = vmatpush1.msra.mxu0 0.0
    %1927 = vmatprep.subr.mxu0 0.0
    %1928 = vmatpush1.msra.mxu0 0.0
    %1929 = vmatprep.subr.mxu0 0.0
    %1930 = vmatpush1.msra.mxu0 0.0
    %1931 = vmatprep.subr.mxu0 0.0
    %1932 = vmatpush1.msra.mxu0 0.0
    %1933 = vmatprep.subr.mxu0 0.0
    %1934 = vmatpush1.msra.mxu0 0.0
    %1935 = vmatprep.subr.mxu0 0.0
    %1936 = vmatpush1.msra.mxu0 0.0
    %1937 = vmatprep.mubr.f32.mxu0 0.0
    %v1938 = vand.u32 %v1534, 4294901760
    %1939 = vmatmul.mubr.f32.gmra.mrb[0].mxu0 %v1938
    %v1940 = vpop.f32.mrb[0].mxu0
    %v1941 = vadd.f32 %v1859, %v1940
    %v1942 = vpop.f32.mrb[0].mxu0
    %1943 = vmatprep.mubr.f32.mxu0 0.0
    %v1944 = vand.u32 %v1537, 4294901760
    %1945 = vmatmul.mubr.f32.gmra.mrb[0].mxu0 %v1944
    %v1946 = vpop.f32.mrb[0].mxu0
    %v1947 = vadd.f32 %v1867, %v1946
    %v1948 = vpop.f32.mrb[0].mxu0
    %1949 = vdwg.mxu0
    %1950 = vmatprep.subr.mxu0 0.0
    %v1951 = vand.u32 %v1530, 4294901760
    %1952 = vmatpush1.msra.mxu0 %v1951
    %1953 = vmatprep.subr.mxu0 0.0
    %1954 = vmatpush1.msra.mxu0 0.0
    %1955 = vmatprep.subr.mxu0 0.0
    %1956 = vmatpush1.msra.mxu0 0.0
    %1957 = vmatprep.subr.mxu0 0.0
    %1958 = vmatpush1.msra.mxu0 0.0
    %1959 = vmatprep.subr.mxu0 0.0
    %1960 = vmatpush1.msra.mxu0 0.0
    %1961 = vmatprep.subr.mxu0 0.0
    %1962 = vmatpush1.msra.mxu0 0.0
    %1963 = vmatprep.subr.mxu0 0.0
    %1964 = vmatpush1.msra.mxu0 0.0
    %1965 = vmatprep.subr.mxu0 0.0
    %1966 = vmatpush1.msra.mxu0 0.0
    %1967 = vmatprep.subr.mxu0 0.0
    %1968 = vmatpush1.msra.mxu0 0.0
    %1969 = vmatprep.subr.mxu0 0.0
    %1970 = vmatpush1.msra.mxu0 0.0
    %1971 = vmatprep.subr.mxu0 0.0
    %1972 = vmatpush1.msra.mxu0 0.0
    %1973 = vmatprep.subr.mxu0 0.0
    %1974 = vmatpush1.msra.mxu0 0.0
    %1975 = vmatprep.subr.mxu0 0.0
    %1976 = vmatpush1.msra.mxu0 0.0
    %1977 = vmatprep.subr.mxu0 0.0
    %1978 = vmatpush1.msra.mxu0 0.0
    %1979 = vmatprep.subr.mxu0 0.0
    %1980 = vmatpush1.msra.mxu0 0.0
    %1981 = vmatprep.subr.mxu0 0.0
    %1982 = vmatpush1.msra.mxu0 0.0
    %1983 = vmatprep.subr.mxu0 0.0
    %1984 = vmatpush1.msra.mxu0 0.0
    %1985 = vmatprep.subr.mxu0 0.0
    %1986 = vmatpush1.msra.mxu0 0.0
    %1987 = vmatprep.subr.mxu0 0.0
    %1988 = vmatpush1.msra.mxu0 0.0
    %1989 = vmatprep.subr.mxu0 0.0
    %1990 = vmatpush1.msra.mxu0 0.0
    %1991 = vmatprep.subr.mxu0 0.0
    %1992 = vmatpush1.msra.mxu0 0.0
    %1993 = vmatprep.subr.mxu0 0.0
    %1994 = vmatpush1.msra.mxu0 0.0
    %1995 = vmatprep.subr.mxu0 0.0
    %1996 = vmatpush1.msra.mxu0 0.0
    %1997 = vmatprep.subr.mxu0 0.0
    %1998 = vmatpush1.msra.mxu0 0.0
    %1999 = vmatprep.subr.mxu0 0.0
    %2000 = vmatpush1.msra.mxu0 0.0
    %2001 = vmatprep.subr.mxu0 0.0
    %2002 = vmatpush1.msra.mxu0 0.0
    %2003 = vmatprep.subr.mxu0 0.0
    %2004 = vmatpush1.msra.mxu0 0.0
    %2005 = vmatprep.subr.mxu0 0.0
    %2006 = vmatpush1.msra.mxu0 0.0
    %2007 = vmatprep.subr.mxu0 0.0
    %2008 = vmatpush1.msra.mxu0 0.0
    %2009 = vmatprep.subr.mxu0 0.0
    %2010 = vmatpush1.msra.mxu0 0.0
    %2011 = vmatprep.subr.mxu0 0.0
    %2012 = vmatpush1.msra.mxu0 0.0
    %2013 = vmatprep.subr.mxu0 0.0
    %2014 = vmatpush1.msra.mxu0 0.0
    %2015 = vmatprep.mubr.f32.mxu0 0.0
    %v2016 = vand.u32 %v1534, 4294901760
    %2017 = vmatmul.mubr.f32.gmra.mrb[0].mxu0 %v2016
    %v2018 = vpop.f32.mrb[0].mxu0
    %v2019 = vadd.f32 %v1941, %v2018
    %v2020 = vpop.f32.mrb[0].mxu0
    %2021 = vmatprep.mubr.f32.mxu0 0.0
    %v2022 = vand.u32 %v1537, 4294901760
    %2023 = vmatmul.mubr.f32.gmra.mrb[0].mxu0 %v2022
    %v2024 = vpop.f32.mrb[0].mxu0
    %v2025 = vadd.f32 %v1947, %v2024
    %v2026 = vpop.f32.mrb[0].mxu0
    %2027 = vdwg.mxu0
    %v2028 = vld [vmem:[%s15] sm:$0xff]
    %v2029 = vld [vmem:[%s15 + $0x8] sm:$0xff]
    %2031 = vset.pattern.permute.xlu0 0
    %2032 = vperm.xlu0 %2031, %v2028
    %v2033 = vpop.permute.xlu0 %2032
    %2036 = vset.pattern.permute.xlu0 0
    %2037 = vperm.xlu0 %2036, %v2029
    %v2038 = vpop.permute.xlu0 %2037
    %v2040 = vmul.f32 %v2019, %v2033
    %v2041 = vmul.f32 %v2025, %v2038
    %v2042 = vld [vmem:[#allocation20] sm:$0xff]
    %v2043 = vld [vmem:[#allocation20 + $0x8] sm:$0xff]
    %2045 = vset.pattern.permute.xlu0 0
    %2046 = vperm.xlu0 %2045, %v2042
    %v2047 = vpop.permute.xlu0 %2046
    %2050 = vset.pattern.permute.xlu0 0
    %2051 = vperm.xlu0 %2050, %v2043
    %v2052 = vpop.permute.xlu0 %2051
    %v2054 = vadd.f32 %v2040, %v2047
    %v2055 = vadd.f32 %v2041, %v2052
    %v2056 = vxor.u32 %v2054, 2147483648
    %v2057 = vxor.u32 %v2055, 2147483648
    %v2058 = vmul.f32 %v2056, 1.442695
    %v2059 = vpow.pop %v2058
    %v2060 = vmul.f32 %v2057, 1.442695
    %v2061 = vpow.pop %v2060
    %v2062 = vadd.f32 %v2059, 1.0
    %v2063 = vadd.f32 %v2061, 1.0
    %v2064 = vrcp.pop %v2062
    %v2065 = vmul.f32 1.0, %v2064
    %v2066 = vrcp.pop %v2063
    %v2067 = vmul.f32 1.0, %v2066
    %v2068 = vmul.f32 %v2054, %v2065
    %v2069 = vmul.f32 %v2055, %v2067
    %v2070 = vld [vmem:[%s17] sm:$0xff]
    %v2071 = vld [vmem:[%s17 + $0x8] sm:$0xff]
    %s2072 = scalar_lea.vmem %s17, 16
    %v2073 = vld [vmem:[%s2072] sm:$0xff]
    %v2074 = vld [vmem:[%s2072 + $0x8] sm:$0xff]
    %2077 = vrot.lane.b32.xlu0 %v2068, 124
    %v2078 = vpop.permute.xlu0 %2077
    %2079 = vrot.lane.b32.xlu0 %v2069, 124
    %v2080 = vpop.permute.xlu0 %2079
    %v2084 = vsel %vm895, %v2073, 0
    %v2087 = vsel %vm895, %v2074, 0
    %2089 = vmatprep.subr.mxu0 0.0
    %v2090 = vand.u32 %v2078, 4294901760
    %2091 = vmatpush1.msra.mxu0 %v2090
    %2092 = vmatprep.subr.mxu0 0.0
    %v2093 = vand.u32 %v2080, 4294901760
    %2094 = vmatpush1.msra.mxu0 %v2093
    %2095 = vmatprep.subr.mxu0 0.0
    %2096 = vmatpush1.msra.mxu0 0.0
    %2097 = vmatprep.subr.mxu0 0.0
    %2098 = vmatpush1.msra.mxu0 0.0
    %2099 = vmatprep.subr.mxu0 0.0
    %2100 = vmatpush1.msra.mxu0 0.0
    %2101 = vmatprep.subr.mxu0 0.0
    %2102 = vmatpush1.msra.mxu0 0.0
    %2103 = vmatprep.subr.mxu0 0.0
    %2104 = vmatpush1.msra.mxu0 0.0
    %2105 = vmatprep.subr.mxu0 0.0
    %2106 = vmatpush1.msra.mxu0 0.0
    %2107 = vmatprep.subr.mxu0 0.0
    %2108 = vmatpush1.msra.mxu0 0.0
    %2109 = vmatprep.subr.mxu0 0.0
    %2110 = vmatpush1.msra.mxu0 0.0
    %2111 = vmatprep.subr.mxu0 0.0
    %2112 = vmatpush1.msra.mxu0 0.0
    %2113 = vmatprep.subr.mxu0 0.0
    %2114 = vmatpush1.msra.mxu0 0.0
    %2115 = vmatprep.subr.mxu0 0.0
    %2116 = vmatpush1.msra.mxu0 0.0
    %2117 = vmatprep.subr.mxu0 0.0
    %2118 = vmatpush1.msra.mxu0 0.0
    %2119 = vmatprep.subr.mxu0 0.0
    %2120 = vmatpush1.msra.mxu0 0.0
    %2121 = vmatprep.subr.mxu0 0.0
    %2122 = vmatpush1.msra.mxu0 0.0
    %2123 = vmatprep.subr.mxu0 0.0
    %2124 = vmatpush1.msra.mxu0 0.0
    %2125 = vmatprep.subr.mxu0 0.0
    %2126 = vmatpush1.msra.mxu0 0.0
    %2127 = vmatprep.subr.mxu0 0.0
    %2128 = vmatpush1.msra.mxu0 0.0
    %2129 = vmatprep.subr.mxu0 0.0
    %2130 = vmatpush1.msra.mxu0 0.0
    %2131 = vmatprep.subr.mxu0 0.0
    %2132 = vmatpush1.msra.mxu0 0.0
    %2133 = vmatprep.subr.mxu0 0.0
    %2134 = vmatpush1.msra.mxu0 0.0
    %2135 = vmatprep.subr.mxu0 0.0
    %2136 = vmatpush1.msra.mxu0 0.0
    %2137 = vmatprep.subr.mxu0 0.0
    %2138 = vmatpush1.msra.mxu0 0.0
    %2139 = vmatprep.subr.mxu0 0.0
    %2140 = vmatpush1.msra.mxu0 0.0
    %2141 = vmatprep.subr.mxu0 0.0
    %2142 = vmatpush1.msra.mxu0 0.0
    %2143 = vmatprep.subr.mxu0 0.0
    %2144 = vmatpush1.msra.mxu0 0.0
    %2145 = vmatprep.subr.mxu0 0.0
    %2146 = vmatpush1.msra.mxu0 0.0
    %2147 = vmatprep.subr.mxu0 0.0
    %2148 = vmatpush1.msra.mxu0 0.0
    %2149 = vmatprep.subr.mxu0 0.0
    %2150 = vmatpush1.msra.mxu0 0.0
    %2151 = vmatprep.subr.mxu0 0.0
    %2152 = vmatpush1.msra.mxu0 0.0
    %2153 = vmatprep.subr.mxu0 0.0
    %2154 = vmatpush1.msra.mxu0 0.0
    %2155 = vmatprep.mubr.f32.mxu0 0.0
    %v2156 = vand.u32 %v2084, 4294901760
    %v2157 = vsub.f32 %v2084, %v2156
    %v2158 = vand.u32 %v2157, 4294901760
    %v2159 = vsub.f32 %v2157, %v2158
    %v2160 = vand.u32 %v2159, 4294901760
    %2161 = vmatmul.mubr.f32.gmra.mrb[0].mxu0 %v2160
    %v2162 = vpop.f32.mrb[0].mxu0
    %v2163 = vadd.f32 0.0, %v2162
    %v2164 = vpop.f32.mrb[0].mxu0
    %2165 = vmatprep.mubr.f32.mxu0 0.0
    %v2166 = vand.u32 %v2087, 4294901760
    %v2167 = vsub.f32 %v2087, %v2166
    %v2168 = vand.u32 %v2167, 4294901760
    %v2169 = vsub.f32 %v2167, %v2168
    %v2170 = vand.u32 %v2169, 4294901760
    %2171 = vmatmul.mubr.f32.gmra.mrb[0].mxu0 %v2170
    %v2172 = vpop.f32.mrb[0].mxu0
    %v2173 = vadd.f32 0.0, %v2172
    %v2174 = vpop.f32.mrb[0].mxu0
    %2175 = vdwg.mxu0
    %2176 = vmatprep.subr.mxu0 0.0
    %v2177 = vand.u32 %v2078, 4294901760
    %v2178 = vsub.f32 %v2078, %v2177
    %v2179 = vand.u32 %v2178, 4294901760
    %v2180 = vsub.f32 %v2178, %v2179
    %v2181 = vand.u32 %v2180, 4294901760
    %2182 = vmatpush1.msra.mxu0 %v2181
    %2183 = vmatprep.subr.mxu0 0.0
    %v2184 = vand.u32 %v2080, 4294901760
    %v2185 = vsub.f32 %v2080, %v2184
    %v2186 = vand.u32 %v2185, 4294901760
    %v2187 = vsub.f32 %v2185, %v2186
    %v2188 = vand.u32 %v2187, 4294901760
    %2189 = vmatpush1.msra.mxu0 %v2188
    %2190 = vmatprep.subr.mxu0 0.0
    %2191 = vmatpush1.msra.mxu0 0.0
    %2192 = vmatprep.subr.mxu0 0.0
    %2193 = vmatpush1.msra.mxu0 0.0
    %2194 = vmatprep.subr.mxu0 0.0
    %2195 = vmatpush1.msra.mxu0 0.0
    %2196 = vmatprep.subr.mxu0 0.0
    %2197 = vmatpush1.msra.mxu0 0.0
    %2198 = vmatprep.subr.mxu0 0.0
    %2199 = vmatpush1.msra.mxu0 0.0
    %2200 = vmatprep.subr.mxu0 0.0
    %2201 = vmatpush1.msra.mxu0 0.0
    %2202 = vmatprep.subr.mxu0 0.0
    %2203 = vmatpush1.msra.mxu0 0.0
    %2204 = vmatprep.subr.mxu0 0.0
    %2205 = vmatpush1.msra.mxu0 0.0
    %2206 = vmatprep.subr.mxu0 0.0
    %2207 = vmatpush1.msra.mxu0 0.0
    %2208 = vmatprep.subr.mxu0 0.0
    %2209 = vmatpush1.msra.mxu0 0.0
    %2210 = vmatprep.subr.mxu0 0.0
    %2211 = vmatpush1.msra.mxu0 0.0
    %2212 = vmatprep.subr.mxu0 0.0
    %2213 = vmatpush1.msra.mxu0 0.0
    %2214 = vmatprep.subr.mxu0 0.0
    %2215 = vmatpush1.msra.mxu0 0.0
    %2216 = vmatprep.subr.mxu0 0.0
    %2217 = vmatpush1.msra.mxu0 0.0
    %2218 = vmatprep.subr.mxu0 0.0
    %2219 = vmatpush1.msra.mxu0 0.0
    %2220 = vmatprep.subr.mxu0 0.0
    %2221 = vmatpush1.msra.mxu0 0.0
    %2222 = vmatprep.subr.mxu0 0.0
    %2223 = vmatpush1.msra.mxu0 0.0
    %2224 = vmatprep.subr.mxu0 0.0
    %2225 = vmatpush1.msra.mxu0 0.0
    %2226 = vmatprep.subr.mxu0 0.0
    %2227 = vmatpush1.msra.mxu0 0.0
    %2228 = vmatprep.subr.mxu0 0.0
    %2229 = vmatpush1.msra.mxu0 0.0
    %2230 = vmatprep.subr.mxu0 0.0
    %2231 = vmatpush1.msra.mxu0 0.0
    %2232 = vmatprep.subr.mxu0 0.0
    %2233 = vmatpush1.msra.mxu0 0.0
    %2234 = vmatprep.subr.mxu0 0.0
    %2235 = vmatpush1.msra.mxu0 0.0
    %2236 = vmatprep.subr.mxu0 0.0
    %2237 = vmatpush1.msra.mxu0 0.0
    %2238 = vmatprep.subr.mxu0 0.0
    %2239 = vmatpush1.msra.mxu0 0.0
    %2240 = vmatprep.subr.mxu0 0.0
    %2241 = vmatpush1.msra.mxu0 0.0
    %2242 = vmatprep.subr.mxu0 0.0
    %2243 = vmatpush1.msra.mxu0 0.0
    %2244 = vmatprep.subr.mxu0 0.0
    %2245 = vmatpush1.msra.mxu0 0.0
    %2246 = vmatprep.subr.mxu0 0.0
    %2247 = vmatpush1.msra.mxu0 0.0
    %2248 = vmatprep.subr.mxu0 0.0
    %2249 = vmatpush1.msra.mxu0 0.0
    %2250 = vmatprep.mubr.f32.mxu0 0.0
    %v2251 = vand.u32 %v2084, 4294901760
    %2252 = vmatmul.mubr.f32.gmra.mrb[0].mxu0 %v2251
    %v2253 = vpop.f32.mrb[0].mxu0
    %v2254 = vadd.f32 %v2163, %v2253
    %v2255 = vpop.f32.mrb[0].mxu0
    %2256 = vmatprep.mubr.f32.mxu0 0.0
    %v2257 = vand.u32 %v2087, 4294901760
    %2258 = vmatmul.mubr.f32.gmra.mrb[0].mxu0 %v2257
    %v2259 = vpop.f32.mrb[0].mxu0
    %v2260 = vadd.f32 %v2173, %v2259
    %v2261 = vpop.f32.mrb[0].mxu0
    %2262 = vdwg.mxu0
    %2263 = vmatprep.subr.mxu0 0.0
    %v2264 = vand.u32 %v2078, 4294901760
    %v2265 = vsub.f32 %v2078, %v2264
    %2266 = vmatpush1.msra.mxu0 %v2265
    %2267 = vmatprep.subr.mxu0 0.0
    %v2268 = vand.u32 %v2080, 4294901760
    %v2269 = vsub.f32 %v2080, %v2268
    %2270 = vmatpush1.msra.mxu0 %v2269
    %2271 = vmatprep.subr.mxu0 0.0
    %2272 = vmatpush1.msra.mxu0 0.0
    %2273 = vmatprep.subr.mxu0 0.0
    %2274 = vmatpush1.msra.mxu0 0.0
    %2275 = vmatprep.subr.mxu0 0.0
    %2276 = vmatpush1.msra.mxu0 0.0
    %2277 = vmatprep.subr.mxu0 0.0
    %2278 = vmatpush1.msra.mxu0 0.0
    %2279 = vmatprep.subr.mxu0 0.0
    %2280 = vmatpush1.msra.mxu0 0.0
    %2281 = vmatprep.subr.mxu0 0.0
    %2282 = vmatpush1.msra.mxu0 0.0
    %2283 = vmatprep.subr.mxu0 0.0
    %2284 = vmatpush1.msra.mxu0 0.0
    %2285 = vmatprep.subr.mxu0 0.0
    %2286 = vmatpush1.msra.mxu0 0.0
    %2287 = vmatprep.subr.mxu0 0.0
    %2288 = vmatpush1.msra.mxu0 0.0
    %2289 = vmatprep.subr.mxu0 0.0
    %2290 = vmatpush1.msra.mxu0 0.0
    %2291 = vmatprep.subr.mxu0 0.0
    %2292 = vmatpush1.msra.mxu0 0.0
    %2293 = vmatprep.subr.mxu0 0.0
    %2294 = vmatpush1.msra.mxu0 0.0
    %2295 = vmatprep.subr.mxu0 0.0
    %2296 = vmatpush1.msra.mxu0 0.0
    %2297 = vmatprep.subr.mxu0 0.0
    %2298 = vmatpush1.msra.mxu0 0.0
    %2299 = vmatprep.subr.mxu0 0.0
    %2300 = vmatpush1.msra.mxu0 0.0
    %2301 = vmatprep.subr.mxu0 0.0
    %2302 = vmatpush1.msra.mxu0 0.0
    %2303 = vmatprep.subr.mxu0 0.0
    %2304 = vmatpush1.msra.mxu0 0.0
    %2305 = vmatprep.subr.mxu0 0.0
    %2306 = vmatpush1.msra.mxu0 0.0
    %2307 = vmatprep.subr.mxu0 0.0
    %2308 = vmatpush1.msra.mxu0 0.0
    %2309 = vmatprep.subr.mxu0 0.0
    %2310 = vmatpush1.msra.mxu0 0.0
    %2311 = vmatprep.subr.mxu0 0.0
    %2312 = vmatpush1.msra.mxu0 0.0
    %2313 = vmatprep.subr.mxu0 0.0
    %2314 = vmatpush1.msra.mxu0 0.0
    %2315 = vmatprep.subr.mxu0 0.0
    %2316 = vmatpush1.msra.mxu0 0.0
    %2317 = vmatprep.subr.mxu0 0.0
    %2318 = vmatpush1.msra.mxu0 0.0
    %2319 = vmatprep.subr.mxu0 0.0
    %2320 = vmatpush1.msra.mxu0 0.0
    %2321 = vmatprep.subr.mxu0 0.0
    %2322 = vmatpush1.msra.mxu0 0.0
    %2323 = vmatprep.subr.mxu0 0.0
    %2324 = vmatpush1.msra.mxu0 0.0
    %2325 = vmatprep.subr.mxu0 0.0
    %2326 = vmatpush1.msra.mxu0 0.0
    %2327 = vmatprep.subr.mxu0 0.0
    %2328 = vmatpush1.msra.mxu0 0.0
    %2329 = vmatprep.subr.mxu0 0.0
    %2330 = vmatpush1.msra.mxu0 0.0
    %2331 = vmatprep.mubr.f32.mxu0 0.0
    %v2332 = vand.u32 %v2084, 4294901760
    %v2333 = vsub.f32 %v2084, %v2332
    %2334 = vmatmul.mubr.f32.gmra.mrb[0].mxu0 %v2333
    %v2335 = vpop.f32.mrb[0].mxu0
    %v2336 = vadd.f32 %v2254, %v2335
    %v2337 = vpop.f32.mrb[0].mxu0
    %2338 = vmatprep.mubr.f32.mxu0 0.0
    %v2339 = vand.u32 %v2087, 4294901760
    %v2340 = vsub.f32 %v2087, %v2339
    %2341 = vmatmul.mubr.f32.gmra.mrb[0].mxu0 %v2340
    %v2342 = vpop.f32.mrb[0].mxu0
    %v2343 = vadd.f32 %v2260, %v2342
    %v2344 = vpop.f32.mrb[0].mxu0
    %2345 = vdwg.mxu0
    %2346 = vmatprep.subr.mxu0 0.0
    %v2347 = vand.u32 %v2078, 4294901760
    %2348 = vmatpush1.msra.mxu0 %v2347
    %2349 = vmatprep.subr.mxu0 0.0
    %v2350 = vand.u32 %v2080, 4294901760
    %2351 = vmatpush1.msra.mxu0 %v2350
    %2352 = vmatprep.subr.mxu0 0.0
    %2353 = vmatpush1.msra.mxu0 0.0
    %2354 = vmatprep.subr.mxu0 0.0
    %2355 = vmatpush1.msra.mxu0 0.0
    %2356 = vmatprep.subr.mxu0 0.0
    %2357 = vmatpush1.msra.mxu0 0.0
    %2358 = vmatprep.subr.mxu0 0.0
    %2359 = vmatpush1.msra.mxu0 0.0
    %2360 = vmatprep.subr.mxu0 0.0
    %2361 = vmatpush1.msra.mxu0 0.0
    %2362 = vmatprep.subr.mxu0 0.0
    %2363 = vmatpush1.msra.mxu0 0.0
    %2364 = vmatprep.subr.mxu0 0.0
    %2365 = vmatpush1.msra.mxu0 0.0
    %2366 = vmatprep.subr.mxu0 0.0
    %2367 = vmatpush1.msra.mxu0 0.0
    %2368 = vmatprep.subr.mxu0 0.0
    %2369 = vmatpush1.msra.mxu0 0.0
    %2370 = vmatprep.subr.mxu0 0.0
    %2371 = vmatpush1.msra.mxu0 0.0
    %2372 = vmatprep.subr.mxu0 0.0
    %2373 = vmatpush1.msra.mxu0 0.0
    %2374 = vmatprep.subr.mxu0 0.0
    %2375 = vmatpush1.msra.mxu0 0.0
    %2376 = vmatprep.subr.mxu0 0.0
    %2377 = vmatpush1.msra.mxu0 0.0
    %2378 = vmatprep.subr.mxu0 0.0
    %2379 = vmatpush1.msra.mxu0 0.0
    %2380 = vmatprep.subr.mxu0 0.0
    %2381 = vmatpush1.msra.mxu0 0.0
    %2382 = vmatprep.subr.mxu0 0.0
    %2383 = vmatpush1.msra.mxu0 0.0
    %2384 = vmatprep.subr.mxu0 0.0
    %2385 = vmatpush1.msra.mxu0 0.0
    %2386 = vmatprep.subr.mxu0 0.0
    %2387 = vmatpush1.msra.mxu0 0.0
    %2388 = vmatprep.subr.mxu0 0.0
    %2389 = vmatpush1.msra.mxu0 0.0
    %2390 = vmatprep.subr.mxu0 0.0
    %2391 = vmatpush1.msra.mxu0 0.0
    %2392 = vmatprep.subr.mxu0 0.0
    %2393 = vmatpush1.msra.mxu0 0.0
    %2394 = vmatprep.subr.mxu0 0.0
    %2395 = vmatpush1.msra.mxu0 0.0
    %2396 = vmatprep.subr.mxu0 0.0
    %2397 = vmatpush1.msra.mxu0 0.0
    %2398 = vmatprep.subr.mxu0 0.0
    %2399 = vmatpush1.msra.mxu0 0.0
    %2400 = vmatprep.subr.mxu0 0.0
    %2401 = vmatpush1.msra.mxu0 0.0
    %2402 = vmatprep.subr.mxu0 0.0
    %2403 = vmatpush1.msra.mxu0 0.0
    %2404 = vmatprep.subr.mxu0 0.0
    %2405 = vmatpush1.msra.mxu0 0.0
    %2406 = vmatprep.subr.mxu0 0.0
    %2407 = vmatpush1.msra.mxu0 0.0
    %2408 = vmatprep.subr.mxu0 0.0
    %2409 = vmatpush1.msra.mxu0 0.0
    %2410 = vmatprep.subr.mxu0 0.0
    %2411 = vmatpush1.msra.mxu0 0.0
    %2412 = vmatprep.mubr.f32.mxu0 0.0
    %v2413 = vand.u32 %v2084, 4294901760
    %v2414 = vsub.f32 %v2084, %v2413
    %v2415 = vand.u32 %v2414, 4294901760
    %2416 = vmatmul.mubr.f32.gmra.mrb[0].mxu0 %v2415
    %v2417 = vpop.f32.mrb[0].mxu0
    %v2418 = vadd.f32 %v2336, %v2417
    %v2419 = vpop.f32.mrb[0].mxu0
    %2420 = vmatprep.mubr.f32.mxu0 0.0
    %v2421 = vand.u32 %v2087, 4294901760
    %v2422 = vsub.f32 %v2087, %v2421
    %v2423 = vand.u32 %v2422, 4294901760
    %2424 = vmatmul.mubr.f32.gmra.mrb[0].mxu0 %v2423
    %v2425 = vpop.f32.mrb[0].mxu0
    %v2426 = vadd.f32 %v2343, %v2425
    %v2427 = vpop.f32.mrb[0].mxu0
    %2428 = vdwg.mxu0
    %2429 = vmatprep.subr.mxu0 0.0
    %v2430 = vand.u32 %v2078, 4294901760
    %v2431 = vsub.f32 %v2078, %v2430
    %v2432 = vand.u32 %v2431, 4294901760
    %2433 = vmatpush1.msra.mxu0 %v2432
    %2434 = vmatprep.subr.mxu0 0.0
    %v2435 = vand.u32 %v2080, 4294901760
    %v2436 = vsub.f32 %v2080, %v2435
    %v2437 = vand.u32 %v2436, 4294901760
    %2438 = vmatpush1.msra.mxu0 %v2437
    %2439 = vmatprep.subr.mxu0 0.0
    %2440 = vmatpush1.msra.mxu0 0.0
    %2441 = vmatprep.subr.mxu0 0.0
    %2442 = vmatpush1.msra.mxu0 0.0
    %2443 = vmatprep.subr.mxu0 0.0
    %2444 = vmatpush1.msra.mxu0 0.0
    %2445 = vmatprep.subr.mxu0 0.0
    %2446 = vmatpush1.msra.mxu0 0.0
    %2447 = vmatprep.subr.mxu0 0.0
    %2448 = vmatpush1.msra.mxu0 0.0
    %2449 = vmatprep.subr.mxu0 0.0
    %2450 = vmatpush1.msra.mxu0 0.0
    %2451 = vmatprep.subr.mxu0 0.0
    %2452 = vmatpush1.msra.mxu0 0.0
    %2453 = vmatprep.subr.mxu0 0.0
    %2454 = vmatpush1.msra.mxu0 0.0
    %2455 = vmatprep.subr.mxu0 0.0
    %2456 = vmatpush1.msra.mxu0 0.0
    %2457 = vmatprep.subr.mxu0 0.0
    %2458 = vmatpush1.msra.mxu0 0.0
    %2459 = vmatprep.subr.mxu0 0.0
    %2460 = vmatpush1.msra.mxu0 0.0
    %2461 = vmatprep.subr.mxu0 0.0
    %2462 = vmatpush1.msra.mxu0 0.0
    %2463 = vmatprep.subr.mxu0 0.0
    %2464 = vmatpush1.msra.mxu0 0.0
    %2465 = vmatprep.subr.mxu0 0.0
    %2466 = vmatpush1.msra.mxu0 0.0
    %2467 = vmatprep.subr.mxu0 0.0
    %2468 = vmatpush1.msra.mxu0 0.0
    %2469 = vmatprep.subr.mxu0 0.0
    %2470 = vmatpush1.msra.mxu0 0.0
    %2471 = vmatprep.subr.mxu0 0.0
    %2472 = vmatpush1.msra.mxu0 0.0
    %2473 = vmatprep.subr.mxu0 0.0
    %2474 = vmatpush1.msra.mxu0 0.0
    %2475 = vmatprep.subr.mxu0 0.0
    %2476 = vmatpush1.msra.mxu0 0.0
    %2477 = vmatprep.subr.mxu0 0.0
    %2478 = vmatpush1.msra.mxu0 0.0
    %2479 = vmatprep.subr.mxu0 0.0
    %2480 = vmatpush1.msra.mxu0 0.0
    %2481 = vmatprep.subr.mxu0 0.0
    %2482 = vmatpush1.msra.mxu0 0.0
    %2483 = vmatprep.subr.mxu0 0.0
    %2484 = vmatpush1.msra.mxu0 0.0
    %2485 = vmatprep.subr.mxu0 0.0
    %2486 = vmatpush1.msra.mxu0 0.0
    %2487 = vmatprep.subr.mxu0 0.0
    %2488 = vmatpush1.msra.mxu0 0.0
    %2489 = vmatprep.subr.mxu0 0.0
    %2490 = vmatpush1.msra.mxu0 0.0
    %2491 = vmatprep.subr.mxu0 0.0
    %2492 = vmatpush1.msra.mxu0 0.0
    %2493 = vmatprep.subr.mxu0 0.0
    %2494 = vmatpush1.msra.mxu0 0.0
    %2495 = vmatprep.subr.mxu0 0.0
    %2496 = vmatpush1.msra.mxu0 0.0
    %2497 = vmatprep.subr.mxu0 0.0
    %2498 = vmatpush1.msra.mxu0 0.0
    %2499 = vmatprep.mubr.f32.mxu0 0.0
    %v2500 = vand.u32 %v2084, 4294901760
    %2501 = vmatmul.mubr.f32.gmra.mrb[0].mxu0 %v2500
    %v2502 = vpop.f32.mrb[0].mxu0
    %v2503 = vadd.f32 %v2418, %v2502
    %v2504 = vpop.f32.mrb[0].mxu0
    %2505 = vmatprep.mubr.f32.mxu0 0.0
    %v2506 = vand.u32 %v2087, 4294901760
    %2507 = vmatmul.mubr.f32.gmra.mrb[0].mxu0 %v2506
    %v2508 = vpop.f32.mrb[0].mxu0
    %v2509 = vadd.f32 %v2426, %v2508
    %v2510 = vpop.f32.mrb[0].mxu0
    %2511 = vdwg.mxu0
    %2512 = vmatprep.subr.mxu0 0.0
    %v2513 = vand.u32 %v2078, 4294901760
    %2514 = vmatpush1.msra.mxu0 %v2513
    %2515 = vmatprep.subr.mxu0 0.0
    %v2516 = vand.u32 %v2080, 4294901760
    %2517 = vmatpush1.msra.mxu0 %v2516
    %2518 = vmatprep.subr.mxu0 0.0
    %2519 = vmatpush1.msra.mxu0 0.0
    %2520 = vmatprep.subr.mxu0 0.0
    %2521 = vmatpush1.msra.mxu0 0.0
    %2522 = vmatprep.subr.mxu0 0.0
    %2523 = vmatpush1.msra.mxu0 0.0
    %2524 = vmatprep.subr.mxu0 0.0
    %2525 = vmatpush1.msra.mxu0 0.0
    %2526 = vmatprep.subr.mxu0 0.0
    %2527 = vmatpush1.msra.mxu0 0.0
    %2528 = vmatprep.subr.mxu0 0.0
    %2529 = vmatpush1.msra.mxu0 0.0
    %2530 = vmatprep.subr.mxu0 0.0
    %2531 = vmatpush1.msra.mxu0 0.0
    %2532 = vmatprep.subr.mxu0 0.0
    %2533 = vmatpush1.msra.mxu0 0.0
    %2534 = vmatprep.subr.mxu0 0.0
    %2535 = vmatpush1.msra.mxu0 0.0
    %2536 = vmatprep.subr.mxu0 0.0
    %2537 = vmatpush1.msra.mxu0 0.0
    %2538 = vmatprep.subr.mxu0 0.0
    %2539 = vmatpush1.msra.mxu0 0.0
    %2540 = vmatprep.subr.mxu0 0.0
    %2541 = vmatpush1.msra.mxu0 0.0
    %2542 = vmatprep.subr.mxu0 0.0
    %2543 = vmatpush1.msra.mxu0 0.0
    %2544 = vmatprep.subr.mxu0 0.0
    %2545 = vmatpush1.msra.mxu0 0.0
    %2546 = vmatprep.subr.mxu0 0.0
    %2547 = vmatpush1.msra.mxu0 0.0
    %2548 = vmatprep.subr.mxu0 0.0
    %2549 = vmatpush1.msra.mxu0 0.0
    %2550 = vmatprep.subr.mxu0 0.0
    %2551 = vmatpush1.msra.mxu0 0.0
    %2552 = vmatprep.subr.mxu0 0.0
    %2553 = vmatpush1.msra.mxu0 0.0
    %2554 = vmatprep.subr.mxu0 0.0
    %2555 = vmatpush1.msra.mxu0 0.0
    %2556 = vmatprep.subr.mxu0 0.0
    %2557 = vmatpush1.msra.mxu0 0.0
    %2558 = vmatprep.subr.mxu0 0.0
    %2559 = vmatpush1.msra.mxu0 0.0
    %2560 = vmatprep.subr.mxu0 0.0
    %2561 = vmatpush1.msra.mxu0 0.0
    %2562 = vmatprep.subr.mxu0 0.0
    %2563 = vmatpush1.msra.mxu0 0.0
    %2564 = vmatprep.subr.mxu0 0.0
    %2565 = vmatpush1.msra.mxu0 0.0
    %2566 = vmatprep.subr.mxu0 0.0
    %2567 = vmatpush1.msra.mxu0 0.0
    %2568 = vmatprep.subr.mxu0 0.0
    %2569 = vmatpush1.msra.mxu0 0.0
    %2570 = vmatprep.subr.mxu0 0.0
    %2571 = vmatpush1.msra.mxu0 0.0
    %2572 = vmatprep.subr.mxu0 0.0
    %2573 = vmatpush1.msra.mxu0 0.0
    %2574 = vmatprep.subr.mxu0 0.0
    %2575 = vmatpush1.msra.mxu0 0.0
    %2576 = vmatprep.subr.mxu0 0.0
    %2577 = vmatpush1.msra.mxu0 0.0
    %2578 = vmatprep.mubr.f32.mxu0 0.0
    %v2579 = vand.u32 %v2084, 4294901760
    %2580 = vmatmul.mubr.f32.gmra.mrb[0].mxu0 %v2579
    %v2581 = vpop.f32.mrb[0].mxu0
    %v2582 = vadd.f32 %v2503, %v2581
    %v2583 = vpop.f32.mrb[0].mxu0
    %2584 = vmatprep.mubr.f32.mxu0 0.0
    %v2585 = vand.u32 %v2087, 4294901760
    %2586 = vmatmul.mubr.f32.gmra.mrb[0].mxu0 %v2585
    %v2587 = vpop.f32.mrb[0].mxu0
    %v2588 = vadd.f32 %v2509, %v2587
    %v2589 = vpop.f32.mrb[0].mxu0
    %2590 = vdwg.mxu0
    %v2592 = vsel %vm895, %v2070, 0
    %v2595 = vsel %vm895, %v2071, 0
    %2597 = vmatprep.subr.mxu0 0.0
    %v2598 = vand.u32 %v2068, 4294901760
    %2599 = vmatpush1.msra.mxu0 %v2598
    %2600 = vmatprep.subr.mxu0 0.0
    %v2601 = vand.u32 %v2069, 4294901760
    %2602 = vmatpush1.msra.mxu0 %v2601
    %2603 = vmatprep.subr.mxu0 0.0
    %2604 = vmatpush1.msra.mxu0 0.0
    %2605 = vmatprep.subr.mxu0 0.0
    %2606 = vmatpush1.msra.mxu0 0.0
    %2607 = vmatprep.subr.mxu0 0.0
    %2608 = vmatpush1.msra.mxu0 0.0
    %2609 = vmatprep.subr.mxu0 0.0
    %2610 = vmatpush1.msra.mxu0 0.0
    %2611 = vmatprep.subr.mxu0 0.0
    %2612 = vmatpush1.msra.mxu0 0.0
    %2613 = vmatprep.subr.mxu0 0.0
    %2614 = vmatpush1.msra.mxu0 0.0
    %2615 = vmatprep.subr.mxu0 0.0
    %2616 = vmatpush1.msra.mxu0 0.0
    %2617 = vmatprep.subr.mxu0 0.0
    %2618 = vmatpush1.msra.mxu0 0.0
    %2619 = vmatprep.subr.mxu0 0.0
    %2620 = vmatpush1.msra.mxu0 0.0
    %2621 = vmatprep.subr.mxu0 0.0
    %2622 = vmatpush1.msra.mxu0 0.0
    %2623 = vmatprep.subr.mxu0 0.0
    %2624 = vmatpush1.msra.mxu0 0.0
    %2625 = vmatprep.subr.mxu0 0.0
    %2626 = vmatpush1.msra.mxu0 0.0
    %2627 = vmatprep.subr.mxu0 0.0
    %2628 = vmatpush1.msra.mxu0 0.0
    %2629 = vmatprep.subr.mxu0 0.0
    %2630 = vmatpush1.msra.mxu0 0.0
    %2631 = vmatprep.subr.mxu0 0.0
    %2632 = vmatpush1.msra.mxu0 0.0
    %2633 = vmatprep.subr.mxu0 0.0
    %2634 = vmatpush1.msra.mxu0 0.0
    %2635 = vmatprep.subr.mxu0 0.0
    %2636 = vmatpush1.msra.mxu0 0.0
    %2637 = vmatprep.subr.mxu0 0.0
    %2638 = vmatpush1.msra.mxu0 0.0
    %2639 = vmatprep.subr.mxu0 0.0
    %2640 = vmatpush1.msra.mxu0 0.0
    %2641 = vmatprep.subr.mxu0 0.0
    %2642 = vmatpush1.msra.mxu0 0.0
    %2643 = vmatprep.subr.mxu0 0.0
    %2644 = vmatpush1.msra.mxu0 0.0
    %2645 = vmatprep.subr.mxu0 0.0
    %2646 = vmatpush1.msra.mxu0 0.0
    %2647 = vmatprep.subr.mxu0 0.0
    %2648 = vmatpush1.msra.mxu0 0.0
    %2649 = vmatprep.subr.mxu0 0.0
    %2650 = vmatpush1.msra.mxu0 0.0
    %2651 = vmatprep.subr.mxu0 0.0
    %2652 = vmatpush1.msra.mxu0 0.0
    %2653 = vmatprep.subr.mxu0 0.0
    %2654 = vmatpush1.msra.mxu0 0.0
    %2655 = vmatprep.subr.mxu0 0.0
    %2656 = vmatpush1.msra.mxu0 0.0
    %2657 = vmatprep.subr.mxu0 0.0
    %2658 = vmatpush1.msra.mxu0 0.0
    %2659 = vmatprep.subr.mxu0 0.0
    %2660 = vmatpush1.msra.mxu0 0.0
    %2661 = vmatprep.subr.mxu0 0.0
    %2662 = vmatpush1.msra.mxu0 0.0
    %2663 = vmatprep.mubr.f32.mxu0 0.0
    %v2664 = vand.u32 %v2592, 4294901760
    %v2665 = vsub.f32 %v2592, %v2664
    %v2666 = vand.u32 %v2665, 4294901760
    %v2667 = vsub.f32 %v2665, %v2666
    %v2668 = vand.u32 %v2667, 4294901760
    %2669 = vmatmul.mubr.f32.gmra.mrb[0].mxu0 %v2668
    %v2670 = vpop.f32.mrb[0].mxu0
    %v2671 = vadd.f32 %v2582, %v2670
    %v2672 = vpop.f32.mrb[0].mxu0
    %2673 = vmatprep.mubr.f32.mxu0 0.0
    %v2674 = vand.u32 %v2595, 4294901760
    %v2675 = vsub.f32 %v2595, %v2674
    %v2676 = vand.u32 %v2675, 4294901760
    %v2677 = vsub.f32 %v2675, %v2676
    %v2678 = vand.u32 %v2677, 4294901760
    %2679 = vmatmul.mubr.f32.gmra.mrb[0].mxu0 %v2678
    %v2680 = vpop.f32.mrb[0].mxu0
    %v2681 = vadd.f32 %v2588, %v2680
    %v2682 = vpop.f32.mrb[0].mxu0
    %2683 = vdwg.mxu0
    %2684 = vmatprep.subr.mxu0 0.0
    %v2685 = vand.u32 %v2068, 4294901760
    %v2686 = vsub.f32 %v2068, %v2685
    %v2687 = vand.u32 %v2686, 4294901760
    %v2688 = vsub.f32 %v2686, %v2687
    %v2689 = vand.u32 %v2688, 4294901760
    %2690 = vmatpush1.msra.mxu0 %v2689
    %2691 = vmatprep.subr.mxu0 0.0
    %v2692 = vand.u32 %v2069, 4294901760
    %v2693 = vsub.f32 %v2069, %v2692
    %v2694 = vand.u32 %v2693, 4294901760
    %v2695 = vsub.f32 %v2693, %v2694
    %v2696 = vand.u32 %v2695, 4294901760
    %2697 = vmatpush1.msra.mxu0 %v2696
    %2698 = vmatprep.subr.mxu0 0.0
    %2699 = vmatpush1.msra.mxu0 0.0
    %2700 = vmatprep.subr.mxu0 0.0
    %2701 = vmatpush1.msra.mxu0 0.0
    %2702 = vmatprep.subr.mxu0 0.0
    %2703 = vmatpush1.msra.mxu0 0.0
    %2704 = vmatprep.subr.mxu0 0.0
    %2705 = vmatpush1.msra.mxu0 0.0
    %2706 = vmatprep.subr.mxu0 0.0
    %2707 = vmatpush1.msra.mxu0 0.0
    %2708 = vmatprep.subr.mxu0 0.0
    %2709 = vmatpush1.msra.mxu0 0.0
    %2710 = vmatprep.subr.mxu0 0.0
    %2711 = vmatpush1.msra.mxu0 0.0
    %2712 = vmatprep.subr.mxu0 0.0
    %2713 = vmatpush1.msra.mxu0 0.0
    %2714 = vmatprep.subr.mxu0 0.0
    %2715 = vmatpush1.msra.mxu0 0.0
    %2716 = vmatprep.subr.mxu0 0.0
    %2717 = vmatpush1.msra.mxu0 0.0
    %2718 = vmatprep.subr.mxu0 0.0
    %2719 = vmatpush1.msra.mxu0 0.0
    %2720 = vmatprep.subr.mxu0 0.0
    %2721 = vmatpush1.msra.mxu0 0.0
    %2722 = vmatprep.subr.mxu0 0.0
    %2723 = vmatpush1.msra.mxu0 0.0
    %2724 = vmatprep.subr.mxu0 0.0
    %2725 = vmatpush1.msra.mxu0 0.0
    %2726 = vmatprep.subr.mxu0 0.0
    %2727 = vmatpush1.msra.mxu0 0.0
    %2728 = vmatprep.subr.mxu0 0.0
    %2729 = vmatpush1.msra.mxu0 0.0
    %2730 = vmatprep.subr.mxu0 0.0
    %2731 = vmatpush1.msra.mxu0 0.0
    %2732 = vmatprep.subr.mxu0 0.0
    %2733 = vmatpush1.msra.mxu0 0.0
    %2734 = vmatprep.subr.mxu0 0.0
    %2735 = vmatpush1.msra.mxu0 0.0
    %2736 = vmatprep.subr.mxu0 0.0
    %2737 = vmatpush1.msra.mxu0 0.0
    %2738 = vmatprep.subr.mxu0 0.0
    %2739 = vmatpush1.msra.mxu0 0.0
    %2740 = vmatprep.subr.mxu0 0.0
    %2741 = vmatpush1.msra.mxu0 0.0
    %2742 = vmatprep.subr.mxu0 0.0
    %2743 = vmatpush1.msra.mxu0 0.0
    %2744 = vmatprep.subr.mxu0 0.0
    %2745 = vmatpush1.msra.mxu0 0.0
    %2746 = vmatprep.subr.mxu0 0.0
    %2747 = vmatpush1.msra.mxu0 0.0
    %2748 = vmatprep.subr.mxu0 0.0
    %2749 = vmatpush1.msra.mxu0 0.0
    %2750 = vmatprep.subr.mxu0 0.0
    %2751 = vmatpush1.msra.mxu0 0.0
    %2752 = vmatprep.subr.mxu0 0.0
    %2753 = vmatpush1.msra.mxu0 0.0
    %2754 = vmatprep.subr.mxu0 0.0
    %2755 = vmatpush1.msra.mxu0 0.0
    %2756 = vmatprep.subr.mxu0 0.0
    %2757 = vmatpush1.msra.mxu0 0.0
    %2758 = vmatprep.mubr.f32.mxu0 0.0
    %v2759 = vand.u32 %v2592, 4294901760
    %2760 = vmatmul.mubr.f32.gmra.mrb[0].mxu0 %v2759
    %v2761 = vpop.f32.mrb[0].mxu0
    %v2762 = vadd.f32 %v2671, %v2761
    %v2763 = vpop.f32.mrb[0].mxu0
    %2764 = vmatprep.mubr.f32.mxu0 0.0
    %v2765 = vand.u32 %v2595, 4294901760
    %2766 = vmatmul.mubr.f32.gmra.mrb[0].mxu0 %v2765
    %v2767 = vpop.f32.mrb[0].mxu0
    %v2768 = vadd.f32 %v2681, %v2767
    %v2769 = vpop.f32.mrb[0].mxu0
    %2770 = vdwg.mxu0
    %2771 = vmatprep.subr.mxu0 0.0
    %v2772 = vand.u32 %v2068, 4294901760
    %v2773 = vsub.f32 %v2068, %v2772
    %2774 = vmatpush1.msra.mxu0 %v2773
    %2775 = vmatprep.subr.mxu0 0.0
    %v2776 = vand.u32 %v2069, 4294901760
    %v2777 = vsub.f32 %v2069, %v2776
    %2778 = vmatpush1.msra.mxu0 %v2777
    %2779 = vmatprep.subr.mxu0 0.0
    %2780 = vmatpush1.msra.mxu0 0.0
    %2781 = vmatprep.subr.mxu0 0.0
    %2782 = vmatpush1.msra.mxu0 0.0
    %2783 = vmatprep.subr.mxu0 0.0
    %2784 = vmatpush1.msra.mxu0 0.0
    %2785 = vmatprep.subr.mxu0 0.0
    %2786 = vmatpush1.msra.mxu0 0.0
    %2787 = vmatprep.subr.mxu0 0.0
    %2788 = vmatpush1.msra.mxu0 0.0
    %2789 = vmatprep.subr.mxu0 0.0
    %2790 = vmatpush1.msra.mxu0 0.0
    %2791 = vmatprep.subr.mxu0 0.0
    %2792 = vmatpush1.msra.mxu0 0.0
    %2793 = vmatprep.subr.mxu0 0.0
    %2794 = vmatpush1.msra.mxu0 0.0
    %2795 = vmatprep.subr.mxu0 0.0
    %2796 = vmatpush1.msra.mxu0 0.0
    %2797 = vmatprep.subr.mxu0 0.0
    %2798 = vmatpush1.msra.mxu0 0.0
    %2799 = vmatprep.subr.mxu0 0.0
    %2800 = vmatpush1.msra.mxu0 0.0
    %2801 = vmatprep.subr.mxu0 0.0
    %2802 = vmatpush1.msra.mxu0 0.0
    %2803 = vmatprep.subr.mxu0 0.0
    %2804 = vmatpush1.msra.mxu0 0.0
    %2805 = vmatprep.subr.mxu0 0.0
    %2806 = vmatpush1.msra.mxu0 0.0
    %2807 = vmatprep.subr.mxu0 0.0
    %2808 = vmatpush1.msra.mxu0 0.0
    %2809 = vmatprep.subr.mxu0 0.0
    %2810 = vmatpush1.msra.mxu0 0.0
    %2811 = vmatprep.subr.mxu0 0.0
    %2812 = vmatpush1.msra.mxu0 0.0
    %2813 = vmatprep.subr.mxu0 0.0
    %2814 = vmatpush1.msra.mxu0 0.0
    %2815 = vmatprep.subr.mxu0 0.0
    %2816 = vmatpush1.msra.mxu0 0.0
    %2817 = vmatprep.subr.mxu0 0.0
    %2818 = vmatpush1.msra.mxu0 0.0
    %2819 = vmatprep.subr.mxu0 0.0
    %2820 = vmatpush1.msra.mxu0 0.0
    %2821 = vmatprep.subr.mxu0 0.0
    %2822 = vmatpush1.msra.mxu0 0.0
    %2823 = vmatprep.subr.mxu0 0.0
    %2824 = vmatpush1.msra.mxu0 0.0
    %2825 = vmatprep.subr.mxu0 0.0
    %2826 = vmatpush1.msra.mxu0 0.0
    %2827 = vmatprep.subr.mxu0 0.0
    %2828 = vmatpush1.msra.mxu0 0.0
    %2829 = vmatprep.subr.mxu0 0.0
    %2830 = vmatpush1.msra.mxu0 0.0
    %2831 = vmatprep.subr.mxu0 0.0
    %2832 = vmatpush1.msra.mxu0 0.0
    %2833 = vmatprep.subr.mxu0 0.0
    %2834 = vmatpush1.msra.mxu0 0.0
    %2835 = vmatprep.subr.mxu0 0.0
    %2836 = vmatpush1.msra.mxu0 0.0
    %2837 = vmatprep.subr.mxu0 0.0
    %2838 = vmatpush1.msra.mxu0 0.0
    %2839 = vmatprep.mubr.f32.mxu0 0.0
    %v2840 = vand.u32 %v2592, 4294901760
    %v2841 = vsub.f32 %v2592, %v2840
    %2842 = vmatmul.mubr.f32.gmra.mrb[0].mxu0 %v2841
    %v2843 = vpop.f32.mrb[0].mxu0
    %v2844 = vadd.f32 %v2762, %v2843
    %v2845 = vpop.f32.mrb[0].mxu0
    %2846 = vmatprep.mubr.f32.mxu0 0.0
    %v2847 = vand.u32 %v2595, 4294901760
    %v2848 = vsub.f32 %v2595, %v2847
    %2849 = vmatmul.mubr.f32.gmra.mrb[0].mxu0 %v2848
    %v2850 = vpop.f32.mrb[0].mxu0
    %v2851 = vadd.f32 %v2768, %v2850
    %v2852 = vpop.f32.mrb[0].mxu0
    %2853 = vdwg.mxu0
    %2854 = vmatprep.subr.mxu0 0.0
    %v2855 = vand.u32 %v2068, 4294901760
    %2856 = vmatpush1.msra.mxu0 %v2855
    %2857 = vmatprep.subr.mxu0 0.0
    %v2858 = vand.u32 %v2069, 4294901760
    %2859 = vmatpush1.msra.mxu0 %v2858
    %2860 = vmatprep.subr.mxu0 0.0
    %2861 = vmatpush1.msra.mxu0 0.0
    %2862 = vmatprep.subr.mxu0 0.0
    %2863 = vmatpush1.msra.mxu0 0.0
    %2864 = vmatprep.subr.mxu0 0.0
    %2865 = vmatpush1.msra.mxu0 0.0
    %2866 = vmatprep.subr.mxu0 0.0
    %2867 = vmatpush1.msra.mxu0 0.0
    %2868 = vmatprep.subr.mxu0 0.0
    %2869 = vmatpush1.msra.mxu0 0.0
    %2870 = vmatprep.subr.mxu0 0.0
    %2871 = vmatpush1.msra.mxu0 0.0
    %2872 = vmatprep.subr.mxu0 0.0
    %2873 = vmatpush1.msra.mxu0 0.0
    %2874 = vmatprep.subr.mxu0 0.0
    %2875 = vmatpush1.msra.mxu0 0.0
    %2876 = vmatprep.subr.mxu0 0.0
    %2877 = vmatpush1.msra.mxu0 0.0
    %2878 = vmatprep.subr.mxu0 0.0
    %2879 = vmatpush1.msra.mxu0 0.0
    %2880 = vmatprep.subr.mxu0 0.0
    %2881 = vmatpush1.msra.mxu0 0.0
    %2882 = vmatprep.subr.mxu0 0.0
    %2883 = vmatpush1.msra.mxu0 0.0
    %2884 = vmatprep.subr.mxu0 0.0
    %2885 = vmatpush1.msra.mxu0 0.0
    %2886 = vmatprep.subr.mxu0 0.0
    %2887 = vmatpush1.msra.mxu0 0.0
    %2888 = vmatprep.subr.mxu0 0.0
    %2889 = vmatpush1.msra.mxu0 0.0
    %2890 = vmatprep.subr.mxu0 0.0
    %2891 = vmatpush1.msra.mxu0 0.0
    %2892 = vmatprep.subr.mxu0 0.0
    %2893 = vmatpush1.msra.mxu0 0.0
    %2894 = vmatprep.subr.mxu0 0.0
    %2895 = vmatpush1.msra.mxu0 0.0
    %2896 = vmatprep.subr.mxu0 0.0
    %2897 = vmatpush1.msra.mxu0 0.0
    %2898 = vmatprep.subr.mxu0 0.0
    %2899 = vmatpush1.msra.mxu0 0.0
    %2900 = vmatprep.subr.mxu0 0.0
    %2901 = vmatpush1.msra.mxu0 0.0
    %2902 = vmatprep.subr.mxu0 0.0
    %2903 = vmatpush1.msra.mxu0 0.0
    %2904 = vmatprep.subr.mxu0 0.0
    %2905 = vmatpush1.msra.mxu0 0.0
    %2906 = vmatprep.subr.mxu0 0.0
    %2907 = vmatpush1.msra.mxu0 0.0
    %2908 = vmatprep.subr.mxu0 0.0
    %2909 = vmatpush1.msra.mxu0 0.0
    %2910 = vmatprep.subr.mxu0 0.0
    %2911 = vmatpush1.msra.mxu0 0.0
    %2912 = vmatprep.subr.mxu0 0.0
    %2913 = vmatpush1.msra.mxu0 0.0
    %2914 = vmatprep.subr.mxu0 0.0
    %2915 = vmatpush1.msra.mxu0 0.0
    %2916 = vmatprep.subr.mxu0 0.0
    %2917 = vmatpush1.msra.mxu0 0.0
    %2918 = vmatprep.subr.mxu0 0.0
    %2919 = vmatpush1.msra.mxu0 0.0
    %2920 = vmatprep.mubr.f32.mxu0 0.0
    %v2921 = vand.u32 %v2592, 4294901760
    %v2922 = vsub.f32 %v2592, %v2921
    %v2923 = vand.u32 %v2922, 4294901760
    %2924 = vmatmul.mubr.f32.gmra.mrb[0].mxu0 %v2923
    %v2925 = vpop.f32.mrb[0].mxu0
    %v2926 = vadd.f32 %v2844, %v2925
    %v2927 = vpop.f32.mrb[0].mxu0
    %2928 = vmatprep.mubr.f32.mxu0 0.0
    %v2929 = vand.u32 %v2595, 4294901760
    %v2930 = vsub.f32 %v2595, %v2929
    %v2931 = vand.u32 %v2930, 4294901760
    %2932 = vmatmul.mubr.f32.gmra.mrb[0].mxu0 %v2931
    %v2933 = vpop.f32.mrb[0].mxu0
    %v2934 = vadd.f32 %v2851, %v2933
    %v2935 = vpop.f32.mrb[0].mxu0
    %2936 = vdwg.mxu0
    %2937 = vmatprep.subr.mxu0 0.0
    %v2938 = vand.u32 %v2068, 4294901760
    %v2939 = vsub.f32 %v2068, %v2938
    %v2940 = vand.u32 %v2939, 4294901760
    %2941 = vmatpush1.msra.mxu0 %v2940
    %2942 = vmatprep.subr.mxu0 0.0
    %v2943 = vand.u32 %v2069, 4294901760
    %v2944 = vsub.f32 %v2069, %v2943
    %v2945 = vand.u32 %v2944, 4294901760
    %2946 = vmatpush1.msra.mxu0 %v2945
    %2947 = vmatprep.subr.mxu0 0.0
    %2948 = vmatpush1.msra.mxu0 0.0
    %2949 = vmatprep.subr.mxu0 0.0
    %2950 = vmatpush1.msra.mxu0 0.0
    %2951 = vmatprep.subr.mxu0 0.0
    %2952 = vmatpush1.msra.mxu0 0.0
    %2953 = vmatprep.subr.mxu0 0.0
    %2954 = vmatpush1.msra.mxu0 0.0
    %2955 = vmatprep.subr.mxu0 0.0
    %2956 = vmatpush1.msra.mxu0 0.0
    %2957 = vmatprep.subr.mxu0 0.0
    %2958 = vmatpush1.msra.mxu0 0.0
    %2959 = vmatprep.subr.mxu0 0.0
    %2960 = vmatpush1.msra.mxu0 0.0
    %2961 = vmatprep.subr.mxu0 0.0
    %2962 = vmatpush1.msra.mxu0 0.0
    %2963 = vmatprep.subr.mxu0 0.0
    %2964 = vmatpush1.msra.mxu0 0.0
    %2965 = vmatprep.subr.mxu0 0.0
    %2966 = vmatpush1.msra.mxu0 0.0
    %2967 = vmatprep.subr.mxu0 0.0
    %2968 = vmatpush1.msra.mxu0 0.0
    %2969 = vmatprep.subr.mxu0 0.0
    %2970 = vmatpush1.msra.mxu0 0.0
    %2971 = vmatprep.subr.mxu0 0.0
    %2972 = vmatpush1.msra.mxu0 0.0
    %2973 = vmatprep.subr.mxu0 0.0
    %2974 = vmatpush1.msra.mxu0 0.0
    %2975 = vmatprep.subr.mxu0 0.0
    %2976 = vmatpush1.msra.mxu0 0.0
    %2977 = vmatprep.subr.mxu0 0.0
    %2978 = vmatpush1.msra.mxu0 0.0
    %2979 = vmatprep.subr.mxu0 0.0
    %2980 = vmatpush1.msra.mxu0 0.0
    %2981 = vmatprep.subr.mxu0 0.0
    %2982 = vmatpush1.msra.mxu0 0.0
    %2983 = vmatprep.subr.mxu0 0.0
    %2984 = vmatpush1.msra.mxu0 0.0
    %2985 = vmatprep.subr.mxu0 0.0
    %2986 = vmatpush1.msra.mxu0 0.0
    %2987 = vmatprep.subr.mxu0 0.0
    %2988 = vmatpush1.msra.mxu0 0.0
    %2989 = vmatprep.subr.mxu0 0.0
    %2990 = vmatpush1.msra.mxu0 0.0
    %2991 = vmatprep.subr.mxu0 0.0
    %2992 = vmatpush1.msra.mxu0 0.0
    %2993 = vmatprep.subr.mxu0 0.0
    %2994 = vmatpush1.msra.mxu0 0.0
    %2995 = vmatprep.subr.mxu0 0.0
    %2996 = vmatpush1.msra.mxu0 0.0
    %2997 = vmatprep.subr.mxu0 0.0
    %2998 = vmatpush1.msra.mxu0 0.0
    %2999 = vmatprep.subr.mxu0 0.0
    %3000 = vmatpush1.msra.mxu0 0.0
    %3001 = vmatprep.subr.mxu0 0.0
    %3002 = vmatpush1.msra.mxu0 0.0
    %3003 = vmatprep.subr.mxu0 0.0
    %3004 = vmatpush1.msra.mxu0 0.0
    %3005 = vmatprep.subr.mxu0 0.0
    %3006 = vmatpush1.msra.mxu0 0.0
    %3007 = vmatprep.mubr.f32.mxu0 0.0
    %v3008 = vand.u32 %v2592, 4294901760
    %3009 = vmatmul.mubr.f32.gmra.mrb[0].mxu0 %v3008
    %v3010 = vpop.f32.mrb[0].mxu0
    %v3011 = vadd.f32 %v2926, %v3010
    %v3012 = vpop.f32.mrb[0].mxu0
    %3013 = vmatprep.mubr.f32.mxu0 0.0
    %v3014 = vand.u32 %v2595, 4294901760
    %3015 = vmatmul.mubr.f32.gmra.mrb[0].mxu0 %v3014
    %v3016 = vpop.f32.mrb[0].mxu0
    %v3017 = vadd.f32 %v2934, %v3016
    %v3018 = vpop.f32.mrb[0].mxu0
    %3019 = vdwg.mxu0
    %3020 = vmatprep.subr.mxu0 0.0
    %v3021 = vand.u32 %v2068, 4294901760
    %3022 = vmatpush1.msra.mxu0 %v3021
    %3023 = vmatprep.subr.mxu0 0.0
    %v3024 = vand.u32 %v2069, 4294901760
    %3025 = vmatpush1.msra.mxu0 %v3024
    %3026 = vmatprep.subr.mxu0 0.0
    %3027 = vmatpush1.msra.mxu0 0.0
    %3028 = vmatprep.subr.mxu0 0.0
    %3029 = vmatpush1.msra.mxu0 0.0
    %3030 = vmatprep.subr.mxu0 0.0
    %3031 = vmatpush1.msra.mxu0 0.0
    %3032 = vmatprep.subr.mxu0 0.0
    %3033 = vmatpush1.msra.mxu0 0.0
    %3034 = vmatprep.subr.mxu0 0.0
    %3035 = vmatpush1.msra.mxu0 0.0
    %3036 = vmatprep.subr.mxu0 0.0
    %3037 = vmatpush1.msra.mxu0 0.0
    %3038 = vmatprep.subr.mxu0 0.0
    %3039 = vmatpush1.msra.mxu0 0.0
    %3040 = vmatprep.subr.mxu0 0.0
    %3041 = vmatpush1.msra.mxu0 0.0
    %3042 = vmatprep.subr.mxu0 0.0
    %3043 = vmatpush1.msra.mxu0 0.0
    %3044 = vmatprep.subr.mxu0 0.0
    %3045 = vmatpush1.msra.mxu0 0.0
    %3046 = vmatprep.subr.mxu0 0.0
    %3047 = vmatpush1.msra.mxu0 0.0
    %3048 = vmatprep.subr.mxu0 0.0
    %3049 = vmatpush1.msra.mxu0 0.0
    %3050 = vmatprep.subr.mxu0 0.0
    %3051 = vmatpush1.msra.mxu0 0.0
    %3052 = vmatprep.subr.mxu0 0.0
    %3053 = vmatpush1.msra.mxu0 0.0
    %3054 = vmatprep.subr.mxu0 0.0
    %3055 = vmatpush1.msra.mxu0 0.0
    %3056 = vmatprep.subr.mxu0 0.0
    %3057 = vmatpush1.msra.mxu0 0.0
    %3058 = vmatprep.subr.mxu0 0.0
    %3059 = vmatpush1.msra.mxu0 0.0
    %3060 = vmatprep.subr.mxu0 0.0
    %3061 = vmatpush1.msra.mxu0 0.0
    %3062 = vmatprep.subr.mxu0 0.0
    %3063 = vmatpush1.msra.mxu0 0.0
    %3064 = vmatprep.subr.mxu0 0.0
    %3065 = vmatpush1.msra.mxu0 0.0
    %3066 = vmatprep.subr.mxu0 0.0
    %3067 = vmatpush1.msra.mxu0 0.0
    %3068 = vmatprep.subr.mxu0 0.0
    %3069 = vmatpush1.msra.mxu0 0.0
    %3070 = vmatprep.subr.mxu0 0.0
    %3071 = vmatpush1.msra.mxu0 0.0
    %3072 = vmatprep.subr.mxu0 0.0
    %3073 = vmatpush1.msra.mxu0 0.0
    %3074 = vmatprep.subr.mxu0 0.0
    %3075 = vmatpush1.msra.mxu0 0.0
    %3076 = vmatprep.subr.mxu0 0.0
    %3077 = vmatpush1.msra.mxu0 0.0
    %3078 = vmatprep.subr.mxu0 0.0
    %3079 = vmatpush1.msra.mxu0 0.0
    %3080 = vmatprep.subr.mxu0 0.0
    %3081 = vmatpush1.msra.mxu0 0.0
    %3082 = vmatprep.subr.mxu0 0.0
    %3083 = vmatpush1.msra.mxu0 0.0
    %3084 = vmatprep.subr.mxu0 0.0
    %3085 = vmatpush1.msra.mxu0 0.0
    %3086 = vmatprep.mubr.f32.mxu0 0.0
    %v3087 = vand.u32 %v2592, 4294901760
    %3088 = vmatmul.mubr.f32.gmra.mrb[0].mxu0 %v3087
    %v3089 = vpop.f32.mrb[0].mxu0
    %v3090 = vadd.f32 %v3011, %v3089
    %v3091 = vpop.f32.mrb[0].mxu0
    %3092 = vmatprep.mubr.f32.mxu0 0.0
    %v3093 = vand.u32 %v2595, 4294901760
    %3094 = vmatmul.mubr.f32.gmra.mrb[0].mxu0 %v3093
    %v3095 = vpop.f32.mrb[0].mxu0
    %v3096 = vadd.f32 %v3017, %v3095
    %v3097 = vpop.f32.mrb[0].mxu0
    %3098 = vdwg.mxu0
    %s3099 = scalar_lea.vmem %s17, 32
    %v3100 = vld [vmem:[%s3099] sm:$0xff]
    %v3101 = vld [vmem:[%s3099 + $0x8] sm:$0xff]
    %3102 = vrot.lane.b32.xlu0 %v2068, 120
    %v3103 = vpop.permute.xlu0 %3102
    %3104 = vrot.lane.b32.xlu0 %v2069, 120
    %v3105 = vpop.permute.xlu0 %3104
    %v3109 = vsel %vm895, %v3100, 0
    %v3112 = vsel %vm895, %v3101, 0
    %3114 = vmatprep.subr.mxu0 0.0
    %v3115 = vand.u32 %v3103, 4294901760
    %3116 = vmatpush1.msra.mxu0 %v3115
    %3117 = vmatprep.subr.mxu0 0.0
    %v3118 = vand.u32 %v3105, 4294901760
    %3119 = vmatpush1.msra.mxu0 %v3118
    %3120 = vmatprep.subr.mxu0 0.0
    %3121 = vmatpush1.msra.mxu0 0.0
    %3122 = vmatprep.subr.mxu0 0.0
    %3123 = vmatpush1.msra.mxu0 0.0
    %3124 = vmatprep.subr.mxu0 0.0
    %3125 = vmatpush1.msra.mxu0 0.0
    %3126 = vmatprep.subr.mxu0 0.0
    %3127 = vmatpush1.msra.mxu0 0.0
    %3128 = vmatprep.subr.mxu0 0.0
    %3129 = vmatpush1.msra.mxu0 0.0
    %3130 = vmatprep.subr.mxu0 0.0
    %3131 = vmatpush1.msra.mxu0 0.0
    %3132 = vmatprep.subr.mxu0 0.0
    %3133 = vmatpush1.msra.mxu0 0.0
    %3134 = vmatprep.subr.mxu0 0.0
    %3135 = vmatpush1.msra.mxu0 0.0
    %3136 = vmatprep.subr.mxu0 0.0
    %3137 = vmatpush1.msra.mxu0 0.0
    %3138 = vmatprep.subr.mxu0 0.0
    %3139 = vmatpush1.msra.mxu0 0.0
    %3140 = vmatprep.subr.mxu0 0.0
    %3141 = vmatpush1.msra.mxu0 0.0
    %3142 = vmatprep.subr.mxu0 0.0
    %3143 = vmatpush1.msra.mxu0 0.0
    %3144 = vmatprep.subr.mxu0 0.0
    %3145 = vmatpush1.msra.mxu0 0.0
    %3146 = vmatprep.subr.mxu0 0.0
    %3147 = vmatpush1.msra.mxu0 0.0
    %3148 = vmatprep.subr.mxu0 0.0
    %3149 = vmatpush1.msra.mxu0 0.0
    %3150 = vmatprep.subr.mxu0 0.0
    %3151 = vmatpush1.msra.mxu0 0.0
    %3152 = vmatprep.subr.mxu0 0.0
    %3153 = vmatpush1.msra.mxu0 0.0
    %3154 = vmatprep.subr.mxu0 0.0
    %3155 = vmatpush1.msra.mxu0 0.0
    %3156 = vmatprep.subr.mxu0 0.0
    %3157 = vmatpush1.msra.mxu0 0.0
    %3158 = vmatprep.subr.mxu0 0.0
    %3159 = vmatpush1.msra.mxu0 0.0
    %3160 = vmatprep.subr.mxu0 0.0
    %3161 = vmatpush1.msra.mxu0 0.0
    %3162 = vmatprep.subr.mxu0 0.0
    %3163 = vmatpush1.msra.mxu0 0.0
    %3164 = vmatprep.subr.mxu0 0.0
    %3165 = vmatpush1.msra.mxu0 0.0
    %3166 = vmatprep.subr.mxu0 0.0
    %3167 = vmatpush1.msra.mxu0 0.0
    %3168 = vmatprep.subr.mxu0 0.0
    %3169 = vmatpush1.msra.mxu0 0.0
    %3170 = vmatprep.subr.mxu0 0.0
    %3171 = vmatpush1.msra.mxu0 0.0
    %3172 = vmatprep.subr.mxu0 0.0
    %3173 = vmatpush1.msra.mxu0 0.0
    %3174 = vmatprep.subr.mxu0 0.0
    %3175 = vmatpush1.msra.mxu0 0.0
    %3176 = vmatprep.subr.mxu0 0.0
    %3177 = vmatpush1.msra.mxu0 0.0
    %3178 = vmatprep.subr.mxu0 0.0
    %3179 = vmatpush1.msra.mxu0 0.0
    %3180 = vmatprep.mubr.f32.mxu0 0.0
    %v3181 = vand.u32 %v3109, 4294901760
    %v3182 = vsub.f32 %v3109, %v3181
    %v3183 = vand.u32 %v3182, 4294901760
    %v3184 = vsub.f32 %v3182, %v3183
    %v3185 = vand.u32 %v3184, 4294901760
    %3186 = vmatmul.mubr.f32.gmra.mrb[0].mxu0 %v3185
    %v3187 = vpop.f32.mrb[0].mxu0
    %v3188 = vadd.f32 0.0, %v3187
    %v3189 = vpop.f32.mrb[0].mxu0
    %3190 = vmatprep.mubr.f32.mxu0 0.0
    %v3191 = vand.u32 %v3112, 4294901760
    %v3192 = vsub.f32 %v3112, %v3191
    %v3193 = vand.u32 %v3192, 4294901760
    %v3194 = vsub.f32 %v3192, %v3193
    %v3195 = vand.u32 %v3194, 4294901760
    %3196 = vmatmul.mubr.f32.gmra.mrb[0].mxu0 %v3195
    %v3197 = vpop.f32.mrb[0].mxu0
    %v3198 = vadd.f32 0.0, %v3197
    %v3199 = vpop.f32.mrb[0].mxu0
    %3200 = vdwg.mxu0
    %3201 = vmatprep.subr.mxu0 0.0
    %v3202 = vand.u32 %v3103, 4294901760
    %v3203 = vsub.f32 %v3103, %v3202
    %v3204 = vand.u32 %v3203, 4294901760
    %v3205 = vsub.f32 %v3203, %v3204
    %v3206 = vand.u32 %v3205, 4294901760
    %3207 = vmatpush1.msra.mxu0 %v3206
    %3208 = vmatprep.subr.mxu0 0.0
    %v3209 = vand.u32 %v3105, 4294901760
    %v3210 = vsub.f32 %v3105, %v3209
    %v3211 = vand.u32 %v3210, 4294901760
    %v3212 = vsub.f32 %v3210, %v3211
    %v3213 = vand.u32 %v3212, 4294901760
    %3214 = vmatpush1.msra.mxu0 %v3213
    %3215 = vmatprep.subr.mxu0 0.0
    %3216 = vmatpush1.msra.mxu0 0.0
    %3217 = vmatprep.subr.mxu0 0.0
    %3218 = vmatpush1.msra.mxu0 0.0
    %3219 = vmatprep.subr.mxu0 0.0
    %3220 = vmatpush1.msra.mxu0 0.0
    %3221 = vmatprep.subr.mxu0 0.0
    %3222 = vmatpush1.msra.mxu0 0.0
    %3223 = vmatprep.subr.mxu0 0.0
    %3224 = vmatpush1.msra.mxu0 0.0
    %3225 = vmatprep.subr.mxu0 0.0
    %3226 = vmatpush1.msra.mxu0 0.0
    %3227 = vmatprep.subr.mxu0 0.0
    %3228 = vmatpush1.msra.mxu0 0.0
    %3229 = vmatprep.subr.mxu0 0.0
    %3230 = vmatpush1.msra.mxu0 0.0
    %3231 = vmatprep.subr.mxu0 0.0
    %3232 = vmatpush1.msra.mxu0 0.0
    %3233 = vmatprep.subr.mxu0 0.0
    %3234 = vmatpush1.msra.mxu0 0.0
    %3235 = vmatprep.subr.mxu0 0.0
    %3236 = vmatpush1.msra.mxu0 0.0
    %3237 = vmatprep.subr.mxu0 0.0
    %3238 = vmatpush1.msra.mxu0 0.0
    %3239 = vmatprep.subr.mxu0 0.0
    %3240 = vmatpush1.msra.mxu0 0.0
    %3241 = vmatprep.subr.mxu0 0.0
    %3242 = vmatpush1.msra.mxu0 0.0
    %3243 = vmatprep.subr.mxu0 0.0
    %3244 = vmatpush1.msra.mxu0 0.0
    %3245 = vmatprep.subr.mxu0 0.0
    %3246 = vmatpush1.msra.mxu0 0.0
    %3247 = vmatprep.subr.mxu0 0.0
    %3248 = vmatpush1.msra.mxu0 0.0
    %3249 = vmatprep.subr.mxu0 0.0
    %3250 = vmatpush1.msra.mxu0 0.0
    %3251 = vmatprep.subr.mxu0 0.0
    %3252 = vmatpush1.msra.mxu0 0.0
    %3253 = vmatprep.subr.mxu0 0.0
    %3254 = vmatpush1.msra.mxu0 0.0
    %3255 = vmatprep.subr.mxu0 0.0
    %3256 = vmatpush1.msra.mxu0 0.0
    %3257 = vmatprep.subr.mxu0 0.0
    %3258 = vmatpush1.msra.mxu0 0.0
    %3259 = vmatprep.subr.mxu0 0.0
    %3260 = vmatpush1.msra.mxu0 0.0
    %3261 = vmatprep.subr.mxu0 0.0
    %3262 = vmatpush1.msra.mxu0 0.0
    %3263 = vmatprep.subr.mxu0 0.0
    %3264 = vmatpush1.msra.mxu0 0.0
    %3265 = vmatprep.subr.mxu0 0.0
    %3266 = vmatpush1.msra.mxu0 0.0
    %3267 = vmatprep.subr.mxu0 0.0
    %3268 = vmatpush1.msra.mxu0 0.0
    %3269 = vmatprep.subr.mxu0 0.0
    %3270 = vmatpush1.msra.mxu0 0.0
    %3271 = vmatprep.subr.mxu0 0.0
    %3272 = vmatpush1.msra.mxu0 0.0
    %3273 = vmatprep.subr.mxu0 0.0
    %3274 = vmatpush1.msra.mxu0 0.0
    %3275 = vmatprep.mubr.f32.mxu0 0.0
    %v3276 = vand.u32 %v3109, 4294901760
    %3277 = vmatmul.mubr.f32.gmra.mrb[0].mxu0 %v3276
    %v3278 = vpop.f32.mrb[0].mxu0
    %v3279 = vadd.f32 %v3188, %v3278
    %v3280 = vpop.f32.mrb[0].mxu0
    %3281 = vmatprep.mubr.f32.mxu0 0.0
    %v3282 = vand.u32 %v3112, 4294901760
    %3283 = vmatmul.mubr.f32.gmra.mrb[0].mxu0 %v3282
    %v3284 = vpop.f32.mrb[0].mxu0
    %v3285 = vadd.f32 %v3198, %v3284
    %v3286 = vpop.f32.mrb[0].mxu0
    %3287 = vdwg.mxu0
    %3288 = vmatprep.subr.mxu0 0.0
    %v3289 = vand.u32 %v3103, 4294901760
    %v3290 = vsub.f32 %v3103, %v3289
    %3291 = vmatpush1.msra.mxu0 %v3290
    %3292 = vmatprep.subr.mxu0 0.0
    %v3293 = vand.u32 %v3105, 4294901760
    %v3294 = vsub.f32 %v3105, %v3293
    %3295 = vmatpush1.msra.mxu0 %v3294
    %3296 = vmatprep.subr.mxu0 0.0
    %3297 = vmatpush1.msra.mxu0 0.0
    %3298 = vmatprep.subr.mxu0 0.0
    %3299 = vmatpush1.msra.mxu0 0.0
    %3300 = vmatprep.subr.mxu0 0.0
    %3301 = vmatpush1.msra.mxu0 0.0
    %3302 = vmatprep.subr.mxu0 0.0
    %3303 = vmatpush1.msra.mxu0 0.0
    %3304 = vmatprep.subr.mxu0 0.0
    %3305 = vmatpush1.msra.mxu0 0.0
    %3306 = vmatprep.subr.mxu0 0.0
    %3307 = vmatpush1.msra.mxu0 0.0
    %3308 = vmatprep.subr.mxu0 0.0
    %3309 = vmatpush1.msra.mxu0 0.0
    %3310 = vmatprep.subr.mxu0 0.0
    %3311 = vmatpush1.msra.mxu0 0.0
    %3312 = vmatprep.subr.mxu0 0.0
    %3313 = vmatpush1.msra.mxu0 0.0
    %3314 = vmatprep.subr.mxu0 0.0
    %3315 = vmatpush1.msra.mxu0 0.0
    %3316 = vmatprep.subr.mxu0 0.0
    %3317 = vmatpush1.msra.mxu0 0.0
    %3318 = vmatprep.subr.mxu0 0.0
    %3319 = vmatpush1.msra.mxu0 0.0
    %3320 = vmatprep.subr.mxu0 0.0
    %3321 = vmatpush1.msra.mxu0 0.0
    %3322 = vmatprep.subr.mxu0 0.0
    %3323 = vmatpush1.msra.mxu0 0.0
    %3324 = vmatprep.subr.mxu0 0.0
    %3325 = vmatpush1.msra.mxu0 0.0
    %3326 = vmatprep.subr.mxu0 0.0
    %3327 = vmatpush1.msra.mxu0 0.0
    %3328 = vmatprep.subr.mxu0 0.0
    %3329 = vmatpush1.msra.mxu0 0.0
    %3330 = vmatprep.subr.mxu0 0.0
    %3331 = vmatpush1.msra.mxu0 0.0
    %3332 = vmatprep.subr.mxu0 0.0
    %3333 = vmatpush1.msra.mxu0 0.0
    %3334 = vmatprep.subr.mxu0 0.0
    %3335 = vmatpush1.msra.mxu0 0.0
    %3336 = vmatprep.subr.mxu0 0.0
    %3337 = vmatpush1.msra.mxu0 0.0
    %3338 = vmatprep.subr.mxu0 0.0
    %3339 = vmatpush1.msra.mxu0 0.0
    %3340 = vmatprep.subr.mxu0 0.0
    %3341 = vmatpush1.msra.mxu0 0.0
    %3342 = vmatprep.subr.mxu0 0.0
    %3343 = vmatpush1.msra.mxu0 0.0
    %3344 = vmatprep.subr.mxu0 0.0
    %3345 = vmatpush1.msra.mxu0 0.0
    %3346 = vmatprep.subr.mxu0 0.0
    %3347 = vmatpush1.msra.mxu0 0.0
    %3348 = vmatprep.subr.mxu0 0.0
    %3349 = vmatpush1.msra.mxu0 0.0
    %3350 = vmatprep.subr.mxu0 0.0
    %3351 = vmatpush1.msra.mxu0 0.0
    %3352 = vmatprep.subr.mxu0 0.0
    %3353 = vmatpush1.msra.mxu0 0.0
    %3354 = vmatprep.subr.mxu0 0.0
    %3355 = vmatpush1.msra.mxu0 0.0
    %3356 = vmatprep.mubr.f32.mxu0 0.0
    %v3357 = vand.u32 %v3109, 4294901760
    %v3358 = vsub.f32 %v3109, %v3357
    %3359 = vmatmul.mubr.f32.gmra.mrb[0].mxu0 %v3358
    %v3360 = vpop.f32.mrb[0].mxu0
    %v3361 = vadd.f32 %v3279, %v3360
    %v3362 = vpop.f32.mrb[0].mxu0
    %3363 = vmatprep.mubr.f32.mxu0 0.0
    %v3364 = vand.u32 %v3112, 4294901760
    %v3365 = vsub.f32 %v3112, %v3364
    %3366 = vmatmul.mubr.f32.gmra.mrb[0].mxu0 %v3365
    %v3367 = vpop.f32.mrb[0].mxu0
    %v3368 = vadd.f32 %v3285, %v3367
    %v3369 = vpop.f32.mrb[0].mxu0
    %3370 = vdwg.mxu0
    %3371 = vmatprep.subr.mxu0 0.0
    %v3372 = vand.u32 %v3103, 4294901760
    %3373 = vmatpush1.msra.mxu0 %v3372
    %3374 = vmatprep.subr.mxu0 0.0
    %v3375 = vand.u32 %v3105, 4294901760
    %3376 = vmatpush1.msra.mxu0 %v3375
    %3377 = vmatprep.subr.mxu0 0.0
    %3378 = vmatpush1.msra.mxu0 0.0
    %3379 = vmatprep.subr.mxu0 0.0
    %3380 = vmatpush1.msra.mxu0 0.0
    %3381 = vmatprep.subr.mxu0 0.0
    %3382 = vmatpush1.msra.mxu0 0.0
    %3383 = vmatprep.subr.mxu0 0.0
    %3384 = vmatpush1.msra.mxu0 0.0
    %3385 = vmatprep.subr.mxu0 0.0
    %3386 = vmatpush1.msra.mxu0 0.0
    %3387 = vmatprep.subr.mxu0 0.0
    %3388 = vmatpush1.msra.mxu0 0.0
    %3389 = vmatprep.subr.mxu0 0.0
    %3390 = vmatpush1.msra.mxu0 0.0
    %3391 = vmatprep.subr.mxu0 0.0
    %3392 = vmatpush1.msra.mxu0 0.0
    %3393 = vmatprep.subr.mxu0 0.0
    %3394 = vmatpush1.msra.mxu0 0.0
    %3395 = vmatprep.subr.mxu0 0.0
    %3396 = vmatpush1.msra.mxu0 0.0
    %3397 = vmatprep.subr.mxu0 0.0
    %3398 = vmatpush1.msra.mxu0 0.0
    %3399 = vmatprep.subr.mxu0 0.0
    %3400 = vmatpush1.msra.mxu0 0.0
    %3401 = vmatprep.subr.mxu0 0.0
    %3402 = vmatpush1.msra.mxu0 0.0
    %3403 = vmatprep.subr.mxu0 0.0
    %3404 = vmatpush1.msra.mxu0 0.0
    %3405 = vmatprep.subr.mxu0 0.0
    %3406 = vmatpush1.msra.mxu0 0.0
    %3407 = vmatprep.subr.mxu0 0.0
    %3408 = vmatpush1.msra.mxu0 0.0
    %3409 = vmatprep.subr.mxu0 0.0
    %3410 = vmatpush1.msra.mxu0 0.0
    %3411 = vmatprep.subr.mxu0 0.0
    %3412 = vmatpush1.msra.mxu0 0.0
    %3413 = vmatprep.subr.mxu0 0.0
    %3414 = vmatpush1.msra.mxu0 0.0
    %3415 = vmatprep.subr.mxu0 0.0
    %3416 = vmatpush1.msra.mxu0 0.0
    %3417 = vmatprep.subr.mxu0 0.0
    %3418 = vmatpush1.msra.mxu0 0.0
    %3419 = vmatprep.subr.mxu0 0.0
    %3420 = vmatpush1.msra.mxu0 0.0
    %3421 = vmatprep.subr.mxu0 0.0
    %3422 = vmatpush1.msra.mxu0 0.0
    %3423 = vmatprep.subr.mxu0 0.0
    %3424 = vmatpush1.msra.mxu0 0.0
    %3425 = vmatprep.subr.mxu0 0.0
    %3426 = vmatpush1.msra.mxu0 0.0
    %3427 = vmatprep.subr.mxu0 0.0
    %3428 = vmatpush1.msra.mxu0 0.0
    %3429 = vmatprep.subr.mxu0 0.0
    %3430 = vmatpush1.msra.mxu0 0.0
    %3431 = vmatprep.subr.mxu0 0.0
    %3432 = vmatpush1.msra.mxu0 0.0
    %3433 = vmatprep.subr.mxu0 0.0
    %3434 = vmatpush1.msra.mxu0 0.0
    %3435 = vmatprep.subr.mxu0 0.0
    %3436 = vmatpush1.msra.mxu0 0.0
    %3437 = vmatprep.mubr.f32.mxu0 0.0
    %v3438 = vand.u32 %v3109, 4294901760
    %v3439 = vsub.f32 %v3109, %v3438
    %v3440 = vand.u32 %v3439, 4294901760
    %3441 = vmatmul.mubr.f32.gmra.mrb[0].mxu0 %v3440
    %v3442 = vpop.f32.mrb[0].mxu0
    %v3443 = vadd.f32 %v3361, %v3442
    %v3444 = vpop.f32.mrb[0].mxu0
    %3445 = vmatprep.mubr.f32.mxu0 0.0
    %v3446 = vand.u32 %v3112, 4294901760
    %v3447 = vsub.f32 %v3112, %v3446
    %v3448 = vand.u32 %v3447, 4294901760
    %3449 = vmatmul.mubr.f32.gmra.mrb[0].mxu0 %v3448
    %v3450 = vpop.f32.mrb[0].mxu0
    %v3451 = vadd.f32 %v3368, %v3450
    %v3452 = vpop.f32.mrb[0].mxu0
    %3453 = vdwg.mxu0
    %3454 = vmatprep.subr.mxu0 0.0
    %v3455 = vand.u32 %v3103, 4294901760
    %v3456 = vsub.f32 %v3103, %v3455
    %v3457 = vand.u32 %v3456, 4294901760
    %3458 = vmatpush1.msra.mxu0 %v3457
    %3459 = vmatprep.subr.mxu0 0.0
    %v3460 = vand.u32 %v3105, 4294901760
    %v3461 = vsub.f32 %v3105, %v3460
    %v3462 = vand.u32 %v3461, 4294901760
    %3463 = vmatpush1.msra.mxu0 %v3462
    %3464 = vmatprep.subr.mxu0 0.0
    %3465 = vmatpush1.msra.mxu0 0.0
    %3466 = vmatprep.subr.mxu0 0.0
    %3467 = vmatpush1.msra.mxu0 0.0
    %3468 = vmatprep.subr.mxu0 0.0
    %3469 = vmatpush1.msra.mxu0 0.0
    %3470 = vmatprep.subr.mxu0 0.0
    %3471 = vmatpush1.msra.mxu0 0.0
    %3472 = vmatprep.subr.mxu0 0.0
    %3473 = vmatpush1.msra.mxu0 0.0
    %3474 = vmatprep.subr.mxu0 0.0
    %3475 = vmatpush1.msra.mxu0 0.0
    %3476 = vmatprep.subr.mxu0 0.0
    %3477 = vmatpush1.msra.mxu0 0.0
    %3478 = vmatprep.subr.mxu0 0.0
    %3479 = vmatpush1.msra.mxu0 0.0
    %3480 = vmatprep.subr.mxu0 0.0
    %3481 = vmatpush1.msra.mxu0 0.0
    %3482 = vmatprep.subr.mxu0 0.0
    %3483 = vmatpush1.msra.mxu0 0.0
    %3484 = vmatprep.subr.mxu0 0.0
    %3485 = vmatpush1.msra.mxu0 0.0
    %3486 = vmatprep.subr.mxu0 0.0
    %3487 = vmatpush1.msra.mxu0 0.0
    %3488 = vmatprep.subr.mxu0 0.0
    %3489 = vmatpush1.msra.mxu0 0.0
    %3490 = vmatprep.subr.mxu0 0.0
    %3491 = vmatpush1.msra.mxu0 0.0
    %3492 = vmatprep.subr.mxu0 0.0
    %3493 = vmatpush1.msra.mxu0 0.0
    %3494 = vmatprep.subr.mxu0 0.0
    %3495 = vmatpush1.msra.mxu0 0.0
    %3496 = vmatprep.subr.mxu0 0.0
    %3497 = vmatpush1.msra.mxu0 0.0
    %3498 = vmatprep.subr.mxu0 0.0
    %3499 = vmatpush1.msra.mxu0 0.0
    %3500 = vmatprep.subr.mxu0 0.0
    %3501 = vmatpush1.msra.mxu0 0.0
    %3502 = vmatprep.subr.mxu0 0.0
    %3503 = vmatpush1.msra.mxu0 0.0
    %3504 = vmatprep.subr.mxu0 0.0
    %3505 = vmatpush1.msra.mxu0 0.0
    %3506 = vmatprep.subr.mxu0 0.0
    %3507 = vmatpush1.msra.mxu0 0.0
    %3508 = vmatprep.subr.mxu0 0.0
    %3509 = vmatpush1.msra.mxu0 0.0
    %3510 = vmatprep.subr.mxu0 0.0
    %3511 = vmatpush1.msra.mxu0 0.0
    %3512 = vmatprep.subr.mxu0 0.0
    %3513 = vmatpush1.msra.mxu0 0.0
    %3514 = vmatprep.subr.mxu0 0.0
    %3515 = vmatpush1.msra.mxu0 0.0
    %3516 = vmatprep.subr.mxu0 0.0
    %3517 = vmatpush1.msra.mxu0 0.0
    %3518 = vmatprep.subr.mxu0 0.0
    %3519 = vmatpush1.msra.mxu0 0.0
    %3520 = vmatprep.subr.mxu0 0.0
    %3521 = vmatpush1.msra.mxu0 0.0
    %3522 = vmatprep.subr.mxu0 0.0
    %3523 = vmatpush1.msra.mxu0 0.0
    %3524 = vmatprep.mubr.f32.mxu0 0.0
    %v3525 = vand.u32 %v3109, 4294901760
    %3526 = vmatmul.mubr.f32.gmra.mrb[0].mxu0 %v3525
    %v3527 = vpop.f32.mrb[0].mxu0
    %v3528 = vadd.f32 %v3443, %v3527
    %v3529 = vpop.f32.mrb[0].mxu0
    %3530 = vmatprep.mubr.f32.mxu0 0.0
    %v3531 = vand.u32 %v3112, 4294901760
    %3532 = vmatmul.mubr.f32.gmra.mrb[0].mxu0 %v3531
    %v3533 = vpop.f32.mrb[0].mxu0
    %v3534 = vadd.f32 %v3451, %v3533
    %v3535 = vpop.f32.mrb[0].mxu0
    %3536 = vdwg.mxu0
    %3537 = vmatprep.subr.mxu0 0.0
    %v3538 = vand.u32 %v3103, 4294901760
    %3539 = vmatpush1.msra.mxu0 %v3538
    %3540 = vmatprep.subr.mxu0 0.0
    %v3541 = vand.u32 %v3105, 4294901760
    %3542 = vmatpush1.msra.mxu0 %v3541
    %3543 = vmatprep.subr.mxu0 0.0
    %3544 = vmatpush1.msra.mxu0 0.0
    %3545 = vmatprep.subr.mxu0 0.0
    %3546 = vmatpush1.msra.mxu0 0.0
    %3547 = vmatprep.subr.mxu0 0.0
    %3548 = vmatpush1.msra.mxu0 0.0
    %3549 = vmatprep.subr.mxu0 0.0
    %3550 = vmatpush1.msra.mxu0 0.0
    %3551 = vmatprep.subr.mxu0 0.0
    %3552 = vmatpush1.msra.mxu0 0.0
    %3553 = vmatprep.subr.mxu0 0.0
    %3554 = vmatpush1.msra.mxu0 0.0
    %3555 = vmatprep.subr.mxu0 0.0
    %3556 = vmatpush1.msra.mxu0 0.0
    %3557 = vmatprep.subr.mxu0 0.0
    %3558 = vmatpush1.msra.mxu0 0.0
    %3559 = vmatprep.subr.mxu0 0.0
    %3560 = vmatpush1.msra.mxu0 0.0
    %3561 = vmatprep.subr.mxu0 0.0
    %3562 = vmatpush1.msra.mxu0 0.0
    %3563 = vmatprep.subr.mxu0 0.0
    %3564 = vmatpush1.msra.mxu0 0.0
    %3565 = vmatprep.subr.mxu0 0.0
    %3566 = vmatpush1.msra.mxu0 0.0
    %3567 = vmatprep.subr.mxu0 0.0
    %3568 = vmatpush1.msra.mxu0 0.0
    %3569 = vmatprep.subr.mxu0 0.0
    %3570 = vmatpush1.msra.mxu0 0.0
    %3571 = vmatprep.subr.mxu0 0.0
    %3572 = vmatpush1.msra.mxu0 0.0
    %3573 = vmatprep.subr.mxu0 0.0
    %3574 = vmatpush1.msra.mxu0 0.0
    %3575 = vmatprep.subr.mxu0 0.0
    %3576 = vmatpush1.msra.mxu0 0.0
    %3577 = vmatprep.subr.mxu0 0.0
    %3578 = vmatpush1.msra.mxu0 0.0
    %3579 = vmatprep.subr.mxu0 0.0
    %3580 = vmatpush1.msra.mxu0 0.0
    %3581 = vmatprep.subr.mxu0 0.0
    %3582 = vmatpush1.msra.mxu0 0.0
    %3583 = vmatprep.subr.mxu0 0.0
    %3584 = vmatpush1.msra.mxu0 0.0
    %3585 = vmatprep.subr.mxu0 0.0
    %3586 = vmatpush1.msra.mxu0 0.0
    %3587 = vmatprep.subr.mxu0 0.0
    %3588 = vmatpush1.msra.mxu0 0.0
    %3589 = vmatprep.subr.mxu0 0.0
    %3590 = vmatpush1.msra.mxu0 0.0
    %3591 = vmatprep.subr.mxu0 0.0
    %3592 = vmatpush1.msra.mxu0 0.0
    %3593 = vmatprep.subr.mxu0 0.0
    %3594 = vmatpush1.msra.mxu0 0.0
    %3595 = vmatprep.subr.mxu0 0.0
    %3596 = vmatpush1.msra.mxu0 0.0
    %3597 = vmatprep.subr.mxu0 0.0
    %3598 = vmatpush1.msra.mxu0 0.0
    %3599 = vmatprep.subr.mxu0 0.0
    %3600 = vmatpush1.msra.mxu0 0.0
    %3601 = vmatprep.subr.mxu0 0.0
    %3602 = vmatpush1.msra.mxu0 0.0
    %3603 = vmatprep.mubr.f32.mxu0 0.0
    %v3604 = vand.u32 %v3109, 4294901760
    %3605 = vmatmul.mubr.f32.gmra.mrb[0].mxu0 %v3604
    %v3606 = vpop.f32.mrb[0].mxu0
    %v3607 = vadd.f32 %v3528, %v3606
    %v3608 = vpop.f32.mrb[0].mxu0
    %3609 = vmatprep.mubr.f32.mxu0 0.0
    %v3610 = vand.u32 %v3112, 4294901760
    %3611 = vmatmul.mubr.f32.gmra.mrb[0].mxu0 %v3610
    %v3612 = vpop.f32.mrb[0].mxu0
    %v3613 = vadd.f32 %v3534, %v3612
    %v3614 = vpop.f32.mrb[0].mxu0
    %3615 = vdwg.mxu0
    %v3616 = vadd.f32 %v3090, %v3607
    %v3617 = vadd.f32 %v3096, %v3613
    %3618 = vst.msk [vmem:[#allocation5] sm:$0xff] %vm895, %v3616
    %3619 = vst.msk [vmem:[#allocation5 + $0x8] sm:$0xff] %vm895, %v3617
    %v3620 = vld [vmem:[%s17] sm:$0xff]
    %v3621 = vld [vmem:[%s17 + $0x8] sm:$0xff]
    %v3622 = vld [vmem:[%s2072] sm:$0xff]
    %v3623 = vld [vmem:[%s2072 + $0x8] sm:$0xff]
    %3624 = vrot.lane.b32.xlu0 %v2068, 100
    %v3625 = vpop.permute.xlu0 %3624
    %3626 = vrot.lane.b32.xlu0 %v2069, 100
    %v3627 = vpop.permute.xlu0 %3626
    %v3631 = vsel %vm895, %v3622, 0
    %v3634 = vsel %vm895, %v3623, 0
    %3636 = vmatprep.subr.mxu0 0.0
    %v3637 = vand.u32 %v3625, 4294901760
    %3638 = vmatpush1.msra.mxu0 %v3637
    %3639 = vmatprep.subr.mxu0 0.0
    %v3640 = vand.u32 %v3627, 4294901760
    %3641 = vmatpush1.msra.mxu0 %v3640
    %3642 = vmatprep.subr.mxu0 0.0
    %3643 = vmatpush1.msra.mxu0 0.0
    %3644 = vmatprep.subr.mxu0 0.0
    %3645 = vmatpush1.msra.mxu0 0.0
    %3646 = vmatprep.subr.mxu0 0.0
    %3647 = vmatpush1.msra.mxu0 0.0
    %3648 = vmatprep.subr.mxu0 0.0
    %3649 = vmatpush1.msra.mxu0 0.0
    %3650 = vmatprep.subr.mxu0 0.0
    %3651 = vmatpush1.msra.mxu0 0.0
    %3652 = vmatprep.subr.mxu0 0.0
    %3653 = vmatpush1.msra.mxu0 0.0
    %3654 = vmatprep.subr.mxu0 0.0
    %3655 = vmatpush1.msra.mxu0 0.0
    %3656 = vmatprep.subr.mxu0 0.0
    %3657 = vmatpush1.msra.mxu0 0.0
    %3658 = vmatprep.subr.mxu0 0.0
    %3659 = vmatpush1.msra.mxu0 0.0
    %3660 = vmatprep.subr.mxu0 0.0
    %3661 = vmatpush1.msra.mxu0 0.0
    %3662 = vmatprep.subr.mxu0 0.0
    %3663 = vmatpush1.msra.mxu0 0.0
    %3664 = vmatprep.subr.mxu0 0.0
    %3665 = vmatpush1.msra.mxu0 0.0
    %3666 = vmatprep.subr.mxu0 0.0
    %3667 = vmatpush1.msra.mxu0 0.0
    %3668 = vmatprep.subr.mxu0 0.0
    %3669 = vmatpush1.msra.mxu0 0.0
    %3670 = vmatprep.subr.mxu0 0.0
    %3671 = vmatpush1.msra.mxu0 0.0
    %3672 = vmatprep.subr.mxu0 0.0
    %3673 = vmatpush1.msra.mxu0 0.0
    %3674 = vmatprep.subr.mxu0 0.0
    %3675 = vmatpush1.msra.mxu0 0.0
    %3676 = vmatprep.subr.mxu0 0.0
    %3677 = vmatpush1.msra.mxu0 0.0
    %3678 = vmatprep.subr.mxu0 0.0
    %3679 = vmatpush1.msra.mxu0 0.0
    %3680 = vmatprep.subr.mxu0 0.0
    %3681 = vmatpush1.msra.mxu0 0.0
    %3682 = vmatprep.subr.mxu0 0.0
    %3683 = vmatpush1.msra.mxu0 0.0
    %3684 = vmatprep.subr.mxu0 0.0
    %3685 = vmatpush1.msra.mxu0 0.0
    %3686 = vmatprep.subr.mxu0 0.0
    %3687 = vmatpush1.msra.mxu0 0.0
    %3688 = vmatprep.subr.mxu0 0.0
    %3689 = vmatpush1.msra.mxu0 0.0
    %3690 = vmatprep.subr.mxu0 0.0
    %3691 = vmatpush1.msra.mxu0 0.0
    %3692 = vmatprep.subr.mxu0 0.0
    %3693 = vmatpush1.msra.mxu0 0.0
    %3694 = vmatprep.subr.mxu0 0.0
    %3695 = vmatpush1.msra.mxu0 0.0
    %3696 = vmatprep.subr.mxu0 0.0
    %3697 = vmatpush1.msra.mxu0 0.0
    %3698 = vmatprep.subr.mxu0 0.0
    %3699 = vmatpush1.msra.mxu0 0.0
    %3700 = vmatprep.subr.mxu0 0.0
    %3701 = vmatpush1.msra.mxu0 0.0
    %3702 = vmatprep.mubr.f32.mxu0 0.0
    %v3703 = vand.u32 %v3631, 4294901760
    %v3704 = vsub.f32 %v3631, %v3703
    %v3705 = vand.u32 %v3704, 4294901760
    %v3706 = vsub.f32 %v3704, %v3705
    %v3707 = vand.u32 %v3706, 4294901760
    %3708 = vmatmul.mubr.f32.gmra.mrb[0].mxu0 %v3707
    %v3709 = vpop.f32.mrb[0].mxu0
    %v3710 = vadd.f32 0.0, %v3709
    %v3711 = vpop.f32.mrb[0].mxu0
    %3712 = vmatprep.mubr.f32.mxu0 0.0
    %v3713 = vand.u32 %v3634, 4294901760
    %v3714 = vsub.f32 %v3634, %v3713
    %v3715 = vand.u32 %v3714, 4294901760
    %v3716 = vsub.f32 %v3714, %v3715
    %v3717 = vand.u32 %v3716, 4294901760
    %3718 = vmatmul.mubr.f32.gmra.mrb[0].mxu0 %v3717
    %v3719 = vpop.f32.mrb[0].mxu0
    %v3720 = vadd.f32 0.0, %v3719
    %v3721 = vpop.f32.mrb[0].mxu0
    %3722 = vdwg.mxu0
    %3723 = vmatprep.subr.mxu0 0.0
    %v3724 = vand.u32 %v3625, 4294901760
    %v3725 = vsub.f32 %v3625, %v3724
    %v3726 = vand.u32 %v3725, 4294901760
    %v3727 = vsub.f32 %v3725, %v3726
    %v3728 = vand.u32 %v3727, 4294901760
    %3729 = vmatpush1.msra.mxu0 %v3728
    %3730 = vmatprep.subr.mxu0 0.0
    %v3731 = vand.u32 %v3627, 4294901760
    %v3732 = vsub.f32 %v3627, %v3731
    %v3733 = vand.u32 %v3732, 4294901760
    %v3734 = vsub.f32 %v3732, %v3733
    %v3735 = vand.u32 %v3734, 4294901760
    %3736 = vmatpush1.msra.mxu0 %v3735
    %3737 = vmatprep.subr.mxu0 0.0
    %3738 = vmatpush1.msra.mxu0 0.0
    %3739 = vmatprep.subr.mxu0 0.0
    %3740 = vmatpush1.msra.mxu0 0.0
    %3741 = vmatprep.subr.mxu0 0.0
    %3742 = vmatpush1.msra.mxu0 0.0
    %3743 = vmatprep.subr.mxu0 0.0
    %3744 = vmatpush1.msra.mxu0 0.0
    %3745 = vmatprep.subr.mxu0 0.0
    %3746 = vmatpush1.msra.mxu0 0.0
    %3747 = vmatprep.subr.mxu0 0.0
    %3748 = vmatpush1.msra.mxu0 0.0
    %3749 = vmatprep.subr.mxu0 0.0
    %3750 = vmatpush1.msra.mxu0 0.0
    %3751 = vmatprep.subr.mxu0 0.0
    %3752 = vmatpush1.msra.mxu0 0.0
    %3753 = vmatprep.subr.mxu0 0.0
    %3754 = vmatpush1.msra.mxu0 0.0
    %3755 = vmatprep.subr.mxu0 0.0
    %3756 = vmatpush1.msra.mxu0 0.0
    %3757 = vmatprep.subr.mxu0 0.0
    %3758 = vmatpush1.msra.mxu0 0.0
    %3759 = vmatprep.subr.mxu0 0.0
    %3760 = vmatpush1.msra.mxu0 0.0
    %3761 = vmatprep.subr.mxu0 0.0
    %3762 = vmatpush1.msra.mxu0 0.0
    %3763 = vmatprep.subr.mxu0 0.0
    %3764 = vmatpush1.msra.mxu0 0.0
    %3765 = vmatprep.subr.mxu0 0.0
    %3766 = vmatpush1.msra.mxu0 0.0
    %3767 = vmatprep.subr.mxu0 0.0
    %3768 = vmatpush1.msra.mxu0 0.0
    %3769 = vmatprep.subr.mxu0 0.0
    %3770 = vmatpush1.msra.mxu0 0.0
    %3771 = vmatprep.subr.mxu0 0.0
    %3772 = vmatpush1.msra.mxu0 0.0
    %3773 = vmatprep.subr.mxu0 0.0
    %3774 = vmatpush1.msra.mxu0 0.0
    %3775 = vmatprep.subr.mxu0 0.0
    %3776 = vmatpush1.msra.mxu0 0.0
    %3777 = vmatprep.subr.mxu0 0.0
    %3778 = vmatpush1.msra.mxu0 0.0
    %3779 = vmatprep.subr.mxu0 0.0
    %3780 = vmatpush1.msra.mxu0 0.0
    %3781 = vmatprep.subr.mxu0 0.0
    %3782 = vmatpush1.msra.mxu0 0.0
    %3783 = vmatprep.subr.mxu0 0.0
    %3784 = vmatpush1.msra.mxu0 0.0
    %3785 = vmatprep.subr.mxu0 0.0
    %3786 = vmatpush1.msra.mxu0 0.0
    %3787 = vmatprep.subr.mxu0 0.0
    %3788 = vmatpush1.msra.mxu0 0.0
    %3789 = vmatprep.subr.mxu0 0.0
    %3790 = vmatpush1.msra.mxu0 0.0
    %3791 = vmatprep.subr.mxu0 0.0
    %3792 = vmatpush1.msra.mxu0 0.0
    %3793 = vmatprep.subr.mxu0 0.0
    %3794 = vmatpush1.msra.mxu0 0.0
    %3795 = vmatprep.subr.mxu0 0.0
    %3796 = vmatpush1.msra.mxu0 0.0
    %3797 = vmatprep.mubr.f32.mxu0 0.0
    %v3798 = vand.u32 %v3631, 4294901760
    %3799 = vmatmul.mubr.f32.gmra.mrb[0].mxu0 %v3798
    %v3800 = vpop.f32.mrb[0].mxu0
    %v3801 = vadd.f32 %v3710, %v3800
    %v3802 = vpop.f32.mrb[0].mxu0
    %3803 = vmatprep.mubr.f32.mxu0 0.0
    %v3804 = vand.u32 %v3634, 4294901760
    %3805 = vmatmul.mubr.f32.gmra.mrb[0].mxu0 %v3804
    %v3806 = vpop.f32.mrb[0].mxu0
    %v3807 = vadd.f32 %v3720, %v3806
    %v3808 = vpop.f32.mrb[0].mxu0
    %3809 = vdwg.mxu0
    %3810 = vmatprep.subr.mxu0 0.0
    %v3811 = vand.u32 %v3625, 4294901760
    %v3812 = vsub.f32 %v3625, %v3811
    %3813 = vmatpush1.msra.mxu0 %v3812
    %3814 = vmatprep.subr.mxu0 0.0
    %v3815 = vand.u32 %v3627, 4294901760
    %v3816 = vsub.f32 %v3627, %v3815
    %3817 = vmatpush1.msra.mxu0 %v3816
    %3818 = vmatprep.subr.mxu0 0.0
    %3819 = vmatpush1.msra.mxu0 0.0
    %3820 = vmatprep.subr.mxu0 0.0
    %3821 = vmatpush1.msra.mxu0 0.0
    %3822 = vmatprep.subr.mxu0 0.0
    %3823 = vmatpush1.msra.mxu0 0.0
    %3824 = vmatprep.subr.mxu0 0.0
    %3825 = vmatpush1.msra.mxu0 0.0
    %3826 = vmatprep.subr.mxu0 0.0
    %3827 = vmatpush1.msra.mxu0 0.0
    %3828 = vmatprep.subr.mxu0 0.0
    %3829 = vmatpush1.msra.mxu0 0.0
    %3830 = vmatprep.subr.mxu0 0.0
    %3831 = vmatpush1.msra.mxu0 0.0
    %3832 = vmatprep.subr.mxu0 0.0
    %3833 = vmatpush1.msra.mxu0 0.0
    %3834 = vmatprep.subr.mxu0 0.0
    %3835 = vmatpush1.msra.mxu0 0.0
    %3836 = vmatprep.subr.mxu0 0.0
    %3837 = vmatpush1.msra.mxu0 0.0
    %3838 = vmatprep.subr.mxu0 0.0
    %3839 = vmatpush1.msra.mxu0 0.0
    %3840 = vmatprep.subr.mxu0 0.0
    %3841 = vmatpush1.msra.mxu0 0.0
    %3842 = vmatprep.subr.mxu0 0.0
    %3843 = vmatpush1.msra.mxu0 0.0
    %3844 = vmatprep.subr.mxu0 0.0
    %3845 = vmatpush1.msra.mxu0 0.0
    %3846 = vmatprep.subr.mxu0 0.0
    %3847 = vmatpush1.msra.mxu0 0.0
    %3848 = vmatprep.subr.mxu0 0.0
    %3849 = vmatpush1.msra.mxu0 0.0
    %3850 = vmatprep.subr.mxu0 0.0
    %3851 = vmatpush1.msra.mxu0 0.0
    %3852 = vmatprep.subr.mxu0 0.0
    %3853 = vmatpush1.msra.mxu0 0.0
    %3854 = vmatprep.subr.mxu0 0.0
    %3855 = vmatpush1.msra.mxu0 0.0
    %3856 = vmatprep.subr.mxu0 0.0
    %3857 = vmatpush1.msra.mxu0 0.0
    %3858 = vmatprep.subr.mxu0 0.0
    %3859 = vmatpush1.msra.mxu0 0.0
    %3860 = vmatprep.subr.mxu0 0.0
    %3861 = vmatpush1.msra.mxu0 0.0
    %3862 = vmatprep.subr.mxu0 0.0
    %3863 = vmatpush1.msra.mxu0 0.0
    %3864 = vmatprep.subr.mxu0 0.0
    %3865 = vmatpush1.msra.mxu0 0.0
    %3866 = vmatprep.subr.mxu0 0.0
    %3867 = vmatpush1.msra.mxu0 0.0
    %3868 = vmatprep.subr.mxu0 0.0
    %3869 = vmatpush1.msra.mxu0 0.0
    %3870 = vmatprep.subr.mxu0 0.0
    %3871 = vmatpush1.msra.mxu0 0.0
    %3872 = vmatprep.subr.mxu0 0.0
    %3873 = vmatpush1.msra.mxu0 0.0
    %3874 = vmatprep.subr.mxu0 0.0
    %3875 = vmatpush1.msra.mxu0 0.0
    %3876 = vmatprep.subr.mxu0 0.0
    %3877 = vmatpush1.msra.mxu0 0.0
    %3878 = vmatprep.mubr.f32.mxu0 0.0
    %v3879 = vand.u32 %v3631, 4294901760
    %v3880 = vsub.f32 %v3631, %v3879
    %3881 = vmatmul.mubr.f32.gmra.mrb[0].mxu0 %v3880
    %v3882 = vpop.f32.mrb[0].mxu0
    %v3883 = vadd.f32 %v3801, %v3882
    %v3884 = vpop.f32.mrb[0].mxu0
    %3885 = vmatprep.mubr.f32.mxu0 0.0
    %v3886 = vand.u32 %v3634, 4294901760
    %v3887 = vsub.f32 %v3634, %v3886
    %3888 = vmatmul.mubr.f32.gmra.mrb[0].mxu0 %v3887
    %v3889 = vpop.f32.mrb[0].mxu0
    %v3890 = vadd.f32 %v3807, %v3889
    %v3891 = vpop.f32.mrb[0].mxu0
    %3892 = vdwg.mxu0
    %3893 = vmatprep.subr.mxu0 0.0
    %v3894 = vand.u32 %v3625, 4294901760
    %3895 = vmatpush1.msra.mxu0 %v3894
    %3896 = vmatprep.subr.mxu0 0.0
    %v3897 = vand.u32 %v3627, 4294901760
    %3898 = vmatpush1.msra.mxu0 %v3897
    %3899 = vmatprep.subr.mxu0 0.0
    %3900 = vmatpush1.msra.mxu0 0.0
    %3901 = vmatprep.subr.mxu0 0.0
    %3902 = vmatpush1.msra.mxu0 0.0
    %3903 = vmatprep.subr.mxu0 0.0
    %3904 = vmatpush1.msra.mxu0 0.0
    %3905 = vmatprep.subr.mxu0 0.0
    %3906 = vmatpush1.msra.mxu0 0.0
    %3907 = vmatprep.subr.mxu0 0.0
    %3908 = vmatpush1.msra.mxu0 0.0
    %3909 = vmatprep.subr.mxu0 0.0
    %3910 = vmatpush1.msra.mxu0 0.0
    %3911 = vmatprep.subr.mxu0 0.0
    %3912 = vmatpush1.msra.mxu0 0.0
    %3913 = vmatprep.subr.mxu0 0.0
    %3914 = vmatpush1.msra.mxu0 0.0
    %3915 = vmatprep.subr.mxu0 0.0
    %3916 = vmatpush1.msra.mxu0 0.0
    %3917 = vmatprep.subr.mxu0 0.0
    %3918 = vmatpush1.msra.mxu0 0.0
    %3919 = vmatprep.subr.mxu0 0.0
    %3920 = vmatpush1.msra.mxu0 0.0
    %3921 = vmatprep.subr.mxu0 0.0
    %3922 = vmatpush1.msra.mxu0 0.0
    %3923 = vmatprep.subr.mxu0 0.0
    %3924 = vmatpush1.msra.mxu0 0.0
    %3925 = vmatprep.subr.mxu0 0.0
    %3926 = vmatpush1.msra.mxu0 0.0
    %3927 = vmatprep.subr.mxu0 0.0
    %3928 = vmatpush1.msra.mxu0 0.0
    %3929 = vmatprep.subr.mxu0 0.0
    %3930 = vmatpush1.msra.mxu0 0.0
    %3931 = vmatprep.subr.mxu0 0.0
    %3932 = vmatpush1.msra.mxu0 0.0
    %3933 = vmatprep.subr.mxu0 0.0
    %3934 = vmatpush1.msra.mxu0 0.0
    %3935 = vmatprep.subr.mxu0 0.0
    %3936 = vmatpush1.msra.mxu0 0.0
    %3937 = vmatprep.subr.mxu0 0.0
    %3938 = vmatpush1.msra.mxu0 0.0
    %3939 = vmatprep.subr.mxu0 0.0
    %3940 = vmatpush1.msra.mxu0 0.0
    %3941 = vmatprep.subr.mxu0 0.0
    %3942 = vmatpush1.msra.mxu0 0.0
    %3943 = vmatprep.subr.mxu0 0.0
    %3944 = vmatpush1.msra.mxu0 0.0
    %3945 = vmatprep.subr.mxu0 0.0
    %3946 = vmatpush1.msra.mxu0 0.0
    %3947 = vmatprep.subr.mxu0 0.0
    %3948 = vmatpush1.msra.mxu0 0.0
    %3949 = vmatprep.subr.mxu0 0.0
    %3950 = vmatpush1.msra.mxu0 0.0
    %3951 = vmatprep.subr.mxu0 0.0
    %3952 = vmatpush1.msra.mxu0 0.0
    %3953 = vmatprep.subr.mxu0 0.0
    %3954 = vmatpush1.msra.mxu0 0.0
    %3955 = vmatprep.subr.mxu0 0.0
    %3956 = vmatpush1.msra.mxu0 0.0
    %3957 = vmatprep.subr.mxu0 0.0
    %3958 = vmatpush1.msra.mxu0 0.0
    %3959 = vmatprep.mubr.f32.mxu0 0.0
    %v3960 = vand.u32 %v3631, 4294901760
    %v3961 = vsub.f32 %v3631, %v3960
    %v3962 = vand.u32 %v3961, 4294901760
    %3963 = vmatmul.mubr.f32.gmra.mrb[0].mxu0 %v3962
    %v3964 = vpop.f32.mrb[0].mxu0
    %v3965 = vadd.f32 %v3883, %v3964
    %v3966 = vpop.f32.mrb[0].mxu0
    %3967 = vmatprep.mubr.f32.mxu0 0.0
    %v3968 = vand.u32 %v3634, 4294901760
    %v3969 = vsub.f32 %v3634, %v3968
    %v3970 = vand.u32 %v3969, 4294901760
    %3971 = vmatmul.mubr.f32.gmra.mrb[0].mxu0 %v3970
    %v3972 = vpop.f32.mrb[0].mxu0
    %v3973 = vadd.f32 %v3890, %v3972
    %v3974 = vpop.f32.mrb[0].mxu0
    %3975 = vdwg.mxu0
    %3976 = vmatprep.subr.mxu0 0.0
    %v3977 = vand.u32 %v3625, 4294901760
    %v3978 = vsub.f32 %v3625, %v3977
    %v3979 = vand.u32 %v3978, 4294901760
    %3980 = vmatpush1.msra.mxu0 %v3979
    %3981 = vmatprep.subr.mxu0 0.0
    %v3982 = vand.u32 %v3627, 4294901760
    %v3983 = vsub.f32 %v3627, %v3982
    %v3984 = vand.u32 %v3983, 4294901760
    %3985 = vmatpush1.msra.mxu0 %v3984
    %3986 = vmatprep.subr.mxu0 0.0
    %3987 = vmatpush1.msra.mxu0 0.0
    %3988 = vmatprep.subr.mxu0 0.0
    %3989 = vmatpush1.msra.mxu0 0.0
    %3990 = vmatprep.subr.mxu0 0.0
    %3991 = vmatpush1.msra.mxu0 0.0
    %3992 = vmatprep.subr.mxu0 0.0
    %3993 = vmatpush1.msra.mxu0 0.0
    %3994 = vmatprep.subr.mxu0 0.0
    %3995 = vmatpush1.msra.mxu0 0.0
    %3996 = vmatprep.subr.mxu0 0.0
    %3997 = vmatpush1.msra.mxu0 0.0
    %3998 = vmatprep.subr.mxu0 0.0
    %3999 = vmatpush1.msra.mxu0 0.0
    %4000 = vmatprep.subr.mxu0 0.0
    %4001 = vmatpush1.msra.mxu0 0.0
    %4002 = vmatprep.subr.mxu0 0.0
    %4003 = vmatpush1.msra.mxu0 0.0
    %4004 = vmatprep.subr.mxu0 0.0
    %4005 = vmatpush1.msra.mxu0 0.0
    %4006 = vmatprep.subr.mxu0 0.0
    %4007 = vmatpush1.msra.mxu0 0.0
    %4008 = vmatprep.subr.mxu0 0.0
    %4009 = vmatpush1.msra.mxu0 0.0
    %4010 = vmatprep.subr.mxu0 0.0
    %4011 = vmatpush1.msra.mxu0 0.0
    %4012 = vmatprep.subr.mxu0 0.0
    %4013 = vmatpush1.msra.mxu0 0.0
    %4014 = vmatprep.subr.mxu0 0.0
    %4015 = vmatpush1.msra.mxu0 0.0
    %4016 = vmatprep.subr.mxu0 0.0
    %4017 = vmatpush1.msra.mxu0 0.0
    %4018 = vmatprep.subr.mxu0 0.0
    %4019 = vmatpush1.msra.mxu0 0.0
    %4020 = vmatprep.subr.mxu0 0.0
    %4021 = vmatpush1.msra.mxu0 0.0
    %4022 = vmatprep.subr.mxu0 0.0
    %4023 = vmatpush1.msra.mxu0 0.0
    %4024 = vmatprep.subr.mxu0 0.0
    %4025 = vmatpush1.msra.mxu0 0.0
    %4026 = vmatprep.subr.mxu0 0.0
    %4027 = vmatpush1.msra.mxu0 0.0
    %4028 = vmatprep.subr.mxu0 0.0
    %4029 = vmatpush1.msra.mxu0 0.0
    %4030 = vmatprep.subr.mxu0 0.0
    %4031 = vmatpush1.msra.mxu0 0.0
    %4032 = vmatprep.subr.mxu0 0.0
    %4033 = vmatpush1.msra.mxu0 0.0
    %4034 = vmatprep.subr.mxu0 0.0
    %4035 = vmatpush1.msra.mxu0 0.0
    %4036 = vmatprep.subr.mxu0 0.0
    %4037 = vmatpush1.msra.mxu0 0.0
    %4038 = vmatprep.subr.mxu0 0.0
    %4039 = vmatpush1.msra.mxu0 0.0
    %4040 = vmatprep.subr.mxu0 0.0
    %4041 = vmatpush1.msra.mxu0 0.0
    %4042 = vmatprep.subr.mxu0 0.0
    %4043 = vmatpush1.msra.mxu0 0.0
    %4044 = vmatprep.subr.mxu0 0.0
    %4045 = vmatpush1.msra.mxu0 0.0
    %4046 = vmatprep.mubr.f32.mxu0 0.0
    %v4047 = vand.u32 %v3631, 4294901760
    %4048 = vmatmul.mubr.f32.gmra.mrb[0].mxu0 %v4047
    %v4049 = vpop.f32.mrb[0].mxu0
    %v4050 = vadd.f32 %v3965, %v4049
    %v4051 = vpop.f32.mrb[0].mxu0
    %4052 = vmatprep.mubr.f32.mxu0 0.0
    %v4053 = vand.u32 %v3634, 4294901760
    %4054 = vmatmul.mubr.f32.gmra.mrb[0].mxu0 %v4053
    %v4055 = vpop.f32.mrb[0].mxu0
    %v4056 = vadd.f32 %v3973, %v4055
    %v4057 = vpop.f32.mrb[0].mxu0
    %4058 = vdwg.mxu0
    %4059 = vmatprep.subr.mxu0 0.0
    %v4060 = vand.u32 %v3625, 4294901760
    %4061 = vmatpush1.msra.mxu0 %v4060
    %4062 = vmatprep.subr.mxu0 0.0
    %v4063 = vand.u32 %v3627, 4294901760
    %4064 = vmatpush1.msra.mxu0 %v4063
    %4065 = vmatprep.subr.mxu0 0.0
    %4066 = vmatpush1.msra.mxu0 0.0
    %4067 = vmatprep.subr.mxu0 0.0
    %4068 = vmatpush1.msra.mxu0 0.0
    %4069 = vmatprep.subr.mxu0 0.0
    %4070 = vmatpush1.msra.mxu0 0.0
    %4071 = vmatprep.subr.mxu0 0.0
    %4072 = vmatpush1.msra.mxu0 0.0
    %4073 = vmatprep.subr.mxu0 0.0
    %4074 = vmatpush1.msra.mxu0 0.0
    %4075 = vmatprep.subr.mxu0 0.0
    %4076 = vmatpush1.msra.mxu0 0.0
    %4077 = vmatprep.subr.mxu0 0.0
    %4078 = vmatpush1.msra.mxu0 0.0
    %4079 = vmatprep.subr.mxu0 0.0
    %4080 = vmatpush1.msra.mxu0 0.0
    %4081 = vmatprep.subr.mxu0 0.0
    %4082 = vmatpush1.msra.mxu0 0.0
    %4083 = vmatprep.subr.mxu0 0.0
    %4084 = vmatpush1.msra.mxu0 0.0
    %4085 = vmatprep.subr.mxu0 0.0
    %4086 = vmatpush1.msra.mxu0 0.0
    %4087 = vmatprep.subr.mxu0 0.0
    %4088 = vmatpush1.msra.mxu0 0.0
    %4089 = vmatprep.subr.mxu0 0.0
    %4090 = vmatpush1.msra.mxu0 0.0
    %4091 = vmatprep.subr.mxu0 0.0
    %4092 = vmatpush1.msra.mxu0 0.0
    %4093 = vmatprep.subr.mxu0 0.0
    %4094 = vmatpush1.msra.mxu0 0.0
    %4095 = vmatprep.subr.mxu0 0.0
    %4096 = vmatpush1.msra.mxu0 0.0
    %4097 = vmatprep.subr.mxu0 0.0
    %4098 = vmatpush1.msra.mxu0 0.0
    %4099 = vmatprep.subr.mxu0 0.0
    %4100 = vmatpush1.msra.mxu0 0.0
    %4101 = vmatprep.subr.mxu0 0.0
    %4102 = vmatpush1.msra.mxu0 0.0
    %4103 = vmatprep.subr.mxu0 0.0
    %4104 = vmatpush1.msra.mxu0 0.0
    %4105 = vmatprep.subr.mxu0 0.0
    %4106 = vmatpush1.msra.mxu0 0.0
    %4107 = vmatprep.subr.mxu0 0.0
    %4108 = vmatpush1.msra.mxu0 0.0
    %4109 = vmatprep.subr.mxu0 0.0
    %4110 = vmatpush1.msra.mxu0 0.0
    %4111 = vmatprep.subr.mxu0 0.0
    %4112 = vmatpush1.msra.mxu0 0.0
    %4113 = vmatprep.subr.mxu0 0.0
    %4114 = vmatpush1.msra.mxu0 0.0
    %4115 = vmatprep.subr.mxu0 0.0
    %4116 = vmatpush1.msra.mxu0 0.0
    %4117 = vmatprep.subr.mxu0 0.0
    %4118 = vmatpush1.msra.mxu0 0.0
    %4119 = vmatprep.subr.mxu0 0.0
    %4120 = vmatpush1.msra.mxu0 0.0
    %4121 = vmatprep.subr.mxu0 0.0
    %4122 = vmatpush1.msra.mxu0 0.0
    %4123 = vmatprep.subr.mxu0 0.0
    %4124 = vmatpush1.msra.mxu0 0.0
    %4125 = vmatprep.mubr.f32.mxu0 0.0
    %v4126 = vand.u32 %v3631, 4294901760
    %4127 = vmatmul.mubr.f32.gmra.mrb[0].mxu0 %v4126
    %v4128 = vpop.f32.mrb[0].mxu0
    %v4129 = vadd.f32 %v4050, %v4128
    %v4130 = vpop.f32.mrb[0].mxu0
    %4131 = vmatprep.mubr.f32.mxu0 0.0
    %v4132 = vand.u32 %v3634, 4294901760
    %4133 = vmatmul.mubr.f32.gmra.mrb[0].mxu0 %v4132
    %v4134 = vpop.f32.mrb[0].mxu0
    %v4135 = vadd.f32 %v4056, %v4134
    %v4136 = vpop.f32.mrb[0].mxu0
    %4137 = vdwg.mxu0
    %4138 = vrot.lane.b32.xlu0 %v2068, 104
    %v4139 = vpop.permute.xlu0 %4138
    %4140 = vrot.lane.b32.xlu0 %v2069, 104
    %v4141 = vpop.permute.xlu0 %4140
    %v4145 = vsel %vm895, %v3620, 0
    %v4148 = vsel %vm895, %v3621, 0
    %4150 = vmatprep.subr.mxu0 0.0
    %v4151 = vand.u32 %v4139, 4294901760
    %4152 = vmatpush1.msra.mxu0 %v4151
    %4153 = vmatprep.subr.mxu0 0.0
    %v4154 = vand.u32 %v4141, 4294901760
    %4155 = vmatpush1.msra.mxu0 %v4154
    %4156 = vmatprep.subr.mxu0 0.0
    %4157 = vmatpush1.msra.mxu0 0.0
    %4158 = vmatprep.subr.mxu0 0.0
    %4159 = vmatpush1.msra.mxu0 0.0
    %4160 = vmatprep.subr.mxu0 0.0
    %4161 = vmatpush1.msra.mxu0 0.0
    %4162 = vmatprep.subr.mxu0 0.0
    %4163 = vmatpush1.msra.mxu0 0.0
    %4164 = vmatprep.subr.mxu0 0.0
    %4165 = vmatpush1.msra.mxu0 0.0
    %4166 = vmatprep.subr.mxu0 0.0
    %4167 = vmatpush1.msra.mxu0 0.0
    %4168 = vmatprep.subr.mxu0 0.0
    %4169 = vmatpush1.msra.mxu0 0.0
    %4170 = vmatprep.subr.mxu0 0.0
    %4171 = vmatpush1.msra.mxu0 0.0
    %4172 = vmatprep.subr.mxu0 0.0
    %4173 = vmatpush1.msra.mxu0 0.0
    %4174 = vmatprep.subr.mxu0 0.0
    %4175 = vmatpush1.msra.mxu0 0.0
    %4176 = vmatprep.subr.mxu0 0.0
    %4177 = vmatpush1.msra.mxu0 0.0
    %4178 = vmatprep.subr.mxu0 0.0
    %4179 = vmatpush1.msra.mxu0 0.0
    %4180 = vmatprep.subr.mxu0 0.0
    %4181 = vmatpush1.msra.mxu0 0.0
    %4182 = vmatprep.subr.mxu0 0.0
    %4183 = vmatpush1.msra.mxu0 0.0
    %4184 = vmatprep.subr.mxu0 0.0
    %4185 = vmatpush1.msra.mxu0 0.0
    %4186 = vmatprep.subr.mxu0 0.0
    %4187 = vmatpush1.msra.mxu0 0.0
    %4188 = vmatprep.subr.mxu0 0.0
    %4189 = vmatpush1.msra.mxu0 0.0
    %4190 = vmatprep.subr.mxu0 0.0
    %4191 = vmatpush1.msra.mxu0 0.0
    %4192 = vmatprep.subr.mxu0 0.0
    %4193 = vmatpush1.msra.mxu0 0.0
    %4194 = vmatprep.subr.mxu0 0.0
    %4195 = vmatpush1.msra.mxu0 0.0
    %4196 = vmatprep.subr.mxu0 0.0
    %4197 = vmatpush1.msra.mxu0 0.0
    %4198 = vmatprep.subr.mxu0 0.0
    %4199 = vmatpush1.msra.mxu0 0.0
    %4200 = vmatprep.subr.mxu0 0.0
    %4201 = vmatpush1.msra.mxu0 0.0
    %4202 = vmatprep.subr.mxu0 0.0
    %4203 = vmatpush1.msra.mxu0 0.0
    %4204 = vmatprep.subr.mxu0 0.0
    %4205 = vmatpush1.msra.mxu0 0.0
    %4206 = vmatprep.subr.mxu0 0.0
    %4207 = vmatpush1.msra.mxu0 0.0
    %4208 = vmatprep.subr.mxu0 0.0
    %4209 = vmatpush1.msra.mxu0 0.0
    %4210 = vmatprep.subr.mxu0 0.0
    %4211 = vmatpush1.msra.mxu0 0.0
    %4212 = vmatprep.subr.mxu0 0.0
    %4213 = vmatpush1.msra.mxu0 0.0
    %4214 = vmatprep.subr.mxu0 0.0
    %4215 = vmatpush1.msra.mxu0 0.0
    %4216 = vmatprep.mubr.f32.mxu0 0.0
    %v4217 = vand.u32 %v4145, 4294901760
    %v4218 = vsub.f32 %v4145, %v4217
    %v4219 = vand.u32 %v4218, 4294901760
    %v4220 = vsub.f32 %v4218, %v4219
    %v4221 = vand.u32 %v4220, 4294901760
    %4222 = vmatmul.mubr.f32.gmra.mrb[0].mxu0 %v4221
    %v4223 = vpop.f32.mrb[0].mxu0
    %v4224 = vadd.f32 %v4129, %v4223
    %v4225 = vpop.f32.mrb[0].mxu0
    %4226 = vmatprep.mubr.f32.mxu0 0.0
    %v4227 = vand.u32 %v4148, 4294901760
    %v4228 = vsub.f32 %v4148, %v4227
    %v4229 = vand.u32 %v4228, 4294901760
    %v4230 = vsub.f32 %v4228, %v4229
    %v4231 = vand.u32 %v4230, 4294901760
    %4232 = vmatmul.mubr.f32.gmra.mrb[0].mxu0 %v4231
    %v4233 = vpop.f32.mrb[0].mxu0
    %v4234 = vadd.f32 %v4135, %v4233
    %v4235 = vpop.f32.mrb[0].mxu0
    %4236 = vdwg.mxu0
    %4237 = vmatprep.subr.mxu0 0.0
    %v4238 = vand.u32 %v4139, 4294901760
    %v4239 = vsub.f32 %v4139, %v4238
    %v4240 = vand.u32 %v4239, 4294901760
    %v4241 = vsub.f32 %v4239, %v4240
    %v4242 = vand.u32 %v4241, 4294901760
    %4243 = vmatpush1.msra.mxu0 %v4242
    %4244 = vmatprep.subr.mxu0 0.0
    %v4245 = vand.u32 %v4141, 4294901760
    %v4246 = vsub.f32 %v4141, %v4245
    %v4247 = vand.u32 %v4246, 4294901760
    %v4248 = vsub.f32 %v4246, %v4247
    %v4249 = vand.u32 %v4248, 4294901760
    %4250 = vmatpush1.msra.mxu0 %v4249
    %4251 = vmatprep.subr.mxu0 0.0
    %4252 = vmatpush1.msra.mxu0 0.0
    %4253 = vmatprep.subr.mxu0 0.0
    %4254 = vmatpush1.msra.mxu0 0.0
    %4255 = vmatprep.subr.mxu0 0.0
    %4256 = vmatpush1.msra.mxu0 0.0
    %4257 = vmatprep.subr.mxu0 0.0
    %4258 = vmatpush1.msra.mxu0 0.0
    %4259 = vmatprep.subr.mxu0 0.0
    %4260 = vmatpush1.msra.mxu0 0.0
    %4261 = vmatprep.subr.mxu0 0.0
    %4262 = vmatpush1.msra.mxu0 0.0
    %4263 = vmatprep.subr.mxu0 0.0
    %4264 = vmatpush1.msra.mxu0 0.0
    %4265 = vmatprep.subr.mxu0 0.0
    %4266 = vmatpush1.msra.mxu0 0.0
    %4267 = vmatprep.subr.mxu0 0.0
    %4268 = vmatpush1.msra.mxu0 0.0
    %4269 = vmatprep.subr.mxu0 0.0
    %4270 = vmatpush1.msra.mxu0 0.0
    %4271 = vmatprep.subr.mxu0 0.0
    %4272 = vmatpush1.msra.mxu0 0.0
    %4273 = vmatprep.subr.mxu0 0.0
    %4274 = vmatpush1.msra.mxu0 0.0
    %4275 = vmatprep.subr.mxu0 0.0
    %4276 = vmatpush1.msra.mxu0 0.0
    %4277 = vmatprep.subr.mxu0 0.0
    %4278 = vmatpush1.msra.mxu0 0.0
    %4279 = vmatprep.subr.mxu0 0.0
    %4280 = vmatpush1.msra.mxu0 0.0
    %4281 = vmatprep.subr.mxu0 0.0
    %4282 = vmatpush1.msra.mxu0 0.0
    %4283 = vmatprep.subr.mxu0 0.0
    %4284 = vmatpush1.msra.mxu0 0.0
    %4285 = vmatprep.subr.mxu0 0.0
    %4286 = vmatpush1.msra.mxu0 0.0
    %4287 = vmatprep.subr.mxu0 0.0
    %4288 = vmatpush1.msra.mxu0 0.0
    %4289 = vmatprep.subr.mxu0 0.0
    %4290 = vmatpush1.msra.mxu0 0.0
    %4291 = vmatprep.subr.mxu0 0.0
    %4292 = vmatpush1.msra.mxu0 0.0
    %4293 = vmatprep.subr.mxu0 0.0
    %4294 = vmatpush1.msra.mxu0 0.0
    %4295 = vmatprep.subr.mxu0 0.0
    %4296 = vmatpush1.msra.mxu0 0.0
    %4297 = vmatprep.subr.mxu0 0.0
    %4298 = vmatpush1.msra.mxu0 0.0
    %4299 = vmatprep.subr.mxu0 0.0
    %4300 = vmatpush1.msra.mxu0 0.0
    %4301 = vmatprep.subr.mxu0 0.0
    %4302 = vmatpush1.msra.mxu0 0.0
    %4303 = vmatprep.subr.mxu0 0.0
    %4304 = vmatpush1.msra.mxu0 0.0
    %4305 = vmatprep.subr.mxu0 0.0
    %4306 = vmatpush1.msra.mxu0 0.0
    %4307 = vmatprep.subr.mxu0 0.0
    %4308 = vmatpush1.msra.mxu0 0.0
    %4309 = vmatprep.subr.mxu0 0.0
    %4310 = vmatpush1.msra.mxu0 0.0
    %4311 = vmatprep.mubr.f32.mxu0 0.0
    %v4312 = vand.u32 %v4145, 4294901760
    %4313 = vmatmul.mubr.f32.gmra.mrb[0].mxu0 %v4312
    %v4314 = vpop.f32.mrb[0].mxu0
    %v4315 = vadd.f32 %v4224, %v4314
    %v4316 = vpop.f32.mrb[0].mxu0
    %4317 = vmatprep.mubr.f32.mxu0 0.0
    %v4318 = vand.u32 %v4148, 4294901760
    %4319 = vmatmul.mubr.f32.gmra.mrb[0].mxu0 %v4318
    %v4320 = vpop.f32.mrb[0].mxu0
    %v4321 = vadd.f32 %v4234, %v4320
    %v4322 = vpop.f32.mrb[0].mxu0
    %4323 = vdwg.mxu0
    %4324 = vmatprep.subr.mxu0 0.0
    %v4325 = vand.u32 %v4139, 4294901760
    %v4326 = vsub.f32 %v4139, %v4325
    %4327 = vmatpush1.msra.mxu0 %v4326
    %4328 = vmatprep.subr.mxu0 0.0
    %v4329 = vand.u32 %v4141, 4294901760
    %v4330 = vsub.f32 %v4141, %v4329
    %4331 = vmatpush1.msra.mxu0 %v4330
    %4332 = vmatprep.subr.mxu0 0.0
    %4333 = vmatpush1.msra.mxu0 0.0
    %4334 = vmatprep.subr.mxu0 0.0
    %4335 = vmatpush1.msra.mxu0 0.0
    %4336 = vmatprep.subr.mxu0 0.0
    %4337 = vmatpush1.msra.mxu0 0.0
    %4338 = vmatprep.subr.mxu0 0.0
    %4339 = vmatpush1.msra.mxu0 0.0
    %4340 = vmatprep.subr.mxu0 0.0
    %4341 = vmatpush1.msra.mxu0 0.0
    %4342 = vmatprep.subr.mxu0 0.0
    %4343 = vmatpush1.msra.mxu0 0.0
    %4344 = vmatprep.subr.mxu0 0.0
    %4345 = vmatpush1.msra.mxu0 0.0
    %4346 = vmatprep.subr.mxu0 0.0
    %4347 = vmatpush1.msra.mxu0 0.0
    %4348 = vmatprep.subr.mxu0 0.0
    %4349 = vmatpush1.msra.mxu0 0.0
    %4350 = vmatprep.subr.mxu0 0.0
    %4351 = vmatpush1.msra.mxu0 0.0
    %4352 = vmatprep.subr.mxu0 0.0
    %4353 = vmatpush1.msra.mxu0 0.0
    %4354 = vmatprep.subr.mxu0 0.0
    %4355 = vmatpush1.msra.mxu0 0.0
    %4356 = vmatprep.subr.mxu0 0.0
    %4357 = vmatpush1.msra.mxu0 0.0
    %4358 = vmatprep.subr.mxu0 0.0
    %4359 = vmatpush1.msra.mxu0 0.0
    %4360 = vmatprep.subr.mxu0 0.0
    %4361 = vmatpush1.msra.mxu0 0.0
    %4362 = vmatprep.subr.mxu0 0.0
    %4363 = vmatpush1.msra.mxu0 0.0
    %4364 = vmatprep.subr.mxu0 0.0
    %4365 = vmatpush1.msra.mxu0 0.0
    %4366 = vmatprep.subr.mxu0 0.0
    %4367 = vmatpush1.msra.mxu0 0.0
    %4368 = vmatprep.subr.mxu0 0.0
    %4369 = vmatpush1.msra.mxu0 0.0
    %4370 = vmatprep.subr.mxu0 0.0
    %4371 = vmatpush1.msra.mxu0 0.0
    %4372 = vmatprep.subr.mxu0 0.0
    %4373 = vmatpush1.msra.mxu0 0.0
    %4374 = vmatprep.subr.mxu0 0.0
    %4375 = vmatpush1.msra.mxu0 0.0
    %4376 = vmatprep.subr.mxu0 0.0
    %4377 = vmatpush1.msra.mxu0 0.0
    %4378 = vmatprep.subr.mxu0 0.0
    %4379 = vmatpush1.msra.mxu0 0.0
    %4380 = vmatprep.subr.mxu0 0.0
    %4381 = vmatpush1.msra.mxu0 0.0
    %4382 = vmatprep.subr.mxu0 0.0
    %4383 = vmatpush1.msra.mxu0 0.0
    %4384 = vmatprep.subr.mxu0 0.0
    %4385 = vmatpush1.msra.mxu0 0.0
    %4386 = vmatprep.subr.mxu0 0.0
    %4387 = vmatpush1.msra.mxu0 0.0
    %4388 = vmatprep.subr.mxu0 0.0
    %4389 = vmatpush1.msra.mxu0 0.0
    %4390 = vmatprep.subr.mxu0 0.0
    %4391 = vmatpush1.msra.mxu0 0.0
    %4392 = vmatprep.mubr.f32.mxu0 0.0
    %v4393 = vand.u32 %v4145, 4294901760
    %v4394 = vsub.f32 %v4145, %v4393
    %4395 = vmatmul.mubr.f32.gmra.mrb[0].mxu0 %v4394
    %v4396 = vpop.f32.mrb[0].mxu0
    %v4397 = vadd.f32 %v4315, %v4396
    %v4398 = vpop.f32.mrb[0].mxu0
    %4399 = vmatprep.mubr.f32.mxu0 0.0
    %v4400 = vand.u32 %v4148, 4294901760
    %v4401 = vsub.f32 %v4148, %v4400
    %4402 = vmatmul.mubr.f32.gmra.mrb[0].mxu0 %v4401
    %v4403 = vpop.f32.mrb[0].mxu0
    %v4404 = vadd.f32 %v4321, %v4403
    %v4405 = vpop.f32.mrb[0].mxu0
    %4406 = vdwg.mxu0
    %4407 = vmatprep.subr.mxu0 0.0
    %v4408 = vand.u32 %v4139, 4294901760
    %4409 = vmatpush1.msra.mxu0 %v4408
    %4410 = vmatprep.subr.mxu0 0.0
    %v4411 = vand.u32 %v4141, 4294901760
    %4412 = vmatpush1.msra.mxu0 %v4411
    %4413 = vmatprep.subr.mxu0 0.0
    %4414 = vmatpush1.msra.mxu0 0.0
    %4415 = vmatprep.subr.mxu0 0.0
    %4416 = vmatpush1.msra.mxu0 0.0
    %4417 = vmatprep.subr.mxu0 0.0
    %4418 = vmatpush1.msra.mxu0 0.0
    %4419 = vmatprep.subr.mxu0 0.0
    %4420 = vmatpush1.msra.mxu0 0.0
    %4421 = vmatprep.subr.mxu0 0.0
    %4422 = vmatpush1.msra.mxu0 0.0
    %4423 = vmatprep.subr.mxu0 0.0
    %4424 = vmatpush1.msra.mxu0 0.0
    %4425 = vmatprep.subr.mxu0 0.0
    %4426 = vmatpush1.msra.mxu0 0.0
    %4427 = vmatprep.subr.mxu0 0.0
    %4428 = vmatpush1.msra.mxu0 0.0
    %4429 = vmatprep.subr.mxu0 0.0
    %4430 = vmatpush1.msra.mxu0 0.0
    %4431 = vmatprep.subr.mxu0 0.0
    %4432 = vmatpush1.msra.mxu0 0.0
    %4433 = vmatprep.subr.mxu0 0.0
    %4434 = vmatpush1.msra.mxu0 0.0
    %4435 = vmatprep.subr.mxu0 0.0
    %4436 = vmatpush1.msra.mxu0 0.0
    %4437 = vmatprep.subr.mxu0 0.0
    %4438 = vmatpush1.msra.mxu0 0.0
    %4439 = vmatprep.subr.mxu0 0.0
    %4440 = vmatpush1.msra.mxu0 0.0
    %4441 = vmatprep.subr.mxu0 0.0
    %4442 = vmatpush1.msra.mxu0 0.0
    %4443 = vmatprep.subr.mxu0 0.0
    %4444 = vmatpush1.msra.mxu0 0.0
    %4445 = vmatprep.subr.mxu0 0.0
    %4446 = vmatpush1.msra.mxu0 0.0
    %4447 = vmatprep.subr.mxu0 0.0
    %4448 = vmatpush1.msra.mxu0 0.0
    %4449 = vmatprep.subr.mxu0 0.0
    %4450 = vmatpush1.msra.mxu0 0.0
    %4451 = vmatprep.subr.mxu0 0.0
    %4452 = vmatpush1.msra.mxu0 0.0
    %4453 = vmatprep.subr.mxu0 0.0
    %4454 = vmatpush1.msra.mxu0 0.0
    %4455 = vmatprep.subr.mxu0 0.0
    %4456 = vmatpush1.msra.mxu0 0.0
    %4457 = vmatprep.subr.mxu0 0.0
    %4458 = vmatpush1.msra.mxu0 0.0
    %4459 = vmatprep.subr.mxu0 0.0
    %4460 = vmatpush1.msra.mxu0 0.0
    %4461 = vmatprep.subr.mxu0 0.0
    %4462 = vmatpush1.msra.mxu0 0.0
    %4463 = vmatprep.subr.mxu0 0.0
    %4464 = vmatpush1.msra.mxu0 0.0
    %4465 = vmatprep.subr.mxu0 0.0
    %4466 = vmatpush1.msra.mxu0 0.0
    %4467 = vmatprep.subr.mxu0 0.0
    %4468 = vmatpush1.msra.mxu0 0.0
    %4469 = vmatprep.subr.mxu0 0.0
    %4470 = vmatpush1.msra.mxu0 0.0
    %4471 = vmatprep.subr.mxu0 0.0
    %4472 = vmatpush1.msra.mxu0 0.0
    %4473 = vmatprep.mubr.f32.mxu0 0.0
    %v4474 = vand.u32 %v4145, 4294901760
    %v4475 = vsub.f32 %v4145, %v4474
    %v4476 = vand.u32 %v4475, 4294901760
    %4477 = vmatmul.mubr.f32.gmra.mrb[0].mxu0 %v4476
    %v4478 = vpop.f32.mrb[0].mxu0
    %v4479 = vadd.f32 %v4397, %v4478
    %v4480 = vpop.f32.mrb[0].mxu0
    %4481 = vmatprep.mubr.f32.mxu0 0.0
    %v4482 = vand.u32 %v4148, 4294901760
    %v4483 = vsub.f32 %v4148, %v4482
    %v4484 = vand.u32 %v4483, 4294901760
    %4485 = vmatmul.mubr.f32.gmra.mrb[0].mxu0 %v4484
    %v4486 = vpop.f32.mrb[0].mxu0
    %v4487 = vadd.f32 %v4404, %v4486
    %v4488 = vpop.f32.mrb[0].mxu0
    %4489 = vdwg.mxu0
    %4490 = vmatprep.subr.mxu0 0.0
    %v4491 = vand.u32 %v4139, 4294901760
    %v4492 = vsub.f32 %v4139, %v4491
    %v4493 = vand.u32 %v4492, 4294901760
    %4494 = vmatpush1.msra.mxu0 %v4493
    %4495 = vmatprep.subr.mxu0 0.0
    %v4496 = vand.u32 %v4141, 4294901760
    %v4497 = vsub.f32 %v4141, %v4496
    %v4498 = vand.u32 %v4497, 4294901760
    %4499 = vmatpush1.msra.mxu0 %v4498
    %4500 = vmatprep.subr.mxu0 0.0
    %4501 = vmatpush1.msra.mxu0 0.0
    %4502 = vmatprep.subr.mxu0 0.0
    %4503 = vmatpush1.msra.mxu0 0.0
    %4504 = vmatprep.subr.mxu0 0.0
    %4505 = vmatpush1.msra.mxu0 0.0
    %4506 = vmatprep.subr.mxu0 0.0
    %4507 = vmatpush1.msra.mxu0 0.0
    %4508 = vmatprep.subr.mxu0 0.0
    %4509 = vmatpush1.msra.mxu0 0.0
    %4510 = vmatprep.subr.mxu0 0.0
    %4511 = vmatpush1.msra.mxu0 0.0
    %4512 = vmatprep.subr.mxu0 0.0
    %4513 = vmatpush1.msra.mxu0 0.0
    %4514 = vmatprep.subr.mxu0 0.0
    %4515 = vmatpush1.msra.mxu0 0.0
    %4516 = vmatprep.subr.mxu0 0.0
    %4517 = vmatpush1.msra.mxu0 0.0
    %4518 = vmatprep.subr.mxu0 0.0
    %4519 = vmatpush1.msra.mxu0 0.0
    %4520 = vmatprep.subr.mxu0 0.0
    %4521 = vmatpush1.msra.mxu0 0.0
    %4522 = vmatprep.subr.mxu0 0.0
    %4523 = vmatpush1.msra.mxu0 0.0
    %4524 = vmatprep.subr.mxu0 0.0
    %4525 = vmatpush1.msra.mxu0 0.0
    %4526 = vmatprep.subr.mxu0 0.0
    %4527 = vmatpush1.msra.mxu0 0.0
    %4528 = vmatprep.subr.mxu0 0.0
    %4529 = vmatpush1.msra.mxu0 0.0
    %4530 = vmatprep.subr.mxu0 0.0
    %4531 = vmatpush1.msra.mxu0 0.0
    %4532 = vmatprep.subr.mxu0 0.0
    %4533 = vmatpush1.msra.mxu0 0.0
    %4534 = vmatprep.subr.mxu0 0.0
    %4535 = vmatpush1.msra.mxu0 0.0
    %4536 = vmatprep.subr.mxu0 0.0
    %4537 = vmatpush1.msra.mxu0 0.0
    %4538 = vmatprep.subr.mxu0 0.0
    %4539 = vmatpush1.msra.mxu0 0.0
    %4540 = vmatprep.subr.mxu0 0.0
    %4541 = vmatpush1.msra.mxu0 0.0
    %4542 = vmatprep.subr.mxu0 0.0
    %4543 = vmatpush1.msra.mxu0 0.0
    %4544 = vmatprep.subr.mxu0 0.0
    %4545 = vmatpush1.msra.mxu0 0.0
    %4546 = vmatprep.subr.mxu0 0.0
    %4547 = vmatpush1.msra.mxu0 0.0
    %4548 = vmatprep.subr.mxu0 0.0
    %4549 = vmatpush1.msra.mxu0 0.0
    %4550 = vmatprep.subr.mxu0 0.0
    %4551 = vmatpush1.msra.mxu0 0.0
    %4552 = vmatprep.subr.mxu0 0.0
    %4553 = vmatpush1.msra.mxu0 0.0
    %4554 = vmatprep.subr.mxu0 0.0
    %4555 = vmatpush1.msra.mxu0 0.0
    %4556 = vmatprep.subr.mxu0 0.0
    %4557 = vmatpush1.msra.mxu0 0.0
    %4558 = vmatprep.subr.mxu0 0.0
    %4559 = vmatpush1.msra.mxu0 0.0
    %4560 = vmatprep.mubr.f32.mxu0 0.0
    %v4561 = vand.u32 %v4145, 4294901760
    %4562 = vmatmul.mubr.f32.gmra.mrb[0].mxu0 %v4561
    %v4563 = vpop.f32.mrb[0].mxu0
    %v4564 = vadd.f32 %v4479, %v4563
    %v4565 = vpop.f32.mrb[0].mxu0
    %4566 = vmatprep.mubr.f32.mxu0 0.0
    %v4567 = vand.u32 %v4148, 4294901760
    %4568 = vmatmul.mubr.f32.gmra.mrb[0].mxu0 %v4567
    %v4569 = vpop.f32.mrb[0].mxu0
    %v4570 = vadd.f32 %v4487, %v4569
    %v4571 = vpop.f32.mrb[0].mxu0
    %4572 = vdwg.mxu0
    %4573 = vmatprep.subr.mxu0 0.0
    %v4574 = vand.u32 %v4139, 4294901760
    %4575 = vmatpush1.msra.mxu0 %v4574
    %4576 = vmatprep.subr.mxu0 0.0
    %v4577 = vand.u32 %v4141, 4294901760
    %4578 = vmatpush1.msra.mxu0 %v4577
    %4579 = vmatprep.subr.mxu0 0.0
    %4580 = vmatpush1.msra.mxu0 0.0
    %4581 = vmatprep.subr.mxu0 0.0
    %4582 = vmatpush1.msra.mxu0 0.0
    %4583 = vmatprep.subr.mxu0 0.0
    %4584 = vmatpush1.msra.mxu0 0.0
    %4585 = vmatprep.subr.mxu0 0.0
    %4586 = vmatpush1.msra.mxu0 0.0
    %4587 = vmatprep.subr.mxu0 0.0
    %4588 = vmatpush1.msra.mxu0 0.0
    %4589 = vmatprep.subr.mxu0 0.0
    %4590 = vmatpush1.msra.mxu0 0.0
    %4591 = vmatprep.subr.mxu0 0.0
    %4592 = vmatpush1.msra.mxu0 0.0
    %4593 = vmatprep.subr.mxu0 0.0
    %4594 = vmatpush1.msra.mxu0 0.0
    %4595 = vmatprep.subr.mxu0 0.0
    %4596 = vmatpush1.msra.mxu0 0.0
    %4597 = vmatprep.subr.mxu0 0.0
    %4598 = vmatpush1.msra.mxu0 0.0
    %4599 = vmatprep.subr.mxu0 0.0
    %4600 = vmatpush1.msra.mxu0 0.0
    %4601 = vmatprep.subr.mxu0 0.0
    %4602 = vmatpush1.msra.mxu0 0.0
    %4603 = vmatprep.subr.mxu0 0.0
    %4604 = vmatpush1.msra.mxu0 0.0
    %4605 = vmatprep.subr.mxu0 0.0
    %4606 = vmatpush1.msra.mxu0 0.0
    %4607 = vmatprep.subr.mxu0 0.0
    %4608 = vmatpush1.msra.mxu0 0.0
    %4609 = vmatprep.subr.mxu0 0.0
    %4610 = vmatpush1.msra.mxu0 0.0
    %4611 = vmatprep.subr.mxu0 0.0
    %4612 = vmatpush1.msra.mxu0 0.0
    %4613 = vmatprep.subr.mxu0 0.0
    %4614 = vmatpush1.msra.mxu0 0.0
    %4615 = vmatprep.subr.mxu0 0.0
    %4616 = vmatpush1.msra.mxu0 0.0
    %4617 = vmatprep.subr.mxu0 0.0
    %4618 = vmatpush1.msra.mxu0 0.0
    %4619 = vmatprep.subr.mxu0 0.0
    %4620 = vmatpush1.msra.mxu0 0.0
    %4621 = vmatprep.subr.mxu0 0.0
    %4622 = vmatpush1.msra.mxu0 0.0
    %4623 = vmatprep.subr.mxu0 0.0
    %4624 = vmatpush1.msra.mxu0 0.0
    %4625 = vmatprep.subr.mxu0 0.0
    %4626 = vmatpush1.msra.mxu0 0.0
    %4627 = vmatprep.subr.mxu0 0.0
    %4628 = vmatpush1.msra.mxu0 0.0
    %4629 = vmatprep.subr.mxu0 0.0
    %4630 = vmatpush1.msra.mxu0 0.0
    %4631 = vmatprep.subr.mxu0 0.0
    %4632 = vmatpush1.msra.mxu0 0.0
    %4633 = vmatprep.subr.mxu0 0.0
    %4634 = vmatpush1.msra.mxu0 0.0
    %4635 = vmatprep.subr.mxu0 0.0
    %4636 = vmatpush1.msra.mxu0 0.0
    %4637 = vmatprep.subr.mxu0 0.0
    %4638 = vmatpush1.msra.mxu0 0.0
    %4639 = vmatprep.mubr.f32.mxu0 0.0
    %v4640 = vand.u32 %v4145, 4294901760
    %4641 = vmatmul.mubr.f32.gmra.mrb[0].mxu0 %v4640
    %v4642 = vpop.f32.mrb[0].mxu0
    %v4643 = vadd.f32 %v4564, %v4642
    %v4644 = vpop.f32.mrb[0].mxu0
    %4645 = vmatprep.mubr.f32.mxu0 0.0
    %v4646 = vand.u32 %v4148, 4294901760
    %4647 = vmatmul.mubr.f32.gmra.mrb[0].mxu0 %v4646
    %v4648 = vpop.f32.mrb[0].mxu0
    %v4649 = vadd.f32 %v4570, %v4648
    %v4650 = vpop.f32.mrb[0].mxu0
    %4651 = vdwg.mxu0
    %v4652 = vld [vmem:[%s3099] sm:$0xff]
    %v4653 = vld [vmem:[%s3099 + $0x8] sm:$0xff]
    %4654 = vrot.lane.b32.xlu0 %v2068, 96
    %v4655 = vpop.permute.xlu0 %4654
    %4656 = vrot.lane.b32.xlu0 %v2069, 96
    %v4657 = vpop.permute.xlu0 %4656
    %v4661 = vsel %vm895, %v4652, 0
    %v4664 = vsel %vm895, %v4653, 0
    %4666 = vmatprep.subr.mxu0 0.0
    %v4667 = vand.u32 %v4655, 4294901760
    %4668 = vmatpush1.msra.mxu0 %v4667
    %4669 = vmatprep.subr.mxu0 0.0
    %v4670 = vand.u32 %v4657, 4294901760
    %4671 = vmatpush1.msra.mxu0 %v4670
    %4672 = vmatprep.subr.mxu0 0.0
    %4673 = vmatpush1.msra.mxu0 0.0
    %4674 = vmatprep.subr.mxu0 0.0
    %4675 = vmatpush1.msra.mxu0 0.0
    %4676 = vmatprep.subr.mxu0 0.0
    %4677 = vmatpush1.msra.mxu0 0.0
    %4678 = vmatprep.subr.mxu0 0.0
    %4679 = vmatpush1.msra.mxu0 0.0
    %4680 = vmatprep.subr.mxu0 0.0
    %4681 = vmatpush1.msra.mxu0 0.0
    %4682 = vmatprep.subr.mxu0 0.0
    %4683 = vmatpush1.msra.mxu0 0.0
    %4684 = vmatprep.subr.mxu0 0.0
    %4685 = vmatpush1.msra.mxu0 0.0
    %4686 = vmatprep.subr.mxu0 0.0
    %4687 = vmatpush1.msra.mxu0 0.0
    %4688 = vmatprep.subr.mxu0 0.0
    %4689 = vmatpush1.msra.mxu0 0.0
    %4690 = vmatprep.subr.mxu0 0.0
    %4691 = vmatpush1.msra.mxu0 0.0
    %4692 = vmatprep.subr.mxu0 0.0
    %4693 = vmatpush1.msra.mxu0 0.0
    %4694 = vmatprep.subr.mxu0 0.0
    %4695 = vmatpush1.msra.mxu0 0.0
    %4696 = vmatprep.subr.mxu0 0.0
    %4697 = vmatpush1.msra.mxu0 0.0
    %4698 = vmatprep.subr.mxu0 0.0
    %4699 = vmatpush1.msra.mxu0 0.0
    %4700 = vmatprep.subr.mxu0 0.0
    %4701 = vmatpush1.msra.mxu0 0.0
    %4702 = vmatprep.subr.mxu0 0.0
    %4703 = vmatpush1.msra.mxu0 0.0
    %4704 = vmatprep.subr.mxu0 0.0
    %4705 = vmatpush1.msra.mxu0 0.0
    %4706 = vmatprep.subr.mxu0 0.0
    %4707 = vmatpush1.msra.mxu0 0.0
    %4708 = vmatprep.subr.mxu0 0.0
    %4709 = vmatpush1.msra.mxu0 0.0
    %4710 = vmatprep.subr.mxu0 0.0
    %4711 = vmatpush1.msra.mxu0 0.0
    %4712 = vmatprep.subr.mxu0 0.0
    %4713 = vmatpush1.msra.mxu0 0.0
    %4714 = vmatprep.subr.mxu0 0.0
    %4715 = vmatpush1.msra.mxu0 0.0
    %4716 = vmatprep.subr.mxu0 0.0
    %4717 = vmatpush1.msra.mxu0 0.0
    %4718 = vmatprep.subr.mxu0 0.0
    %4719 = vmatpush1.msra.mxu0 0.0
    %4720 = vmatprep.subr.mxu0 0.0
    %4721 = vmatpush1.msra.mxu0 0.0
    %4722 = vmatprep.subr.mxu0 0.0
    %4723 = vmatpush1.msra.mxu0 0.0
    %4724 = vmatprep.subr.mxu0 0.0
    %4725 = vmatpush1.msra.mxu0 0.0
    %4726 = vmatprep.subr.mxu0 0.0
    %4727 = vmatpush1.msra.mxu0 0.0
    %4728 = vmatprep.subr.mxu0 0.0
    %4729 = vmatpush1.msra.mxu0 0.0
    %4730 = vmatprep.subr.mxu0 0.0
    %4731 = vmatpush1.msra.mxu0 0.0
    %4732 = vmatprep.mubr.f32.mxu0 0.0
    %v4733 = vand.u32 %v4661, 4294901760
    %v4734 = vsub.f32 %v4661, %v4733
    %v4735 = vand.u32 %v4734, 4294901760
    %v4736 = vsub.f32 %v4734, %v4735
    %v4737 = vand.u32 %v4736, 4294901760
    %4738 = vmatmul.mubr.f32.gmra.mrb[0].mxu0 %v4737
    %v4739 = vpop.f32.mrb[0].mxu0
    %v4740 = vadd.f32 0.0, %v4739
    %v4741 = vpop.f32.mrb[0].mxu0
    %4742 = vmatprep.mubr.f32.mxu0 0.0
    %v4743 = vand.u32 %v4664, 4294901760
    %v4744 = vsub.f32 %v4664, %v4743
    %v4745 = vand.u32 %v4744, 4294901760
    %v4746 = vsub.f32 %v4744, %v4745
    %v4747 = vand.u32 %v4746, 4294901760
    %4748 = vmatmul.mubr.f32.gmra.mrb[0].mxu0 %v4747
    %v4749 = vpop.f32.mrb[0].mxu0
    %v4750 = vadd.f32 0.0, %v4749
    %v4751 = vpop.f32.mrb[0].mxu0
    %4752 = vdwg.mxu0
    %4753 = vmatprep.subr.mxu0 0.0
    %v4754 = vand.u32 %v4655, 4294901760
    %v4755 = vsub.f32 %v4655, %v4754
    %v4756 = vand.u32 %v4755, 4294901760
    %v4757 = vsub.f32 %v4755, %v4756
    %v4758 = vand.u32 %v4757, 4294901760
    %4759 = vmatpush1.msra.mxu0 %v4758
    %4760 = vmatprep.subr.mxu0 0.0
    %v4761 = vand.u32 %v4657, 4294901760
    %v4762 = vsub.f32 %v4657, %v4761
    %v4763 = vand.u32 %v4762, 4294901760
    %v4764 = vsub.f32 %v4762, %v4763
    %v4765 = vand.u32 %v4764, 4294901760
    %4766 = vmatpush1.msra.mxu0 %v4765
    %4767 = vmatprep.subr.mxu0 0.0
    %4768 = vmatpush1.msra.mxu0 0.0
    %4769 = vmatprep.subr.mxu0 0.0
    %4770 = vmatpush1.msra.mxu0 0.0
    %4771 = vmatprep.subr.mxu0 0.0
    %4772 = vmatpush1.msra.mxu0 0.0
    %4773 = vmatprep.subr.mxu0 0.0
    %4774 = vmatpush1.msra.mxu0 0.0
    %4775 = vmatprep.subr.mxu0 0.0
    %4776 = vmatpush1.msra.mxu0 0.0
    %4777 = vmatprep.subr.mxu0 0.0
    %4778 = vmatpush1.msra.mxu0 0.0
    %4779 = vmatprep.subr.mxu0 0.0
    %4780 = vmatpush1.msra.mxu0 0.0
    %4781 = vmatprep.subr.mxu0 0.0
    %4782 = vmatpush1.msra.mxu0 0.0
    %4783 = vmatprep.subr.mxu0 0.0
    %4784 = vmatpush1.msra.mxu0 0.0
    %4785 = vmatprep.subr.mxu0 0.0
    %4786 = vmatpush1.msra.mxu0 0.0
    %4787 = vmatprep.subr.mxu0 0.0
    %4788 = vmatpush1.msra.mxu0 0.0
    %4789 = vmatprep.subr.mxu0 0.0
    %4790 = vmatpush1.msra.mxu0 0.0
    %4791 = vmatprep.subr.mxu0 0.0
    %4792 = vmatpush1.msra.mxu0 0.0
    %4793 = vmatprep.subr.mxu0 0.0
    %4794 = vmatpush1.msra.mxu0 0.0
    %4795 = vmatprep.subr.mxu0 0.0
    %4796 = vmatpush1.msra.mxu0 0.0
    %4797 = vmatprep.subr.mxu0 0.0
    %4798 = vmatpush1.msra.mxu0 0.0
    %4799 = vmatprep.subr.mxu0 0.0
    %4800 = vmatpush1.msra.mxu0 0.0
    %4801 = vmatprep.subr.mxu0 0.0
    %4802 = vmatpush1.msra.mxu0 0.0
    %4803 = vmatprep.subr.mxu0 0.0
    %4804 = vmatpush1.msra.mxu0 0.0
    %4805 = vmatprep.subr.mxu0 0.0
    %4806 = vmatpush1.msra.mxu0 0.0
    %4807 = vmatprep.subr.mxu0 0.0
    %4808 = vmatpush1.msra.mxu0 0.0
    %4809 = vmatprep.subr.mxu0 0.0
    %4810 = vmatpush1.msra.mxu0 0.0
    %4811 = vmatprep.subr.mxu0 0.0
    %4812 = vmatpush1.msra.mxu0 0.0
    %4813 = vmatprep.subr.mxu0 0.0
    %4814 = vmatpush1.msra.mxu0 0.0
    %4815 = vmatprep.subr.mxu0 0.0
    %4816 = vmatpush1.msra.mxu0 0.0
    %4817 = vmatprep.subr.mxu0 0.0
    %4818 = vmatpush1.msra.mxu0 0.0
    %4819 = vmatprep.subr.mxu0 0.0
    %4820 = vmatpush1.msra.mxu0 0.0
    %4821 = vmatprep.subr.mxu0 0.0
    %4822 = vmatpush1.msra.mxu0 0.0
    %4823 = vmatprep.subr.mxu0 0.0
    %4824 = vmatpush1.msra.mxu0 0.0
    %4825 = vmatprep.subr.mxu0 0.0
    %4826 = vmatpush1.msra.mxu0 0.0
    %4827 = vmatprep.mubr.f32.mxu0 0.0
    %v4828 = vand.u32 %v4661, 4294901760
    %4829 = vmatmul.mubr.f32.gmra.mrb[0].mxu0 %v4828
    %v4830 = vpop.f32.mrb[0].mxu0
    %v4831 = vadd.f32 %v4740, %v4830
    %v4832 = vpop.f32.mrb[0].mxu0
    %4833 = vmatprep.mubr.f32.mxu0 0.0
    %v4834 = vand.u32 %v4664, 4294901760
    %4835 = vmatmul.mubr.f32.gmra.mrb[0].mxu0 %v4834
    %v4836 = vpop.f32.mrb[0].mxu0
    %v4837 = vadd.f32 %v4750, %v4836
    %v4838 = vpop.f32.mrb[0].mxu0
    %4839 = vdwg.mxu0
    %4840 = vmatprep.subr.mxu0 0.0
    %v4841 = vand.u32 %v4655, 4294901760
    %v4842 = vsub.f32 %v4655, %v4841
    %4843 = vmatpush1.msra.mxu0 %v4842
    %4844 = vmatprep.subr.mxu0 0.0
    %v4845 = vand.u32 %v4657, 4294901760
    %v4846 = vsub.f32 %v4657, %v4845
    %4847 = vmatpush1.msra.mxu0 %v4846
    %4848 = vmatprep.subr.mxu0 0.0
    %4849 = vmatpush1.msra.mxu0 0.0
    %4850 = vmatprep.subr.mxu0 0.0
    %4851 = vmatpush1.msra.mxu0 0.0
    %4852 = vmatprep.subr.mxu0 0.0
    %4853 = vmatpush1.msra.mxu0 0.0
    %4854 = vmatprep.subr.mxu0 0.0
    %4855 = vmatpush1.msra.mxu0 0.0
    %4856 = vmatprep.subr.mxu0 0.0
    %4857 = vmatpush1.msra.mxu0 0.0
    %4858 = vmatprep.subr.mxu0 0.0
    %4859 = vmatpush1.msra.mxu0 0.0
    %4860 = vmatprep.subr.mxu0 0.0
    %4861 = vmatpush1.msra.mxu0 0.0
    %4862 = vmatprep.subr.mxu0 0.0
    %4863 = vmatpush1.msra.mxu0 0.0
    %4864 = vmatprep.subr.mxu0 0.0
    %4865 = vmatpush1.msra.mxu0 0.0
    %4866 = vmatprep.subr.mxu0 0.0
    %4867 = vmatpush1.msra.mxu0 0.0
    %4868 = vmatprep.subr.mxu0 0.0
    %4869 = vmatpush1.msra.mxu0 0.0
    %4870 = vmatprep.subr.mxu0 0.0
    %4871 = vmatpush1.msra.mxu0 0.0
    %4872 = vmatprep.subr.mxu0 0.0
    %4873 = vmatpush1.msra.mxu0 0.0
    %4874 = vmatprep.subr.mxu0 0.0
    %4875 = vmatpush1.msra.mxu0 0.0
    %4876 = vmatprep.subr.mxu0 0.0
    %4877 = vmatpush1.msra.mxu0 0.0
    %4878 = vmatprep.subr.mxu0 0.0
    %4879 = vmatpush1.msra.mxu0 0.0
    %4880 = vmatprep.subr.mxu0 0.0
    %4881 = vmatpush1.msra.mxu0 0.0
    %4882 = vmatprep.subr.mxu0 0.0
    %4883 = vmatpush1.msra.mxu0 0.0
    %4884 = vmatprep.subr.mxu0 0.0
    %4885 = vmatpush1.msra.mxu0 0.0
    %4886 = vmatprep.subr.mxu0 0.0
    %4887 = vmatpush1.msra.mxu0 0.0
    %4888 = vmatprep.subr.mxu0 0.0
    %4889 = vmatpush1.msra.mxu0 0.0
    %4890 = vmatprep.subr.mxu0 0.0
    %4891 = vmatpush1.msra.mxu0 0.0
    %4892 = vmatprep.subr.mxu0 0.0
    %4893 = vmatpush1.msra.mxu0 0.0
    %4894 = vmatprep.subr.mxu0 0.0
    %4895 = vmatpush1.msra.mxu0 0.0
    %4896 = vmatprep.subr.mxu0 0.0
    %4897 = vmatpush1.msra.mxu0 0.0
    %4898 = vmatprep.subr.mxu0 0.0
    %4899 = vmatpush1.msra.mxu0 0.0
    %4900 = vmatprep.subr.mxu0 0.0
    %4901 = vmatpush1.msra.mxu0 0.0
    %4902 = vmatprep.subr.mxu0 0.0
    %4903 = vmatpush1.msra.mxu0 0.0
    %4904 = vmatprep.subr.mxu0 0.0
    %4905 = vmatpush1.msra.mxu0 0.0
    %4906 = vmatprep.subr.mxu0 0.0
    %4907 = vmatpush1.msra.mxu0 0.0
    %4908 = vmatprep.mubr.f32.mxu0 0.0
    %v4909 = vand.u32 %v4661, 4294901760
    %v4910 = vsub.f32 %v4661, %v4909
    %4911 = vmatmul.mubr.f32.gmra.mrb[0].mxu0 %v4910
    %v4912 = vpop.f32.mrb[0].mxu0
    %v4913 = vadd.f32 %v4831, %v4912
    %v4914 = vpop.f32.mrb[0].mxu0
    %4915 = vmatprep.mubr.f32.mxu0 0.0
    %v4916 = vand.u32 %v4664, 4294901760
    %v4917 = vsub.f32 %v4664, %v4916
    %4918 = vmatmul.mubr.f32.gmra.mrb[0].mxu0 %v4917
    %v4919 = vpop.f32.mrb[0].mxu0
    %v4920 = vadd.f32 %v4837, %v4919
    %v4921 = vpop.f32.mrb[0].mxu0
    %4922 = vdwg.mxu0
    %4923 = vmatprep.subr.mxu0 0.0
    %v4924 = vand.u32 %v4655, 4294901760
    %4925 = vmatpush1.msra.mxu0 %v4924
    %4926 = vmatprep.subr.mxu0 0.0
    %v4927 = vand.u32 %v4657, 4294901760
    %4928 = vmatpush1.msra.mxu0 %v4927
    %4929 = vmatprep.subr.mxu0 0.0
    %4930 = vmatpush1.msra.mxu0 0.0
    %4931 = vmatprep.subr.mxu0 0.0
    %4932 = vmatpush1.msra.mxu0 0.0
    %4933 = vmatprep.subr.mxu0 0.0
    %4934 = vmatpush1.msra.mxu0 0.0
    %4935 = vmatprep.subr.mxu0 0.0
    %4936 = vmatpush1.msra.mxu0 0.0
    %4937 = vmatprep.subr.mxu0 0.0
    %4938 = vmatpush1.msra.mxu0 0.0
    %4939 = vmatprep.subr.mxu0 0.0
    %4940 = vmatpush1.msra.mxu0 0.0
    %4941 = vmatprep.subr.mxu0 0.0
    %4942 = vmatpush1.msra.mxu0 0.0
    %4943 = vmatprep.subr.mxu0 0.0
    %4944 = vmatpush1.msra.mxu0 0.0
    %4945 = vmatprep.subr.mxu0 0.0
    %4946 = vmatpush1.msra.mxu0 0.0
    %4947 = vmatprep.subr.mxu0 0.0
    %4948 = vmatpush1.msra.mxu0 0.0
    %4949 = vmatprep.subr.mxu0 0.0
    %4950 = vmatpush1.msra.mxu0 0.0
    %4951 = vmatprep.subr.mxu0 0.0
    %4952 = vmatpush1.msra.mxu0 0.0
    %4953 = vmatprep.subr.mxu0 0.0
    %4954 = vmatpush1.msra.mxu0 0.0
    %4955 = vmatprep.subr.mxu0 0.0
    %4956 = vmatpush1.msra.mxu0 0.0
    %4957 = vmatprep.subr.mxu0 0.0
    %4958 = vmatpush1.msra.mxu0 0.0
    %4959 = vmatprep.subr.mxu0 0.0
    %4960 = vmatpush1.msra.mxu0 0.0
    %4961 = vmatprep.subr.mxu0 0.0
    %4962 = vmatpush1.msra.mxu0 0.0
    %4963 = vmatprep.subr.mxu0 0.0
    %4964 = vmatpush1.msra.mxu0 0.0
    %4965 = vmatprep.subr.mxu0 0.0
    %4966 = vmatpush1.msra.mxu0 0.0
    %4967 = vmatprep.subr.mxu0 0.0
    %4968 = vmatpush1.msra.mxu0 0.0
    %4969 = vmatprep.subr.mxu0 0.0
    %4970 = vmatpush1.msra.mxu0 0.0
    %4971 = vmatprep.subr.mxu0 0.0
    %4972 = vmatpush1.msra.mxu0 0.0
    %4973 = vmatprep.subr.mxu0 0.0
    %4974 = vmatpush1.msra.mxu0 0.0
    %4975 = vmatprep.subr.mxu0 0.0
    %4976 = vmatpush1.msra.mxu0 0.0
    %4977 = vmatprep.subr.mxu0 0.0
    %4978 = vmatpush1.msra.mxu0 0.0
    %4979 = vmatprep.subr.mxu0 0.0
    %4980 = vmatpush1.msra.mxu0 0.0
    %4981 = vmatprep.subr.mxu0 0.0
    %4982 = vmatpush1.msra.mxu0 0.0
    %4983 = vmatprep.subr.mxu0 0.0
    %4984 = vmatpush1.msra.mxu0 0.0
    %4985 = vmatprep.subr.mxu0 0.0
    %4986 = vmatpush1.msra.mxu0 0.0
    %4987 = vmatprep.subr.mxu0 0.0
    %4988 = vmatpush1.msra.mxu0 0.0
    %4989 = vmatprep.mubr.f32.mxu0 0.0
    %v4990 = vand.u32 %v4661, 4294901760
    %v4991 = vsub.f32 %v4661, %v4990
    %v4992 = vand.u32 %v4991, 4294901760
    %4993 = vmatmul.mubr.f32.gmra.mrb[0].mxu0 %v4992
    %v4994 = vpop.f32.mrb[0].mxu0
    %v4995 = vadd.f32 %v4913, %v4994
    %v4996 = vpop.f32.mrb[0].mxu0
    %4997 = vmatprep.mubr.f32.mxu0 0.0
    %v4998 = vand.u32 %v4664, 4294901760
    %v4999 = vsub.f32 %v4664, %v4998
    %v5000 = vand.u32 %v4999, 4294901760
    %5001 = vmatmul.mubr.f32.gmra.mrb[0].mxu0 %v5000
    %v5002 = vpop.f32.mrb[0].mxu0
    %v5003 = vadd.f32 %v4920, %v5002
    %v5004 = vpop.f32.mrb[0].mxu0
    %5005 = vdwg.mxu0
    %5006 = vmatprep.subr.mxu0 0.0
    %v5007 = vand.u32 %v4655, 4294901760
    %v5008 = vsub.f32 %v4655, %v5007
    %v5009 = vand.u32 %v5008, 4294901760
    %5010 = vmatpush1.msra.mxu0 %v5009
    %5011 = vmatprep.subr.mxu0 0.0
    %v5012 = vand.u32 %v4657, 4294901760
    %v5013 = vsub.f32 %v4657, %v5012
    %v5014 = vand.u32 %v5013, 4294901760
    %5015 = vmatpush1.msra.mxu0 %v5014
    %5016 = vmatprep.subr.mxu0 0.0
    %5017 = vmatpush1.msra.mxu0 0.0
    %5018 = vmatprep.subr.mxu0 0.0
    %5019 = vmatpush1.msra.mxu0 0.0
    %5020 = vmatprep.subr.mxu0 0.0
    %5021 = vmatpush1.msra.mxu0 0.0
    %5022 = vmatprep.subr.mxu0 0.0
    %5023 = vmatpush1.msra.mxu0 0.0
    %5024 = vmatprep.subr.mxu0 0.0
    %5025 = vmatpush1.msra.mxu0 0.0
    %5026 = vmatprep.subr.mxu0 0.0
    %5027 = vmatpush1.msra.mxu0 0.0
    %5028 = vmatprep.subr.mxu0 0.0
    %5029 = vmatpush1.msra.mxu0 0.0
    %5030 = vmatprep.subr.mxu0 0.0
    %5031 = vmatpush1.msra.mxu0 0.0
    %5032 = vmatprep.subr.mxu0 0.0
    %5033 = vmatpush1.msra.mxu0 0.0
    %5034 = vmatprep.subr.mxu0 0.0
    %5035 = vmatpush1.msra.mxu0 0.0
    %5036 = vmatprep.subr.mxu0 0.0
    %5037 = vmatpush1.msra.mxu0 0.0
    %5038 = vmatprep.subr.mxu0 0.0
    %5039 = vmatpush1.msra.mxu0 0.0
    %5040 = vmatprep.subr.mxu0 0.0
    %5041 = vmatpush1.msra.mxu0 0.0
    %5042 = vmatprep.subr.mxu0 0.0
    %5043 = vmatpush1.msra.mxu0 0.0
    %5044 = vmatprep.subr.mxu0 0.0
    %5045 = vmatpush1.msra.mxu0 0.0
    %5046 = vmatprep.subr.mxu0 0.0
    %5047 = vmatpush1.msra.mxu0 0.0
    %5048 = vmatprep.subr.mxu0 0.0
    %5049 = vmatpush1.msra.mxu0 0.0
    %5050 = vmatprep.subr.mxu0 0.0
    %5051 = vmatpush1.msra.mxu0 0.0
    %5052 = vmatprep.subr.mxu0 0.0
    %5053 = vmatpush1.msra.mxu0 0.0
    %5054 = vmatprep.subr.mxu0 0.0
    %5055 = vmatpush1.msra.mxu0 0.0
    %5056 = vmatprep.subr.mxu0 0.0
    %5057 = vmatpush1.msra.mxu0 0.0
    %5058 = vmatprep.subr.mxu0 0.0
    %5059 = vmatpush1.msra.mxu0 0.0
    %5060 = vmatprep.subr.mxu0 0.0
    %5061 = vmatpush1.msra.mxu0 0.0
    %5062 = vmatprep.subr.mxu0 0.0
    %5063 = vmatpush1.msra.mxu0 0.0
    %5064 = vmatprep.subr.mxu0 0.0
    %5065 = vmatpush1.msra.mxu0 0.0
    %5066 = vmatprep.subr.mxu0 0.0
    %5067 = vmatpush1.msra.mxu0 0.0
    %5068 = vmatprep.subr.mxu0 0.0
    %5069 = vmatpush1.msra.mxu0 0.0
    %5070 = vmatprep.subr.mxu0 0.0
    %5071 = vmatpush1.msra.mxu0 0.0
    %5072 = vmatprep.subr.mxu0 0.0
    %5073 = vmatpush1.msra.mxu0 0.0
    %5074 = vmatprep.subr.mxu0 0.0
    %5075 = vmatpush1.msra.mxu0 0.0
    %5076 = vmatprep.mubr.f32.mxu0 0.0
    %v5077 = vand.u32 %v4661, 4294901760
    %5078 = vmatmul.mubr.f32.gmra.mrb[0].mxu0 %v5077
    %v5079 = vpop.f32.mrb[0].mxu0
    %v5080 = vadd.f32 %v4995, %v5079
    %v5081 = vpop.f32.mrb[0].mxu0
    %5082 = vmatprep.mubr.f32.mxu0 0.0
    %v5083 = vand.u32 %v4664, 4294901760
    %5084 = vmatmul.mubr.f32.gmra.mrb[0].mxu0 %v5083
    %v5085 = vpop.f32.mrb[0].mxu0
    %v5086 = vadd.f32 %v5003, %v5085
    %v5087 = vpop.f32.mrb[0].mxu0
    %5088 = vdwg.mxu0
    %5089 = vmatprep.subr.mxu0 0.0
    %v5090 = vand.u32 %v4655, 4294901760
    %5091 = vmatpush1.msra.mxu0 %v5090
    %5092 = vmatprep.subr.mxu0 0.0
    %v5093 = vand.u32 %v4657, 4294901760
    %5094 = vmatpush1.msra.mxu0 %v5093
    %5095 = vmatprep.subr.mxu0 0.0
    %5096 = vmatpush1.msra.mxu0 0.0
    %5097 = vmatprep.subr.mxu0 0.0
    %5098 = vmatpush1.msra.mxu0 0.0
    %5099 = vmatprep.subr.mxu0 0.0
    %5100 = vmatpush1.msra.mxu0 0.0
    %5101 = vmatprep.subr.mxu0 0.0
    %5102 = vmatpush1.msra.mxu0 0.0
    %5103 = vmatprep.subr.mxu0 0.0
    %5104 = vmatpush1.msra.mxu0 0.0
    %5105 = vmatprep.subr.mxu0 0.0
    %5106 = vmatpush1.msra.mxu0 0.0
    %5107 = vmatprep.subr.mxu0 0.0
    %5108 = vmatpush1.msra.mxu0 0.0
    %5109 = vmatprep.subr.mxu0 0.0
    %5110 = vmatpush1.msra.mxu0 0.0
    %5111 = vmatprep.subr.mxu0 0.0
    %5112 = vmatpush1.msra.mxu0 0.0
    %5113 = vmatprep.subr.mxu0 0.0
    %5114 = vmatpush1.msra.mxu0 0.0
    %5115 = vmatprep.subr.mxu0 0.0
    %5116 = vmatpush1.msra.mxu0 0.0
    %5117 = vmatprep.subr.mxu0 0.0
    %5118 = vmatpush1.msra.mxu0 0.0
    %5119 = vmatprep.subr.mxu0 0.0
    %5120 = vmatpush1.msra.mxu0 0.0
    %5121 = vmatprep.subr.mxu0 0.0
    %5122 = vmatpush1.msra.mxu0 0.0
    %5123 = vmatprep.subr.mxu0 0.0
    %5124 = vmatpush1.msra.mxu0 0.0
    %5125 = vmatprep.subr.mxu0 0.0
    %5126 = vmatpush1.msra.mxu0 0.0
    %5127 = vmatprep.subr.mxu0 0.0
    %5128 = vmatpush1.msra.mxu0 0.0
    %5129 = vmatprep.subr.mxu0 0.0
    %5130 = vmatpush1.msra.mxu0 0.0
    %5131 = vmatprep.subr.mxu0 0.0
    %5132 = vmatpush1.msra.mxu0 0.0
    %5133 = vmatprep.subr.mxu0 0.0
    %5134 = vmatpush1.msra.mxu0 0.0
    %5135 = vmatprep.subr.mxu0 0.0
    %5136 = vmatpush1.msra.mxu0 0.0
    %5137 = vmatprep.subr.mxu0 0.0
    %5138 = vmatpush1.msra.mxu0 0.0
    %5139 = vmatprep.subr.mxu0 0.0
    %5140 = vmatpush1.msra.mxu0 0.0
    %5141 = vmatprep.subr.mxu0 0.0
    %5142 = vmatpush1.msra.mxu0 0.0
    %5143 = vmatprep.subr.mxu0 0.0
    %5144 = vmatpush1.msra.mxu0 0.0
    %5145 = vmatprep.subr.mxu0 0.0
    %5146 = vmatpush1.msra.mxu0 0.0
    %5147 = vmatprep.subr.mxu0 0.0
    %5148 = vmatpush1.msra.mxu0 0.0
    %5149 = vmatprep.subr.mxu0 0.0
    %5150 = vmatpush1.msra.mxu0 0.0
    %5151 = vmatprep.subr.mxu0 0.0
    %5152 = vmatpush1.msra.mxu0 0.0
    %5153 = vmatprep.subr.mxu0 0.0
    %5154 = vmatpush1.msra.mxu0 0.0
    %5155 = vmatprep.mubr.f32.mxu0 0.0
    %v5156 = vand.u32 %v4661, 4294901760
    %5157 = vmatmul.mubr.f32.gmra.mrb[0].mxu0 %v5156
    %v5158 = vpop.f32.mrb[0].mxu0
    %v5159 = vadd.f32 %v5080, %v5158
    %v5160 = vpop.f32.mrb[0].mxu0
    %5161 = vmatprep.mubr.f32.mxu0 0.0
    %v5162 = vand.u32 %v4664, 4294901760
    %5163 = vmatmul.mubr.f32.gmra.mrb[0].mxu0 %v5162
    %v5164 = vpop.f32.mrb[0].mxu0
    %v5165 = vadd.f32 %v5086, %v5164
    %v5166 = vpop.f32.mrb[0].mxu0
    %5167 = vdwg.mxu0
    %v5168 = vadd.f32 %v4643, %v5159
    %v5169 = vadd.f32 %v4649, %v5165
    %5172 = vrot.lane.b32.xlu0 %v5168, 16
    %v5173 = vpop.permute.xlu0 %5172
    %5174 = vrot.lane.b32.xlu0 %v5169, 16
    %v5175 = vpop.permute.xlu0 %5174
    %5178 = vst.msk [vmem:[#allocation5] sm:$0xff] %vm962, %v5173
    %5179 = vst.msk [vmem:[#allocation5 + $0x8] sm:$0xff] %vm962, %v5175
    %v5180 = vld [vmem:[#allocation5] sm:$0xff]
    %v5181 = vld [vmem:[#allocation5 + $0x8] sm:$0xff]
    %v5182 = vld [vmem:[%s18] sm:$0xff]
    %v5183 = vld [vmem:[%s18 + $0x8] sm:$0xff]
    %5185 = vset.pattern.permute.xlu0 0
    %5186 = vperm.xlu0 %5185, %v5182
    %v5187 = vpop.permute.xlu0 %5186
    %5190 = vset.pattern.permute.xlu0 0
    %5191 = vperm.xlu0 %5190, %v5183
    %v5192 = vpop.permute.xlu0 %5191
    %v5194 = vmul.f32 %v5180, %v5187
    %v5195 = vmul.f32 %v5181, %v5192
    %v5196 = vld [vmem:[%s19] sm:$0xff]
    %v5197 = vld [vmem:[%s19 + $0x8] sm:$0xff]
    %5199 = vset.pattern.permute.xlu0 0
    %5200 = vperm.xlu0 %5199, %v5196
    %v5201 = vpop.permute.xlu0 %5200
    %5204 = vset.pattern.permute.xlu0 0
    %5205 = vperm.xlu0 %5204, %v5197
    %v5206 = vpop.permute.xlu0 %5205
    %v5208 = vadd.f32 %v5194, %v5201
    %v5209 = vadd.f32 %v5195, %v5206
    %v5210 = vxor.u32 %v5208, 2147483648
    %v5211 = vxor.u32 %v5209, 2147483648
    %v5212 = vmul.f32 %v5210, 1.442695
    %v5213 = vpow.pop %v5212
    %v5214 = vmul.f32 %v5211, 1.442695
    %v5215 = vpow.pop %v5214
    %v5216 = vadd.f32 %v5213, 1.0
    %v5217 = vadd.f32 %v5215, 1.0
    %v5218 = vrcp.pop %v5216
    %v5219 = vmul.f32 1.0, %v5218
    %v5220 = vrcp.pop %v5217
    %v5221 = vmul.f32 1.0, %v5220
    %v5222 = vmul.f32 %v5208, %v5219
    %v5223 = vmul.f32 %v5209, %v5221
    %v5224 = vld [vmem:[%s20] sm:$0xff]
    %v5225 = vld [vmem:[%s20 + $0x8] sm:$0xff]
    %v5227 = vsel %vm895, %v5224, 0
    %v5230 = vsel %vm895, %v5225, 0
    %5232 = vmatprep.subr.mxu0 0.0
    %v5233 = vand.u32 %v5222, 4294901760
    %5234 = vmatpush1.msra.mxu0 %v5233
    %5235 = vmatprep.subr.mxu0 0.0
    %v5236 = vand.u32 %v5223, 4294901760
    %5237 = vmatpush1.msra.mxu0 %v5236
    %5238 = vmatprep.subr.mxu0 0.0
    %5239 = vmatpush1.msra.mxu0 0.0
    %5240 = vmatprep.subr.mxu0 0.0
    %5241 = vmatpush1.msra.mxu0 0.0
    %5242 = vmatprep.subr.mxu0 0.0
    %5243 = vmatpush1.msra.mxu0 0.0
    %5244 = vmatprep.subr.mxu0 0.0
    %5245 = vmatpush1.msra.mxu0 0.0
    %5246 = vmatprep.subr.mxu0 0.0
    %5247 = vmatpush1.msra.mxu0 0.0
    %5248 = vmatprep.subr.mxu0 0.0
    %5249 = vmatpush1.msra.mxu0 0.0
    %5250 = vmatprep.subr.mxu0 0.0
    %5251 = vmatpush1.msra.mxu0 0.0
    %5252 = vmatprep.subr.mxu0 0.0
    %5253 = vmatpush1.msra.mxu0 0.0
    %5254 = vmatprep.subr.mxu0 0.0
    %5255 = vmatpush1.msra.mxu0 0.0
    %5256 = vmatprep.subr.mxu0 0.0
    %5257 = vmatpush1.msra.mxu0 0.0
    %5258 = vmatprep.subr.mxu0 0.0
    %5259 = vmatpush1.msra.mxu0 0.0
    %5260 = vmatprep.subr.mxu0 0.0
    %5261 = vmatpush1.msra.mxu0 0.0
    %5262 = vmatprep.subr.mxu0 0.0
    %5263 = vmatpush1.msra.mxu0 0.0
    %5264 = vmatprep.subr.mxu0 0.0
    %5265 = vmatpush1.msra.mxu0 0.0
    %5266 = vmatprep.subr.mxu0 0.0
    %5267 = vmatpush1.msra.mxu0 0.0
    %5268 = vmatprep.subr.mxu0 0.0
    %5269 = vmatpush1.msra.mxu0 0.0
    %5270 = vmatprep.subr.mxu0 0.0
    %5271 = vmatpush1.msra.mxu0 0.0
    %5272 = vmatprep.subr.mxu0 0.0
    %5273 = vmatpush1.msra.mxu0 0.0
    %5274 = vmatprep.subr.mxu0 0.0
    %5275 = vmatpush1.msra.mxu0 0.0
    %5276 = vmatprep.subr.mxu0 0.0
    %5277 = vmatpush1.msra.mxu0 0.0
    %5278 = vmatprep.subr.mxu0 0.0
    %5279 = vmatpush1.msra.mxu0 0.0
    %5280 = vmatprep.subr.mxu0 0.0
    %5281 = vmatpush1.msra.mxu0 0.0
    %5282 = vmatprep.subr.mxu0 0.0
    %5283 = vmatpush1.msra.mxu0 0.0
    %5284 = vmatprep.subr.mxu0 0.0
    %5285 = vmatpush1.msra.mxu0 0.0
    %5286 = vmatprep.subr.mxu0 0.0
    %5287 = vmatpush1.msra.mxu0 0.0
    %5288 = vmatprep.subr.mxu0 0.0
    %5289 = vmatpush1.msra.mxu0 0.0
    %5290 = vmatprep.subr.mxu0 0.0
    %5291 = vmatpush1.msra.mxu0 0.0
    %5292 = vmatprep.subr.mxu0 0.0
    %5293 = vmatpush1.msra.mxu0 0.0
    %5294 = vmatprep.subr.mxu0 0.0
    %5295 = vmatpush1.msra.mxu0 0.0
    %5296 = vmatprep.subr.mxu0 0.0
    %5297 = vmatpush1.msra.mxu0 0.0
    %5298 = vmatprep.mubr.f32.mxu0 0.0
    %v5299 = vand.u32 %v5227, 4294901760
    %v5300 = vsub.f32 %v5227, %v5299
    %v5301 = vand.u32 %v5300, 4294901760
    %v5302 = vsub.f32 %v5300, %v5301
    %v5303 = vand.u32 %v5302, 4294901760
    %5304 = vmatmul.mubr.f32.gmra.mrb[0].mxu0 %v5303
    %v5305 = vpop.f32.mrb[0].mxu0
    %v5306 = vadd.f32 0.0, %v5305
    %v5307 = vpop.f32.mrb[0].mxu0
    %5308 = vmatprep.mubr.f32.mxu0 0.0
    %v5309 = vand.u32 %v5230, 4294901760
    %v5310 = vsub.f32 %v5230, %v5309
    %v5311 = vand.u32 %v5310, 4294901760
    %v5312 = vsub.f32 %v5310, %v5311
    %v5313 = vand.u32 %v5312, 4294901760
    %5314 = vmatmul.mubr.f32.gmra.mrb[0].mxu0 %v5313
    %v5315 = vpop.f32.mrb[0].mxu0
    %v5316 = vadd.f32 0.0, %v5315
    %v5317 = vpop.f32.mrb[0].mxu0
    %5318 = vdwg.mxu0
    %5319 = vmatprep.subr.mxu0 0.0
    %v5320 = vand.u32 %v5222, 4294901760
    %v5321 = vsub.f32 %v5222, %v5320
    %v5322 = vand.u32 %v5321, 4294901760
    %v5323 = vsub.f32 %v5321, %v5322
    %v5324 = vand.u32 %v5323, 4294901760
    %5325 = vmatpush1.msra.mxu0 %v5324
    %5326 = vmatprep.subr.mxu0 0.0
    %v5327 = vand.u32 %v5223, 4294901760
    %v5328 = vsub.f32 %v5223, %v5327
    %v5329 = vand.u32 %v5328, 4294901760
    %v5330 = vsub.f32 %v5328, %v5329
    %v5331 = vand.u32 %v5330, 4294901760
    %5332 = vmatpush1.msra.mxu0 %v5331
    %5333 = vmatprep.subr.mxu0 0.0
    %5334 = vmatpush1.msra.mxu0 0.0
    %5335 = vmatprep.subr.mxu0 0.0
    %5336 = vmatpush1.msra.mxu0 0.0
    %5337 = vmatprep.subr.mxu0 0.0
    %5338 = vmatpush1.msra.mxu0 0.0
    %5339 = vmatprep.subr.mxu0 0.0
    %5340 = vmatpush1.msra.mxu0 0.0
    %5341 = vmatprep.subr.mxu0 0.0
    %5342 = vmatpush1.msra.mxu0 0.0
    %5343 = vmatprep.subr.mxu0 0.0
    %5344 = vmatpush1.msra.mxu0 0.0
    %5345 = vmatprep.subr.mxu0 0.0
    %5346 = vmatpush1.msra.mxu0 0.0
    %5347 = vmatprep.subr.mxu0 0.0
    %5348 = vmatpush1.msra.mxu0 0.0
    %5349 = vmatprep.subr.mxu0 0.0
    %5350 = vmatpush1.msra.mxu0 0.0
    %5351 = vmatprep.subr.mxu0 0.0
    %5352 = vmatpush1.msra.mxu0 0.0
    %5353 = vmatprep.subr.mxu0 0.0
    %5354 = vmatpush1.msra.mxu0 0.0
    %5355 = vmatprep.subr.mxu0 0.0
    %5356 = vmatpush1.msra.mxu0 0.0
    %5357 = vmatprep.subr.mxu0 0.0
    %5358 = vmatpush1.msra.mxu0 0.0
    %5359 = vmatprep.subr.mxu0 0.0
    %5360 = vmatpush1.msra.mxu0 0.0
    %5361 = vmatprep.subr.mxu0 0.0
    %5362 = vmatpush1.msra.mxu0 0.0
    %5363 = vmatprep.subr.mxu0 0.0
    %5364 = vmatpush1.msra.mxu0 0.0
    %5365 = vmatprep.subr.mxu0 0.0
    %5366 = vmatpush1.msra.mxu0 0.0
    %5367 = vmatprep.subr.mxu0 0.0
    %5368 = vmatpush1.msra.mxu0 0.0
    %5369 = vmatprep.subr.mxu0 0.0
    %5370 = vmatpush1.msra.mxu0 0.0
    %5371 = vmatprep.subr.mxu0 0.0
    %5372 = vmatpush1.msra.mxu0 0.0
    %5373 = vmatprep.subr.mxu0 0.0
    %5374 = vmatpush1.msra.mxu0 0.0
    %5375 = vmatprep.subr.mxu0 0.0
    %5376 = vmatpush1.msra.mxu0 0.0
    %5377 = vmatprep.subr.mxu0 0.0
    %5378 = vmatpush1.msra.mxu0 0.0
    %5379 = vmatprep.subr.mxu0 0.0
    %5380 = vmatpush1.msra.mxu0 0.0
    %5381 = vmatprep.subr.mxu0 0.0
    %5382 = vmatpush1.msra.mxu0 0.0
    %5383 = vmatprep.subr.mxu0 0.0
    %5384 = vmatpush1.msra.mxu0 0.0
    %5385 = vmatprep.subr.mxu0 0.0
    %5386 = vmatpush1.msra.mxu0 0.0
    %5387 = vmatprep.subr.mxu0 0.0
    %5388 = vmatpush1.msra.mxu0 0.0
    %5389 = vmatprep.subr.mxu0 0.0
    %5390 = vmatpush1.msra.mxu0 0.0
    %5391 = vmatprep.subr.mxu0 0.0
    %5392 = vmatpush1.msra.mxu0 0.0
    %5393 = vmatprep.mubr.f32.mxu0 0.0
    %v5394 = vand.u32 %v5227, 4294901760
    %5395 = vmatmul.mubr.f32.gmra.mrb[0].mxu0 %v5394
    %v5396 = vpop.f32.mrb[0].mxu0
    %v5397 = vadd.f32 %v5306, %v5396
    %v5398 = vpop.f32.mrb[0].mxu0
    %5399 = vmatprep.mubr.f32.mxu0 0.0
    %v5400 = vand.u32 %v5230, 4294901760
    %5401 = vmatmul.mubr.f32.gmra.mrb[0].mxu0 %v5400
    %v5402 = vpop.f32.mrb[0].mxu0
    %v5403 = vadd.f32 %v5316, %v5402
    %v5404 = vpop.f32.mrb[0].mxu0
    %5405 = vdwg.mxu0
    %5406 = vmatprep.subr.mxu0 0.0
    %v5407 = vand.u32 %v5222, 4294901760
    %v5408 = vsub.f32 %v5222, %v5407
    %5409 = vmatpush1.msra.mxu0 %v5408
    %5410 = vmatprep.subr.mxu0 0.0
    %v5411 = vand.u32 %v5223, 4294901760
    %v5412 = vsub.f32 %v5223, %v5411
    %5413 = vmatpush1.msra.mxu0 %v5412
    %5414 = vmatprep.subr.mxu0 0.0
    %5415 = vmatpush1.msra.mxu0 0.0
    %5416 = vmatprep.subr.mxu0 0.0
    %5417 = vmatpush1.msra.mxu0 0.0
    %5418 = vmatprep.subr.mxu0 0.0
    %5419 = vmatpush1.msra.mxu0 0.0
    %5420 = vmatprep.subr.mxu0 0.0
    %5421 = vmatpush1.msra.mxu0 0.0
    %5422 = vmatprep.subr.mxu0 0.0
    %5423 = vmatpush1.msra.mxu0 0.0
    %5424 = vmatprep.subr.mxu0 0.0
    %5425 = vmatpush1.msra.mxu0 0.0
    %5426 = vmatprep.subr.mxu0 0.0
    %5427 = vmatpush1.msra.mxu0 0.0
    %5428 = vmatprep.subr.mxu0 0.0
    %5429 = vmatpush1.msra.mxu0 0.0
    %5430 = vmatprep.subr.mxu0 0.0
    %5431 = vmatpush1.msra.mxu0 0.0
    %5432 = vmatprep.subr.mxu0 0.0
    %5433 = vmatpush1.msra.mxu0 0.0
    %5434 = vmatprep.subr.mxu0 0.0
    %5435 = vmatpush1.msra.mxu0 0.0
    %5436 = vmatprep.subr.mxu0 0.0
    %5437 = vmatpush1.msra.mxu0 0.0
    %5438 = vmatprep.subr.mxu0 0.0
    %5439 = vmatpush1.msra.mxu0 0.0
    %5440 = vmatprep.subr.mxu0 0.0
    %5441 = vmatpush1.msra.mxu0 0.0
    %5442 = vmatprep.subr.mxu0 0.0
    %5443 = vmatpush1.msra.mxu0 0.0
    %5444 = vmatprep.subr.mxu0 0.0
    %5445 = vmatpush1.msra.mxu0 0.0
    %5446 = vmatprep.subr.mxu0 0.0
    %5447 = vmatpush1.msra.mxu0 0.0
    %5448 = vmatprep.subr.mxu0 0.0
    %5449 = vmatpush1.msra.mxu0 0.0
    %5450 = vmatprep.subr.mxu0 0.0
    %5451 = vmatpush1.msra.mxu0 0.0
    %5452 = vmatprep.subr.mxu0 0.0
    %5453 = vmatpush1.msra.mxu0 0.0
    %5454 = vmatprep.subr.mxu0 0.0
    %5455 = vmatpush1.msra.mxu0 0.0
    %5456 = vmatprep.subr.mxu0 0.0
    %5457 = vmatpush1.msra.mxu0 0.0
    %5458 = vmatprep.subr.mxu0 0.0
    %5459 = vmatpush1.msra.mxu0 0.0
    %5460 = vmatprep.subr.mxu0 0.0
    %5461 = vmatpush1.msra.mxu0 0.0
    %5462 = vmatprep.subr.mxu0 0.0
    %5463 = vmatpush1.msra.mxu0 0.0
    %5464 = vmatprep.subr.mxu0 0.0
    %5465 = vmatpush1.msra.mxu0 0.0
    %5466 = vmatprep.subr.mxu0 0.0
    %5467 = vmatpush1.msra.mxu0 0.0
    %5468 = vmatprep.subr.mxu0 0.0
    %5469 = vmatpush1.msra.mxu0 0.0
    %5470 = vmatprep.subr.mxu0 0.0
    %5471 = vmatpush1.msra.mxu0 0.0
    %5472 = vmatprep.subr.mxu0 0.0
    %5473 = vmatpush1.msra.mxu0 0.0
    %5474 = vmatprep.mubr.f32.mxu0 0.0
    %v5475 = vand.u32 %v5227, 4294901760
    %v5476 = vsub.f32 %v5227, %v5475
    %5477 = vmatmul.mubr.f32.gmra.mrb[0].mxu0 %v5476
    %v5478 = vpop.f32.mrb[0].mxu0
    %v5479 = vadd.f32 %v5397, %v5478
    %v5480 = vpop.f32.mrb[0].mxu0
    %5481 = vmatprep.mubr.f32.mxu0 0.0
    %v5482 = vand.u32 %v5230, 4294901760
    %v5483 = vsub.f32 %v5230, %v5482
    %5484 = vmatmul.mubr.f32.gmra.mrb[0].mxu0 %v5483
    %v5485 = vpop.f32.mrb[0].mxu0
    %v5486 = vadd.f32 %v5403, %v5485
    %v5487 = vpop.f32.mrb[0].mxu0
    %5488 = vdwg.mxu0
    %5489 = vmatprep.subr.mxu0 0.0
    %v5490 = vand.u32 %v5222, 4294901760
    %5491 = vmatpush1.msra.mxu0 %v5490
    %5492 = vmatprep.subr.mxu0 0.0
    %v5493 = vand.u32 %v5223, 4294901760
    %5494 = vmatpush1.msra.mxu0 %v5493
    %5495 = vmatprep.subr.mxu0 0.0
    %5496 = vmatpush1.msra.mxu0 0.0
    %5497 = vmatprep.subr.mxu0 0.0
    %5498 = vmatpush1.msra.mxu0 0.0
    %5499 = vmatprep.subr.mxu0 0.0
    %5500 = vmatpush1.msra.mxu0 0.0
    %5501 = vmatprep.subr.mxu0 0.0
    %5502 = vmatpush1.msra.mxu0 0.0
    %5503 = vmatprep.subr.mxu0 0.0
    %5504 = vmatpush1.msra.mxu0 0.0
    %5505 = vmatprep.subr.mxu0 0.0
    %5506 = vmatpush1.msra.mxu0 0.0
    %5507 = vmatprep.subr.mxu0 0.0
    %5508 = vmatpush1.msra.mxu0 0.0
    %5509 = vmatprep.subr.mxu0 0.0
    %5510 = vmatpush1.msra.mxu0 0.0
    %5511 = vmatprep.subr.mxu0 0.0
    %5512 = vmatpush1.msra.mxu0 0.0
    %5513 = vmatprep.subr.mxu0 0.0
    %5514 = vmatpush1.msra.mxu0 0.0
    %5515 = vmatprep.subr.mxu0 0.0
    %5516 = vmatpush1.msra.mxu0 0.0
    %5517 = vmatprep.subr.mxu0 0.0
    %5518 = vmatpush1.msra.mxu0 0.0
    %5519 = vmatprep.subr.mxu0 0.0
    %5520 = vmatpush1.msra.mxu0 0.0
    %5521 = vmatprep.subr.mxu0 0.0
    %5522 = vmatpush1.msra.mxu0 0.0
    %5523 = vmatprep.subr.mxu0 0.0
    %5524 = vmatpush1.msra.mxu0 0.0
    %5525 = vmatprep.subr.mxu0 0.0
    %5526 = vmatpush1.msra.mxu0 0.0
    %5527 = vmatprep.subr.mxu0 0.0
    %5528 = vmatpush1.msra.mxu0 0.0
    %5529 = vmatprep.subr.mxu0 0.0
    %5530 = vmatpush1.msra.mxu0 0.0
    %5531 = vmatprep.subr.mxu0 0.0
    %5532 = vmatpush1.msra.mxu0 0.0
    %5533 = vmatprep.subr.mxu0 0.0
    %5534 = vmatpush1.msra.mxu0 0.0
    %5535 = vmatprep.subr.mxu0 0.0
    %5536 = vmatpush1.msra.mxu0 0.0
    %5537 = vmatprep.subr.mxu0 0.0
    %5538 = vmatpush1.msra.mxu0 0.0
    %5539 = vmatprep.subr.mxu0 0.0
    %5540 = vmatpush1.msra.mxu0 0.0
    %5541 = vmatprep.subr.mxu0 0.0
    %5542 = vmatpush1.msra.mxu0 0.0
    %5543 = vmatprep.subr.mxu0 0.0
    %5544 = vmatpush1.msra.mxu0 0.0
    %5545 = vmatprep.subr.mxu0 0.0
    %5546 = vmatpush1.msra.mxu0 0.0
    %5547 = vmatprep.subr.mxu0 0.0
    %5548 = vmatpush1.msra.mxu0 0.0
    %5549 = vmatprep.subr.mxu0 0.0
    %5550 = vmatpush1.msra.mxu0 0.0
    %5551 = vmatprep.subr.mxu0 0.0
    %5552 = vmatpush1.msra.mxu0 0.0
    %5553 = vmatprep.subr.mxu0 0.0
    %5554 = vmatpush1.msra.mxu0 0.0
    %5555 = vmatprep.mubr.f32.mxu0 0.0
    %v5556 = vand.u32 %v5227, 4294901760
    %v5557 = vsub.f32 %v5227, %v5556
    %v5558 = vand.u32 %v5557, 4294901760
    %5559 = vmatmul.mubr.f32.gmra.mrb[0].mxu0 %v5558
    %v5560 = vpop.f32.mrb[0].mxu0
    %v5561 = vadd.f32 %v5479, %v5560
    %v5562 = vpop.f32.mrb[0].mxu0
    %5563 = vmatprep.mubr.f32.mxu0 0.0
    %v5564 = vand.u32 %v5230, 4294901760
    %v5565 = vsub.f32 %v5230, %v5564
    %v5566 = vand.u32 %v5565, 4294901760
    %5567 = vmatmul.mubr.f32.gmra.mrb[0].mxu0 %v5566
    %v5568 = vpop.f32.mrb[0].mxu0
    %v5569 = vadd.f32 %v5486, %v5568
    %v5570 = vpop.f32.mrb[0].mxu0
    %5571 = vdwg.mxu0
    %5572 = vmatprep.subr.mxu0 0.0
    %v5573 = vand.u32 %v5222, 4294901760
    %v5574 = vsub.f32 %v5222, %v5573
    %v5575 = vand.u32 %v5574, 4294901760
    %5576 = vmatpush1.msra.mxu0 %v5575
    %5577 = vmatprep.subr.mxu0 0.0
    %v5578 = vand.u32 %v5223, 4294901760
    %v5579 = vsub.f32 %v5223, %v5578
    %v5580 = vand.u32 %v5579, 4294901760
    %5581 = vmatpush1.msra.mxu0 %v5580
    %5582 = vmatprep.subr.mxu0 0.0
    %5583 = vmatpush1.msra.mxu0 0.0
    %5584 = vmatprep.subr.mxu0 0.0
    %5585 = vmatpush1.msra.mxu0 0.0
    %5586 = vmatprep.subr.mxu0 0.0
    %5587 = vmatpush1.msra.mxu0 0.0
    %5588 = vmatprep.subr.mxu0 0.0
    %5589 = vmatpush1.msra.mxu0 0.0
    %5590 = vmatprep.subr.mxu0 0.0
    %5591 = vmatpush1.msra.mxu0 0.0
    %5592 = vmatprep.subr.mxu0 0.0
    %5593 = vmatpush1.msra.mxu0 0.0
    %5594 = vmatprep.subr.mxu0 0.0
    %5595 = vmatpush1.msra.mxu0 0.0
    %5596 = vmatprep.subr.mxu0 0.0
    %5597 = vmatpush1.msra.mxu0 0.0
    %5598 = vmatprep.subr.mxu0 0.0
    %5599 = vmatpush1.msra.mxu0 0.0
    %5600 = vmatprep.subr.mxu0 0.0
    %5601 = vmatpush1.msra.mxu0 0.0
    %5602 = vmatprep.subr.mxu0 0.0
    %5603 = vmatpush1.msra.mxu0 0.0
    %5604 = vmatprep.subr.mxu0 0.0
    %5605 = vmatpush1.msra.mxu0 0.0
    %5606 = vmatprep.subr.mxu0 0.0
    %5607 = vmatpush1.msra.mxu0 0.0
    %5608 = vmatprep.subr.mxu0 0.0
    %5609 = vmatpush1.msra.mxu0 0.0
    %5610 = vmatprep.subr.mxu0 0.0
    %5611 = vmatpush1.msra.mxu0 0.0
    %5612 = vmatprep.subr.mxu0 0.0
    %5613 = vmatpush1.msra.mxu0 0.0
    %5614 = vmatprep.subr.mxu0 0.0
    %5615 = vmatpush1.msra.mxu0 0.0
    %5616 = vmatprep.subr.mxu0 0.0
    %5617 = vmatpush1.msra.mxu0 0.0
    %5618 = vmatprep.subr.mxu0 0.0
    %5619 = vmatpush1.msra.mxu0 0.0
    %5620 = vmatprep.subr.mxu0 0.0
    %5621 = vmatpush1.msra.mxu0 0.0
    %5622 = vmatprep.subr.mxu0 0.0
    %5623 = vmatpush1.msra.mxu0 0.0
    %5624 = vmatprep.subr.mxu0 0.0
    %5625 = vmatpush1.msra.mxu0 0.0
    %5626 = vmatprep.subr.mxu0 0.0
    %5627 = vmatpush1.msra.mxu0 0.0
    %5628 = vmatprep.subr.mxu0 0.0
    %5629 = vmatpush1.msra.mxu0 0.0
    %5630 = vmatprep.subr.mxu0 0.0
    %5631 = vmatpush1.msra.mxu0 0.0
    %5632 = vmatprep.subr.mxu0 0.0
    %5633 = vmatpush1.msra.mxu0 0.0
    %5634 = vmatprep.subr.mxu0 0.0
    %5635 = vmatpush1.msra.mxu0 0.0
    %5636 = vmatprep.subr.mxu0 0.0
    %5637 = vmatpush1.msra.mxu0 0.0
    %5638 = vmatprep.subr.mxu0 0.0
    %5639 = vmatpush1.msra.mxu0 0.0
    %5640 = vmatprep.subr.mxu0 0.0
    %5641 = vmatpush1.msra.mxu0 0.0
    %5642 = vmatprep.mubr.f32.mxu0 0.0
    %v5643 = vand.u32 %v5227, 4294901760
    %5644 = vmatmul.mubr.f32.gmra.mrb[0].mxu0 %v5643
    %v5645 = vpop.f32.mrb[0].mxu0
    %v5646 = vadd.f32 %v5561, %v5645
    %v5647 = vpop.f32.mrb[0].mxu0
    %5648 = vmatprep.mubr.f32.mxu0 0.0
    %v5649 = vand.u32 %v5230, 4294901760
    %5650 = vmatmul.mubr.f32.gmra.mrb[0].mxu0 %v5649
    %v5651 = vpop.f32.mrb[0].mxu0
    %v5652 = vadd.f32 %v5569, %v5651
    %v5653 = vpop.f32.mrb[0].mxu0
    %5654 = vdwg.mxu0
    %5655 = vmatprep.subr.mxu0 0.0
    %v5656 = vand.u32 %v5222, 4294901760
    %5657 = vmatpush1.msra.mxu0 %v5656
    %5658 = vmatprep.subr.mxu0 0.0
    %v5659 = vand.u32 %v5223, 4294901760
    %5660 = vmatpush1.msra.mxu0 %v5659
    %5661 = vmatprep.subr.mxu0 0.0
    %5662 = vmatpush1.msra.mxu0 0.0
    %5663 = vmatprep.subr.mxu0 0.0
    %5664 = vmatpush1.msra.mxu0 0.0
    %5665 = vmatprep.subr.mxu0 0.0
    %5666 = vmatpush1.msra.mxu0 0.0
    %5667 = vmatprep.subr.mxu0 0.0
    %5668 = vmatpush1.msra.mxu0 0.0
    %5669 = vmatprep.subr.mxu0 0.0
    %5670 = vmatpush1.msra.mxu0 0.0
    %5671 = vmatprep.subr.mxu0 0.0
    %5672 = vmatpush1.msra.mxu0 0.0
    %5673 = vmatprep.subr.mxu0 0.0
    %5674 = vmatpush1.msra.mxu0 0.0
    %5675 = vmatprep.subr.mxu0 0.0
    %5676 = vmatpush1.msra.mxu0 0.0
    %5677 = vmatprep.subr.mxu0 0.0
    %5678 = vmatpush1.msra.mxu0 0.0
    %5679 = vmatprep.subr.mxu0 0.0
    %5680 = vmatpush1.msra.mxu0 0.0
    %5681 = vmatprep.subr.mxu0 0.0
    %5682 = vmatpush1.msra.mxu0 0.0
    %5683 = vmatprep.subr.mxu0 0.0
    %5684 = vmatpush1.msra.mxu0 0.0
    %5685 = vmatprep.subr.mxu0 0.0
    %5686 = vmatpush1.msra.mxu0 0.0
    %5687 = vmatprep.subr.mxu0 0.0
    %5688 = vmatpush1.msra.mxu0 0.0
    %5689 = vmatprep.subr.mxu0 0.0
    %5690 = vmatpush1.msra.mxu0 0.0
    %5691 = vmatprep.subr.mxu0 0.0
    %5692 = vmatpush1.msra.mxu0 0.0
    %5693 = vmatprep.subr.mxu0 0.0
    %5694 = vmatpush1.msra.mxu0 0.0
    %5695 = vmatprep.subr.mxu0 0.0
    %5696 = vmatpush1.msra.mxu0 0.0
    %5697 = vmatprep.subr.mxu0 0.0
    %5698 = vmatpush1.msra.mxu0 0.0
    %5699 = vmatprep.subr.mxu0 0.0
    %5700 = vmatpush1.msra.mxu0 0.0
    %5701 = vmatprep.subr.mxu0 0.0
    %5702 = vmatpush1.msra.mxu0 0.0
    %5703 = vmatprep.subr.mxu0 0.0
    %5704 = vmatpush1.msra.mxu0 0.0
    %5705 = vmatprep.subr.mxu0 0.0
    %5706 = vmatpush1.msra.mxu0 0.0
    %5707 = vmatprep.subr.mxu0 0.0
    %5708 = vmatpush1.msra.mxu0 0.0
    %5709 = vmatprep.subr.mxu0 0.0
    %5710 = vmatpush1.msra.mxu0 0.0
    %5711 = vmatprep.subr.mxu0 0.0
    %5712 = vmatpush1.msra.mxu0 0.0
    %5713 = vmatprep.subr.mxu0 0.0
    %5714 = vmatpush1.msra.mxu0 0.0
    %5715 = vmatprep.subr.mxu0 0.0
    %5716 = vmatpush1.msra.mxu0 0.0
    %5717 = vmatprep.subr.mxu0 0.0
    %5718 = vmatpush1.msra.mxu0 0.0
    %5719 = vmatprep.subr.mxu0 0.0
    %5720 = vmatpush1.msra.mxu0 0.0
    %5721 = vmatprep.mubr.f32.mxu0 0.0
    %v5722 = vand.u32 %v5227, 4294901760
    %5723 = vmatmul.mubr.f32.gmra.mrb[0].mxu0 %v5722
    %v5724 = vpop.f32.mrb[0].mxu0
    %v5725 = vadd.f32 %v5646, %v5724
    %v5726 = vpop.f32.mrb[0].mxu0
    %5727 = vmatprep.mubr.f32.mxu0 0.0
    %v5728 = vand.u32 %v5230, 4294901760
    %5729 = vmatmul.mubr.f32.gmra.mrb[0].mxu0 %v5728
    %v5730 = vpop.f32.mrb[0].mxu0
    %v5731 = vadd.f32 %v5652, %v5730
    %v5732 = vpop.f32.mrb[0].mxu0
    %5733 = vdwg.mxu0
    %v5734 = vld [vmem:[%s21] sm:$0xff]
    %v5735 = vld [vmem:[%s21 + $0x8] sm:$0xff]
    %5737 = vset.pattern.permute.xlu0 0
    %5738 = vperm.xlu0 %5737, %v5734
    %v5739 = vpop.permute.xlu0 %5738
    %5742 = vset.pattern.permute.xlu0 0
    %5743 = vperm.xlu0 %5742, %v5735
    %v5744 = vpop.permute.xlu0 %5743
    %v5746 = vmul.f32 %v5725, %v5739
    %v5747 = vmul.f32 %v5731, %v5744
    %v5748 = vld [vmem:[%s22] sm:$0xff]
    %v5749 = vld [vmem:[%s22 + $0x8] sm:$0xff]
    %5751 = vset.pattern.permute.xlu0 0
    %5752 = vperm.xlu0 %5751, %v5748
    %v5753 = vpop.permute.xlu0 %5752
    %5756 = vset.pattern.permute.xlu0 0
    %5757 = vperm.xlu0 %5756, %v5749
    %v5758 = vpop.permute.xlu0 %5757
    %v5760 = vadd.f32 %v5746, %v5753
    %v5761 = vadd.f32 %v5747, %v5758
    %v5762 = vxor.u32 %v5760, 2147483648
    %v5763 = vxor.u32 %v5761, 2147483648
    %v5764 = vmul.f32 %v5762, 1.442695
    %v5765 = vpow.pop %v5764
    %v5766 = vmul.f32 %v5763, 1.442695
    %v5767 = vpow.pop %v5766
    %v5768 = vadd.f32 %v5765, 1.0
    %v5769 = vadd.f32 %v5767, 1.0
    %v5770 = vrcp.pop %v5768
    %v5771 = vmul.f32 1.0, %v5770
    %v5772 = vrcp.pop %v5769
    %v5773 = vmul.f32 1.0, %v5772
    %v5774 = vmul.f32 %v5760, %v5771
    %v5775 = vmul.f32 %v5761, %v5773
    %vm5776 = vcmask 261120
    %5777 = vst.msk [vmem:[%s23] sm:$0xff] %vm5776, %v5774
    %5778 = vst.msk [vmem:[%s23 + $0x8] sm:$0xff] %vm5776, %v5775
    // Predicated region
    $region134: #{tcn_forward.1} parent=1 // pred_check
      _
    $region135: #{tcn_forward.1} parent=1 // pred_check_branch
      %5780 = sbr.rel (0) target = $region137
    $region136: #{tcn_forward.1} parent=1 // pred_region
      _
    $region137: #{tcn_forward.1} parent=1 // pred_fallthru
      _
    // Predicated region
    $region138: #{tcn_forward.1} parent=1 // pred_check
      _
    $region139: #{tcn_forward.1} parent=1 // pred_check_branch
      %5782 = sbr.rel (0) target = $region141
    $region140: #{tcn_forward.1} parent=1 // pred_region
      _
    $region141: #{tcn_forward.1} parent=1 // pred_fallthru
      _
    %5783 = vsyncpa [#allocation7], 1
    %5784 = vsyncpa [#allocation9], 1
    %5785 = vsyncpa [#allocation12], 1
    %5786 = vsyncpa [#allocation15], 1
    %5787 = vsyncpa [#allocation18], 1
    %5788 = vsyncpa [#allocation21], 1

</llo_original>
